<compile_context>
chip_gen: v6e
topology: v6e:2x2x1
jax: 0.10.0
libtpu: 0.0.40
codegen_flags: <defaults>
</compile_context>

<pallas_src>
import functools

import jax
import jax.numpy as jnp
from jax import lax
from jax.experimental import pallas as pl
from jax.experimental.pallas import tpu as pltpu


def _round_up(v, m):
    return ((v + m - 1) // m) * m


# Fixed flattening order of the parameter pytree (all leaves are 2-D f32).
_PARAM_ORDER = (
    ("rcbn1", ("w", "scale", "shift")),
    ("rcbn2", ("w", "scale", "shift")),
    ("rcbn3", ("w", "scale", "shift")),
    ("rcbn4", ("w", "scale", "shift")),
    ("up1_d", ("w", "b")),
    ("up1_c", ("w", "scale", "shift")),
    ("up2_d", ("w", "b")),
    ("up2_c", ("w", "scale", "shift")),
    ("up3_d", ("w", "b")),
    ("up3_c", ("w", "scale", "shift")),
    ("outc", ("w", "scale", "shift")),
)


def _flatten_params(p):
    return [p[layer][leaf] for layer, leaves in _PARAM_ORDER for leaf in leaves]


# ----------------------------------------------------------------------------
# The fused kernel: full UNet3SC forward for one batch element.
# ----------------------------------------------------------------------------
def _unet3sc_kernel(x_ref, *refs, mxu_dtype):
    o_ref, ws, im = refs[-3], refs[-2], refs[-1]
    it = iter(refs[:-3])

    def cast(v):
        return v if mxu_dtype == jnp.float32 else v.astype(mxu_dtype)

    def conv_bn_act(parts, w_ref, scale_ref, shift_ref, K, act):
        """'same' Conv1d over concat(parts) + folded-BN affine + activation.

        parts:   list of (C_i, Lc) f32 values (channel concat, VMEM only)
        w_ref:   (C_out, round8(K * sum C_i))  im2col weight matrix
        returns: (C_out, Lc) f32
        """
        Lc = parts[0].shape[1]
        P = (K - 1) // 2                     # odd K only (true for this model)
        C_in = sum(q.shape[0] for q in parts)
        KC = K * C_in
        KCp = w_ref.shape[1]                 # host pads K*C_in up to mult of 8

        # -- zero-pad the (concatenated) input into the padding workspace.
        if P > 0:
            zpad = jnp.zeros((C_in, P), jnp.float32)
            ws[0:C_in, 0:P] = zpad
            ws[0:C_in, P + Lc:P + Lc + P] = zpad
        row = 0
        for q in parts:
            C = q.shape[0]
            ws[row:row + C, P:P + Lc] = q
            row += C

        # -- im2col: row (k*C_in + c) holds x_pad[c, k : k + Lc].
        if KCp > KC:                          # keep padded contraction rows 0
            im[KC:KCp, 0:Lc] = jnp.zeros((KCp - KC, Lc), jnp.float32)
        for k in range(K):
            im[k * C_in:(k + 1) * C_in, 0:Lc] = ws[0:C_in, k:k + Lc]

        # -- one MXU dot + f32 VPU epilogue.
        patches = im[0:KCp, 0:Lc]
        y = jnp.dot(cast(w_ref[...]), cast(patches),
                    preferred_element_type=jnp.float32)
        y = y * scale_ref[...] + shift_ref[...]
        if act == "relu":
            y = jnp.maximum(y, 0.0)
        else:  # numerically stable softplus
            y = jnp.maximum(y, 0.0) + jnp.log1p(jnp.exp(-jnp.abs(y)))
        return y

    def maxpool(y, p):
        """MaxPool1d(kernel=p, stride=p) via exact 0/1 selection matmuls."""
        _, Lc = y.shape
        Lo = Lc // p
        ri = lax.broadcasted_iota(jnp.int32, (Lc, Lo), 0)
        ci = lax.broadcasted_iota(jnp.int32, (Lc, Lo), 1)
        out = None
        for j in range(p):
            sel = (ri == ci * p + j).astype(jnp.float32)        # (Lc, Lo)
            cand = jnp.dot(y, sel, preferred_element_type=jnp.float32)
            out = cand if out is None else jnp.maximum(out, cand)
        return out

    def deconv(parts, w_ref, b_ref, K):
        """ConvTranspose1d with stride == K (no overlap), interleave in VMEM.

        parts: list of (C_i, Lin) values;  w_ref: (K*C_out, sum C_i);
        b_ref: (C_out, 1).  returns (C_out, K*Lin).
        """
        Lin = parts[0].shape[1]
        Lout = Lin * K
        C_out = b_ref.shape[0]
        ri = lax.broadcasted_iota(jnp.int32, (Lin, Lout), 0)
        ci = lax.broadcasted_iota(jnp.int32, (Lin, Lout), 1)
        w = w_ref[...]
        acc = jnp.zeros((C_out, Lout), jnp.float32)
        for j in range(K):
            wj = w[j * C_out:(j + 1) * C_out, :]               # (C_out, C_in)
            yj = jnp.zeros((C_out, Lin), jnp.float32)
            col = 0
            for q in parts:                                    # split-weight
                C = q.shape[0]                                 # "concat"
                yj = yj + jnp.dot(cast(wj[:, col:col + C]), cast(q),
                                  preferred_element_type=jnp.float32)
                col += C
            # scatter phase j to output lanes i*K + j (exact 0/1 matmul)
            sel = (ci == ri * K + j).astype(jnp.float32)       # (Lin, Lout)
            acc = acc + jnp.dot(yj, sel, preferred_element_type=jnp.float32)
        return acc + b_ref[...]

    # ---------------- forward pass (one batch element) ----------------
    x_in = x_ref[...].astype(jnp.float32)                      # (1, L)

    rcbn1 = (next(it), next(it), next(it))
    rcbn2 = (next(it), next(it), next(it))
    rcbn3 = (next(it), next(it), next(it))
    rcbn4 = (next(it), next(it), next(it))
    up1_d = (next(it), next(it))
    up1_c = (next(it), next(it), next(it))
    up2_d = (next(it), next(it))
    up2_c = (next(it), next(it), next(it))
    up3_d = (next(it), next(it))
    up3_c = (next(it), next(it), next(it))
    outc = (next(it), next(it), next(it))

    x1 = conv_bn_act([x_in], *rcbn1, K=25, act="relu")            # (n, L)
    x2 = maxpool(conv_bn_act([x1], *rcbn2, K=7, act="relu"), 2)   # (n, L/2)
    x3 = maxpool(conv_bn_act([x2], *rcbn3, K=5, act="relu"), 4)   # (n, L/8)
    x4 = maxpool(conv_bn_act([x3], *rcbn4, K=3, act="relu"), 4)   # (n, L/32)

    u = deconv([x4], *up1_d, K=4)                                 # (n, L/8)
    u = conv_bn_act([u], *up1_c, K=5, act="relu")
    u = deconv([u, x3], *up2_d, K=4)                              # (n, L/2)
    u = conv_bn_act([u], *up2_c, K=5, act="relu")
    u = deconv([u, x2], *up3_d, K=2)                              # (n, L)
    u = conv_bn_act([u], *up3_c, K=5, act="relu")

    logits = conv_bn_act([u, x1], *outc, K=5, act="softplus")     # (1, L)
    o_ref[...] = logits.astype(o_ref.dtype)


# ----------------------------------------------------------------------------
# Wrapper
# ----------------------------------------------------------------------------
def unet3sc_forward(x, params, *, mxu_dtype=jnp.float32):
    """x: (B, 1, L), L divisible by 32. Returns softplus(logits).squeeze()."""
    B, c_in, L = x.shape
    assert c_in == 1 and L % 32 == 0, (c_in, L)
    n = int(params["rcbn1"]["scale"].shape[0])
    flat = _flatten_params(params)

    ws_rows = max(8, _round_up(2 * n, 8))           # padded-input workspace
    ws_cols = _round_up(L + 24, 128)                # rcbn1 needs L + 2*12
    im_rows = max(_round_up(25, 8),                 # rcbn1:  K=25, C_in=1
                  _round_up(7 * n, 8),              # rcbn2:  K=7,  C_in=n
                  _round_up(10 * n, 8))             # outc:   K=5,  C_in=2n

    w_map = lambda b: (0, 0)                        # weights: constant block
    in_specs = [pl.BlockSpec((None, 1, L), lambda b: (b, 0, 0))]
    for a in flat:
        in_specs.append(pl.BlockSpec(a.shape, w_map))

    out = pl.pallas_call(
        functools.partial(_unet3sc_kernel, mxu_dtype=mxu_dtype),
        out_shape=jax.ShapeDtypeStruct((B, 1, L), jnp.float32),
        grid=(B,),
        in_specs=in_specs,
        out_specs=pl.BlockSpec((None, 1, L), lambda b: (b, 0, 0)),
        scratch_shapes=[
            pltpu.VMEM((ws_rows, ws_cols), jnp.float32),   # padding workspace
            pltpu.VMEM((im_rows, L), jnp.float32),         # im2col workspace
        ],
        compiler_params=pltpu.CompilerParams(
            dimension_semantics=("parallel",)),
    )(x, *flat)
    return jnp.squeeze(out)


# ----------------------------------------------------------------------------
# Parameter construction (deterministic, synthetic; BN folded in eval mode)
# ----------------------------------------------------------------------------
def _conv_init(key, cin, cout, k):
    k1, k2 = jax.random.split(key)
    w = jax.random.normal(k1, (cout, cin, k), jnp.float32) / jnp.sqrt(cin * k)
    b = 0.05 * jax.random.normal(k2, (cout,), jnp.float32)
    return w, b


def _bn_init(key, c):
    k1, k2, k3, k4 = jax.random.split(key, 4)
    gamma = 1.0 + 0.1 * jax.random.normal(k1, (c,), jnp.float32)
    beta = 0.1 * jax.random.normal(k2, (c,), jnp.float32)
    mean = 0.1 * jax.random.normal(k3, (c,), jnp.float32)
    var = 0.5 + jax.random.uniform(k4, (c,), jnp.float32)
    return gamma, beta, mean, var


def _conv_to_mat(w):
    """(C_out, C_in, K) torch layout -> (C_out, round8(K*C_in)) im2col matrix."""
    cout, cin, k = w.shape
    m = jnp.transpose(w, (0, 2, 1)).reshape(cout, k * cin)   # [co, k*cin + ci]
    kcp = _round_up(k * cin, 8)
    if kcp > k * cin:
        m = jnp.pad(m, ((0, 0), (0, kcp - k * cin)))
    return m


def _make_cbr(key, cin, cout, k, eps=1e-5):
    kc, kb = jax.random.split(key)
    w, b = _conv_init(kc, cin, cout, k)
    gamma, beta, mean, var = _bn_init(kb, cout)
    scale = gamma / jnp.sqrt(var + eps)
    shift = beta + scale * (b - mean)
    return dict(w=_conv_to_mat(w), scale=scale[:, None], shift=shift[:, None])


def _make_deconv(key, cin, cout, k):
    k1, k2 = jax.random.split(key)
    w = jax.random.normal(k1, (cin, cout, k), jnp.float32) / jnp.sqrt(cin * k)
    b = 0.05 * jax.random.normal(k2, (cout,), jnp.float32)
    w2d = jnp.transpose(w, (2, 1, 0)).reshape(k * cout, cin)  # [j*cout+co, ci]
    return dict(w=w2d, b=b[:, None])


def init_unet3sc_params(key, n=24):
    keys = jax.random.split(key, 11)
    p = {}
    p["rcbn1"] = _make_cbr(keys[0], 1, n, 25)
    p["rcbn2"] = _make_cbr(keys[1], n, n, 7)
    p["rcbn3"] = _make_cbr(keys[2], n, n, 5)
    p["rcbn4"] = _make_cbr(keys[3], n, n, 3)
    p["up1_d"] = _make_deconv(keys[4], n, n, 4)
    p["up1_c"] = _make_cbr(keys[5], n, n, 5)
    p["up2_d"] = _make_deconv(keys[6], 2 * n, n, 4)
    p["up2_c"] = _make_cbr(keys[7], n, n, 5)
    p["up3_d"] = _make_deconv(keys[8], 2 * n, n, 2)
    p["up3_c"] = _make_cbr(keys[9], n, n, 5)
    w_out, b_out = _conv_init(keys[10], 2 * n, 1, 5)
    p["outc"] = dict(w=_conv_to_mat(w_out),
                     scale=jnp.ones((1, 1), jnp.float32),
                     shift=b_out[:, None])
    return p


# ----------------------------------------------------------------------------
# Demo
# ----------------------------------------------------------------------------
if __name__ == "__main__":
    key = jax.random.PRNGKey(0)
    k_param, k_input = jax.random.split(key)

    B, L, n = 2, 256, 24
    params = init_unet3sc_params(k_param, n=n)
    x = jax.random.normal(k_input, (B, 1, L), jnp.float32)

    # Default f32 MXU operands keep parity with the PyTorch reference; on
    # v6e/v7x pass mxu_dtype=jnp.bfloat16 for bf16-operand / f32-accumulate dots.
    fwd = jax.jit(functools.partial(unet3sc_forward, mxu_dtype=jnp.float32))
    out = jax.block_until_ready(fwd(x, params))

    assert out.shape == (B, L), out.shape
    assert bool(jnp.all(jnp.isfinite(out)))
    assert bool(jnp.all(out >= 0.0))   # softplus output is non-negative
    print("KERNEL_OK")
</pallas_src>

<mosaic_0001>
module attributes {stable_mosaic.version = 11 : i64} {
  func.func @_unet3sc_kernel(%arg0: i32, %arg1: memref<1x1x256xf32, #tpu.memory_space<vmem>>, %arg2: memref<24x32xf32, #tpu.memory_space<vmem>>, %arg3: memref<24x1xf32, #tpu.memory_space<vmem>>, %arg4: memref<24x1xf32, #tpu.memory_space<vmem>>, %arg5: memref<24x168xf32, #tpu.memory_space<vmem>>, %arg6: memref<24x1xf32, #tpu.memory_space<vmem>>, %arg7: memref<24x1xf32, #tpu.memory_space<vmem>>, %arg8: memref<24x120xf32, #tpu.memory_space<vmem>>, %arg9: memref<24x1xf32, #tpu.memory_space<vmem>>, %arg10: memref<24x1xf32, #tpu.memory_space<vmem>>, %arg11: memref<24x72xf32, #tpu.memory_space<vmem>>, %arg12: memref<24x1xf32, #tpu.memory_space<vmem>>, %arg13: memref<24x1xf32, #tpu.memory_space<vmem>>, %arg14: memref<96x24xf32, #tpu.memory_space<vmem>>, %arg15: memref<24x1xf32, #tpu.memory_space<vmem>>, %arg16: memref<24x120xf32, #tpu.memory_space<vmem>>, %arg17: memref<24x1xf32, #tpu.memory_space<vmem>>, %arg18: memref<24x1xf32, #tpu.memory_space<vmem>>, %arg19: memref<96x48xf32, #tpu.memory_space<vmem>>, %arg20: memref<24x1xf32, #tpu.memory_space<vmem>>, %arg21: memref<24x120xf32, #tpu.memory_space<vmem>>, %arg22: memref<24x1xf32, #tpu.memory_space<vmem>>, %arg23: memref<24x1xf32, #tpu.memory_space<vmem>>, %arg24: memref<48x48xf32, #tpu.memory_space<vmem>>, %arg25: memref<24x1xf32, #tpu.memory_space<vmem>>, %arg26: memref<24x120xf32, #tpu.memory_space<vmem>>, %arg27: memref<24x1xf32, #tpu.memory_space<vmem>>, %arg28: memref<24x1xf32, #tpu.memory_space<vmem>>, %arg29: memref<1x240xf32, #tpu.memory_space<vmem>>, %arg30: memref<1x1xf32, #tpu.memory_space<vmem>>, %arg31: memref<1x1xf32, #tpu.memory_space<vmem>>, %arg32: memref<1x1x256xf32, #tpu.memory_space<vmem>>, %arg33: memref<48x384xf32, #tpu.memory_space<vmem>>, %arg34: memref<240x256xf32, #tpu.memory_space<vmem>>) attributes {dimension_semantics = [#tpu.dimension_semantics<parallel>], iteration_bounds = array<i64: 2>, scalar_prefetch = 0 : i64, scratch_operands = 2 : i64, tpu.core_type = #tpu.core_type<tc>, window_params = [{transform_indices = @transform_0, window_bounds = array<i64: 1, 1, 256>}, {pipeline_mode = #tpu.pipeline_mode<synchronous>, transform_indices = @transform_1, window_bounds = array<i64: 24, 32>}, {pipeline_mode = #tpu.pipeline_mode<synchronous>, transform_indices = @transform_2, window_bounds = array<i64: 24, 1>}, {pipeline_mode = #tpu.pipeline_mode<synchronous>, transform_indices = @transform_3, window_bounds = array<i64: 24, 1>}, {pipeline_mode = #tpu.pipeline_mode<synchronous>, transform_indices = @transform_4, window_bounds = array<i64: 24, 168>}, {pipeline_mode = #tpu.pipeline_mode<synchronous>, transform_indices = @transform_5, window_bounds = array<i64: 24, 1>}, {pipeline_mode = #tpu.pipeline_mode<synchronous>, transform_indices = @transform_6, window_bounds = array<i64: 24, 1>}, {pipeline_mode = #tpu.pipeline_mode<synchronous>, transform_indices = @transform_7, window_bounds = array<i64: 24, 120>}, {pipeline_mode = #tpu.pipeline_mode<synchronous>, transform_indices = @transform_8, window_bounds = array<i64: 24, 1>}, {pipeline_mode = #tpu.pipeline_mode<synchronous>, transform_indices = @transform_9, window_bounds = array<i64: 24, 1>}, {pipeline_mode = #tpu.pipeline_mode<synchronous>, transform_indices = @transform_10, window_bounds = array<i64: 24, 72>}, {pipeline_mode = #tpu.pipeline_mode<synchronous>, transform_indices = @transform_11, window_bounds = array<i64: 24, 1>}, {pipeline_mode = #tpu.pipeline_mode<synchronous>, transform_indices = @transform_12, window_bounds = array<i64: 24, 1>}, {pipeline_mode = #tpu.pipeline_mode<synchronous>, transform_indices = @transform_13, window_bounds = array<i64: 96, 24>}, {pipeline_mode = #tpu.pipeline_mode<synchronous>, transform_indices = @transform_14, window_bounds = array<i64: 24, 1>}, {pipeline_mode = #tpu.pipeline_mode<synchronous>, transform_indices = @transform_15, window_bounds = array<i64: 24, 120>}, {pipeline_mode = #tpu.pipeline_mode<synchronous>, transform_indices = @transform_16, window_bounds = array<i64: 24, 1>}, {pipeline_mode = #tpu.pipeline_mode<synchronous>, transform_indices = @transform_17, window_bounds = array<i64: 24, 1>}, {pipeline_mode = #tpu.pipeline_mode<synchronous>, transform_indices = @transform_18, window_bounds = array<i64: 96, 48>}, {pipeline_mode = #tpu.pipeline_mode<synchronous>, transform_indices = @transform_19, window_bounds = array<i64: 24, 1>}, {pipeline_mode = #tpu.pipeline_mode<synchronous>, transform_indices = @transform_20, window_bounds = array<i64: 24, 120>}, {pipeline_mode = #tpu.pipeline_mode<synchronous>, transform_indices = @transform_21, window_bounds = array<i64: 24, 1>}, {pipeline_mode = #tpu.pipeline_mode<synchronous>, transform_indices = @transform_22, window_bounds = array<i64: 24, 1>}, {pipeline_mode = #tpu.pipeline_mode<synchronous>, transform_indices = @transform_23, window_bounds = array<i64: 48, 48>}, {pipeline_mode = #tpu.pipeline_mode<synchronous>, transform_indices = @transform_24, window_bounds = array<i64: 24, 1>}, {pipeline_mode = #tpu.pipeline_mode<synchronous>, transform_indices = @transform_25, window_bounds = array<i64: 24, 120>}, {pipeline_mode = #tpu.pipeline_mode<synchronous>, transform_indices = @transform_26, window_bounds = array<i64: 24, 1>}, {pipeline_mode = #tpu.pipeline_mode<synchronous>, transform_indices = @transform_27, window_bounds = array<i64: 24, 1>}, {pipeline_mode = #tpu.pipeline_mode<synchronous>, transform_indices = @transform_28, window_bounds = array<i64: 1, 240>}, {pipeline_mode = #tpu.pipeline_mode<synchronous>, transform_indices = @transform_29, window_bounds = array<i64: 1, 1>}, {pipeline_mode = #tpu.pipeline_mode<synchronous>, transform_indices = @transform_30, window_bounds = array<i64: 1, 1>}, {transform_indices = @transform_31, window_bounds = array<i64: 1, 1, 256>}]} {
    %c0 = arith.constant 0 : index
    %c0_0 = arith.constant 0 : index
    %c0_1 = arith.constant 0 : index
    %0 = vector.load %arg1[%c0, %c0_0, %c0_1] : memref<1x1x256xf32, #tpu.memory_space<vmem>>, vector<1x1x256xf32>
    %1 = vector.shape_cast %0 : vector<1x1x256xf32> to vector<1x256xf32>
    %cst = arith.constant 0.000000e+00 : f32
    %2 = vector.broadcast %cst : f32 to vector<1x12xf32>
    %c0_2 = arith.constant 0 : index
    %c0_3 = arith.constant 0 : index
    %3 = vector.load %arg33[%c0_2, %c0_3] : memref<48x384xf32, #tpu.memory_space<vmem>>, vector<1x12xf32>
    tpu.vector_store %arg33[%c0_2, %c0_3], %2 {strides = array<i32>} : memref<48x384xf32, #tpu.memory_space<vmem>>, vector<1x12xf32>,
    %c0_4 = arith.constant 0 : index
    %c268 = arith.constant 268 : index
    %4 = vector.load %arg33[%c0_4, %c268] : memref<48x384xf32, #tpu.memory_space<vmem>>, vector<1x12xf32>
    tpu.vector_store %arg33[%c0_4, %c268], %2 {strides = array<i32>} : memref<48x384xf32, #tpu.memory_space<vmem>>, vector<1x12xf32>,
    %c0_5 = arith.constant 0 : index
    %c12 = arith.constant 12 : index
    %5 = vector.load %arg33[%c0_5, %c12] : memref<48x384xf32, #tpu.memory_space<vmem>>, vector<1x256xf32>
    tpu.vector_store %arg33[%c0_5, %c12], %1 {strides = array<i32>} : memref<48x384xf32, #tpu.memory_space<vmem>>, vector<1x256xf32>,
    %cst_6 = arith.constant 0.000000e+00 : f32
    %6 = vector.broadcast %cst_6 : f32 to vector<7x256xf32>
    %c25 = arith.constant 25 : index
    %c0_7 = arith.constant 0 : index
    %7 = vector.load %arg34[%c25, %c0_7] : memref<240x256xf32, #tpu.memory_space<vmem>>, vector<7x256xf32>
    tpu.vector_store %arg34[%c25, %c0_7], %6 {strides = array<i32>} : memref<240x256xf32, #tpu.memory_space<vmem>>, vector<7x256xf32>,
    %c0_8 = arith.constant 0 : index
    %c0_9 = arith.constant 0 : index
    %8 = vector.load %arg33[%c0_8, %c0_9] : memref<48x384xf32, #tpu.memory_space<vmem>>, vector<1x256xf32>
    %c0_10 = arith.constant 0 : index
    %c0_11 = arith.constant 0 : index
    %9 = vector.load %arg34[%c0_10, %c0_11] : memref<240x256xf32, #tpu.memory_space<vmem>>, vector<1x256xf32>
    tpu.vector_store %arg34[%c0_10, %c0_11], %8 {strides = array<i32>} : memref<240x256xf32, #tpu.memory_space<vmem>>, vector<1x256xf32>,
    %c0_12 = arith.constant 0 : index
    %c1 = arith.constant 1 : index
    %10 = vector.load %arg33[%c0_12, %c1] : memref<48x384xf32, #tpu.memory_space<vmem>>, vector<1x256xf32>
    %c1_13 = arith.constant 1 : index
    %c0_14 = arith.constant 0 : index
    %11 = vector.load %arg34[%c1_13, %c0_14] : memref<240x256xf32, #tpu.memory_space<vmem>>, vector<1x256xf32>
    tpu.vector_store %arg34[%c1_13, %c0_14], %10 {strides = array<i32>} : memref<240x256xf32, #tpu.memory_space<vmem>>, vector<1x256xf32>,
    %c0_15 = arith.constant 0 : index
    %c2 = arith.constant 2 : index
    %12 = vector.load %arg33[%c0_15, %c2] : memref<48x384xf32, #tpu.memory_space<vmem>>, vector<1x256xf32>
    %c2_16 = arith.constant 2 : index
    %c0_17 = arith.constant 0 : index
    %13 = vector.load %arg34[%c2_16, %c0_17] : memref<240x256xf32, #tpu.memory_space<vmem>>, vector<1x256xf32>
    tpu.vector_store %arg34[%c2_16, %c0_17], %12 {strides = array<i32>} : memref<240x256xf32, #tpu.memory_space<vmem>>, vector<1x256xf32>,
    %c0_18 = arith.constant 0 : index
    %c3 = arith.constant 3 : index
    %14 = vector.load %arg33[%c0_18, %c3] : memref<48x384xf32, #tpu.memory_space<vmem>>, vector<1x256xf32>
    %c3_19 = arith.constant 3 : index
    %c0_20 = arith.constant 0 : index
    %15 = vector.load %arg34[%c3_19, %c0_20] : memref<240x256xf32, #tpu.memory_space<vmem>>, vector<1x256xf32>
    tpu.vector_store %arg34[%c3_19, %c0_20], %14 {strides = array<i32>} : memref<240x256xf32, #tpu.memory_space<vmem>>, vector<1x256xf32>,
    %c0_21 = arith.constant 0 : index
    %c4 = arith.constant 4 : index
    %16 = vector.load %arg33[%c0_21, %c4] : memref<48x384xf32, #tpu.memory_space<vmem>>, vector<1x256xf32>
    %c4_22 = arith.constant 4 : index
    %c0_23 = arith.constant 0 : index
    %17 = vector.load %arg34[%c4_22, %c0_23] : memref<240x256xf32, #tpu.memory_space<vmem>>, vector<1x256xf32>
    tpu.vector_store %arg34[%c4_22, %c0_23], %16 {strides = array<i32>} : memref<240x256xf32, #tpu.memory_space<vmem>>, vector<1x256xf32>,
    %c0_24 = arith.constant 0 : index
    %c5 = arith.constant 5 : index
    %18 = vector.load %arg33[%c0_24, %c5] : memref<48x384xf32, #tpu.memory_space<vmem>>, vector<1x256xf32>
    %c5_25 = arith.constant 5 : index
    %c0_26 = arith.constant 0 : index
    %19 = vector.load %arg34[%c5_25, %c0_26] : memref<240x256xf32, #tpu.memory_space<vmem>>, vector<1x256xf32>
    tpu.vector_store %arg34[%c5_25, %c0_26], %18 {strides = array<i32>} : memref<240x256xf32, #tpu.memory_space<vmem>>, vector<1x256xf32>,
    %c0_27 = arith.constant 0 : index
    %c6 = arith.constant 6 : index
    %20 = vector.load %arg33[%c0_27, %c6] : memref<48x384xf32, #tpu.memory_space<vmem>>, vector<1x256xf32>
    %c6_28 = arith.constant 6 : index
    %c0_29 = arith.constant 0 : index
    %21 = vector.load %arg34[%c6_28, %c0_29] : memref<240x256xf32, #tpu.memory_space<vmem>>, vector<1x256xf32>
    tpu.vector_store %arg34[%c6_28, %c0_29], %20 {strides = array<i32>} : memref<240x256xf32, #tpu.memory_space<vmem>>, vector<1x256xf32>,
    %c0_30 = arith.constant 0 : index
    %c7 = arith.constant 7 : index
    %22 = vector.load %arg33[%c0_30, %c7] : memref<48x384xf32, #tpu.memory_space<vmem>>, vector<1x256xf32>
    %c7_31 = arith.constant 7 : index
    %c0_32 = arith.constant 0 : index
    %23 = vector.load %arg34[%c7_31, %c0_32] : memref<240x256xf32, #tpu.memory_space<vmem>>, vector<1x256xf32>
    tpu.vector_store %arg34[%c7_31, %c0_32], %22 {strides = array<i32>} : memref<240x256xf32, #tpu.memory_space<vmem>>, vector<1x256xf32>,
    %c0_33 = arith.constant 0 : index
    %c8 = arith.constant 8 : index
    %24 = vector.load %arg33[%c0_33, %c8] : memref<48x384xf32, #tpu.memory_space<vmem>>, vector<1x256xf32>
    %c8_34 = arith.constant 8 : index
    %c0_35 = arith.constant 0 : index
    %25 = vector.load %arg34[%c8_34, %c0_35] : memref<240x256xf32, #tpu.memory_space<vmem>>, vector<1x256xf32>
    tpu.vector_store %arg34[%c8_34, %c0_35], %24 {strides = array<i32>} : memref<240x256xf32, #tpu.memory_space<vmem>>, vector<1x256xf32>,
    %c0_36 = arith.constant 0 : index
    %c9 = arith.constant 9 : index
    %26 = vector.load %arg33[%c0_36, %c9] : memref<48x384xf32, #tpu.memory_space<vmem>>, vector<1x256xf32>
    %c9_37 = arith.constant 9 : index
    %c0_38 = arith.constant 0 : index
    %27 = vector.load %arg34[%c9_37, %c0_38] : memref<240x256xf32, #tpu.memory_space<vmem>>, vector<1x256xf32>
    tpu.vector_store %arg34[%c9_37, %c0_38], %26 {strides = array<i32>} : memref<240x256xf32, #tpu.memory_space<vmem>>, vector<1x256xf32>,
    %c0_39 = arith.constant 0 : index
    %c10 = arith.constant 10 : index
    %28 = vector.load %arg33[%c0_39, %c10] : memref<48x384xf32, #tpu.memory_space<vmem>>, vector<1x256xf32>
    %c10_40 = arith.constant 10 : index
    %c0_41 = arith.constant 0 : index
    %29 = vector.load %arg34[%c10_40, %c0_41] : memref<240x256xf32, #tpu.memory_space<vmem>>, vector<1x256xf32>
    tpu.vector_store %arg34[%c10_40, %c0_41], %28 {strides = array<i32>} : memref<240x256xf32, #tpu.memory_space<vmem>>, vector<1x256xf32>,
    %c0_42 = arith.constant 0 : index
    %c11 = arith.constant 11 : index
    %30 = vector.load %arg33[%c0_42, %c11] : memref<48x384xf32, #tpu.memory_space<vmem>>, vector<1x256xf32>
    %c11_43 = arith.constant 11 : index
    %c0_44 = arith.constant 0 : index
    %31 = vector.load %arg34[%c11_43, %c0_44] : memref<240x256xf32, #tpu.memory_space<vmem>>, vector<1x256xf32>
    tpu.vector_store %arg34[%c11_43, %c0_44], %30 {strides = array<i32>} : memref<240x256xf32, #tpu.memory_space<vmem>>, vector<1x256xf32>,
    %c0_45 = arith.constant 0 : index
    %c12_46 = arith.constant 12 : index
    %32 = vector.load %arg33[%c0_45, %c12_46] : memref<48x384xf32, #tpu.memory_space<vmem>>, vector<1x256xf32>
    %c12_47 = arith.constant 12 : index
    %c0_48 = arith.constant 0 : index
    %33 = vector.load %arg34[%c12_47, %c0_48] : memref<240x256xf32, #tpu.memory_space<vmem>>, vector<1x256xf32>
    tpu.vector_store %arg34[%c12_47, %c0_48], %32 {strides = array<i32>} : memref<240x256xf32, #tpu.memory_space<vmem>>, vector<1x256xf32>,
    %c0_49 = arith.constant 0 : index
    %c13 = arith.constant 13 : index
    %34 = vector.load %arg33[%c0_49, %c13] : memref<48x384xf32, #tpu.memory_space<vmem>>, vector<1x256xf32>
    %c13_50 = arith.constant 13 : index
    %c0_51 = arith.constant 0 : index
    %35 = vector.load %arg34[%c13_50, %c0_51] : memref<240x256xf32, #tpu.memory_space<vmem>>, vector<1x256xf32>
    tpu.vector_store %arg34[%c13_50, %c0_51], %34 {strides = array<i32>} : memref<240x256xf32, #tpu.memory_space<vmem>>, vector<1x256xf32>,
    %c0_52 = arith.constant 0 : index
    %c14 = arith.constant 14 : index
    %36 = vector.load %arg33[%c0_52, %c14] : memref<48x384xf32, #tpu.memory_space<vmem>>, vector<1x256xf32>
    %c14_53 = arith.constant 14 : index
    %c0_54 = arith.constant 0 : index
    %37 = vector.load %arg34[%c14_53, %c0_54] : memref<240x256xf32, #tpu.memory_space<vmem>>, vector<1x256xf32>
    tpu.vector_store %arg34[%c14_53, %c0_54], %36 {strides = array<i32>} : memref<240x256xf32, #tpu.memory_space<vmem>>, vector<1x256xf32>,
    %c0_55 = arith.constant 0 : index
    %c15 = arith.constant 15 : index
    %38 = vector.load %arg33[%c0_55, %c15] : memref<48x384xf32, #tpu.memory_space<vmem>>, vector<1x256xf32>
    %c15_56 = arith.constant 15 : index
    %c0_57 = arith.constant 0 : index
    %39 = vector.load %arg34[%c15_56, %c0_57] : memref<240x256xf32, #tpu.memory_space<vmem>>, vector<1x256xf32>
    tpu.vector_store %arg34[%c15_56, %c0_57], %38 {strides = array<i32>} : memref<240x256xf32, #tpu.memory_space<vmem>>, vector<1x256xf32>,
    %c0_58 = arith.constant 0 : index
    %c16 = arith.constant 16 : index
    %40 = vector.load %arg33[%c0_58, %c16] : memref<48x384xf32, #tpu.memory_space<vmem>>, vector<1x256xf32>
    %c16_59 = arith.constant 16 : index
    %c0_60 = arith.constant 0 : index
    %41 = vector.load %arg34[%c16_59, %c0_60] : memref<240x256xf32, #tpu.memory_space<vmem>>, vector<1x256xf32>
    tpu.vector_store %arg34[%c16_59, %c0_60], %40 {strides = array<i32>} : memref<240x256xf32, #tpu.memory_space<vmem>>, vector<1x256xf32>,
    %c0_61 = arith.constant 0 : index
    %c17 = arith.constant 17 : index
    %42 = vector.load %arg33[%c0_61, %c17] : memref<48x384xf32, #tpu.memory_space<vmem>>, vector<1x256xf32>
    %c17_62 = arith.constant 17 : index
    %c0_63 = arith.constant 0 : index
    %43 = vector.load %arg34[%c17_62, %c0_63] : memref<240x256xf32, #tpu.memory_space<vmem>>, vector<1x256xf32>
    tpu.vector_store %arg34[%c17_62, %c0_63], %42 {strides = array<i32>} : memref<240x256xf32, #tpu.memory_space<vmem>>, vector<1x256xf32>,
    %c0_64 = arith.constant 0 : index
    %c18 = arith.constant 18 : index
    %44 = vector.load %arg33[%c0_64, %c18] : memref<48x384xf32, #tpu.memory_space<vmem>>, vector<1x256xf32>
    %c18_65 = arith.constant 18 : index
    %c0_66 = arith.constant 0 : index
    %45 = vector.load %arg34[%c18_65, %c0_66] : memref<240x256xf32, #tpu.memory_space<vmem>>, vector<1x256xf32>
    tpu.vector_store %arg34[%c18_65, %c0_66], %44 {strides = array<i32>} : memref<240x256xf32, #tpu.memory_space<vmem>>, vector<1x256xf32>,
    %c0_67 = arith.constant 0 : index
    %c19 = arith.constant 19 : index
    %46 = vector.load %arg33[%c0_67, %c19] : memref<48x384xf32, #tpu.memory_space<vmem>>, vector<1x256xf32>
    %c19_68 = arith.constant 19 : index
    %c0_69 = arith.constant 0 : index
    %47 = vector.load %arg34[%c19_68, %c0_69] : memref<240x256xf32, #tpu.memory_space<vmem>>, vector<1x256xf32>
    tpu.vector_store %arg34[%c19_68, %c0_69], %46 {strides = array<i32>} : memref<240x256xf32, #tpu.memory_space<vmem>>, vector<1x256xf32>,
    %c0_70 = arith.constant 0 : index
    %c20 = arith.constant 20 : index
    %48 = vector.load %arg33[%c0_70, %c20] : memref<48x384xf32, #tpu.memory_space<vmem>>, vector<1x256xf32>
    %c20_71 = arith.constant 20 : index
    %c0_72 = arith.constant 0 : index
    %49 = vector.load %arg34[%c20_71, %c0_72] : memref<240x256xf32, #tpu.memory_space<vmem>>, vector<1x256xf32>
    tpu.vector_store %arg34[%c20_71, %c0_72], %48 {strides = array<i32>} : memref<240x256xf32, #tpu.memory_space<vmem>>, vector<1x256xf32>,
    %c0_73 = arith.constant 0 : index
    %c21 = arith.constant 21 : index
    %50 = vector.load %arg33[%c0_73, %c21] : memref<48x384xf32, #tpu.memory_space<vmem>>, vector<1x256xf32>
    %c21_74 = arith.constant 21 : index
    %c0_75 = arith.constant 0 : index
    %51 = vector.load %arg34[%c21_74, %c0_75] : memref<240x256xf32, #tpu.memory_space<vmem>>, vector<1x256xf32>
    tpu.vector_store %arg34[%c21_74, %c0_75], %50 {strides = array<i32>} : memref<240x256xf32, #tpu.memory_space<vmem>>, vector<1x256xf32>,
    %c0_76 = arith.constant 0 : index
    %c22 = arith.constant 22 : index
    %52 = vector.load %arg33[%c0_76, %c22] : memref<48x384xf32, #tpu.memory_space<vmem>>, vector<1x256xf32>
    %c22_77 = arith.constant 22 : index
    %c0_78 = arith.constant 0 : index
    %53 = vector.load %arg34[%c22_77, %c0_78] : memref<240x256xf32, #tpu.memory_space<vmem>>, vector<1x256xf32>
    tpu.vector_store %arg34[%c22_77, %c0_78], %52 {strides = array<i32>} : memref<240x256xf32, #tpu.memory_space<vmem>>, vector<1x256xf32>,
    %c0_79 = arith.constant 0 : index
    %c23 = arith.constant 23 : index
    %54 = vector.load %arg33[%c0_79, %c23] : memref<48x384xf32, #tpu.memory_space<vmem>>, vector<1x256xf32>
    %c23_80 = arith.constant 23 : index
    %c0_81 = arith.constant 0 : index
    %55 = vector.load %arg34[%c23_80, %c0_81] : memref<240x256xf32, #tpu.memory_space<vmem>>, vector<1x256xf32>
    tpu.vector_store %arg34[%c23_80, %c0_81], %54 {strides = array<i32>} : memref<240x256xf32, #tpu.memory_space<vmem>>, vector<1x256xf32>,
    %c0_82 = arith.constant 0 : index
    %c24 = arith.constant 24 : index
    %56 = vector.load %arg33[%c0_82, %c24] : memref<48x384xf32, #tpu.memory_space<vmem>>, vector<1x256xf32>
    %c24_83 = arith.constant 24 : index
    %c0_84 = arith.constant 0 : index
    %57 = vector.load %arg34[%c24_83, %c0_84] : memref<240x256xf32, #tpu.memory_space<vmem>>, vector<1x256xf32>
    tpu.vector_store %arg34[%c24_83, %c0_84], %56 {strides = array<i32>} : memref<240x256xf32, #tpu.memory_space<vmem>>, vector<1x256xf32>,
    %c0_85 = arith.constant 0 : index
    %c0_86 = arith.constant 0 : index
    %58 = vector.load %arg34[%c0_85, %c0_86] : memref<240x256xf32, #tpu.memory_space<vmem>>, vector<32x256xf32>
    %c0_87 = arith.constant 0 : index
    %c0_88 = arith.constant 0 : index
    %59 = vector.load %arg2[%c0_87, %c0_88] : memref<24x32xf32, #tpu.memory_space<vmem>>, vector<24x32xf32>
    %cst_89 = arith.constant dense<0.000000e+00> : vector<24x256xf32>
    %60 = tpu.matmul %59, %58, %cst_89 {dimension_numbers = #tpu.dot_dimension_numbers<[1], [0], [0], [1], [0, 0, 1, 1], [], []>} : vector<24x32xf32>, vector<32x256xf32>, vector<24x256xf32> -> vector<24x256xf32>
    %c0_90 = arith.constant 0 : index
    %c0_91 = arith.constant 0 : index
    %61 = vector.load %arg3[%c0_90, %c0_91] : memref<24x1xf32, #tpu.memory_space<vmem>>, vector<24x1xf32>
    %62 = vector.broadcast %61 : vector<24x1xf32> to vector<24x256xf32>
    %63 = arith.mulf %60, %62 : vector<24x256xf32>
    %c0_92 = arith.constant 0 : index
    %c0_93 = arith.constant 0 : index
    %64 = vector.load %arg4[%c0_92, %c0_93] : memref<24x1xf32, #tpu.memory_space<vmem>>, vector<24x1xf32>
    %65 = vector.broadcast %64 : vector<24x1xf32> to vector<24x256xf32>
    %66 = arith.addf %63, %65 : vector<24x256xf32>
    %cst_94 = arith.constant 0.000000e+00 : f32
    %67 = vector.broadcast %cst_94 : f32 to vector<24x256xf32>
    %68 = arith.maximumf %66, %67 : vector<24x256xf32>
    %cst_95 = arith.constant 0.000000e+00 : f32
    %69 = vector.broadcast %cst_95 : f32 to vector<24x3xf32>
    %c0_96 = arith.constant 0 : index
    %c0_97 = arith.constant 0 : index
    %70 = vector.load %arg33[%c0_96, %c0_97] : memref<48x384xf32, #tpu.memory_space<vmem>>, vector<24x3xf32>
    tpu.vector_store %arg33[%c0_96, %c0_97], %69 {strides = array<i32>} : memref<48x384xf32, #tpu.memory_space<vmem>>, vector<24x3xf32>,
    %c0_98 = arith.constant 0 : index
    %c259 = arith.constant 259 : index
    %71 = vector.load %arg33[%c0_98, %c259] : memref<48x384xf32, #tpu.memory_space<vmem>>, vector<24x3xf32>
    tpu.vector_store %arg33[%c0_98, %c259], %69 {strides = array<i32>} : memref<48x384xf32, #tpu.memory_space<vmem>>, vector<24x3xf32>,
    %c0_99 = arith.constant 0 : index
    %c3_100 = arith.constant 3 : index
    %72 = vector.load %arg33[%c0_99, %c3_100] : memref<48x384xf32, #tpu.memory_space<vmem>>, vector<24x256xf32>
    tpu.vector_store %arg33[%c0_99, %c3_100], %68 {strides = array<i32>} : memref<48x384xf32, #tpu.memory_space<vmem>>, vector<24x256xf32>,
    %c0_101 = arith.constant 0 : index
    %c0_102 = arith.constant 0 : index
    %73 = vector.load %arg33[%c0_101, %c0_102] : memref<48x384xf32, #tpu.memory_space<vmem>>, vector<24x256xf32>
    %c0_103 = arith.constant 0 : index
    %c0_104 = arith.constant 0 : index
    %74 = vector.load %arg34[%c0_103, %c0_104] : memref<240x256xf32, #tpu.memory_space<vmem>>, vector<24x256xf32>
    tpu.vector_store %arg34[%c0_103, %c0_104], %73 {strides = array<i32>} : memref<240x256xf32, #tpu.memory_space<vmem>>, vector<24x256xf32>,
    %c0_105 = arith.constant 0 : index
    %c1_106 = arith.constant 1 : index
    %75 = vector.load %arg33[%c0_105, %c1_106] : memref<48x384xf32, #tpu.memory_space<vmem>>, vector<24x256xf32>
    %c24_107 = arith.constant 24 : index
    %c0_108 = arith.constant 0 : index
    %76 = vector.load %arg34[%c24_107, %c0_108] : memref<240x256xf32, #tpu.memory_space<vmem>>, vector<24x256xf32>
    tpu.vector_store %arg34[%c24_107, %c0_108], %75 {strides = array<i32>} : memref<240x256xf32, #tpu.memory_space<vmem>>, vector<24x256xf32>,
    %c0_109 = arith.constant 0 : index
    %c2_110 = arith.constant 2 : index
    %77 = vector.load %arg33[%c0_109, %c2_110] : memref<48x384xf32, #tpu.memory_space<vmem>>, vector<24x256xf32>
    %c48 = arith.constant 48 : index
    %c0_111 = arith.constant 0 : index
    %78 = vector.load %arg34[%c48, %c0_111] : memref<240x256xf32, #tpu.memory_space<vmem>>, vector<24x256xf32>
    tpu.vector_store %arg34[%c48, %c0_111], %77 {strides = array<i32>} : memref<240x256xf32, #tpu.memory_space<vmem>>, vector<24x256xf32>,
    %c0_112 = arith.constant 0 : index
    %c3_113 = arith.constant 3 : index
    %79 = vector.load %arg33[%c0_112, %c3_113] : memref<48x384xf32, #tpu.memory_space<vmem>>, vector<24x256xf32>
    %c72 = arith.constant 72 : index
    %c0_114 = arith.constant 0 : index
    %80 = vector.load %arg34[%c72, %c0_114] : memref<240x256xf32, #tpu.memory_space<vmem>>, vector<24x256xf32>
    tpu.vector_store %arg34[%c72, %c0_114], %79 {strides = array<i32>} : memref<240x256xf32, #tpu.memory_space<vmem>>, vector<24x256xf32>,
    %c0_115 = arith.constant 0 : index
    %c4_116 = arith.constant 4 : index
    %81 = vector.load %arg33[%c0_115, %c4_116] : memref<48x384xf32, #tpu.memory_space<vmem>>, vector<24x256xf32>
    %c96 = arith.constant 96 : index
    %c0_117 = arith.constant 0 : index
    %82 = vector.load %arg34[%c96, %c0_117] : memref<240x256xf32, #tpu.memory_space<vmem>>, vector<24x256xf32>
    tpu.vector_store %arg34[%c96, %c0_117], %81 {strides = array<i32>} : memref<240x256xf32, #tpu.memory_space<vmem>>, vector<24x256xf32>,
    %c0_118 = arith.constant 0 : index
    %c5_119 = arith.constant 5 : index
    %83 = vector.load %arg33[%c0_118, %c5_119] : memref<48x384xf32, #tpu.memory_space<vmem>>, vector<24x256xf32>
    %c120 = arith.constant 120 : index
    %c0_120 = arith.constant 0 : index
    %84 = vector.load %arg34[%c120, %c0_120] : memref<240x256xf32, #tpu.memory_space<vmem>>, vector<24x256xf32>
    tpu.vector_store %arg34[%c120, %c0_120], %83 {strides = array<i32>} : memref<240x256xf32, #tpu.memory_space<vmem>>, vector<24x256xf32>,
    %c0_121 = arith.constant 0 : index
    %c6_122 = arith.constant 6 : index
    %85 = vector.load %arg33[%c0_121, %c6_122] : memref<48x384xf32, #tpu.memory_space<vmem>>, vector<24x256xf32>
    %c144 = arith.constant 144 : index
    %c0_123 = arith.constant 0 : index
    %86 = vector.load %arg34[%c144, %c0_123] : memref<240x256xf32, #tpu.memory_space<vmem>>, vector<24x256xf32>
    tpu.vector_store %arg34[%c144, %c0_123], %85 {strides = array<i32>} : memref<240x256xf32, #tpu.memory_space<vmem>>, vector<24x256xf32>,
    %c0_124 = arith.constant 0 : index
    %c0_125 = arith.constant 0 : index
    %87 = vector.load %arg34[%c0_124, %c0_125] : memref<240x256xf32, #tpu.memory_space<vmem>>, vector<168x256xf32>
    %c0_126 = arith.constant 0 : index
    %c0_127 = arith.constant 0 : index
    %88 = vector.load %arg5[%c0_126, %c0_127] : memref<24x168xf32, #tpu.memory_space<vmem>>, vector<24x168xf32>
    %cst_128 = arith.constant dense<0.000000e+00> : vector<24x256xf32>
    %89 = tpu.matmul %88, %87, %cst_128 {dimension_numbers = #tpu.dot_dimension_numbers<[1], [0], [0], [1], [0, 0, 1, 1], [], []>} : vector<24x168xf32>, vector<168x256xf32>, vector<24x256xf32> -> vector<24x256xf32>
    %c0_129 = arith.constant 0 : index
    %c0_130 = arith.constant 0 : index
    %90 = vector.load %arg6[%c0_129, %c0_130] : memref<24x1xf32, #tpu.memory_space<vmem>>, vector<24x1xf32>
    %91 = vector.broadcast %90 : vector<24x1xf32> to vector<24x256xf32>
    %92 = arith.mulf %89, %91 : vector<24x256xf32>
    %c0_131 = arith.constant 0 : index
    %c0_132 = arith.constant 0 : index
    %93 = vector.load %arg7[%c0_131, %c0_132] : memref<24x1xf32, #tpu.memory_space<vmem>>, vector<24x1xf32>
    %94 = vector.broadcast %93 : vector<24x1xf32> to vector<24x256xf32>
    %95 = arith.addf %92, %94 : vector<24x256xf32>
    %cst_133 = arith.constant 0.000000e+00 : f32
    %96 = vector.broadcast %cst_133 : f32 to vector<24x256xf32>
    %97 = arith.maximumf %95, %96 : vector<24x256xf32>
    %98 = tpu.iota {dimensions = array<i32: 0>} : vector<256x128xi32>
    %99 = tpu.iota {dimensions = array<i32: 1>} : vector<256x128xi32>
    %c2_i32 = arith.constant 2 : i32
    %100 = vector.broadcast %c2_i32 : i32 to vector<256x128xi32>
    %101 = arith.muli %99, %100 : vector<256x128xi32>
    %c0_i32 = arith.constant 0 : i32
    %102 = vector.broadcast %c0_i32 : i32 to vector<256x128xi32>
    %103 = arith.addi %101, %102 : vector<256x128xi32>
    %104 = arith.cmpi eq, %98, %103 : vector<256x128xi32>
    %105 = arith.extui %104 : vector<256x128xi1> to vector<256x128xi32>
    %106 = arith.sitofp %105 : vector<256x128xi32> to vector<256x128xf32>
    %cst_134 = arith.constant dense<0.000000e+00> : vector<24x128xf32>
    %107 = tpu.matmul %97, %106, %cst_134 {dimension_numbers = #tpu.dot_dimension_numbers<[1], [0], [0], [1], [0, 0, 1, 1], [], []>} : vector<24x256xf32>, vector<256x128xf32>, vector<24x128xf32> -> vector<24x128xf32>
    %c2_i32_135 = arith.constant 2 : i32
    %108 = vector.broadcast %c2_i32_135 : i32 to vector<256x128xi32>
    %109 = arith.muli %99, %108 : vector<256x128xi32>
    %c1_i32 = arith.constant 1 : i32
    %110 = vector.broadcast %c1_i32 : i32 to vector<256x128xi32>
    %111 = arith.addi %109, %110 : vector<256x128xi32>
    %112 = arith.cmpi eq, %98, %111 : vector<256x128xi32>
    %113 = arith.extui %112 : vector<256x128xi1> to vector<256x128xi32>
    %114 = arith.sitofp %113 : vector<256x128xi32> to vector<256x128xf32>
    %cst_136 = arith.constant dense<0.000000e+00> : vector<24x128xf32>
    %115 = tpu.matmul %97, %114, %cst_136 {dimension_numbers = #tpu.dot_dimension_numbers<[1], [0], [0], [1], [0, 0, 1, 1], [], []>} : vector<24x256xf32>, vector<256x128xf32>, vector<24x128xf32> -> vector<24x128xf32>
    %116 = arith.maximumf %107, %115 : vector<24x128xf32>
    %cst_137 = arith.constant 0.000000e+00 : f32
    %117 = vector.broadcast %cst_137 : f32 to vector<24x2xf32>
    %c0_138 = arith.constant 0 : index
    %c0_139 = arith.constant 0 : index
    %118 = vector.load %arg33[%c0_138, %c0_139] : memref<48x384xf32, #tpu.memory_space<vmem>>, vector<24x2xf32>
    tpu.vector_store %arg33[%c0_138, %c0_139], %117 {strides = array<i32>} : memref<48x384xf32, #tpu.memory_space<vmem>>, vector<24x2xf32>,
    %c0_140 = arith.constant 0 : index
    %c130 = arith.constant 130 : index
    %119 = vector.load %arg33[%c0_140, %c130] : memref<48x384xf32, #tpu.memory_space<vmem>>, vector<24x2xf32>
    tpu.vector_store %arg33[%c0_140, %c130], %117 {strides = array<i32>} : memref<48x384xf32, #tpu.memory_space<vmem>>, vector<24x2xf32>,
    %c0_141 = arith.constant 0 : index
    %c2_142 = arith.constant 2 : index
    %120 = vector.load %arg33[%c0_141, %c2_142] : memref<48x384xf32, #tpu.memory_space<vmem>>, vector<24x128xf32>
    tpu.vector_store %arg33[%c0_141, %c2_142], %116 {strides = array<i32>} : memref<48x384xf32, #tpu.memory_space<vmem>>, vector<24x128xf32>,
    %c0_143 = arith.constant 0 : index
    %c0_144 = arith.constant 0 : index
    %121 = vector.load %arg33[%c0_143, %c0_144] : memref<48x384xf32, #tpu.memory_space<vmem>>, vector<24x128xf32>
    %c0_145 = arith.constant 0 : index
    %c0_146 = arith.constant 0 : index
    %122 = vector.load %arg34[%c0_145, %c0_146] : memref<240x256xf32, #tpu.memory_space<vmem>>, vector<24x128xf32>
    tpu.vector_store %arg34[%c0_145, %c0_146], %121 {strides = array<i32>} : memref<240x256xf32, #tpu.memory_space<vmem>>, vector<24x128xf32>,
    %c0_147 = arith.constant 0 : index
    %c1_148 = arith.constant 1 : index
    %123 = vector.load %arg33[%c0_147, %c1_148] : memref<48x384xf32, #tpu.memory_space<vmem>>, vector<24x128xf32>
    %c24_149 = arith.constant 24 : index
    %c0_150 = arith.constant 0 : index
    %124 = vector.load %arg34[%c24_149, %c0_150] : memref<240x256xf32, #tpu.memory_space<vmem>>, vector<24x128xf32>
    tpu.vector_store %arg34[%c24_149, %c0_150], %123 {strides = array<i32>} : memref<240x256xf32, #tpu.memory_space<vmem>>, vector<24x128xf32>,
    %c0_151 = arith.constant 0 : index
    %c2_152 = arith.constant 2 : index
    %125 = vector.load %arg33[%c0_151, %c2_152] : memref<48x384xf32, #tpu.memory_space<vmem>>, vector<24x128xf32>
    %c48_153 = arith.constant 48 : index
    %c0_154 = arith.constant 0 : index
    %126 = vector.load %arg34[%c48_153, %c0_154] : memref<240x256xf32, #tpu.memory_space<vmem>>, vector<24x128xf32>
    tpu.vector_store %arg34[%c48_153, %c0_154], %125 {strides = array<i32>} : memref<240x256xf32, #tpu.memory_space<vmem>>, vector<24x128xf32>,
    %c0_155 = arith.constant 0 : index
    %c3_156 = arith.constant 3 : index
    %127 = vector.load %arg33[%c0_155, %c3_156] : memref<48x384xf32, #tpu.memory_space<vmem>>, vector<24x128xf32>
    %c72_157 = arith.constant 72 : index
    %c0_158 = arith.constant 0 : index
    %128 = vector.load %arg34[%c72_157, %c0_158] : memref<240x256xf32, #tpu.memory_space<vmem>>, vector<24x128xf32>
    tpu.vector_store %arg34[%c72_157, %c0_158], %127 {strides = array<i32>} : memref<240x256xf32, #tpu.memory_space<vmem>>, vector<24x128xf32>,
    %c0_159 = arith.constant 0 : index
    %c4_160 = arith.constant 4 : index
    %129 = vector.load %arg33[%c0_159, %c4_160] : memref<48x384xf32, #tpu.memory_space<vmem>>, vector<24x128xf32>
    %c96_161 = arith.constant 96 : index
    %c0_162 = arith.constant 0 : index
    %130 = vector.load %arg34[%c96_161, %c0_162] : memref<240x256xf32, #tpu.memory_space<vmem>>, vector<24x128xf32>
    tpu.vector_store %arg34[%c96_161, %c0_162], %129 {strides = array<i32>} : memref<240x256xf32, #tpu.memory_space<vmem>>, vector<24x128xf32>,
    %c0_163 = arith.constant 0 : index
    %c0_164 = arith.constant 0 : index
    %131 = vector.load %arg34[%c0_163, %c0_164] : memref<240x256xf32, #tpu.memory_space<vmem>>, vector<120x128xf32>
    %c0_165 = arith.constant 0 : index
    %c0_166 = arith.constant 0 : index
    %132 = vector.load %arg8[%c0_165, %c0_166] : memref<24x120xf32, #tpu.memory_space<vmem>>, vector<24x120xf32>
    %cst_167 = arith.constant dense<0.000000e+00> : vector<24x128xf32>
    %133 = tpu.matmul %132, %131, %cst_167 {dimension_numbers = #tpu.dot_dimension_numbers<[1], [0], [0], [1], [0, 0, 1, 1], [], []>} : vector<24x120xf32>, vector<120x128xf32>, vector<24x128xf32> -> vector<24x128xf32>
    %c0_168 = arith.constant 0 : index
    %c0_169 = arith.constant 0 : index
    %134 = vector.load %arg9[%c0_168, %c0_169] : memref<24x1xf32, #tpu.memory_space<vmem>>, vector<24x1xf32>
    %135 = vector.broadcast %134 : vector<24x1xf32> to vector<24x128xf32>
    %136 = arith.mulf %133, %135 : vector<24x128xf32>
    %c0_170 = arith.constant 0 : index
    %c0_171 = arith.constant 0 : index
    %137 = vector.load %arg10[%c0_170, %c0_171] : memref<24x1xf32, #tpu.memory_space<vmem>>, vector<24x1xf32>
    %138 = vector.broadcast %137 : vector<24x1xf32> to vector<24x128xf32>
    %139 = arith.addf %136, %138 : vector<24x128xf32>
    %cst_172 = arith.constant 0.000000e+00 : f32
    %140 = vector.broadcast %cst_172 : f32 to vector<24x128xf32>
    %141 = arith.maximumf %139, %140 : vector<24x128xf32>
    %142 = tpu.iota {dimensions = array<i32: 0>} : vector<128x32xi32>
    %143 = tpu.iota {dimensions = array<i32: 1>} : vector<128x32xi32>
    %c4_i32 = arith.constant 4 : i32
    %144 = vector.broadcast %c4_i32 : i32 to vector<128x32xi32>
    %145 = arith.muli %143, %144 : vector<128x32xi32>
    %c0_i32_173 = arith.constant 0 : i32
    %146 = vector.broadcast %c0_i32_173 : i32 to vector<128x32xi32>
    %147 = arith.addi %145, %146 : vector<128x32xi32>
    %148 = arith.cmpi eq, %142, %147 : vector<128x32xi32>
    %149 = arith.extui %148 : vector<128x32xi1> to vector<128x32xi32>
    %150 = arith.sitofp %149 : vector<128x32xi32> to vector<128x32xf32>
    %cst_174 = arith.constant dense<0.000000e+00> : vector<24x32xf32>
    %151 = tpu.matmul %141, %150, %cst_174 {dimension_numbers = #tpu.dot_dimension_numbers<[1], [0], [0], [1], [0, 0, 1, 1], [], []>} : vector<24x128xf32>, vector<128x32xf32>, vector<24x32xf32> -> vector<24x32xf32>
    %c4_i32_175 = arith.constant 4 : i32
    %152 = vector.broadcast %c4_i32_175 : i32 to vector<128x32xi32>
    %153 = arith.muli %143, %152 : vector<128x32xi32>
    %c1_i32_176 = arith.constant 1 : i32
    %154 = vector.broadcast %c1_i32_176 : i32 to vector<128x32xi32>
    %155 = arith.addi %153, %154 : vector<128x32xi32>
    %156 = arith.cmpi eq, %142, %155 : vector<128x32xi32>
    %157 = arith.extui %156 : vector<128x32xi1> to vector<128x32xi32>
    %158 = arith.sitofp %157 : vector<128x32xi32> to vector<128x32xf32>
    %cst_177 = arith.constant dense<0.000000e+00> : vector<24x32xf32>
    %159 = tpu.matmul %141, %158, %cst_177 {dimension_numbers = #tpu.dot_dimension_numbers<[1], [0], [0], [1], [0, 0, 1, 1], [], []>} : vector<24x128xf32>, vector<128x32xf32>, vector<24x32xf32> -> vector<24x32xf32>
    %160 = arith.maximumf %151, %159 : vector<24x32xf32>
    %c4_i32_178 = arith.constant 4 : i32
    %161 = vector.broadcast %c4_i32_178 : i32 to vector<128x32xi32>
    %162 = arith.muli %143, %161 : vector<128x32xi32>
    %c2_i32_179 = arith.constant 2 : i32
    %163 = vector.broadcast %c2_i32_179 : i32 to vector<128x32xi32>
    %164 = arith.addi %162, %163 : vector<128x32xi32>
    %165 = arith.cmpi eq, %142, %164 : vector<128x32xi32>
    %166 = arith.extui %165 : vector<128x32xi1> to vector<128x32xi32>
    %167 = arith.sitofp %166 : vector<128x32xi32> to vector<128x32xf32>
    %cst_180 = arith.constant dense<0.000000e+00> : vector<24x32xf32>
    %168 = tpu.matmul %141, %167, %cst_180 {dimension_numbers = #tpu.dot_dimension_numbers<[1], [0], [0], [1], [0, 0, 1, 1], [], []>} : vector<24x128xf32>, vector<128x32xf32>, vector<24x32xf32> -> vector<24x32xf32>
    %169 = arith.maximumf %160, %168 : vector<24x32xf32>
    %c4_i32_181 = arith.constant 4 : i32
    %170 = vector.broadcast %c4_i32_181 : i32 to vector<128x32xi32>
    %171 = arith.muli %143, %170 : vector<128x32xi32>
    %c3_i32 = arith.constant 3 : i32
    %172 = vector.broadcast %c3_i32 : i32 to vector<128x32xi32>
    %173 = arith.addi %171, %172 : vector<128x32xi32>
    %174 = arith.cmpi eq, %142, %173 : vector<128x32xi32>
    %175 = arith.extui %174 : vector<128x32xi1> to vector<128x32xi32>
    %176 = arith.sitofp %175 : vector<128x32xi32> to vector<128x32xf32>
    %cst_182 = arith.constant dense<0.000000e+00> : vector<24x32xf32>
    %177 = tpu.matmul %141, %176, %cst_182 {dimension_numbers = #tpu.dot_dimension_numbers<[1], [0], [0], [1], [0, 0, 1, 1], [], []>} : vector<24x128xf32>, vector<128x32xf32>, vector<24x32xf32> -> vector<24x32xf32>
    %178 = arith.maximumf %169, %177 : vector<24x32xf32>
    %cst_183 = arith.constant 0.000000e+00 : f32
    %179 = vector.broadcast %cst_183 : f32 to vector<24x1xf32>
    %c0_184 = arith.constant 0 : index
    %c0_185 = arith.constant 0 : index
    %180 = vector.load %arg33[%c0_184, %c0_185] : memref<48x384xf32, #tpu.memory_space<vmem>>, vector<24x1xf32>
    tpu.vector_store %arg33[%c0_184, %c0_185], %179 {strides = array<i32>} : memref<48x384xf32, #tpu.memory_space<vmem>>, vector<24x1xf32>,
    %c0_186 = arith.constant 0 : index
    %c33 = arith.constant 33 : index
    %181 = vector.load %arg33[%c0_186, %c33] : memref<48x384xf32, #tpu.memory_space<vmem>>, vector<24x1xf32>
    tpu.vector_store %arg33[%c0_186, %c33], %179 {strides = array<i32>} : memref<48x384xf32, #tpu.memory_space<vmem>>, vector<24x1xf32>,
    %c0_187 = arith.constant 0 : index
    %c1_188 = arith.constant 1 : index
    %182 = vector.load %arg33[%c0_187, %c1_188] : memref<48x384xf32, #tpu.memory_space<vmem>>, vector<24x32xf32>
    tpu.vector_store %arg33[%c0_187, %c1_188], %178 {strides = array<i32>} : memref<48x384xf32, #tpu.memory_space<vmem>>, vector<24x32xf32>,
    %c0_189 = arith.constant 0 : index
    %c0_190 = arith.constant 0 : index
    %183 = vector.load %arg33[%c0_189, %c0_190] : memref<48x384xf32, #tpu.memory_space<vmem>>, vector<24x32xf32>
    %c0_191 = arith.constant 0 : index
    %c0_192 = arith.constant 0 : index
    %184 = vector.load %arg34[%c0_191, %c0_192] : memref<240x256xf32, #tpu.memory_space<vmem>>, vector<24x32xf32>
    tpu.vector_store %arg34[%c0_191, %c0_192], %183 {strides = array<i32>} : memref<240x256xf32, #tpu.memory_space<vmem>>, vector<24x32xf32>,
    %c0_193 = arith.constant 0 : index
    %c1_194 = arith.constant 1 : index
    %185 = vector.load %arg33[%c0_193, %c1_194] : memref<48x384xf32, #tpu.memory_space<vmem>>, vector<24x32xf32>
    %c24_195 = arith.constant 24 : index
    %c0_196 = arith.constant 0 : index
    %186 = vector.load %arg34[%c24_195, %c0_196] : memref<240x256xf32, #tpu.memory_space<vmem>>, vector<24x32xf32>
    tpu.vector_store %arg34[%c24_195, %c0_196], %185 {strides = array<i32>} : memref<240x256xf32, #tpu.memory_space<vmem>>, vector<24x32xf32>,
    %c0_197 = arith.constant 0 : index
    %c2_198 = arith.constant 2 : index
    %187 = vector.load %arg33[%c0_197, %c2_198] : memref<48x384xf32, #tpu.memory_space<vmem>>, vector<24x32xf32>
    %c48_199 = arith.constant 48 : index
    %c0_200 = arith.constant 0 : index
    %188 = vector.load %arg34[%c48_199, %c0_200] : memref<240x256xf32, #tpu.memory_space<vmem>>, vector<24x32xf32>
    tpu.vector_store %arg34[%c48_199, %c0_200], %187 {strides = array<i32>} : memref<240x256xf32, #tpu.memory_space<vmem>>, vector<24x32xf32>,
    %c0_201 = arith.constant 0 : index
    %c0_202 = arith.constant 0 : index
    %189 = vector.load %arg34[%c0_201, %c0_202] : memref<240x256xf32, #tpu.memory_space<vmem>>, vector<72x32xf32>
    %c0_203 = arith.constant 0 : index
    %c0_204 = arith.constant 0 : index
    %190 = vector.load %arg11[%c0_203, %c0_204] : memref<24x72xf32, #tpu.memory_space<vmem>>, vector<24x72xf32>
    %cst_205 = arith.constant dense<0.000000e+00> : vector<24x32xf32>
    %191 = tpu.matmul %190, %189, %cst_205 {dimension_numbers = #tpu.dot_dimension_numbers<[1], [0], [0], [1], [0, 0, 1, 1], [], []>} : vector<24x72xf32>, vector<72x32xf32>, vector<24x32xf32> -> vector<24x32xf32>
    %c0_206 = arith.constant 0 : index
    %c0_207 = arith.constant 0 : index
    %192 = vector.load %arg12[%c0_206, %c0_207] : memref<24x1xf32, #tpu.memory_space<vmem>>, vector<24x1xf32>
    %193 = vector.broadcast %192 : vector<24x1xf32> to vector<24x32xf32>
    %194 = arith.mulf %191, %193 : vector<24x32xf32>
    %c0_208 = arith.constant 0 : index
    %c0_209 = arith.constant 0 : index
    %195 = vector.load %arg13[%c0_208, %c0_209] : memref<24x1xf32, #tpu.memory_space<vmem>>, vector<24x1xf32>
    %196 = vector.broadcast %195 : vector<24x1xf32> to vector<24x32xf32>
    %197 = arith.addf %194, %196 : vector<24x32xf32>
    %cst_210 = arith.constant 0.000000e+00 : f32
    %198 = vector.broadcast %cst_210 : f32 to vector<24x32xf32>
    %199 = arith.maximumf %197, %198 : vector<24x32xf32>
    %200 = tpu.iota {dimensions = array<i32: 0>} : vector<32x8xi32>
    %201 = tpu.iota {dimensions = array<i32: 1>} : vector<32x8xi32>
    %c4_i32_211 = arith.constant 4 : i32
    %202 = vector.broadcast %c4_i32_211 : i32 to vector<32x8xi32>
    %203 = arith.muli %201, %202 : vector<32x8xi32>
    %c0_i32_212 = arith.constant 0 : i32
    %204 = vector.broadcast %c0_i32_212 : i32 to vector<32x8xi32>
    %205 = arith.addi %203, %204 : vector<32x8xi32>
    %206 = arith.cmpi eq, %200, %205 : vector<32x8xi32>
    %207 = arith.extui %206 : vector<32x8xi1> to vector<32x8xi32>
    %208 = arith.sitofp %207 : vector<32x8xi32> to vector<32x8xf32>
    %cst_213 = arith.constant dense<0.000000e+00> : vector<24x8xf32>
    %209 = tpu.matmul %199, %208, %cst_213 {dimension_numbers = #tpu.dot_dimension_numbers<[1], [0], [0], [1], [0, 0, 1, 1], [], []>} : vector<24x32xf32>, vector<32x8xf32>, vector<24x8xf32> -> vector<24x8xf32>
    %c4_i32_214 = arith.constant 4 : i32
    %210 = vector.broadcast %c4_i32_214 : i32 to vector<32x8xi32>
    %211 = arith.muli %201, %210 : vector<32x8xi32>
    %c1_i32_215 = arith.constant 1 : i32
    %212 = vector.broadcast %c1_i32_215 : i32 to vector<32x8xi32>
    %213 = arith.addi %211, %212 : vector<32x8xi32>
    %214 = arith.cmpi eq, %200, %213 : vector<32x8xi32>
    %215 = arith.extui %214 : vector<32x8xi1> to vector<32x8xi32>
    %216 = arith.sitofp %215 : vector<32x8xi32> to vector<32x8xf32>
    %cst_216 = arith.constant dense<0.000000e+00> : vector<24x8xf32>
    %217 = tpu.matmul %199, %216, %cst_216 {dimension_numbers = #tpu.dot_dimension_numbers<[1], [0], [0], [1], [0, 0, 1, 1], [], []>} : vector<24x32xf32>, vector<32x8xf32>, vector<24x8xf32> -> vector<24x8xf32>
    %218 = arith.maximumf %209, %217 : vector<24x8xf32>
    %c4_i32_217 = arith.constant 4 : i32
    %219 = vector.broadcast %c4_i32_217 : i32 to vector<32x8xi32>
    %220 = arith.muli %201, %219 : vector<32x8xi32>
    %c2_i32_218 = arith.constant 2 : i32
    %221 = vector.broadcast %c2_i32_218 : i32 to vector<32x8xi32>
    %222 = arith.addi %220, %221 : vector<32x8xi32>
    %223 = arith.cmpi eq, %200, %222 : vector<32x8xi32>
    %224 = arith.extui %223 : vector<32x8xi1> to vector<32x8xi32>
    %225 = arith.sitofp %224 : vector<32x8xi32> to vector<32x8xf32>
    %cst_219 = arith.constant dense<0.000000e+00> : vector<24x8xf32>
    %226 = tpu.matmul %199, %225, %cst_219 {dimension_numbers = #tpu.dot_dimension_numbers<[1], [0], [0], [1], [0, 0, 1, 1], [], []>} : vector<24x32xf32>, vector<32x8xf32>, vector<24x8xf32> -> vector<24x8xf32>
    %227 = arith.maximumf %218, %226 : vector<24x8xf32>
    %c4_i32_220 = arith.constant 4 : i32
    %228 = vector.broadcast %c4_i32_220 : i32 to vector<32x8xi32>
    %229 = arith.muli %201, %228 : vector<32x8xi32>
    %c3_i32_221 = arith.constant 3 : i32
    %230 = vector.broadcast %c3_i32_221 : i32 to vector<32x8xi32>
    %231 = arith.addi %229, %230 : vector<32x8xi32>
    %232 = arith.cmpi eq, %200, %231 : vector<32x8xi32>
    %233 = arith.extui %232 : vector<32x8xi1> to vector<32x8xi32>
    %234 = arith.sitofp %233 : vector<32x8xi32> to vector<32x8xf32>
    %cst_222 = arith.constant dense<0.000000e+00> : vector<24x8xf32>
    %235 = tpu.matmul %199, %234, %cst_222 {dimension_numbers = #tpu.dot_dimension_numbers<[1], [0], [0], [1], [0, 0, 1, 1], [], []>} : vector<24x32xf32>, vector<32x8xf32>, vector<24x8xf32> -> vector<24x8xf32>
    %236 = arith.maximumf %227, %235 : vector<24x8xf32>
    %237 = tpu.iota {dimensions = array<i32: 0>} : vector<8x32xi32>
    %238 = tpu.iota {dimensions = array<i32: 1>} : vector<8x32xi32>
    %c0_223 = arith.constant 0 : index
    %c0_224 = arith.constant 0 : index
    %239 = vector.load %arg14[%c0_223, %c0_224] : memref<96x24xf32, #tpu.memory_space<vmem>>, vector<96x24xf32>
    %cst_225 = arith.constant 0.000000e+00 : f32
    %240 = vector.broadcast %cst_225 : f32 to vector<24x32xf32>
    %241 = vector.extract_strided_slice %239 {offsets = [0, 0], sizes = [24, 24], strides = [1, 1]} : vector<96x24xf32> to vector<24x24xf32>
    %cst_226 = arith.constant 0.000000e+00 : f32
    %242 = vector.broadcast %cst_226 : f32 to vector<24x8xf32>
    %cst_227 = arith.constant dense<0.000000e+00> : vector<24x8xf32>
    %243 = tpu.matmul %241, %236, %cst_227 {dimension_numbers = #tpu.dot_dimension_numbers<[1], [0], [0], [1], [0, 0, 1, 1], [], []>} : vector<24x24xf32>, vector<24x8xf32>, vector<24x8xf32> -> vector<24x8xf32>
    %244 = arith.addf %242, %243 : vector<24x8xf32>
    %c4_i32_228 = arith.constant 4 : i32
    %245 = vector.broadcast %c4_i32_228 : i32 to vector<8x32xi32>
    %246 = arith.muli %237, %245 : vector<8x32xi32>
    %c0_i32_229 = arith.constant 0 : i32
    %247 = vector.broadcast %c0_i32_229 : i32 to vector<8x32xi32>
    %248 = arith.addi %246, %247 : vector<8x32xi32>
    %249 = arith.cmpi eq, %238, %248 : vector<8x32xi32>
    %250 = arith.extui %249 : vector<8x32xi1> to vector<8x32xi32>
    %251 = arith.sitofp %250 : vector<8x32xi32> to vector<8x32xf32>
    %cst_230 = arith.constant dense<0.000000e+00> : vector<24x32xf32>
    %252 = tpu.matmul %244, %251, %cst_230 {dimension_numbers = #tpu.dot_dimension_numbers<[1], [0], [0], [1], [0, 0, 1, 1], [], []>} : vector<24x8xf32>, vector<8x32xf32>, vector<24x32xf32> -> vector<24x32xf32>
    %253 = arith.addf %240, %252 : vector<24x32xf32>
    %254 = vector.extract_strided_slice %239 {offsets = [24, 0], sizes = [24, 24], strides = [1, 1]} : vector<96x24xf32> to vector<24x24xf32>
    %cst_231 = arith.constant 0.000000e+00 : f32
    %255 = vector.broadcast %cst_231 : f32 to vector<24x8xf32>
    %cst_232 = arith.constant dense<0.000000e+00> : vector<24x8xf32>
    %256 = tpu.matmul %254, %236, %cst_232 {dimension_numbers = #tpu.dot_dimension_numbers<[1], [0], [0], [1], [0, 0, 1, 1], [], []>} : vector<24x24xf32>, vector<24x8xf32>, vector<24x8xf32> -> vector<24x8xf32>
    %257 = arith.addf %255, %256 : vector<24x8xf32>
    %c4_i32_233 = arith.constant 4 : i32
    %258 = vector.broadcast %c4_i32_233 : i32 to vector<8x32xi32>
    %259 = arith.muli %237, %258 : vector<8x32xi32>
    %c1_i32_234 = arith.constant 1 : i32
    %260 = vector.broadcast %c1_i32_234 : i32 to vector<8x32xi32>
    %261 = arith.addi %259, %260 : vector<8x32xi32>
    %262 = arith.cmpi eq, %238, %261 : vector<8x32xi32>
    %263 = arith.extui %262 : vector<8x32xi1> to vector<8x32xi32>
    %264 = arith.sitofp %263 : vector<8x32xi32> to vector<8x32xf32>
    %cst_235 = arith.constant dense<0.000000e+00> : vector<24x32xf32>
    %265 = tpu.matmul %257, %264, %cst_235 {dimension_numbers = #tpu.dot_dimension_numbers<[1], [0], [0], [1], [0, 0, 1, 1], [], []>} : vector<24x8xf32>, vector<8x32xf32>, vector<24x32xf32> -> vector<24x32xf32>
    %266 = arith.addf %253, %265 : vector<24x32xf32>
    %267 = vector.extract_strided_slice %239 {offsets = [48, 0], sizes = [24, 24], strides = [1, 1]} : vector<96x24xf32> to vector<24x24xf32>
    %cst_236 = arith.constant 0.000000e+00 : f32
    %268 = vector.broadcast %cst_236 : f32 to vector<24x8xf32>
    %cst_237 = arith.constant dense<0.000000e+00> : vector<24x8xf32>
    %269 = tpu.matmul %267, %236, %cst_237 {dimension_numbers = #tpu.dot_dimension_numbers<[1], [0], [0], [1], [0, 0, 1, 1], [], []>} : vector<24x24xf32>, vector<24x8xf32>, vector<24x8xf32> -> vector<24x8xf32>
    %270 = arith.addf %268, %269 : vector<24x8xf32>
    %c4_i32_238 = arith.constant 4 : i32
    %271 = vector.broadcast %c4_i32_238 : i32 to vector<8x32xi32>
    %272 = arith.muli %237, %271 : vector<8x32xi32>
    %c2_i32_239 = arith.constant 2 : i32
    %273 = vector.broadcast %c2_i32_239 : i32 to vector<8x32xi32>
    %274 = arith.addi %272, %273 : vector<8x32xi32>
    %275 = arith.cmpi eq, %238, %274 : vector<8x32xi32>
    %276 = arith.extui %275 : vector<8x32xi1> to vector<8x32xi32>
    %277 = arith.sitofp %276 : vector<8x32xi32> to vector<8x32xf32>
    %cst_240 = arith.constant dense<0.000000e+00> : vector<24x32xf32>
    %278 = tpu.matmul %270, %277, %cst_240 {dimension_numbers = #tpu.dot_dimension_numbers<[1], [0], [0], [1], [0, 0, 1, 1], [], []>} : vector<24x8xf32>, vector<8x32xf32>, vector<24x32xf32> -> vector<24x32xf32>
    %279 = arith.addf %266, %278 : vector<24x32xf32>
    %280 = vector.extract_strided_slice %239 {offsets = [72, 0], sizes = [24, 24], strides = [1, 1]} : vector<96x24xf32> to vector<24x24xf32>
    %cst_241 = arith.constant 0.000000e+00 : f32
    %281 = vector.broadcast %cst_241 : f32 to vector<24x8xf32>
    %cst_242 = arith.constant dense<0.000000e+00> : vector<24x8xf32>
    %282 = tpu.matmul %280, %236, %cst_242 {dimension_numbers = #tpu.dot_dimension_numbers<[1], [0], [0], [1], [0, 0, 1, 1], [], []>} : vector<24x24xf32>, vector<24x8xf32>, vector<24x8xf32> -> vector<24x8xf32>
    %283 = arith.addf %281, %282 : vector<24x8xf32>
    %c4_i32_243 = arith.constant 4 : i32
    %284 = vector.broadcast %c4_i32_243 : i32 to vector<8x32xi32>
    %285 = arith.muli %237, %284 : vector<8x32xi32>
    %c3_i32_244 = arith.constant 3 : i32
    %286 = vector.broadcast %c3_i32_244 : i32 to vector<8x32xi32>
    %287 = arith.addi %285, %286 : vector<8x32xi32>
    %288 = arith.cmpi eq, %238, %287 : vector<8x32xi32>
    %289 = arith.extui %288 : vector<8x32xi1> to vector<8x32xi32>
    %290 = arith.sitofp %289 : vector<8x32xi32> to vector<8x32xf32>
    %cst_245 = arith.constant dense<0.000000e+00> : vector<24x32xf32>
    %291 = tpu.matmul %283, %290, %cst_245 {dimension_numbers = #tpu.dot_dimension_numbers<[1], [0], [0], [1], [0, 0, 1, 1], [], []>} : vector<24x8xf32>, vector<8x32xf32>, vector<24x32xf32> -> vector<24x32xf32>
    %292 = arith.addf %279, %291 : vector<24x32xf32>
    %c0_246 = arith.constant 0 : index
    %c0_247 = arith.constant 0 : index
    %293 = vector.load %arg15[%c0_246, %c0_247] : memref<24x1xf32, #tpu.memory_space<vmem>>, vector<24x1xf32>
    %294 = vector.broadcast %293 : vector<24x1xf32> to vector<24x32xf32>
    %295 = arith.addf %292, %294 : vector<24x32xf32>
    %cst_248 = arith.constant 0.000000e+00 : f32
    %296 = vector.broadcast %cst_248 : f32 to vector<24x2xf32>
    %c0_249 = arith.constant 0 : index
    %c0_250 = arith.constant 0 : index
    %297 = vector.load %arg33[%c0_249, %c0_250] : memref<48x384xf32, #tpu.memory_space<vmem>>, vector<24x2xf32>
    tpu.vector_store %arg33[%c0_249, %c0_250], %296 {strides = array<i32>} : memref<48x384xf32, #tpu.memory_space<vmem>>, vector<24x2xf32>,
    %c0_251 = arith.constant 0 : index
    %c34 = arith.constant 34 : index
    %298 = vector.load %arg33[%c0_251, %c34] : memref<48x384xf32, #tpu.memory_space<vmem>>, vector<24x2xf32>
    tpu.vector_store %arg33[%c0_251, %c34], %296 {strides = array<i32>} : memref<48x384xf32, #tpu.memory_space<vmem>>, vector<24x2xf32>,
    %c0_252 = arith.constant 0 : index
    %c2_253 = arith.constant 2 : index
    %299 = vector.load %arg33[%c0_252, %c2_253] : memref<48x384xf32, #tpu.memory_space<vmem>>, vector<24x32xf32>
    tpu.vector_store %arg33[%c0_252, %c2_253], %295 {strides = array<i32>} : memref<48x384xf32, #tpu.memory_space<vmem>>, vector<24x32xf32>,
    %c0_254 = arith.constant 0 : index
    %c0_255 = arith.constant 0 : index
    %300 = vector.load %arg33[%c0_254, %c0_255] : memref<48x384xf32, #tpu.memory_space<vmem>>, vector<24x32xf32>
    %c0_256 = arith.constant 0 : index
    %c0_257 = arith.constant 0 : index
    %301 = vector.load %arg34[%c0_256, %c0_257] : memref<240x256xf32, #tpu.memory_space<vmem>>, vector<24x32xf32>
    tpu.vector_store %arg34[%c0_256, %c0_257], %300 {strides = array<i32>} : memref<240x256xf32, #tpu.memory_space<vmem>>, vector<24x32xf32>,
    %c0_258 = arith.constant 0 : index
    %c1_259 = arith.constant 1 : index
    %302 = vector.load %arg33[%c0_258, %c1_259] : memref<48x384xf32, #tpu.memory_space<vmem>>, vector<24x32xf32>
    %c24_260 = arith.constant 24 : index
    %c0_261 = arith.constant 0 : index
    %303 = vector.load %arg34[%c24_260, %c0_261] : memref<240x256xf32, #tpu.memory_space<vmem>>, vector<24x32xf32>
    tpu.vector_store %arg34[%c24_260, %c0_261], %302 {strides = array<i32>} : memref<240x256xf32, #tpu.memory_space<vmem>>, vector<24x32xf32>,
    %c0_262 = arith.constant 0 : index
    %c2_263 = arith.constant 2 : index
    %304 = vector.load %arg33[%c0_262, %c2_263] : memref<48x384xf32, #tpu.memory_space<vmem>>, vector<24x32xf32>
    %c48_264 = arith.constant 48 : index
    %c0_265 = arith.constant 0 : index
    %305 = vector.load %arg34[%c48_264, %c0_265] : memref<240x256xf32, #tpu.memory_space<vmem>>, vector<24x32xf32>
    tpu.vector_store %arg34[%c48_264, %c0_265], %304 {strides = array<i32>} : memref<240x256xf32, #tpu.memory_space<vmem>>, vector<24x32xf32>,
    %c0_266 = arith.constant 0 : index
    %c3_267 = arith.constant 3 : index
    %306 = vector.load %arg33[%c0_266, %c3_267] : memref<48x384xf32, #tpu.memory_space<vmem>>, vector<24x32xf32>
    %c72_268 = arith.constant 72 : index
    %c0_269 = arith.constant 0 : index
    %307 = vector.load %arg34[%c72_268, %c0_269] : memref<240x256xf32, #tpu.memory_space<vmem>>, vector<24x32xf32>
    tpu.vector_store %arg34[%c72_268, %c0_269], %306 {strides = array<i32>} : memref<240x256xf32, #tpu.memory_space<vmem>>, vector<24x32xf32>,
    %c0_270 = arith.constant 0 : index
    %c4_271 = arith.constant 4 : index
    %308 = vector.load %arg33[%c0_270, %c4_271] : memref<48x384xf32, #tpu.memory_space<vmem>>, vector<24x32xf32>
    %c96_272 = arith.constant 96 : index
    %c0_273 = arith.constant 0 : index
    %309 = vector.load %arg34[%c96_272, %c0_273] : memref<240x256xf32, #tpu.memory_space<vmem>>, vector<24x32xf32>
    tpu.vector_store %arg34[%c96_272, %c0_273], %308 {strides = array<i32>} : memref<240x256xf32, #tpu.memory_space<vmem>>, vector<24x32xf32>,
    %c0_274 = arith.constant 0 : index
    %c0_275 = arith.constant 0 : index
    %310 = vector.load %arg34[%c0_274, %c0_275] : memref<240x256xf32, #tpu.memory_space<vmem>>, vector<120x32xf32>
    %c0_276 = arith.constant 0 : index
    %c0_277 = arith.constant 0 : index
    %311 = vector.load %arg16[%c0_276, %c0_277] : memref<24x120xf32, #tpu.memory_space<vmem>>, vector<24x120xf32>
    %cst_278 = arith.constant dense<0.000000e+00> : vector<24x32xf32>
    %312 = tpu.matmul %311, %310, %cst_278 {dimension_numbers = #tpu.dot_dimension_numbers<[1], [0], [0], [1], [0, 0, 1, 1], [], []>} : vector<24x120xf32>, vector<120x32xf32>, vector<24x32xf32> -> vector<24x32xf32>
    %c0_279 = arith.constant 0 : index
    %c0_280 = arith.constant 0 : index
    %313 = vector.load %arg17[%c0_279, %c0_280] : memref<24x1xf32, #tpu.memory_space<vmem>>, vector<24x1xf32>
    %314 = vector.broadcast %313 : vector<24x1xf32> to vector<24x32xf32>
    %315 = arith.mulf %312, %314 : vector<24x32xf32>
    %c0_281 = arith.constant 0 : index
    %c0_282 = arith.constant 0 : index
    %316 = vector.load %arg18[%c0_281, %c0_282] : memref<24x1xf32, #tpu.memory_space<vmem>>, vector<24x1xf32>
    %317 = vector.broadcast %316 : vector<24x1xf32> to vector<24x32xf32>
    %318 = arith.addf %315, %317 : vector<24x32xf32>
    %cst_283 = arith.constant 0.000000e+00 : f32
    %319 = vector.broadcast %cst_283 : f32 to vector<24x32xf32>
    %320 = arith.maximumf %318, %319 : vector<24x32xf32>
    %321 = tpu.iota {dimensions = array<i32: 0>} : vector<32x128xi32>
    %322 = tpu.iota {dimensions = array<i32: 1>} : vector<32x128xi32>
    %c0_284 = arith.constant 0 : index
    %c0_285 = arith.constant 0 : index
    %323 = vector.load %arg19[%c0_284, %c0_285] : memref<96x48xf32, #tpu.memory_space<vmem>>, vector<96x48xf32>
    %cst_286 = arith.constant 0.000000e+00 : f32
    %324 = vector.broadcast %cst_286 : f32 to vector<24x128xf32>
    %325 = vector.extract_strided_slice %323 {offsets = [0, 0], sizes = [24, 48], strides = [1, 1]} : vector<96x48xf32> to vector<24x48xf32>
    %cst_287 = arith.constant 0.000000e+00 : f32
    %326 = vector.broadcast %cst_287 : f32 to vector<24x32xf32>
    %327 = vector.extract_strided_slice %325 {offsets = [0, 0], sizes = [24, 24], strides = [1, 1]} : vector<24x48xf32> to vector<24x24xf32>
    %cst_288 = arith.constant dense<0.000000e+00> : vector<24x32xf32>
    %328 = tpu.matmul %327, %320, %cst_288 {dimension_numbers = #tpu.dot_dimension_numbers<[1], [0], [0], [1], [0, 0, 1, 1], [], []>} : vector<24x24xf32>, vector<24x32xf32>, vector<24x32xf32> -> vector<24x32xf32>
    %329 = arith.addf %326, %328 : vector<24x32xf32>
    %330 = vector.extract_strided_slice %325 {offsets = [0, 24], sizes = [24, 24], strides = [1, 1]} : vector<24x48xf32> to vector<24x24xf32>
    %cst_289 = arith.constant dense<0.000000e+00> : vector<24x32xf32>
    %331 = tpu.matmul %330, %178, %cst_289 {dimension_numbers = #tpu.dot_dimension_numbers<[1], [0], [0], [1], [0, 0, 1, 1], [], []>} : vector<24x24xf32>, vector<24x32xf32>, vector<24x32xf32> -> vector<24x32xf32>
    %332 = arith.addf %329, %331 : vector<24x32xf32>
    %c4_i32_290 = arith.constant 4 : i32
    %333 = vector.broadcast %c4_i32_290 : i32 to vector<32x128xi32>
    %334 = arith.muli %321, %333 : vector<32x128xi32>
    %c0_i32_291 = arith.constant 0 : i32
    %335 = vector.broadcast %c0_i32_291 : i32 to vector<32x128xi32>
    %336 = arith.addi %334, %335 : vector<32x128xi32>
    %337 = arith.cmpi eq, %322, %336 : vector<32x128xi32>
    %338 = arith.extui %337 : vector<32x128xi1> to vector<32x128xi32>
    %339 = arith.sitofp %338 : vector<32x128xi32> to vector<32x128xf32>
    %cst_292 = arith.constant dense<0.000000e+00> : vector<24x128xf32>
    %340 = tpu.matmul %332, %339, %cst_292 {dimension_numbers = #tpu.dot_dimension_numbers<[1], [0], [0], [1], [0, 0, 1, 1], [], []>} : vector<24x32xf32>, vector<32x128xf32>, vector<24x128xf32> -> vector<24x128xf32>
    %341 = arith.addf %324, %340 : vector<24x128xf32>
    %342 = vector.extract_strided_slice %323 {offsets = [24, 0], sizes = [24, 48], strides = [1, 1]} : vector<96x48xf32> to vector<24x48xf32>
    %cst_293 = arith.constant 0.000000e+00 : f32
    %343 = vector.broadcast %cst_293 : f32 to vector<24x32xf32>
    %344 = vector.extract_strided_slice %342 {offsets = [0, 0], sizes = [24, 24], strides = [1, 1]} : vector<24x48xf32> to vector<24x24xf32>
    %cst_294 = arith.constant dense<0.000000e+00> : vector<24x32xf32>
    %345 = tpu.matmul %344, %320, %cst_294 {dimension_numbers = #tpu.dot_dimension_numbers<[1], [0], [0], [1], [0, 0, 1, 1], [], []>} : vector<24x24xf32>, vector<24x32xf32>, vector<24x32xf32> -> vector<24x32xf32>
    %346 = arith.addf %343, %345 : vector<24x32xf32>
    %347 = vector.extract_strided_slice %342 {offsets = [0, 24], sizes = [24, 24], strides = [1, 1]} : vector<24x48xf32> to vector<24x24xf32>
    %cst_295 = arith.constant dense<0.000000e+00> : vector<24x32xf32>
    %348 = tpu.matmul %347, %178, %cst_295 {dimension_numbers = #tpu.dot_dimension_numbers<[1], [0], [0], [1], [0, 0, 1, 1], [], []>} : vector<24x24xf32>, vector<24x32xf32>, vector<24x32xf32> -> vector<24x32xf32>
    %349 = arith.addf %346, %348 : vector<24x32xf32>
    %c4_i32_296 = arith.constant 4 : i32
    %350 = vector.broadcast %c4_i32_296 : i32 to vector<32x128xi32>
    %351 = arith.muli %321, %350 : vector<32x128xi32>
    %c1_i32_297 = arith.constant 1 : i32
    %352 = vector.broadcast %c1_i32_297 : i32 to vector<32x128xi32>
    %353 = arith.addi %351, %352 : vector<32x128xi32>
    %354 = arith.cmpi eq, %322, %353 : vector<32x128xi32>
    %355 = arith.extui %354 : vector<32x128xi1> to vector<32x128xi32>
    %356 = arith.sitofp %355 : vector<32x128xi32> to vector<32x128xf32>
    %cst_298 = arith.constant dense<0.000000e+00> : vector<24x128xf32>
    %357 = tpu.matmul %349, %356, %cst_298 {dimension_numbers = #tpu.dot_dimension_numbers<[1], [0], [0], [1], [0, 0, 1, 1], [], []>} : vector<24x32xf32>, vector<32x128xf32>, vector<24x128xf32> -> vector<24x128xf32>
    %358 = arith.addf %341, %357 : vector<24x128xf32>
    %359 = vector.extract_strided_slice %323 {offsets = [48, 0], sizes = [24, 48], strides = [1, 1]} : vector<96x48xf32> to vector<24x48xf32>
    %cst_299 = arith.constant 0.000000e+00 : f32
    %360 = vector.broadcast %cst_299 : f32 to vector<24x32xf32>
    %361 = vector.extract_strided_slice %359 {offsets = [0, 0], sizes = [24, 24], strides = [1, 1]} : vector<24x48xf32> to vector<24x24xf32>
    %cst_300 = arith.constant dense<0.000000e+00> : vector<24x32xf32>
    %362 = tpu.matmul %361, %320, %cst_300 {dimension_numbers = #tpu.dot_dimension_numbers<[1], [0], [0], [1], [0, 0, 1, 1], [], []>} : vector<24x24xf32>, vector<24x32xf32>, vector<24x32xf32> -> vector<24x32xf32>
    %363 = arith.addf %360, %362 : vector<24x32xf32>
    %364 = vector.extract_strided_slice %359 {offsets = [0, 24], sizes = [24, 24], strides = [1, 1]} : vector<24x48xf32> to vector<24x24xf32>
    %cst_301 = arith.constant dense<0.000000e+00> : vector<24x32xf32>
    %365 = tpu.matmul %364, %178, %cst_301 {dimension_numbers = #tpu.dot_dimension_numbers<[1], [0], [0], [1], [0, 0, 1, 1], [], []>} : vector<24x24xf32>, vector<24x32xf32>, vector<24x32xf32> -> vector<24x32xf32>
    %366 = arith.addf %363, %365 : vector<24x32xf32>
    %c4_i32_302 = arith.constant 4 : i32
    %367 = vector.broadcast %c4_i32_302 : i32 to vector<32x128xi32>
    %368 = arith.muli %321, %367 : vector<32x128xi32>
    %c2_i32_303 = arith.constant 2 : i32
    %369 = vector.broadcast %c2_i32_303 : i32 to vector<32x128xi32>
    %370 = arith.addi %368, %369 : vector<32x128xi32>
    %371 = arith.cmpi eq, %322, %370 : vector<32x128xi32>
    %372 = arith.extui %371 : vector<32x128xi1> to vector<32x128xi32>
    %373 = arith.sitofp %372 : vector<32x128xi32> to vector<32x128xf32>
    %cst_304 = arith.constant dense<0.000000e+00> : vector<24x128xf32>
    %374 = tpu.matmul %366, %373, %cst_304 {dimension_numbers = #tpu.dot_dimension_numbers<[1], [0], [0], [1], [0, 0, 1, 1], [], []>} : vector<24x32xf32>, vector<32x128xf32>, vector<24x128xf32> -> vector<24x128xf32>
    %375 = arith.addf %358, %374 : vector<24x128xf32>
    %376 = vector.extract_strided_slice %323 {offsets = [72, 0], sizes = [24, 48], strides = [1, 1]} : vector<96x48xf32> to vector<24x48xf32>
    %cst_305 = arith.constant 0.000000e+00 : f32
    %377 = vector.broadcast %cst_305 : f32 to vector<24x32xf32>
    %378 = vector.extract_strided_slice %376 {offsets = [0, 0], sizes = [24, 24], strides = [1, 1]} : vector<24x48xf32> to vector<24x24xf32>
    %cst_306 = arith.constant dense<0.000000e+00> : vector<24x32xf32>
    %379 = tpu.matmul %378, %320, %cst_306 {dimension_numbers = #tpu.dot_dimension_numbers<[1], [0], [0], [1], [0, 0, 1, 1], [], []>} : vector<24x24xf32>, vector<24x32xf32>, vector<24x32xf32> -> vector<24x32xf32>
    %380 = arith.addf %377, %379 : vector<24x32xf32>
    %381 = vector.extract_strided_slice %376 {offsets = [0, 24], sizes = [24, 24], strides = [1, 1]} : vector<24x48xf32> to vector<24x24xf32>
    %cst_307 = arith.constant dense<0.000000e+00> : vector<24x32xf32>
    %382 = tpu.matmul %381, %178, %cst_307 {dimension_numbers = #tpu.dot_dimension_numbers<[1], [0], [0], [1], [0, 0, 1, 1], [], []>} : vector<24x24xf32>, vector<24x32xf32>, vector<24x32xf32> -> vector<24x32xf32>
    %383 = arith.addf %380, %382 : vector<24x32xf32>
    %c4_i32_308 = arith.constant 4 : i32
    %384 = vector.broadcast %c4_i32_308 : i32 to vector<32x128xi32>
    %385 = arith.muli %321, %384 : vector<32x128xi32>
    %c3_i32_309 = arith.constant 3 : i32
    %386 = vector.broadcast %c3_i32_309 : i32 to vector<32x128xi32>
    %387 = arith.addi %385, %386 : vector<32x128xi32>
    %388 = arith.cmpi eq, %322, %387 : vector<32x128xi32>
    %389 = arith.extui %388 : vector<32x128xi1> to vector<32x128xi32>
    %390 = arith.sitofp %389 : vector<32x128xi32> to vector<32x128xf32>
    %cst_310 = arith.constant dense<0.000000e+00> : vector<24x128xf32>
    %391 = tpu.matmul %383, %390, %cst_310 {dimension_numbers = #tpu.dot_dimension_numbers<[1], [0], [0], [1], [0, 0, 1, 1], [], []>} : vector<24x32xf32>, vector<32x128xf32>, vector<24x128xf32> -> vector<24x128xf32>
    %392 = arith.addf %375, %391 : vector<24x128xf32>
    %c0_311 = arith.constant 0 : index
    %c0_312 = arith.constant 0 : index
    %393 = vector.load %arg20[%c0_311, %c0_312] : memref<24x1xf32, #tpu.memory_space<vmem>>, vector<24x1xf32>
    %394 = vector.broadcast %393 : vector<24x1xf32> to vector<24x128xf32>
    %395 = arith.addf %392, %394 : vector<24x128xf32>
    %cst_313 = arith.constant 0.000000e+00 : f32
    %396 = vector.broadcast %cst_313 : f32 to vector<24x2xf32>
    %c0_314 = arith.constant 0 : index
    %c0_315 = arith.constant 0 : index
    %397 = vector.load %arg33[%c0_314, %c0_315] : memref<48x384xf32, #tpu.memory_space<vmem>>, vector<24x2xf32>
    tpu.vector_store %arg33[%c0_314, %c0_315], %396 {strides = array<i32>} : memref<48x384xf32, #tpu.memory_space<vmem>>, vector<24x2xf32>,
    %c0_316 = arith.constant 0 : index
    %c130_317 = arith.constant 130 : index
    %398 = vector.load %arg33[%c0_316, %c130_317] : memref<48x384xf32, #tpu.memory_space<vmem>>, vector<24x2xf32>
    tpu.vector_store %arg33[%c0_316, %c130_317], %396 {strides = array<i32>} : memref<48x384xf32, #tpu.memory_space<vmem>>, vector<24x2xf32>,
    %c0_318 = arith.constant 0 : index
    %c2_319 = arith.constant 2 : index
    %399 = vector.load %arg33[%c0_318, %c2_319] : memref<48x384xf32, #tpu.memory_space<vmem>>, vector<24x128xf32>
    tpu.vector_store %arg33[%c0_318, %c2_319], %395 {strides = array<i32>} : memref<48x384xf32, #tpu.memory_space<vmem>>, vector<24x128xf32>,
    %c0_320 = arith.constant 0 : index
    %c0_321 = arith.constant 0 : index
    %400 = vector.load %arg33[%c0_320, %c0_321] : memref<48x384xf32, #tpu.memory_space<vmem>>, vector<24x128xf32>
    %c0_322 = arith.constant 0 : index
    %c0_323 = arith.constant 0 : index
    %401 = vector.load %arg34[%c0_322, %c0_323] : memref<240x256xf32, #tpu.memory_space<vmem>>, vector<24x128xf32>
    tpu.vector_store %arg34[%c0_322, %c0_323], %400 {strides = array<i32>} : memref<240x256xf32, #tpu.memory_space<vmem>>, vector<24x128xf32>,
    %c0_324 = arith.constant 0 : index
    %c1_325 = arith.constant 1 : index
    %402 = vector.load %arg33[%c0_324, %c1_325] : memref<48x384xf32, #tpu.memory_space<vmem>>, vector<24x128xf32>
    %c24_326 = arith.constant 24 : index
    %c0_327 = arith.constant 0 : index
    %403 = vector.load %arg34[%c24_326, %c0_327] : memref<240x256xf32, #tpu.memory_space<vmem>>, vector<24x128xf32>
    tpu.vector_store %arg34[%c24_326, %c0_327], %402 {strides = array<i32>} : memref<240x256xf32, #tpu.memory_space<vmem>>, vector<24x128xf32>,
    %c0_328 = arith.constant 0 : index
    %c2_329 = arith.constant 2 : index
    %404 = vector.load %arg33[%c0_328, %c2_329] : memref<48x384xf32, #tpu.memory_space<vmem>>, vector<24x128xf32>
    %c48_330 = arith.constant 48 : index
    %c0_331 = arith.constant 0 : index
    %405 = vector.load %arg34[%c48_330, %c0_331] : memref<240x256xf32, #tpu.memory_space<vmem>>, vector<24x128xf32>
    tpu.vector_store %arg34[%c48_330, %c0_331], %404 {strides = array<i32>} : memref<240x256xf32, #tpu.memory_space<vmem>>, vector<24x128xf32>,
    %c0_332 = arith.constant 0 : index
    %c3_333 = arith.constant 3 : index
    %406 = vector.load %arg33[%c0_332, %c3_333] : memref<48x384xf32, #tpu.memory_space<vmem>>, vector<24x128xf32>
    %c72_334 = arith.constant 72 : index
    %c0_335 = arith.constant 0 : index
    %407 = vector.load %arg34[%c72_334, %c0_335] : memref<240x256xf32, #tpu.memory_space<vmem>>, vector<24x128xf32>
    tpu.vector_store %arg34[%c72_334, %c0_335], %406 {strides = array<i32>} : memref<240x256xf32, #tpu.memory_space<vmem>>, vector<24x128xf32>,
    %c0_336 = arith.constant 0 : index
    %c4_337 = arith.constant 4 : index
    %408 = vector.load %arg33[%c0_336, %c4_337] : memref<48x384xf32, #tpu.memory_space<vmem>>, vector<24x128xf32>
    %c96_338 = arith.constant 96 : index
    %c0_339 = arith.constant 0 : index
    %409 = vector.load %arg34[%c96_338, %c0_339] : memref<240x256xf32, #tpu.memory_space<vmem>>, vector<24x128xf32>
    tpu.vector_store %arg34[%c96_338, %c0_339], %408 {strides = array<i32>} : memref<240x256xf32, #tpu.memory_space<vmem>>, vector<24x128xf32>,
    %c0_340 = arith.constant 0 : index
    %c0_341 = arith.constant 0 : index
    %410 = vector.load %arg34[%c0_340, %c0_341] : memref<240x256xf32, #tpu.memory_space<vmem>>, vector<120x128xf32>
    %c0_342 = arith.constant 0 : index
    %c0_343 = arith.constant 0 : index
    %411 = vector.load %arg21[%c0_342, %c0_343] : memref<24x120xf32, #tpu.memory_space<vmem>>, vector<24x120xf32>
    %cst_344 = arith.constant dense<0.000000e+00> : vector<24x128xf32>
    %412 = tpu.matmul %411, %410, %cst_344 {dimension_numbers = #tpu.dot_dimension_numbers<[1], [0], [0], [1], [0, 0, 1, 1], [], []>} : vector<24x120xf32>, vector<120x128xf32>, vector<24x128xf32> -> vector<24x128xf32>
    %c0_345 = arith.constant 0 : index
    %c0_346 = arith.constant 0 : index
    %413 = vector.load %arg22[%c0_345, %c0_346] : memref<24x1xf32, #tpu.memory_space<vmem>>, vector<24x1xf32>
    %414 = vector.broadcast %413 : vector<24x1xf32> to vector<24x128xf32>
    %415 = arith.mulf %412, %414 : vector<24x128xf32>
    %c0_347 = arith.constant 0 : index
    %c0_348 = arith.constant 0 : index
    %416 = vector.load %arg23[%c0_347, %c0_348] : memref<24x1xf32, #tpu.memory_space<vmem>>, vector<24x1xf32>
    %417 = vector.broadcast %416 : vector<24x1xf32> to vector<24x128xf32>
    %418 = arith.addf %415, %417 : vector<24x128xf32>
    %cst_349 = arith.constant 0.000000e+00 : f32
    %419 = vector.broadcast %cst_349 : f32 to vector<24x128xf32>
    %420 = arith.maximumf %418, %419 : vector<24x128xf32>
    %421 = tpu.iota {dimensions = array<i32: 0>} : vector<128x256xi32>
    %422 = tpu.iota {dimensions = array<i32: 1>} : vector<128x256xi32>
    %c0_350 = arith.constant 0 : index
    %c0_351 = arith.constant 0 : index
    %423 = vector.load %arg24[%c0_350, %c0_351] : memref<48x48xf32, #tpu.memory_space<vmem>>, vector<48x48xf32>
    %cst_352 = arith.constant 0.000000e+00 : f32
    %424 = vector.broadcast %cst_352 : f32 to vector<24x256xf32>
    %425 = vector.extract_strided_slice %423 {offsets = [0, 0], sizes = [24, 48], strides = [1, 1]} : vector<48x48xf32> to vector<24x48xf32>
    %cst_353 = arith.constant 0.000000e+00 : f32
    %426 = vector.broadcast %cst_353 : f32 to vector<24x128xf32>
    %427 = vector.extract_strided_slice %425 {offsets = [0, 0], sizes = [24, 24], strides = [1, 1]} : vector<24x48xf32> to vector<24x24xf32>
    %cst_354 = arith.constant dense<0.000000e+00> : vector<24x128xf32>
    %428 = tpu.matmul %427, %420, %cst_354 {dimension_numbers = #tpu.dot_dimension_numbers<[1], [0], [0], [1], [0, 0, 1, 1], [], []>} : vector<24x24xf32>, vector<24x128xf32>, vector<24x128xf32> -> vector<24x128xf32>
    %429 = arith.addf %426, %428 : vector<24x128xf32>
    %430 = vector.extract_strided_slice %425 {offsets = [0, 24], sizes = [24, 24], strides = [1, 1]} : vector<24x48xf32> to vector<24x24xf32>
    %cst_355 = arith.constant dense<0.000000e+00> : vector<24x128xf32>
    %431 = tpu.matmul %430, %116, %cst_355 {dimension_numbers = #tpu.dot_dimension_numbers<[1], [0], [0], [1], [0, 0, 1, 1], [], []>} : vector<24x24xf32>, vector<24x128xf32>, vector<24x128xf32> -> vector<24x128xf32>
    %432 = arith.addf %429, %431 : vector<24x128xf32>
    %c2_i32_356 = arith.constant 2 : i32
    %433 = vector.broadcast %c2_i32_356 : i32 to vector<128x256xi32>
    %434 = arith.muli %421, %433 : vector<128x256xi32>
    %c0_i32_357 = arith.constant 0 : i32
    %435 = vector.broadcast %c0_i32_357 : i32 to vector<128x256xi32>
    %436 = arith.addi %434, %435 : vector<128x256xi32>
    %437 = arith.cmpi eq, %422, %436 : vector<128x256xi32>
    %438 = arith.extui %437 : vector<128x256xi1> to vector<128x256xi32>
    %439 = arith.sitofp %438 : vector<128x256xi32> to vector<128x256xf32>
    %cst_358 = arith.constant dense<0.000000e+00> : vector<24x256xf32>
    %440 = tpu.matmul %432, %439, %cst_358 {dimension_numbers = #tpu.dot_dimension_numbers<[1], [0], [0], [1], [0, 0, 1, 1], [], []>} : vector<24x128xf32>, vector<128x256xf32>, vector<24x256xf32> -> vector<24x256xf32>
    %441 = arith.addf %424, %440 : vector<24x256xf32>
    %442 = vector.extract_strided_slice %423 {offsets = [24, 0], sizes = [24, 48], strides = [1, 1]} : vector<48x48xf32> to vector<24x48xf32>
    %cst_359 = arith.constant 0.000000e+00 : f32
    %443 = vector.broadcast %cst_359 : f32 to vector<24x128xf32>
    %444 = vector.extract_strided_slice %442 {offsets = [0, 0], sizes = [24, 24], strides = [1, 1]} : vector<24x48xf32> to vector<24x24xf32>
    %cst_360 = arith.constant dense<0.000000e+00> : vector<24x128xf32>
    %445 = tpu.matmul %444, %420, %cst_360 {dimension_numbers = #tpu.dot_dimension_numbers<[1], [0], [0], [1], [0, 0, 1, 1], [], []>} : vector<24x24xf32>, vector<24x128xf32>, vector<24x128xf32> -> vector<24x128xf32>
    %446 = arith.addf %443, %445 : vector<24x128xf32>
    %447 = vector.extract_strided_slice %442 {offsets = [0, 24], sizes = [24, 24], strides = [1, 1]} : vector<24x48xf32> to vector<24x24xf32>
    %cst_361 = arith.constant dense<0.000000e+00> : vector<24x128xf32>
    %448 = tpu.matmul %447, %116, %cst_361 {dimension_numbers = #tpu.dot_dimension_numbers<[1], [0], [0], [1], [0, 0, 1, 1], [], []>} : vector<24x24xf32>, vector<24x128xf32>, vector<24x128xf32> -> vector<24x128xf32>
    %449 = arith.addf %446, %448 : vector<24x128xf32>
    %c2_i32_362 = arith.constant 2 : i32
    %450 = vector.broadcast %c2_i32_362 : i32 to vector<128x256xi32>
    %451 = arith.muli %421, %450 : vector<128x256xi32>
    %c1_i32_363 = arith.constant 1 : i32
    %452 = vector.broadcast %c1_i32_363 : i32 to vector<128x256xi32>
    %453 = arith.addi %451, %452 : vector<128x256xi32>
    %454 = arith.cmpi eq, %422, %453 : vector<128x256xi32>
    %455 = arith.extui %454 : vector<128x256xi1> to vector<128x256xi32>
    %456 = arith.sitofp %455 : vector<128x256xi32> to vector<128x256xf32>
    %cst_364 = arith.constant dense<0.000000e+00> : vector<24x256xf32>
    %457 = tpu.matmul %449, %456, %cst_364 {dimension_numbers = #tpu.dot_dimension_numbers<[1], [0], [0], [1], [0, 0, 1, 1], [], []>} : vector<24x128xf32>, vector<128x256xf32>, vector<24x256xf32> -> vector<24x256xf32>
    %458 = arith.addf %441, %457 : vector<24x256xf32>
    %c0_365 = arith.constant 0 : index
    %c0_366 = arith.constant 0 : index
    %459 = vector.load %arg25[%c0_365, %c0_366] : memref<24x1xf32, #tpu.memory_space<vmem>>, vector<24x1xf32>
    %460 = vector.broadcast %459 : vector<24x1xf32> to vector<24x256xf32>
    %461 = arith.addf %458, %460 : vector<24x256xf32>
    %cst_367 = arith.constant 0.000000e+00 : f32
    %462 = vector.broadcast %cst_367 : f32 to vector<24x2xf32>
    %c0_368 = arith.constant 0 : index
    %c0_369 = arith.constant 0 : index
    %463 = vector.load %arg33[%c0_368, %c0_369] : memref<48x384xf32, #tpu.memory_space<vmem>>, vector<24x2xf32>
    tpu.vector_store %arg33[%c0_368, %c0_369], %462 {strides = array<i32>} : memref<48x384xf32, #tpu.memory_space<vmem>>, vector<24x2xf32>,
    %c0_370 = arith.constant 0 : index
    %c258 = arith.constant 258 : index
    %464 = vector.load %arg33[%c0_370, %c258] : memref<48x384xf32, #tpu.memory_space<vmem>>, vector<24x2xf32>
    tpu.vector_store %arg33[%c0_370, %c258], %462 {strides = array<i32>} : memref<48x384xf32, #tpu.memory_space<vmem>>, vector<24x2xf32>,
    %c0_371 = arith.constant 0 : index
    %c2_372 = arith.constant 2 : index
    %465 = vector.load %arg33[%c0_371, %c2_372] : memref<48x384xf32, #tpu.memory_space<vmem>>, vector<24x256xf32>
    tpu.vector_store %arg33[%c0_371, %c2_372], %461 {strides = array<i32>} : memref<48x384xf32, #tpu.memory_space<vmem>>, vector<24x256xf32>,
    %c0_373 = arith.constant 0 : index
    %c0_374 = arith.constant 0 : index
    %466 = vector.load %arg33[%c0_373, %c0_374] : memref<48x384xf32, #tpu.memory_space<vmem>>, vector<24x256xf32>
    %c0_375 = arith.constant 0 : index
    %c0_376 = arith.constant 0 : index
    %467 = vector.load %arg34[%c0_375, %c0_376] : memref<240x256xf32, #tpu.memory_space<vmem>>, vector<24x256xf32>
    tpu.vector_store %arg34[%c0_375, %c0_376], %466 {strides = array<i32>} : memref<240x256xf32, #tpu.memory_space<vmem>>, vector<24x256xf32>,
    %c0_377 = arith.constant 0 : index
    %c1_378 = arith.constant 1 : index
    %468 = vector.load %arg33[%c0_377, %c1_378] : memref<48x384xf32, #tpu.memory_space<vmem>>, vector<24x256xf32>
    %c24_379 = arith.constant 24 : index
    %c0_380 = arith.constant 0 : index
    %469 = vector.load %arg34[%c24_379, %c0_380] : memref<240x256xf32, #tpu.memory_space<vmem>>, vector<24x256xf32>
    tpu.vector_store %arg34[%c24_379, %c0_380], %468 {strides = array<i32>} : memref<240x256xf32, #tpu.memory_space<vmem>>, vector<24x256xf32>,
    %c0_381 = arith.constant 0 : index
    %c2_382 = arith.constant 2 : index
    %470 = vector.load %arg33[%c0_381, %c2_382] : memref<48x384xf32, #tpu.memory_space<vmem>>, vector<24x256xf32>
    %c48_383 = arith.constant 48 : index
    %c0_384 = arith.constant 0 : index
    %471 = vector.load %arg34[%c48_383, %c0_384] : memref<240x256xf32, #tpu.memory_space<vmem>>, vector<24x256xf32>
    tpu.vector_store %arg34[%c48_383, %c0_384], %470 {strides = array<i32>} : memref<240x256xf32, #tpu.memory_space<vmem>>, vector<24x256xf32>,
    %c0_385 = arith.constant 0 : index
    %c3_386 = arith.constant 3 : index
    %472 = vector.load %arg33[%c0_385, %c3_386] : memref<48x384xf32, #tpu.memory_space<vmem>>, vector<24x256xf32>
    %c72_387 = arith.constant 72 : index
    %c0_388 = arith.constant 0 : index
    %473 = vector.load %arg34[%c72_387, %c0_388] : memref<240x256xf32, #tpu.memory_space<vmem>>, vector<24x256xf32>
    tpu.vector_store %arg34[%c72_387, %c0_388], %472 {strides = array<i32>} : memref<240x256xf32, #tpu.memory_space<vmem>>, vector<24x256xf32>,
    %c0_389 = arith.constant 0 : index
    %c4_390 = arith.constant 4 : index
    %474 = vector.load %arg33[%c0_389, %c4_390] : memref<48x384xf32, #tpu.memory_space<vmem>>, vector<24x256xf32>
    %c96_391 = arith.constant 96 : index
    %c0_392 = arith.constant 0 : index
    %475 = vector.load %arg34[%c96_391, %c0_392] : memref<240x256xf32, #tpu.memory_space<vmem>>, vector<24x256xf32>
    tpu.vector_store %arg34[%c96_391, %c0_392], %474 {strides = array<i32>} : memref<240x256xf32, #tpu.memory_space<vmem>>, vector<24x256xf32>,
    %c0_393 = arith.constant 0 : index
    %c0_394 = arith.constant 0 : index
    %476 = vector.load %arg34[%c0_393, %c0_394] : memref<240x256xf32, #tpu.memory_space<vmem>>, vector<120x256xf32>
    %c0_395 = arith.constant 0 : index
    %c0_396 = arith.constant 0 : index
    %477 = vector.load %arg26[%c0_395, %c0_396] : memref<24x120xf32, #tpu.memory_space<vmem>>, vector<24x120xf32>
    %cst_397 = arith.constant dense<0.000000e+00> : vector<24x256xf32>
    %478 = tpu.matmul %477, %476, %cst_397 {dimension_numbers = #tpu.dot_dimension_numbers<[1], [0], [0], [1], [0, 0, 1, 1], [], []>} : vector<24x120xf32>, vector<120x256xf32>, vector<24x256xf32> -> vector<24x256xf32>
    %c0_398 = arith.constant 0 : index
    %c0_399 = arith.constant 0 : index
    %479 = vector.load %arg27[%c0_398, %c0_399] : memref<24x1xf32, #tpu.memory_space<vmem>>, vector<24x1xf32>
    %480 = vector.broadcast %479 : vector<24x1xf32> to vector<24x256xf32>
    %481 = arith.mulf %478, %480 : vector<24x256xf32>
    %c0_400 = arith.constant 0 : index
    %c0_401 = arith.constant 0 : index
    %482 = vector.load %arg28[%c0_400, %c0_401] : memref<24x1xf32, #tpu.memory_space<vmem>>, vector<24x1xf32>
    %483 = vector.broadcast %482 : vector<24x1xf32> to vector<24x256xf32>
    %484 = arith.addf %481, %483 : vector<24x256xf32>
    %cst_402 = arith.constant 0.000000e+00 : f32
    %485 = vector.broadcast %cst_402 : f32 to vector<24x256xf32>
    %486 = arith.maximumf %484, %485 : vector<24x256xf32>
    %cst_403 = arith.constant 0.000000e+00 : f32
    %487 = vector.broadcast %cst_403 : f32 to vector<48x2xf32>
    %c0_404 = arith.constant 0 : index
    %c0_405 = arith.constant 0 : index
    %488 = vector.load %arg33[%c0_404, %c0_405] : memref<48x384xf32, #tpu.memory_space<vmem>>, vector<48x2xf32>
    tpu.vector_store %arg33[%c0_404, %c0_405], %487 {strides = array<i32>} : memref<48x384xf32, #tpu.memory_space<vmem>>, vector<48x2xf32>,
    %c0_406 = arith.constant 0 : index
    %c258_407 = arith.constant 258 : index
    %489 = vector.load %arg33[%c0_406, %c258_407] : memref<48x384xf32, #tpu.memory_space<vmem>>, vector<48x2xf32>
    tpu.vector_store %arg33[%c0_406, %c258_407], %487 {strides = array<i32>} : memref<48x384xf32, #tpu.memory_space<vmem>>, vector<48x2xf32>,
    %c0_408 = arith.constant 0 : index
    %c2_409 = arith.constant 2 : index
    %490 = vector.load %arg33[%c0_408, %c2_409] : memref<48x384xf32, #tpu.memory_space<vmem>>, vector<24x256xf32>
    tpu.vector_store %arg33[%c0_408, %c2_409], %486 {strides = array<i32>} : memref<48x384xf32, #tpu.memory_space<vmem>>, vector<24x256xf32>,
    %c24_410 = arith.constant 24 : index
    %c2_411 = arith.constant 2 : index
    %491 = vector.load %arg33[%c24_410, %c2_411] : memref<48x384xf32, #tpu.memory_space<vmem>>, vector<24x256xf32>
    tpu.vector_store %arg33[%c24_410, %c2_411], %68 {strides = array<i32>} : memref<48x384xf32, #tpu.memory_space<vmem>>, vector<24x256xf32>,
    %c0_412 = arith.constant 0 : index
    %c0_413 = arith.constant 0 : index
    %492 = vector.load %arg33[%c0_412, %c0_413] : memref<48x384xf32, #tpu.memory_space<vmem>>, vector<48x256xf32>
    %c0_414 = arith.constant 0 : index
    %c0_415 = arith.constant 0 : index
    %493 = vector.load %arg34[%c0_414, %c0_415] : memref<240x256xf32, #tpu.memory_space<vmem>>, vector<48x256xf32>
    tpu.vector_store %arg34[%c0_414, %c0_415], %492 {strides = array<i32>} : memref<240x256xf32, #tpu.memory_space<vmem>>, vector<48x256xf32>,
    %c0_416 = arith.constant 0 : index
    %c1_417 = arith.constant 1 : index
    %494 = vector.load %arg33[%c0_416, %c1_417] : memref<48x384xf32, #tpu.memory_space<vmem>>, vector<48x256xf32>
    %c48_418 = arith.constant 48 : index
    %c0_419 = arith.constant 0 : index
    %495 = vector.load %arg34[%c48_418, %c0_419] : memref<240x256xf32, #tpu.memory_space<vmem>>, vector<48x256xf32>
    tpu.vector_store %arg34[%c48_418, %c0_419], %494 {strides = array<i32>} : memref<240x256xf32, #tpu.memory_space<vmem>>, vector<48x256xf32>,
    %c0_420 = arith.constant 0 : index
    %c2_421 = arith.constant 2 : index
    %496 = vector.load %arg33[%c0_420, %c2_421] : memref<48x384xf32, #tpu.memory_space<vmem>>, vector<48x256xf32>
    %c96_422 = arith.constant 96 : index
    %c0_423 = arith.constant 0 : index
    %497 = vector.load %arg34[%c96_422, %c0_423] : memref<240x256xf32, #tpu.memory_space<vmem>>, vector<48x256xf32>
    tpu.vector_store %arg34[%c96_422, %c0_423], %496 {strides = array<i32>} : memref<240x256xf32, #tpu.memory_space<vmem>>, vector<48x256xf32>,
    %c0_424 = arith.constant 0 : index
    %c3_425 = arith.constant 3 : index
    %498 = vector.load %arg33[%c0_424, %c3_425] : memref<48x384xf32, #tpu.memory_space<vmem>>, vector<48x256xf32>
    %c144_426 = arith.constant 144 : index
    %c0_427 = arith.constant 0 : index
    %499 = vector.load %arg34[%c144_426, %c0_427] : memref<240x256xf32, #tpu.memory_space<vmem>>, vector<48x256xf32>
    tpu.vector_store %arg34[%c144_426, %c0_427], %498 {strides = array<i32>} : memref<240x256xf32, #tpu.memory_space<vmem>>, vector<48x256xf32>,
    %c0_428 = arith.constant 0 : index
    %c4_429 = arith.constant 4 : index
    %500 = vector.load %arg33[%c0_428, %c4_429] : memref<48x384xf32, #tpu.memory_space<vmem>>, vector<48x256xf32>
    %c192 = arith.constant 192 : index
    %c0_430 = arith.constant 0 : index
    %501 = vector.load %arg34[%c192, %c0_430] : memref<240x256xf32, #tpu.memory_space<vmem>>, vector<48x256xf32>
    tpu.vector_store %arg34[%c192, %c0_430], %500 {strides = array<i32>} : memref<240x256xf32, #tpu.memory_space<vmem>>, vector<48x256xf32>,
    %c0_431 = arith.constant 0 : index
    %c0_432 = arith.constant 0 : index
    %502 = vector.load %arg34[%c0_431, %c0_432] : memref<240x256xf32, #tpu.memory_space<vmem>>, vector<240x256xf32>
    %c0_433 = arith.constant 0 : index
    %c0_434 = arith.constant 0 : index
    %503 = vector.load %arg29[%c0_433, %c0_434] : memref<1x240xf32, #tpu.memory_space<vmem>>, vector<1x240xf32>
    %cst_435 = arith.constant dense<0.000000e+00> : vector<1x256xf32>
    %504 = tpu.matmul %503, %502, %cst_435 {dimension_numbers = #tpu.dot_dimension_numbers<[1], [0], [0], [1], [0, 0, 1, 1], [], []>} : vector<1x240xf32>, vector<240x256xf32>, vector<1x256xf32> -> vector<1x256xf32>
    %c0_436 = arith.constant 0 : index
    %c0_437 = arith.constant 0 : index
    %505 = vector.load %arg30[%c0_436, %c0_437] : memref<1x1xf32, #tpu.memory_space<vmem>>, vector<1x1xf32>
    %506 = vector.broadcast %505 : vector<1x1xf32> to vector<1x256xf32>
    %507 = arith.mulf %504, %506 : vector<1x256xf32>
    %c0_438 = arith.constant 0 : index
    %c0_439 = arith.constant 0 : index
    %508 = vector.load %arg31[%c0_438, %c0_439] : memref<1x1xf32, #tpu.memory_space<vmem>>, vector<1x1xf32>
    %509 = vector.broadcast %508 : vector<1x1xf32> to vector<1x256xf32>
    %510 = arith.addf %507, %509 : vector<1x256xf32>
    %cst_440 = arith.constant 0.000000e+00 : f32
    %511 = vector.broadcast %cst_440 : f32 to vector<1x256xf32>
    %512 = arith.maximumf %510, %511 : vector<1x256xf32>
    %513 = math.absf %510 : vector<1x256xf32>
    %cst_441 = arith.constant 0.000000e+00 : f32
    %514 = vector.broadcast %cst_441 : f32 to vector<1x256xf32>
    %515 = arith.subf %514, %513 : vector<1x256xf32>
    %516 = math.exp %515 : vector<1x256xf32>
    %517 = math.log1p %516 : vector<1x256xf32>
    %518 = arith.addf %512, %517 : vector<1x256xf32>
    %c0_442 = arith.constant 0 : index
    %c0_443 = arith.constant 0 : index
    %c0_444 = arith.constant 0 : index
    %519 = vector.load %arg32[%c0_442, %c0_443, %c0_444] : memref<1x1x256xf32, #tpu.memory_space<vmem>>, vector<1x1x256xf32>
    %520 = vector.shape_cast %519 : vector<1x1x256xf32> to vector<1x256xf32>
    %521 = vector.shape_cast %518 : vector<1x256xf32> to vector<1x1x256xf32>
    tpu.vector_store %arg32[%c0_442, %c0_443, %c0_444], %521 {strides = array<i32>} : memref<1x1x256xf32, #tpu.memory_space<vmem>>, vector<1x1x256xf32>,
    return
  }
  func.func @transform_0(%arg0: i32) -> (i32, i32, i32) {
    %c0_i32 = arith.constant 0 : i32
    %c0_i32_0 = arith.constant 0 : i32
    %c0_i32_1 = arith.constant 0 : i32
    return %arg0, %c0_i32, %c0_i32_0 : i32, i32, i32
  }
  func.func @transform_1(%arg0: i32) -> (i32, i32) {
    %c0_i32 = arith.constant 0 : i32
    %c0_i32_0 = arith.constant 0 : i32
    %c0_i32_1 = arith.constant 0 : i32
    return %c0_i32, %c0_i32_0 : i32, i32
  }
  func.func @transform_2(%arg0: i32) -> (i32, i32) {
    %c0_i32 = arith.constant 0 : i32
    %c0_i32_0 = arith.constant 0 : i32
    %c0_i32_1 = arith.constant 0 : i32
    return %c0_i32, %c0_i32_0 : i32, i32
  }
  func.func @transform_3(%arg0: i32) -> (i32, i32) {
    %c0_i32 = arith.constant 0 : i32
    %c0_i32_0 = arith.constant 0 : i32
    %c0_i32_1 = arith.constant 0 : i32
    return %c0_i32, %c0_i32_0 : i32, i32
  }
  func.func @transform_4(%arg0: i32) -> (i32, i32) {
    %c0_i32 = arith.constant 0 : i32
    %c0_i32_0 = arith.constant 0 : i32
    %c0_i32_1 = arith.constant 0 : i32
    return %c0_i32, %c0_i32_0 : i32, i32
  }
  func.func @transform_5(%arg0: i32) -> (i32, i32) {
    %c0_i32 = arith.constant 0 : i32
    %c0_i32_0 = arith.constant 0 : i32
    %c0_i32_1 = arith.constant 0 : i32
    return %c0_i32, %c0_i32_0 : i32, i32
  }
  func.func @transform_6(%arg0: i32) -> (i32, i32) {
    %c0_i32 = arith.constant 0 : i32
    %c0_i32_0 = arith.constant 0 : i32
    %c0_i32_1 = arith.constant 0 : i32
    return %c0_i32, %c0_i32_0 : i32, i32
  }
  func.func @transform_7(%arg0: i32) -> (i32, i32) {
    %c0_i32 = arith.constant 0 : i32
    %c0_i32_0 = arith.constant 0 : i32
    %c0_i32_1 = arith.constant 0 : i32
    return %c0_i32, %c0_i32_0 : i32, i32
  }
  func.func @transform_8(%arg0: i32) -> (i32, i32) {
    %c0_i32 = arith.constant 0 : i32
    %c0_i32_0 = arith.constant 0 : i32
    %c0_i32_1 = arith.constant 0 : i32
    return %c0_i32, %c0_i32_0 : i32, i32
  }
  func.func @transform_9(%arg0: i32) -> (i32, i32) {
    %c0_i32 = arith.constant 0 : i32
    %c0_i32_0 = arith.constant 0 : i32
    %c0_i32_1 = arith.constant 0 : i32
    return %c0_i32, %c0_i32_0 : i32, i32
  }
  func.func @transform_10(%arg0: i32) -> (i32, i32) {
    %c0_i32 = arith.constant 0 : i32
    %c0_i32_0 = arith.constant 0 : i32
    %c0_i32_1 = arith.constant 0 : i32
    return %c0_i32, %c0_i32_0 : i32, i32
  }
  func.func @transform_11(%arg0: i32) -> (i32, i32) {
    %c0_i32 = arith.constant 0 : i32
    %c0_i32_0 = arith.constant 0 : i32
    %c0_i32_1 = arith.constant 0 : i32
    return %c0_i32, %c0_i32_0 : i32, i32
  }
  func.func @transform_12(%arg0: i32) -> (i32, i32) {
    %c0_i32 = arith.constant 0 : i32
    %c0_i32_0 = arith.constant 0 : i32
    %c0_i32_1 = arith.constant 0 : i32
    return %c0_i32, %c0_i32_0 : i32, i32
  }
  func.func @transform_13(%arg0: i32) -> (i32, i32) {
    %c0_i32 = arith.constant 0 : i32
    %c0_i32_0 = arith.constant 0 : i32
    %c0_i32_1 = arith.constant 0 : i32
    return %c0_i32, %c0_i32_0 : i32, i32
  }
  func.func @transform_14(%arg0: i32) -> (i32, i32) {
    %c0_i32 = arith.constant 0 : i32
    %c0_i32_0 = arith.constant 0 : i32
    %c0_i32_1 = arith.constant 0 : i32
    return %c0_i32, %c0_i32_0 : i32, i32
  }
  func.func @transform_15(%arg0: i32) -> (i32, i32) {
    %c0_i32 = arith.constant 0 : i32
    %c0_i32_0 = arith.constant 0 : i32
    %c0_i32_1 = arith.constant 0 : i32
    return %c0_i32, %c0_i32_0 : i32, i32
  }
  func.func @transform_16(%arg0: i32) -> (i32, i32) {
    %c0_i32 = arith.constant 0 : i32
    %c0_i32_0 = arith.constant 0 : i32
    %c0_i32_1 = arith.constant 0 : i32
    return %c0_i32, %c0_i32_0 : i32, i32
  }
  func.func @transform_17(%arg0: i32) -> (i32, i32) {
    %c0_i32 = arith.constant 0 : i32
    %c0_i32_0 = arith.constant 0 : i32
    %c0_i32_1 = arith.constant 0 : i32
    return %c0_i32, %c0_i32_0 : i32, i32
  }
  func.func @transform_18(%arg0: i32) -> (i32, i32) {
    %c0_i32 = arith.constant 0 : i32
    %c0_i32_0 = arith.constant 0 : i32
    %c0_i32_1 = arith.constant 0 : i32
    return %c0_i32, %c0_i32_0 : i32, i32
  }
  func.func @transform_19(%arg0: i32) -> (i32, i32) {
    %c0_i32 = arith.constant 0 : i32
    %c0_i32_0 = arith.constant 0 : i32
    %c0_i32_1 = arith.constant 0 : i32
    return %c0_i32, %c0_i32_0 : i32, i32
  }
  func.func @transform_20(%arg0: i32) -> (i32, i32) {
    %c0_i32 = arith.constant 0 : i32
    %c0_i32_0 = arith.constant 0 : i32
    %c0_i32_1 = arith.constant 0 : i32
    return %c0_i32, %c0_i32_0 : i32, i32
  }
  func.func @transform_21(%arg0: i32) -> (i32, i32) {
    %c0_i32 = arith.constant 0 : i32
    %c0_i32_0 = arith.constant 0 : i32
    %c0_i32_1 = arith.constant 0 : i32
    return %c0_i32, %c0_i32_0 : i32, i32
  }
  func.func @transform_22(%arg0: i32) -> (i32, i32) {
    %c0_i32 = arith.constant 0 : i32
    %c0_i32_0 = arith.constant 0 : i32
    %c0_i32_1 = arith.constant 0 : i32
    return %c0_i32, %c0_i32_0 : i32, i32
  }
  func.func @transform_23(%arg0: i32) -> (i32, i32) {
    %c0_i32 = arith.constant 0 : i32
    %c0_i32_0 = arith.constant 0 : i32
    %c0_i32_1 = arith.constant 0 : i32
    return %c0_i32, %c0_i32_0 : i32, i32
  }
  func.func @transform_24(%arg0: i32) -> (i32, i32) {
    %c0_i32 = arith.constant 0 : i32
    %c0_i32_0 = arith.constant 0 : i32
    %c0_i32_1 = arith.constant 0 : i32
    return %c0_i32, %c0_i32_0 : i32, i32
  }
  func.func @transform_25(%arg0: i32) -> (i32, i32) {
    %c0_i32 = arith.constant 0 : i32
    %c0_i32_0 = arith.constant 0 : i32
    %c0_i32_1 = arith.constant 0 : i32
    return %c0_i32, %c0_i32_0 : i32, i32
  }
  func.func @transform_26(%arg0: i32) -> (i32, i32) {
    %c0_i32 = arith.constant 0 : i32
    %c0_i32_0 = arith.constant 0 : i32
    %c0_i32_1 = arith.constant 0 : i32
    return %c0_i32, %c0_i32_0 : i32, i32
  }
  func.func @transform_27(%arg0: i32) -> (i32, i32) {
    %c0_i32 = arith.constant 0 : i32
    %c0_i32_0 = arith.constant 0 : i32
    %c0_i32_1 = arith.constant 0 : i32
    return %c0_i32, %c0_i32_0 : i32, i32
  }
  func.func @transform_28(%arg0: i32) -> (i32, i32) {
    %c0_i32 = arith.constant 0 : i32
    %c0_i32_0 = arith.constant 0 : i32
    %c0_i32_1 = arith.constant 0 : i32
    return %c0_i32, %c0_i32_0 : i32, i32
  }
  func.func @transform_29(%arg0: i32) -> (i32, i32) {
    %c0_i32 = arith.constant 0 : i32
    %c0_i32_0 = arith.constant 0 : i32
    %c0_i32_1 = arith.constant 0 : i32
    return %c0_i32, %c0_i32_0 : i32, i32
  }
  func.func @transform_30(%arg0: i32) -> (i32, i32) {
    %c0_i32 = arith.constant 0 : i32
    %c0_i32_0 = arith.constant 0 : i32
    %c0_i32_1 = arith.constant 0 : i32
    return %c0_i32, %c0_i32_0 : i32, i32
  }
  func.func @transform_31(%arg0: i32) -> (i32, i32, i32) {
    %c0_i32 = arith.constant 0 : i32
    %c0_i32_0 = arith.constant 0 : i32
    %c0_i32_1 = arith.constant 0 : i32
    return %arg0, %c0_i32, %c0_i32_0 : i32, i32, i32
  }
}

</mosaic_0001>

<llo_original>
// kernel: unet3sc_forward.1
$region0: #{unet3sc_forward.1}
  #allocation0 [shape = 'u32[]', space=smem, size = 0x4, offset = 0x4, fixed_abs, tag = 'smem constant byte address 0x4 - core index']
  #allocation1 [shape = 'u32[144,128]{1,0:T(1,128)}', space=vmem, size = 0x12000, scoped, tag = 'internal scratch']
  #allocation2 [shape = 'f32[48,384]{1,0:T(8,128)}', space=vmem, size = 0x12000, scoped, tag = 'scratch operand']
  #allocation3 [shape = 'f32[240,256]{1,0:T(8,128)}', space=vmem, size = 0x3c000, scoped, tag = 'scratch operand']
  #allocation4 [shape = 'f32[1,1]{1,0:T(1,128)S(1)}', space=vmem, size = 0x200, scoped, tag = 'scoped memory for unet3sc_forward.1']
  #allocation5 [shape = 'f32[1,1]{1,0:T(1,128)S(1)}', space=vmem, size = 0x200, scoped, tag = 'scoped memory for unet3sc_forward.1']
  %s0 = inlined_call_operand.smem [shape: u32[32], index: -1, kind: input, shape index: {}]
  %s1 = sld [smem:[%s0]]
  %s2 = scalar_lea.smem %s0, 1
  %s3 = sld [smem:[%s2]]
  %s4 = scalar_lea.smem %s0, 2
  %s5 = sld [smem:[%s4]]
  %s6 = scalar_lea.smem %s0, 3
  %s7 = sld [smem:[%s6]]
  %s8 = scalar_lea.smem %s0, 4
  %s9 = sld [smem:[%s8]]
  %s10 = scalar_lea.smem %s0, 5
  %s11 = sld [smem:[%s10]]
  %s12 = scalar_lea.smem %s0, 6
  %s13 = sld [smem:[%s12]]
  %s14 = scalar_lea.smem %s0, 7
  %s15 = sld [smem:[%s14]]
  %s16 = scalar_lea.smem %s0, 8
  %s17 = sld [smem:[%s16]]
  %s18 = scalar_lea.smem %s0, 9
  %s19 = sld [smem:[%s18]]
  %s20 = scalar_lea.smem %s0, 10
  %s21 = sld [smem:[%s20]]
  %s22 = scalar_lea.smem %s0, 11
  %s23 = sld [smem:[%s22]]
  %s24 = scalar_lea.smem %s0, 12
  %s25 = sld [smem:[%s24]]
  %s26 = scalar_lea.smem %s0, 13
  %s27 = sld [smem:[%s26]]
  %s28 = scalar_lea.smem %s0, 14
  %s29 = sld [smem:[%s28]]
  %s30 = scalar_lea.smem %s0, 15
  %s31 = sld [smem:[%s30]]
  %s32 = scalar_lea.smem %s0, 16
  %s33 = sld [smem:[%s32]]
  %s34 = scalar_lea.smem %s0, 17
  %s35 = sld [smem:[%s34]]
  %s36 = scalar_lea.smem %s0, 18
  %s37 = sld [smem:[%s36]]
  %s38 = scalar_lea.smem %s0, 19
  %s39 = sld [smem:[%s38]]
  %s40 = scalar_lea.smem %s0, 20
  %s41 = sld [smem:[%s40]]
  %s42 = scalar_lea.smem %s0, 21
  %s43 = sld [smem:[%s42]]
  %s44 = scalar_lea.smem %s0, 22
  %s45 = sld [smem:[%s44]]
  %s46 = scalar_lea.smem %s0, 23
  %s47 = sld [smem:[%s46]]
  %s48 = scalar_lea.smem %s0, 24
  %s49 = sld [smem:[%s48]]
  %s50 = scalar_lea.smem %s0, 25
  %s51 = sld [smem:[%s50]]
  %s52 = scalar_lea.smem %s0, 26
  %s53 = sld [smem:[%s52]]
  %s54 = scalar_lea.smem %s0, 27
  %s55 = sld [smem:[%s54]]
  %s56 = scalar_lea.smem %s0, 28
  %s57 = sld [smem:[%s56]]
  %s58 = scalar_lea.smem %s0, 29
  %s59 = sld [smem:[%s58]]
  %s60 = scalar_lea.smem %s0, 30
  %s61 = sld [smem:[%s60]]
  %s62 = scalar_lea.smem %s0, 31
  %s63 = sld [smem:[%s62]]
  %s64 = sld [smem:[#allocation0]]
  $region157: #{unet3sc_forward.1} parent=0
    _
  %s66 = ssub.s32 1, %s64
  %s67 = scalar_select 0, %s66, %s64
  %v68 = vstv %s59
  %69 = vst [vmem:[#allocation4] sm:$0x1] %v68
  %v70 = vstv %s61
  %71 = vst [vmem:[#allocation5] sm:$0x1] %v70
  loop: start=0, step=1, limit=4
  $region2: #{unet3sc_forward.1} parent=0 // loop_pre_header
    _
  $region3: #{unet3sc_forward.1} parent=0 // loop_header
    %s73 = sphi 0, %s77
    %p74 = scmp.ge.s32.totalorder %s73, 4
    %s83 = sphi 0, %s85
    %s86 = sphi 0, %s83
    %s87 = sphi 0, %s86
    %s103 = sphi 0, %s87
    %s107 = sphi 0, %s107
    %s109 = sphi 0, %s107
    %s110 = sphi 0, %s109
    %s124 = sphi 0, %s110
    %s128 = sphi 0, %s128
    %s130 = sphi 0, %s128
    %s131 = sphi 0, %s130
    %s145 = sphi 0, %s131
    %s149 = sphi 0, %s149
    %s151 = sphi 0, %s149
    %s152 = sphi 0, %s151
    %s166 = sphi 0, %s152
    %s170 = sphi 0, %s170
    %s172 = sphi 0, %s170
    %s173 = sphi 0, %s172
    %s187 = sphi 0, %s173
    %s191 = sphi 0, %s191
    %s193 = sphi 0, %s191
    %s194 = sphi 0, %s193
    %s208 = sphi 0, %s194
    %s212 = sphi 0, %s212
    %s214 = sphi 0, %s212
    %s215 = sphi 0, %s214
    %s229 = sphi 0, %s215
    %s233 = sphi 0, %s233
    %s235 = sphi 0, %s233
    %s236 = sphi 0, %s235
    %s250 = sphi 0, %s236
    %s254 = sphi 0, %s254
    %s256 = sphi 0, %s254
    %s257 = sphi 0, %s256
    %s271 = sphi 0, %s257
    %s275 = sphi 0, %s275
    %s277 = sphi 0, %s275
    %s278 = sphi 0, %s277
    %s292 = sphi 0, %s278
    %s296 = sphi 0, %s296
    %s298 = sphi 0, %s296
    %s299 = sphi 0, %s298
    %s313 = sphi 0, %s299
    %s317 = sphi 0, %s317
    %s319 = sphi 0, %s317
    %s320 = sphi 0, %s319
    %s334 = sphi 0, %s320
    %s338 = sphi 0, %s338
    %s340 = sphi 0, %s338
    %s341 = sphi 0, %s340
    %s355 = sphi 0, %s341
    %s359 = sphi 0, %s359
    %s361 = sphi 0, %s359
    %s362 = sphi 0, %s361
    %s376 = sphi 0, %s362
    %s380 = sphi 0, %s380
    %s382 = sphi 0, %s380
    %s383 = sphi 0, %s382
    %s397 = sphi 0, %s383
    %s401 = sphi 0, %s401
    %s403 = sphi 0, %s401
    %s404 = sphi 0, %s403
    %s418 = sphi 0, %s404
    %s422 = sphi 0, %s422
    %s424 = sphi 0, %s422
    %s425 = sphi 0, %s424
    %s439 = sphi 0, %s425
    %s443 = sphi 0, %s443
    %s445 = sphi 0, %s443
    %s446 = sphi 0, %s445
    %s460 = sphi 0, %s446
    %s464 = sphi 0, %s464
    %s466 = sphi 0, %s464
    %s467 = sphi 0, %s466
    %s481 = sphi 0, %s467
    %s485 = sphi 0, %s485
    %s487 = sphi 0, %s485
    %s488 = sphi 0, %s487
    %s502 = sphi 0, %s488
    %s506 = sphi 0, %s506
    %s508 = sphi 0, %s506
    %s509 = sphi 0, %s508
    %s523 = sphi 0, %s509
    %s527 = sphi 0, %s527
    %s529 = sphi 0, %s527
    %s530 = sphi 0, %s529
    %s544 = sphi 0, %s530
    %s548 = sphi 0, %s548
    %s550 = sphi 0, %s548
    %s551 = sphi 0, %s550
    %s565 = sphi 0, %s551
    %s569 = sphi 0, %s569
    %s571 = sphi 0, %s569
    %s572 = sphi 0, %s571
    %s586 = sphi 0, %s572
    %s590 = sphi 0, %s590
    %s592 = sphi 0, %s590
    %s593 = sphi 0, %s592
    %s607 = sphi 0, %s593
    %s611 = sphi 0, %s611
    %s613 = sphi 0, %s611
    %s614 = sphi 0, %s613
    %s628 = sphi 0, %s614
    %s632 = sphi 0, %s632
    %s634 = sphi 0, %s632
    %s635 = sphi 0, %s634
    %s649 = sphi 0, %s635
    %s653 = sphi 0, %s653
    %s655 = sphi 0, %s653
    %s656 = sphi 0, %s655
    %s670 = sphi 0, %s656
    %s674 = sphi 0, %s674
    %s676 = sphi 0, %s674
    %s677 = sphi 0, %s676
    %s691 = sphi 0, %s677
    %s695 = sphi 0, %s695
    %s697 = sphi 0, %s695
    %s698 = sphi 0, %s697
    %s712 = sphi 0, %s698
    %s716 = sphi 0, %s716
    %s718 = sphi 0, %s716
    %s719 = sphi 0, %s718
    %s733 = sphi 0, %s719
    %s739 = sphi 0, %s741
    %s742 = sphi 0, %s739
    %s743 = sphi 0, %s742
    %s759 = sphi 0, %s743
  $region4: #{unet3sc_forward.1} parent=0 // loop_header_branch
    %76 = sbr.rel (%p74) target = $region8
  $region5: #{unet3sc_forward.1} parent=0 // loop_body
    %s78 = ssub.s32 %s73, 1
    %s79 = ssub.s32 %s73, 2
    %s80 = sadd.s32 %s73, 1
    %s81 = ssub.s32 %s73, %s80
    %p82 = scmp.eq.s32.totalorder %s81, 0
    %s84 = sadd.s32 %s83, 1
    %s85 = scalar_select %p82, %s83, %s84
    %p88 = pneg %p82
    %p89 = scmp.eq.s32.totalorder %s73, 1
    %p90 = por %p88, %p89
    %p91 = scmp.ne.s32.totalorder %s83, %s86
    %p92 = scmp.eq.s32.totalorder %s73, 0
    %p93 = por %p91, %p92
    %p94 = scmp.ne.s32.totalorder %s83, %s86
    %p95 = scmp.eq.s32.totalorder %s78, 1
    %p96 = por %p94, %p95
    %p97 = scmp.ne.s32.totalorder %s86, %s87
    %p98 = scmp.eq.s32.totalorder %s78, 0
    %p99 = por %p97, %p98
    %p100 = scmp.ne.s32.totalorder %s86, %s87
    %p101 = scmp.eq.s32.totalorder %s79, 1
    %p102 = por %p100, %p101
    %p104 = scmp.ne.s32.totalorder %s87, %s103
    %p105 = scmp.eq.s32.totalorder %s79, 0
    %p106 = por %p104, %p105
    %s108 = sadd.s32 %s107, 1
    %p111 = scmp.eq.s32.totalorder %s73, 1
    %p112 = scmp.ne.s32.totalorder %s107, %s109
    %p113 = scmp.eq.s32.totalorder %s73, 0
    %p114 = por %p112, %p113
    %p115 = scmp.ne.s32.totalorder %s107, %s109
    %p116 = scmp.eq.s32.totalorder %s78, 1
    %p117 = por %p115, %p116
    %p118 = scmp.ne.s32.totalorder %s109, %s110
    %p119 = scmp.eq.s32.totalorder %s78, 0
    %p120 = por %p118, %p119
    %p121 = scmp.ne.s32.totalorder %s109, %s110
    %p122 = scmp.eq.s32.totalorder %s79, 1
    %p123 = por %p121, %p122
    %p125 = scmp.ne.s32.totalorder %s110, %s124
    %p126 = scmp.eq.s32.totalorder %s79, 0
    %p127 = por %p125, %p126
    %s129 = sadd.s32 %s128, 1
    %p132 = scmp.eq.s32.totalorder %s73, 1
    %p133 = scmp.ne.s32.totalorder %s128, %s130
    %p134 = scmp.eq.s32.totalorder %s73, 0
    %p135 = por %p133, %p134
    %p136 = scmp.ne.s32.totalorder %s128, %s130
    %p137 = scmp.eq.s32.totalorder %s78, 1
    %p138 = por %p136, %p137
    %p139 = scmp.ne.s32.totalorder %s130, %s131
    %p140 = scmp.eq.s32.totalorder %s78, 0
    %p141 = por %p139, %p140
    %p142 = scmp.ne.s32.totalorder %s130, %s131
    %p143 = scmp.eq.s32.totalorder %s79, 1
    %p144 = por %p142, %p143
    %p146 = scmp.ne.s32.totalorder %s131, %s145
    %p147 = scmp.eq.s32.totalorder %s79, 0
    %p148 = por %p146, %p147
    %s150 = sadd.s32 %s149, 1
    %p153 = scmp.eq.s32.totalorder %s73, 1
    %p154 = scmp.ne.s32.totalorder %s149, %s151
    %p155 = scmp.eq.s32.totalorder %s73, 0
    %p156 = por %p154, %p155
    %p157 = scmp.ne.s32.totalorder %s149, %s151
    %p158 = scmp.eq.s32.totalorder %s78, 1
    %p159 = por %p157, %p158
    %p160 = scmp.ne.s32.totalorder %s151, %s152
    %p161 = scmp.eq.s32.totalorder %s78, 0
    %p162 = por %p160, %p161
    %p163 = scmp.ne.s32.totalorder %s151, %s152
    %p164 = scmp.eq.s32.totalorder %s79, 1
    %p165 = por %p163, %p164
    %p167 = scmp.ne.s32.totalorder %s152, %s166
    %p168 = scmp.eq.s32.totalorder %s79, 0
    %p169 = por %p167, %p168
    %s171 = sadd.s32 %s170, 1
    %p174 = scmp.eq.s32.totalorder %s73, 1
    %p175 = scmp.ne.s32.totalorder %s170, %s172
    %p176 = scmp.eq.s32.totalorder %s73, 0
    %p177 = por %p175, %p176
    %p178 = scmp.ne.s32.totalorder %s170, %s172
    %p179 = scmp.eq.s32.totalorder %s78, 1
    %p180 = por %p178, %p179
    %p181 = scmp.ne.s32.totalorder %s172, %s173
    %p182 = scmp.eq.s32.totalorder %s78, 0
    %p183 = por %p181, %p182
    %p184 = scmp.ne.s32.totalorder %s172, %s173
    %p185 = scmp.eq.s32.totalorder %s79, 1
    %p186 = por %p184, %p185
    %p188 = scmp.ne.s32.totalorder %s173, %s187
    %p189 = scmp.eq.s32.totalorder %s79, 0
    %p190 = por %p188, %p189
    %s192 = sadd.s32 %s191, 1
    %p195 = scmp.eq.s32.totalorder %s73, 1
    %p196 = scmp.ne.s32.totalorder %s191, %s193
    %p197 = scmp.eq.s32.totalorder %s73, 0
    %p198 = por %p196, %p197
    %p199 = scmp.ne.s32.totalorder %s191, %s193
    %p200 = scmp.eq.s32.totalorder %s78, 1
    %p201 = por %p199, %p200
    %p202 = scmp.ne.s32.totalorder %s193, %s194
    %p203 = scmp.eq.s32.totalorder %s78, 0
    %p204 = por %p202, %p203
    %p205 = scmp.ne.s32.totalorder %s193, %s194
    %p206 = scmp.eq.s32.totalorder %s79, 1
    %p207 = por %p205, %p206
    %p209 = scmp.ne.s32.totalorder %s194, %s208
    %p210 = scmp.eq.s32.totalorder %s79, 0
    %p211 = por %p209, %p210
    %s213 = sadd.s32 %s212, 1
    %p216 = scmp.eq.s32.totalorder %s73, 1
    %p217 = scmp.ne.s32.totalorder %s212, %s214
    %p218 = scmp.eq.s32.totalorder %s73, 0
    %p219 = por %p217, %p218
    %p220 = scmp.ne.s32.totalorder %s212, %s214
    %p221 = scmp.eq.s32.totalorder %s78, 1
    %p222 = por %p220, %p221
    %p223 = scmp.ne.s32.totalorder %s214, %s215
    %p224 = scmp.eq.s32.totalorder %s78, 0
    %p225 = por %p223, %p224
    %p226 = scmp.ne.s32.totalorder %s214, %s215
    %p227 = scmp.eq.s32.totalorder %s79, 1
    %p228 = por %p226, %p227
    %p230 = scmp.ne.s32.totalorder %s215, %s229
    %p231 = scmp.eq.s32.totalorder %s79, 0
    %p232 = por %p230, %p231
    %s234 = sadd.s32 %s233, 1
    %p237 = scmp.eq.s32.totalorder %s73, 1
    %p238 = scmp.ne.s32.totalorder %s233, %s235
    %p239 = scmp.eq.s32.totalorder %s73, 0
    %p240 = por %p238, %p239
    %p241 = scmp.ne.s32.totalorder %s233, %s235
    %p242 = scmp.eq.s32.totalorder %s78, 1
    %p243 = por %p241, %p242
    %p244 = scmp.ne.s32.totalorder %s235, %s236
    %p245 = scmp.eq.s32.totalorder %s78, 0
    %p246 = por %p244, %p245
    %p247 = scmp.ne.s32.totalorder %s235, %s236
    %p248 = scmp.eq.s32.totalorder %s79, 1
    %p249 = por %p247, %p248
    %p251 = scmp.ne.s32.totalorder %s236, %s250
    %p252 = scmp.eq.s32.totalorder %s79, 0
    %p253 = por %p251, %p252
    %s255 = sadd.s32 %s254, 1
    %p258 = scmp.eq.s32.totalorder %s73, 1
    %p259 = scmp.ne.s32.totalorder %s254, %s256
    %p260 = scmp.eq.s32.totalorder %s73, 0
    %p261 = por %p259, %p260
    %p262 = scmp.ne.s32.totalorder %s254, %s256
    %p263 = scmp.eq.s32.totalorder %s78, 1
    %p264 = por %p262, %p263
    %p265 = scmp.ne.s32.totalorder %s256, %s257
    %p266 = scmp.eq.s32.totalorder %s78, 0
    %p267 = por %p265, %p266
    %p268 = scmp.ne.s32.totalorder %s256, %s257
    %p269 = scmp.eq.s32.totalorder %s79, 1
    %p270 = por %p268, %p269
    %p272 = scmp.ne.s32.totalorder %s257, %s271
    %p273 = scmp.eq.s32.totalorder %s79, 0
    %p274 = por %p272, %p273
    %s276 = sadd.s32 %s275, 1
    %p279 = scmp.eq.s32.totalorder %s73, 1
    %p280 = scmp.ne.s32.totalorder %s275, %s277
    %p281 = scmp.eq.s32.totalorder %s73, 0
    %p282 = por %p280, %p281
    %p283 = scmp.ne.s32.totalorder %s275, %s277
    %p284 = scmp.eq.s32.totalorder %s78, 1
    %p285 = por %p283, %p284
    %p286 = scmp.ne.s32.totalorder %s277, %s278
    %p287 = scmp.eq.s32.totalorder %s78, 0
    %p288 = por %p286, %p287
    %p289 = scmp.ne.s32.totalorder %s277, %s278
    %p290 = scmp.eq.s32.totalorder %s79, 1
    %p291 = por %p289, %p290
    %p293 = scmp.ne.s32.totalorder %s278, %s292
    %p294 = scmp.eq.s32.totalorder %s79, 0
    %p295 = por %p293, %p294
    %s297 = sadd.s32 %s296, 1
    %p300 = scmp.eq.s32.totalorder %s73, 1
    %p301 = scmp.ne.s32.totalorder %s296, %s298
    %p302 = scmp.eq.s32.totalorder %s73, 0
    %p303 = por %p301, %p302
    %p304 = scmp.ne.s32.totalorder %s296, %s298
    %p305 = scmp.eq.s32.totalorder %s78, 1
    %p306 = por %p304, %p305
    %p307 = scmp.ne.s32.totalorder %s298, %s299
    %p308 = scmp.eq.s32.totalorder %s78, 0
    %p309 = por %p307, %p308
    %p310 = scmp.ne.s32.totalorder %s298, %s299
    %p311 = scmp.eq.s32.totalorder %s79, 1
    %p312 = por %p310, %p311
    %p314 = scmp.ne.s32.totalorder %s299, %s313
    %p315 = scmp.eq.s32.totalorder %s79, 0
    %p316 = por %p314, %p315
    %s318 = sadd.s32 %s317, 1
    %p321 = scmp.eq.s32.totalorder %s73, 1
    %p322 = scmp.ne.s32.totalorder %s317, %s319
    %p323 = scmp.eq.s32.totalorder %s73, 0
    %p324 = por %p322, %p323
    %p325 = scmp.ne.s32.totalorder %s317, %s319
    %p326 = scmp.eq.s32.totalorder %s78, 1
    %p327 = por %p325, %p326
    %p328 = scmp.ne.s32.totalorder %s319, %s320
    %p329 = scmp.eq.s32.totalorder %s78, 0
    %p330 = por %p328, %p329
    %p331 = scmp.ne.s32.totalorder %s319, %s320
    %p332 = scmp.eq.s32.totalorder %s79, 1
    %p333 = por %p331, %p332
    %p335 = scmp.ne.s32.totalorder %s320, %s334
    %p336 = scmp.eq.s32.totalorder %s79, 0
    %p337 = por %p335, %p336
    %s339 = sadd.s32 %s338, 1
    %p342 = scmp.eq.s32.totalorder %s73, 1
    %p343 = scmp.ne.s32.totalorder %s338, %s340
    %p344 = scmp.eq.s32.totalorder %s73, 0
    %p345 = por %p343, %p344
    %p346 = scmp.ne.s32.totalorder %s338, %s340
    %p347 = scmp.eq.s32.totalorder %s78, 1
    %p348 = por %p346, %p347
    %p349 = scmp.ne.s32.totalorder %s340, %s341
    %p350 = scmp.eq.s32.totalorder %s78, 0
    %p351 = por %p349, %p350
    %p352 = scmp.ne.s32.totalorder %s340, %s341
    %p353 = scmp.eq.s32.totalorder %s79, 1
    %p354 = por %p352, %p353
    %p356 = scmp.ne.s32.totalorder %s341, %s355
    %p357 = scmp.eq.s32.totalorder %s79, 0
    %p358 = por %p356, %p357
    %s360 = sadd.s32 %s359, 1
    %p363 = scmp.eq.s32.totalorder %s73, 1
    %p364 = scmp.ne.s32.totalorder %s359, %s361
    %p365 = scmp.eq.s32.totalorder %s73, 0
    %p366 = por %p364, %p365
    %p367 = scmp.ne.s32.totalorder %s359, %s361
    %p368 = scmp.eq.s32.totalorder %s78, 1
    %p369 = por %p367, %p368
    %p370 = scmp.ne.s32.totalorder %s361, %s362
    %p371 = scmp.eq.s32.totalorder %s78, 0
    %p372 = por %p370, %p371
    %p373 = scmp.ne.s32.totalorder %s361, %s362
    %p374 = scmp.eq.s32.totalorder %s79, 1
    %p375 = por %p373, %p374
    %p377 = scmp.ne.s32.totalorder %s362, %s376
    %p378 = scmp.eq.s32.totalorder %s79, 0
    %p379 = por %p377, %p378
    %s381 = sadd.s32 %s380, 1
    %p384 = scmp.eq.s32.totalorder %s73, 1
    %p385 = scmp.ne.s32.totalorder %s380, %s382
    %p386 = scmp.eq.s32.totalorder %s73, 0
    %p387 = por %p385, %p386
    %p388 = scmp.ne.s32.totalorder %s380, %s382
    %p389 = scmp.eq.s32.totalorder %s78, 1
    %p390 = por %p388, %p389
    %p391 = scmp.ne.s32.totalorder %s382, %s383
    %p392 = scmp.eq.s32.totalorder %s78, 0
    %p393 = por %p391, %p392
    %p394 = scmp.ne.s32.totalorder %s382, %s383
    %p395 = scmp.eq.s32.totalorder %s79, 1
    %p396 = por %p394, %p395
    %p398 = scmp.ne.s32.totalorder %s383, %s397
    %p399 = scmp.eq.s32.totalorder %s79, 0
    %p400 = por %p398, %p399
    %s402 = sadd.s32 %s401, 1
    %p405 = scmp.eq.s32.totalorder %s73, 1
    %p406 = scmp.ne.s32.totalorder %s401, %s403
    %p407 = scmp.eq.s32.totalorder %s73, 0
    %p408 = por %p406, %p407
    %p409 = scmp.ne.s32.totalorder %s401, %s403
    %p410 = scmp.eq.s32.totalorder %s78, 1
    %p411 = por %p409, %p410
    %p412 = scmp.ne.s32.totalorder %s403, %s404
    %p413 = scmp.eq.s32.totalorder %s78, 0
    %p414 = por %p412, %p413
    %p415 = scmp.ne.s32.totalorder %s403, %s404
    %p416 = scmp.eq.s32.totalorder %s79, 1
    %p417 = por %p415, %p416
    %p419 = scmp.ne.s32.totalorder %s404, %s418
    %p420 = scmp.eq.s32.totalorder %s79, 0
    %p421 = por %p419, %p420
    %s423 = sadd.s32 %s422, 1
    %p426 = scmp.eq.s32.totalorder %s73, 1
    %p427 = scmp.ne.s32.totalorder %s422, %s424
    %p428 = scmp.eq.s32.totalorder %s73, 0
    %p429 = por %p427, %p428
    %p430 = scmp.ne.s32.totalorder %s422, %s424
    %p431 = scmp.eq.s32.totalorder %s78, 1
    %p432 = por %p430, %p431
    %p433 = scmp.ne.s32.totalorder %s424, %s425
    %p434 = scmp.eq.s32.totalorder %s78, 0
    %p435 = por %p433, %p434
    %p436 = scmp.ne.s32.totalorder %s424, %s425
    %p437 = scmp.eq.s32.totalorder %s79, 1
    %p438 = por %p436, %p437
    %p440 = scmp.ne.s32.totalorder %s425, %s439
    %p441 = scmp.eq.s32.totalorder %s79, 0
    %p442 = por %p440, %p441
    %s444 = sadd.s32 %s443, 1
    %p447 = scmp.eq.s32.totalorder %s73, 1
    %p448 = scmp.ne.s32.totalorder %s443, %s445
    %p449 = scmp.eq.s32.totalorder %s73, 0
    %p450 = por %p448, %p449
    %p451 = scmp.ne.s32.totalorder %s443, %s445
    %p452 = scmp.eq.s32.totalorder %s78, 1
    %p453 = por %p451, %p452
    %p454 = scmp.ne.s32.totalorder %s445, %s446
    %p455 = scmp.eq.s32.totalorder %s78, 0
    %p456 = por %p454, %p455
    %p457 = scmp.ne.s32.totalorder %s445, %s446
    %p458 = scmp.eq.s32.totalorder %s79, 1
    %p459 = por %p457, %p458
    %p461 = scmp.ne.s32.totalorder %s446, %s460
    %p462 = scmp.eq.s32.totalorder %s79, 0
    %p463 = por %p461, %p462
    %s465 = sadd.s32 %s464, 1
    %p468 = scmp.eq.s32.totalorder %s73, 1
    %p469 = scmp.ne.s32.totalorder %s464, %s466
    %p470 = scmp.eq.s32.totalorder %s73, 0
    %p471 = por %p469, %p470
    %p472 = scmp.ne.s32.totalorder %s464, %s466
    %p473 = scmp.eq.s32.totalorder %s78, 1
    %p474 = por %p472, %p473
    %p475 = scmp.ne.s32.totalorder %s466, %s467
    %p476 = scmp.eq.s32.totalorder %s78, 0
    %p477 = por %p475, %p476
    %p478 = scmp.ne.s32.totalorder %s466, %s467
    %p479 = scmp.eq.s32.totalorder %s79, 1
    %p480 = por %p478, %p479
    %p482 = scmp.ne.s32.totalorder %s467, %s481
    %p483 = scmp.eq.s32.totalorder %s79, 0
    %p484 = por %p482, %p483
    %s486 = sadd.s32 %s485, 1
    %p489 = scmp.eq.s32.totalorder %s73, 1
    %p490 = scmp.ne.s32.totalorder %s485, %s487
    %p491 = scmp.eq.s32.totalorder %s73, 0
    %p492 = por %p490, %p491
    %p493 = scmp.ne.s32.totalorder %s485, %s487
    %p494 = scmp.eq.s32.totalorder %s78, 1
    %p495 = por %p493, %p494
    %p496 = scmp.ne.s32.totalorder %s487, %s488
    %p497 = scmp.eq.s32.totalorder %s78, 0
    %p498 = por %p496, %p497
    %p499 = scmp.ne.s32.totalorder %s487, %s488
    %p500 = scmp.eq.s32.totalorder %s79, 1
    %p501 = por %p499, %p500
    %p503 = scmp.ne.s32.totalorder %s488, %s502
    %p504 = scmp.eq.s32.totalorder %s79, 0
    %p505 = por %p503, %p504
    %s507 = sadd.s32 %s506, 1
    %p510 = scmp.eq.s32.totalorder %s73, 1
    %p511 = scmp.ne.s32.totalorder %s506, %s508
    %p512 = scmp.eq.s32.totalorder %s73, 0
    %p513 = por %p511, %p512
    %p514 = scmp.ne.s32.totalorder %s506, %s508
    %p515 = scmp.eq.s32.totalorder %s78, 1
    %p516 = por %p514, %p515
    %p517 = scmp.ne.s32.totalorder %s508, %s509
    %p518 = scmp.eq.s32.totalorder %s78, 0
    %p519 = por %p517, %p518
    %p520 = scmp.ne.s32.totalorder %s508, %s509
    %p521 = scmp.eq.s32.totalorder %s79, 1
    %p522 = por %p520, %p521
    %p524 = scmp.ne.s32.totalorder %s509, %s523
    %p525 = scmp.eq.s32.totalorder %s79, 0
    %p526 = por %p524, %p525
    %s528 = sadd.s32 %s527, 1
    %p531 = scmp.eq.s32.totalorder %s73, 1
    %p532 = scmp.ne.s32.totalorder %s527, %s529
    %p533 = scmp.eq.s32.totalorder %s73, 0
    %p534 = por %p532, %p533
    %p535 = scmp.ne.s32.totalorder %s527, %s529
    %p536 = scmp.eq.s32.totalorder %s78, 1
    %p537 = por %p535, %p536
    %p538 = scmp.ne.s32.totalorder %s529, %s530
    %p539 = scmp.eq.s32.totalorder %s78, 0
    %p540 = por %p538, %p539
    %p541 = scmp.ne.s32.totalorder %s529, %s530
    %p542 = scmp.eq.s32.totalorder %s79, 1
    %p543 = por %p541, %p542
    %p545 = scmp.ne.s32.totalorder %s530, %s544
    %p546 = scmp.eq.s32.totalorder %s79, 0
    %p547 = por %p545, %p546
    %s549 = sadd.s32 %s548, 1
    %p552 = scmp.eq.s32.totalorder %s73, 1
    %p553 = scmp.ne.s32.totalorder %s548, %s550
    %p554 = scmp.eq.s32.totalorder %s73, 0
    %p555 = por %p553, %p554
    %p556 = scmp.ne.s32.totalorder %s548, %s550
    %p557 = scmp.eq.s32.totalorder %s78, 1
    %p558 = por %p556, %p557
    %p559 = scmp.ne.s32.totalorder %s550, %s551
    %p560 = scmp.eq.s32.totalorder %s78, 0
    %p561 = por %p559, %p560
    %p562 = scmp.ne.s32.totalorder %s550, %s551
    %p563 = scmp.eq.s32.totalorder %s79, 1
    %p564 = por %p562, %p563
    %p566 = scmp.ne.s32.totalorder %s551, %s565
    %p567 = scmp.eq.s32.totalorder %s79, 0
    %p568 = por %p566, %p567
    %s570 = sadd.s32 %s569, 1
    %p573 = scmp.eq.s32.totalorder %s73, 1
    %p574 = scmp.ne.s32.totalorder %s569, %s571
    %p575 = scmp.eq.s32.totalorder %s73, 0
    %p576 = por %p574, %p575
    %p577 = scmp.ne.s32.totalorder %s569, %s571
    %p578 = scmp.eq.s32.totalorder %s78, 1
    %p579 = por %p577, %p578
    %p580 = scmp.ne.s32.totalorder %s571, %s572
    %p581 = scmp.eq.s32.totalorder %s78, 0
    %p582 = por %p580, %p581
    %p583 = scmp.ne.s32.totalorder %s571, %s572
    %p584 = scmp.eq.s32.totalorder %s79, 1
    %p585 = por %p583, %p584
    %p587 = scmp.ne.s32.totalorder %s572, %s586
    %p588 = scmp.eq.s32.totalorder %s79, 0
    %p589 = por %p587, %p588
    %s591 = sadd.s32 %s590, 1
    %p594 = scmp.eq.s32.totalorder %s73, 1
    %p595 = scmp.ne.s32.totalorder %s590, %s592
    %p596 = scmp.eq.s32.totalorder %s73, 0
    %p597 = por %p595, %p596
    %p598 = scmp.ne.s32.totalorder %s590, %s592
    %p599 = scmp.eq.s32.totalorder %s78, 1
    %p600 = por %p598, %p599
    %p601 = scmp.ne.s32.totalorder %s592, %s593
    %p602 = scmp.eq.s32.totalorder %s78, 0
    %p603 = por %p601, %p602
    %p604 = scmp.ne.s32.totalorder %s592, %s593
    %p605 = scmp.eq.s32.totalorder %s79, 1
    %p606 = por %p604, %p605
    %p608 = scmp.ne.s32.totalorder %s593, %s607
    %p609 = scmp.eq.s32.totalorder %s79, 0
    %p610 = por %p608, %p609
    %s612 = sadd.s32 %s611, 1
    %p615 = scmp.eq.s32.totalorder %s73, 1
    %p616 = scmp.ne.s32.totalorder %s611, %s613
    %p617 = scmp.eq.s32.totalorder %s73, 0
    %p618 = por %p616, %p617
    %p619 = scmp.ne.s32.totalorder %s611, %s613
    %p620 = scmp.eq.s32.totalorder %s78, 1
    %p621 = por %p619, %p620
    %p622 = scmp.ne.s32.totalorder %s613, %s614
    %p623 = scmp.eq.s32.totalorder %s78, 0
    %p624 = por %p622, %p623
    %p625 = scmp.ne.s32.totalorder %s613, %s614
    %p626 = scmp.eq.s32.totalorder %s79, 1
    %p627 = por %p625, %p626
    %p629 = scmp.ne.s32.totalorder %s614, %s628
    %p630 = scmp.eq.s32.totalorder %s79, 0
    %p631 = por %p629, %p630
    %s633 = sadd.s32 %s632, 1
    %p636 = scmp.eq.s32.totalorder %s73, 1
    %p637 = scmp.ne.s32.totalorder %s632, %s634
    %p638 = scmp.eq.s32.totalorder %s73, 0
    %p639 = por %p637, %p638
    %p640 = scmp.ne.s32.totalorder %s632, %s634
    %p641 = scmp.eq.s32.totalorder %s78, 1
    %p642 = por %p640, %p641
    %p643 = scmp.ne.s32.totalorder %s634, %s635
    %p644 = scmp.eq.s32.totalorder %s78, 0
    %p645 = por %p643, %p644
    %p646 = scmp.ne.s32.totalorder %s634, %s635
    %p647 = scmp.eq.s32.totalorder %s79, 1
    %p648 = por %p646, %p647
    %p650 = scmp.ne.s32.totalorder %s635, %s649
    %p651 = scmp.eq.s32.totalorder %s79, 0
    %p652 = por %p650, %p651
    %s654 = sadd.s32 %s653, 1
    %p657 = scmp.eq.s32.totalorder %s73, 1
    %p658 = scmp.ne.s32.totalorder %s653, %s655
    %p659 = scmp.eq.s32.totalorder %s73, 0
    %p660 = por %p658, %p659
    %p661 = scmp.ne.s32.totalorder %s653, %s655
    %p662 = scmp.eq.s32.totalorder %s78, 1
    %p663 = por %p661, %p662
    %p664 = scmp.ne.s32.totalorder %s655, %s656
    %p665 = scmp.eq.s32.totalorder %s78, 0
    %p666 = por %p664, %p665
    %p667 = scmp.ne.s32.totalorder %s655, %s656
    %p668 = scmp.eq.s32.totalorder %s79, 1
    %p669 = por %p667, %p668
    %p671 = scmp.ne.s32.totalorder %s656, %s670
    %p672 = scmp.eq.s32.totalorder %s79, 0
    %p673 = por %p671, %p672
    %s675 = sadd.s32 %s674, 1
    %p678 = scmp.eq.s32.totalorder %s73, 1
    %p679 = scmp.ne.s32.totalorder %s674, %s676
    %p680 = scmp.eq.s32.totalorder %s73, 0
    %p681 = por %p679, %p680
    %p682 = scmp.ne.s32.totalorder %s674, %s676
    %p683 = scmp.eq.s32.totalorder %s78, 1
    %p684 = por %p682, %p683
    %p685 = scmp.ne.s32.totalorder %s676, %s677
    %p686 = scmp.eq.s32.totalorder %s78, 0
    %p687 = por %p685, %p686
    %p688 = scmp.ne.s32.totalorder %s676, %s677
    %p689 = scmp.eq.s32.totalorder %s79, 1
    %p690 = por %p688, %p689
    %p692 = scmp.ne.s32.totalorder %s677, %s691
    %p693 = scmp.eq.s32.totalorder %s79, 0
    %p694 = por %p692, %p693
    %s696 = sadd.s32 %s695, 1
    %p699 = scmp.eq.s32.totalorder %s73, 1
    %p700 = scmp.ne.s32.totalorder %s695, %s697
    %p701 = scmp.eq.s32.totalorder %s73, 0
    %p702 = por %p700, %p701
    %p703 = scmp.ne.s32.totalorder %s695, %s697
    %p704 = scmp.eq.s32.totalorder %s78, 1
    %p705 = por %p703, %p704
    %p706 = scmp.ne.s32.totalorder %s697, %s698
    %p707 = scmp.eq.s32.totalorder %s78, 0
    %p708 = por %p706, %p707
    %p709 = scmp.ne.s32.totalorder %s697, %s698
    %p710 = scmp.eq.s32.totalorder %s79, 1
    %p711 = por %p709, %p710
    %p713 = scmp.ne.s32.totalorder %s698, %s712
    %p714 = scmp.eq.s32.totalorder %s79, 0
    %p715 = por %p713, %p714
    %s717 = sadd.s32 %s716, 1
    %p720 = scmp.eq.s32.totalorder %s73, 1
    %p721 = scmp.ne.s32.totalorder %s716, %s718
    %p722 = scmp.eq.s32.totalorder %s73, 0
    %p723 = por %p721, %p722
    %p724 = scmp.ne.s32.totalorder %s716, %s718
    %p725 = scmp.eq.s32.totalorder %s78, 1
    %p726 = por %p724, %p725
    %p727 = scmp.ne.s32.totalorder %s718, %s719
    %p728 = scmp.eq.s32.totalorder %s78, 0
    %p729 = por %p727, %p728
    %p730 = scmp.ne.s32.totalorder %s718, %s719
    %p731 = scmp.eq.s32.totalorder %s79, 1
    %p732 = por %p730, %p731
    %p734 = scmp.ne.s32.totalorder %s719, %s733
    %p735 = scmp.eq.s32.totalorder %s79, 0
    %p736 = por %p734, %p735
    %s737 = ssub.s32 %s73, %s80
    %p738 = scmp.eq.s32.totalorder %s737, 0
    %s740 = sadd.s32 %s739, 1
    %s741 = scalar_select %p738, %s739, %s740
    %p744 = pneg %p738
    %p745 = scmp.eq.s32.totalorder %s73, 1
    %p746 = por %p744, %p745
    %p747 = scmp.ne.s32.totalorder %s739, %s742
    %p748 = scmp.eq.s32.totalorder %s73, 0
    %p749 = por %p747, %p748
    %p750 = scmp.ne.s32.totalorder %s739, %s742
    %p751 = scmp.eq.s32.totalorder %s78, 1
    %p752 = por %p750, %p751
    %p753 = scmp.ne.s32.totalorder %s742, %s743
    %p754 = scmp.eq.s32.totalorder %s78, 0
    %p755 = por %p753, %p754
    %p756 = scmp.ne.s32.totalorder %s742, %s743
    %p757 = scmp.eq.s32.totalorder %s79, 1
    %p758 = por %p756, %p757
    %p760 = scmp.ne.s32.totalorder %s743, %s759
    %p761 = scmp.eq.s32.totalorder %s79, 0
    %p762 = por %p760, %p761
    %p763 = scmp.le.s32.totalorder 1, %s73
    %p764 = scmp.lt.s32.totalorder %s73, 3
    %p765 = pnand %p763, %p764
    %p766 = pneg %p765
    // Predicated region
    $region9: #{unet3sc_forward.1} parent=5 // pred_check
      _
    $region10: #{unet3sc_forward.1} parent=5 // pred_check_branch
      %768 = sbr.rel (%p765) target = $region12
    $region11: #{unet3sc_forward.1} parent=5 // pred_region
      %s769 = ssub.s32 %s73, 1
      // Predicated region
      $region13: #{unet3sc_forward.1} parent=11 // pred_check
        %p770 = pneg %p120
      $region14: #{unet3sc_forward.1} parent=11 // pred_check_branch
        %772 = sbr.rel (%p770) target = $region16
      $region15: #{unet3sc_forward.1} parent=11 // pred_region
        _
      $region16: #{unet3sc_forward.1} parent=11 // pred_fallthru
        _
      // Predicated region
      $region17: #{unet3sc_forward.1} parent=11 // pred_check
        %p773 = pneg %p141
      $region18: #{unet3sc_forward.1} parent=11 // pred_check_branch
        %775 = sbr.rel (%p773) target = $region20
      $region19: #{unet3sc_forward.1} parent=11 // pred_region
        _
      $region20: #{unet3sc_forward.1} parent=11 // pred_fallthru
        _
      // Predicated region
      $region21: #{unet3sc_forward.1} parent=11 // pred_check
        %p776 = pneg %p162
      $region22: #{unet3sc_forward.1} parent=11 // pred_check_branch
        %778 = sbr.rel (%p776) target = $region24
      $region23: #{unet3sc_forward.1} parent=11 // pred_region
        _
      $region24: #{unet3sc_forward.1} parent=11 // pred_fallthru
        _
      // Predicated region
      $region25: #{unet3sc_forward.1} parent=11 // pred_check
        %p779 = pneg %p183
      $region26: #{unet3sc_forward.1} parent=11 // pred_check_branch
        %781 = sbr.rel (%p779) target = $region28
      $region27: #{unet3sc_forward.1} parent=11 // pred_region
        _
      $region28: #{unet3sc_forward.1} parent=11 // pred_fallthru
        _
      // Predicated region
      $region29: #{unet3sc_forward.1} parent=11 // pred_check
        %p782 = pneg %p204
      $region30: #{unet3sc_forward.1} parent=11 // pred_check_branch
        %784 = sbr.rel (%p782) target = $region32
      $region31: #{unet3sc_forward.1} parent=11 // pred_region
        _
      $region32: #{unet3sc_forward.1} parent=11 // pred_fallthru
        _
      // Predicated region
      $region33: #{unet3sc_forward.1} parent=11 // pred_check
        %p785 = pneg %p225
      $region34: #{unet3sc_forward.1} parent=11 // pred_check_branch
        %787 = sbr.rel (%p785) target = $region36
      $region35: #{unet3sc_forward.1} parent=11 // pred_region
        _
      $region36: #{unet3sc_forward.1} parent=11 // pred_fallthru
        _
      // Predicated region
      $region37: #{unet3sc_forward.1} parent=11 // pred_check
        %p788 = pneg %p246
      $region38: #{unet3sc_forward.1} parent=11 // pred_check_branch
        %790 = sbr.rel (%p788) target = $region40
      $region39: #{unet3sc_forward.1} parent=11 // pred_region
        _
      $region40: #{unet3sc_forward.1} parent=11 // pred_fallthru
        _
      // Predicated region
      $region41: #{unet3sc_forward.1} parent=11 // pred_check
        %p791 = pneg %p267
      $region42: #{unet3sc_forward.1} parent=11 // pred_check_branch
        %793 = sbr.rel (%p791) target = $region44
      $region43: #{unet3sc_forward.1} parent=11 // pred_region
        _
      $region44: #{unet3sc_forward.1} parent=11 // pred_fallthru
        _
      // Predicated region
      $region45: #{unet3sc_forward.1} parent=11 // pred_check
        %p794 = pneg %p288
      $region46: #{unet3sc_forward.1} parent=11 // pred_check_branch
        %796 = sbr.rel (%p794) target = $region48
      $region47: #{unet3sc_forward.1} parent=11 // pred_region
        _
      $region48: #{unet3sc_forward.1} parent=11 // pred_fallthru
        _
      // Predicated region
      $region49: #{unet3sc_forward.1} parent=11 // pred_check
        %p797 = pneg %p309
      $region50: #{unet3sc_forward.1} parent=11 // pred_check_branch
        %799 = sbr.rel (%p797) target = $region52
      $region51: #{unet3sc_forward.1} parent=11 // pred_region
        _
      $region52: #{unet3sc_forward.1} parent=11 // pred_fallthru
        _
      // Predicated region
      $region53: #{unet3sc_forward.1} parent=11 // pred_check
        %p800 = pneg %p330
      $region54: #{unet3sc_forward.1} parent=11 // pred_check_branch
        %802 = sbr.rel (%p800) target = $region56
      $region55: #{unet3sc_forward.1} parent=11 // pred_region
        _
      $region56: #{unet3sc_forward.1} parent=11 // pred_fallthru
        _
      // Predicated region
      $region57: #{unet3sc_forward.1} parent=11 // pred_check
        %p803 = pneg %p351
      $region58: #{unet3sc_forward.1} parent=11 // pred_check_branch
        %805 = sbr.rel (%p803) target = $region60
      $region59: #{unet3sc_forward.1} parent=11 // pred_region
        _
      $region60: #{unet3sc_forward.1} parent=11 // pred_fallthru
        _
      // Predicated region
      $region61: #{unet3sc_forward.1} parent=11 // pred_check
        %p806 = pneg %p372
      $region62: #{unet3sc_forward.1} parent=11 // pred_check_branch
        %808 = sbr.rel (%p806) target = $region64
      $region63: #{unet3sc_forward.1} parent=11 // pred_region
        _
      $region64: #{unet3sc_forward.1} parent=11 // pred_fallthru
        _
      // Predicated region
      $region65: #{unet3sc_forward.1} parent=11 // pred_check
        %p809 = pneg %p393
      $region66: #{unet3sc_forward.1} parent=11 // pred_check_branch
        %811 = sbr.rel (%p809) target = $region68
      $region67: #{unet3sc_forward.1} parent=11 // pred_region
        _
      $region68: #{unet3sc_forward.1} parent=11 // pred_fallthru
        _
      // Predicated region
      $region69: #{unet3sc_forward.1} parent=11 // pred_check
        %p812 = pneg %p414
      $region70: #{unet3sc_forward.1} parent=11 // pred_check_branch
        %814 = sbr.rel (%p812) target = $region72
      $region71: #{unet3sc_forward.1} parent=11 // pred_region
        _
      $region72: #{unet3sc_forward.1} parent=11 // pred_fallthru
        _
      // Predicated region
      $region73: #{unet3sc_forward.1} parent=11 // pred_check
        %p815 = pneg %p435
      $region74: #{unet3sc_forward.1} parent=11 // pred_check_branch
        %817 = sbr.rel (%p815) target = $region76
      $region75: #{unet3sc_forward.1} parent=11 // pred_region
        _
      $region76: #{unet3sc_forward.1} parent=11 // pred_fallthru
        _
      // Predicated region
      $region77: #{unet3sc_forward.1} parent=11 // pred_check
        %p818 = pneg %p456
      $region78: #{unet3sc_forward.1} parent=11 // pred_check_branch
        %820 = sbr.rel (%p818) target = $region80
      $region79: #{unet3sc_forward.1} parent=11 // pred_region
        _
      $region80: #{unet3sc_forward.1} parent=11 // pred_fallthru
        _
      // Predicated region
      $region81: #{unet3sc_forward.1} parent=11 // pred_check
        %p821 = pneg %p477
      $region82: #{unet3sc_forward.1} parent=11 // pred_check_branch
        %823 = sbr.rel (%p821) target = $region84
      $region83: #{unet3sc_forward.1} parent=11 // pred_region
        _
      $region84: #{unet3sc_forward.1} parent=11 // pred_fallthru
        _
      // Predicated region
      $region85: #{unet3sc_forward.1} parent=11 // pred_check
        %p824 = pneg %p498
      $region86: #{unet3sc_forward.1} parent=11 // pred_check_branch
        %826 = sbr.rel (%p824) target = $region88
      $region87: #{unet3sc_forward.1} parent=11 // pred_region
        _
      $region88: #{unet3sc_forward.1} parent=11 // pred_fallthru
        _
      // Predicated region
      $region89: #{unet3sc_forward.1} parent=11 // pred_check
        %p827 = pneg %p519
      $region90: #{unet3sc_forward.1} parent=11 // pred_check_branch
        %829 = sbr.rel (%p827) target = $region92
      $region91: #{unet3sc_forward.1} parent=11 // pred_region
        _
      $region92: #{unet3sc_forward.1} parent=11 // pred_fallthru
        _
      // Predicated region
      $region93: #{unet3sc_forward.1} parent=11 // pred_check
        %p830 = pneg %p540
      $region94: #{unet3sc_forward.1} parent=11 // pred_check_branch
        %832 = sbr.rel (%p830) target = $region96
      $region95: #{unet3sc_forward.1} parent=11 // pred_region
        _
      $region96: #{unet3sc_forward.1} parent=11 // pred_fallthru
        _
      // Predicated region
      $region97: #{unet3sc_forward.1} parent=11 // pred_check
        %p833 = pneg %p561
      $region98: #{unet3sc_forward.1} parent=11 // pred_check_branch
        %835 = sbr.rel (%p833) target = $region100
      $region99: #{unet3sc_forward.1} parent=11 // pred_region
        _
      $region100: #{unet3sc_forward.1} parent=11 // pred_fallthru
        _
      // Predicated region
      $region101: #{unet3sc_forward.1} parent=11 // pred_check
        %p836 = pneg %p582
      $region102: #{unet3sc_forward.1} parent=11 // pred_check_branch
        %838 = sbr.rel (%p836) target = $region104
      $region103: #{unet3sc_forward.1} parent=11 // pred_region
        _
      $region104: #{unet3sc_forward.1} parent=11 // pred_fallthru
        _
      // Predicated region
      $region105: #{unet3sc_forward.1} parent=11 // pred_check
        %p839 = pneg %p603
      $region106: #{unet3sc_forward.1} parent=11 // pred_check_branch
        %841 = sbr.rel (%p839) target = $region108
      $region107: #{unet3sc_forward.1} parent=11 // pred_region
        _
      $region108: #{unet3sc_forward.1} parent=11 // pred_fallthru
        _
      // Predicated region
      $region109: #{unet3sc_forward.1} parent=11 // pred_check
        %p842 = pneg %p624
      $region110: #{unet3sc_forward.1} parent=11 // pred_check_branch
        %844 = sbr.rel (%p842) target = $region112
      $region111: #{unet3sc_forward.1} parent=11 // pred_region
        _
      $region112: #{unet3sc_forward.1} parent=11 // pred_fallthru
        _
      // Predicated region
      $region113: #{unet3sc_forward.1} parent=11 // pred_check
        %p845 = pneg %p645
      $region114: #{unet3sc_forward.1} parent=11 // pred_check_branch
        %847 = sbr.rel (%p845) target = $region116
      $region115: #{unet3sc_forward.1} parent=11 // pred_region
        _
      $region116: #{unet3sc_forward.1} parent=11 // pred_fallthru
        _
      // Predicated region
      $region117: #{unet3sc_forward.1} parent=11 // pred_check
        %p848 = pneg %p666
      $region118: #{unet3sc_forward.1} parent=11 // pred_check_branch
        %850 = sbr.rel (%p848) target = $region120
      $region119: #{unet3sc_forward.1} parent=11 // pred_region
        _
      $region120: #{unet3sc_forward.1} parent=11 // pred_fallthru
        _
      // Predicated region
      $region121: #{unet3sc_forward.1} parent=11 // pred_check
        %p851 = pneg %p687
      $region122: #{unet3sc_forward.1} parent=11 // pred_check_branch
        %853 = sbr.rel (%p851) target = $region124
      $region123: #{unet3sc_forward.1} parent=11 // pred_region
        _
      $region124: #{unet3sc_forward.1} parent=11 // pred_fallthru
        _
      // Predicated region
      $region125: #{unet3sc_forward.1} parent=11 // pred_check
        %p854 = pneg %p708
      $region126: #{unet3sc_forward.1} parent=11 // pred_check_branch
        %856 = sbr.rel (%p854) target = $region128
      $region127: #{unet3sc_forward.1} parent=11 // pred_region
        _
      $region128: #{unet3sc_forward.1} parent=11 // pred_fallthru
        _
      // Predicated region
      $region129: #{unet3sc_forward.1} parent=11 // pred_check
        %p857 = pneg %p729
      $region130: #{unet3sc_forward.1} parent=11 // pred_check_branch
        %859 = sbr.rel (%p857) target = $region132
      $region131: #{unet3sc_forward.1} parent=11 // pred_region
        _
      $region132: #{unet3sc_forward.1} parent=11 // pred_fallthru
        _
    $region12: #{unet3sc_forward.1} parent=5 // pred_fallthru
      _
    %p860 = scmp.lt.s32.totalorder %s73, 2
    // Predicated region
    $region133: #{unet3sc_forward.1} parent=5 // pred_check
      %p861 = pneg %p860
    $region134: #{unet3sc_forward.1} parent=5 // pred_check_branch
      %863 = sbr.rel (%p861) target = $region136
    $region135: #{unet3sc_forward.1} parent=5 // pred_region
      // Predicated region
      $region137: #{unet3sc_forward.1} parent=135 // pred_check
        %p864 = pneg %p93
      $region138: #{unet3sc_forward.1} parent=135 // pred_check_branch
        %866 = sbr.rel (%p864) target = $region140
      $region139: #{unet3sc_forward.1} parent=135 // pred_region
        %p867 = scmp.lt.s32.totalorder %s73, 1
        %s868 = scalar_select %p867, %s73, 1
        %s869 = smul.addr %s868, 2
        %s870 = scalar_lea.vmem %s1, %s869
      $region140: #{unet3sc_forward.1} parent=135 // pred_fallthru
        _
    $region136: #{unet3sc_forward.1} parent=5 // pred_fallthru
      _
    %p871 = scmp.le.s32.totalorder 1, %s73
    %p872 = scmp.lt.s32.totalorder %s73, 3
    %p873 = pnand %p871, %p872
    %p874 = pneg %p873
    // Predicated region
    $region141: #{unet3sc_forward.1} parent=5 // pred_check
      _
    $region142: #{unet3sc_forward.1} parent=5 // pred_check_branch
      %876 = sbr.rel (%p873) target = $region144
    $region143: #{unet3sc_forward.1} parent=5 // pred_region
      %s877 = ssub.s32 %s73, 1
      %p878 = scmp.lt.s32.totalorder %s78, 1
      %s879 = scalar_select %p878, %s78, 1
      %s880 = smul.addr %s879, 2
      %s881 = scalar_lea.vmem %s1, %s880
      %p882 = pneg %p99
      %p883 = pneg %p96
      %p884 = pneg %p120
      %p885 = pneg %p117
      %p886 = pneg %p141
      %p887 = pneg %p138
      %p888 = pneg %p162
      %p889 = pneg %p159
      %p890 = pneg %p183
      %p891 = pneg %p180
      %p892 = pneg %p204
      %p893 = pneg %p201
      %p894 = pneg %p225
      %p895 = pneg %p222
      %p896 = pneg %p246
      %p897 = pneg %p243
      %p898 = pneg %p267
      %p899 = pneg %p264
      %p900 = pneg %p288
      %p901 = pneg %p285
      %p902 = pneg %p309
      %p903 = pneg %p306
      %p904 = pneg %p330
      %p905 = pneg %p327
      %p906 = pneg %p351
      %p907 = pneg %p348
      %p908 = pneg %p372
      %p909 = pneg %p369
      %p910 = pneg %p393
      %p911 = pneg %p390
      %p912 = pneg %p414
      %p913 = pneg %p411
      %p914 = pneg %p435
      %p915 = pneg %p432
      %p916 = pneg %p456
      %p917 = pneg %p453
      %p918 = pneg %p477
      %p919 = pneg %p474
      %p920 = pneg %p498
      %p921 = pneg %p495
      %p922 = pneg %p519
      %p923 = pneg %p516
      %p924 = pneg %p540
      %p925 = pneg %p537
      %p926 = pneg %p561
      %p927 = pneg %p558
      %p928 = pneg %p582
      %p929 = pneg %p579
      %p930 = pneg %p603
      %p931 = pneg %p600
      %p932 = pneg %p624
      %p933 = pneg %p621
      %p934 = pneg %p645
      %p935 = pneg %p642
      %p936 = pneg %p666
      %p937 = pneg %p663
      %p938 = pneg %p687
      %p939 = pneg %p684
      %p940 = pneg %p708
      %p941 = pneg %p705
      %p942 = pneg %p729
      %p943 = pneg %p726
      %p944 = pneg %p755
      %p945 = pneg %p752
      %p946 = scmp.lt.s32.totalorder %s78, 1
      %s947 = scalar_select %p946, %s78, 1
      %s948 = smul.addr %s947, 2
      %s949 = scalar_lea.vmem %s63, %s948
      %p950 = scmp.lt.s32.totalorder %s78, 1
      %s951 = scalar_select %p950, %s78, 1
      %s952 = smul.addr %s951, 2
      %s953 = scalar_lea.vmem %s1, %s952
      %p954 = scmp.lt.s32.totalorder %s78, 1
      %s955 = scalar_select %p954, %s78, 1
      %s956 = smul.addr %s955, 2
      %s957 = scalar_lea.vmem %s63, %s956
      %v958 = vld [vmem:[%s953] sm:$0x3]
      %vm959 = vcmask 90112
      %960 = vst.msk [vmem:[#allocation2] sm:$0x1] %vm959, 0.0
      %vm961 = vcmask 188512
      %962 = vst.msk [vmem:[#allocation2 + $0x10] sm:$0x1] %vm961, 0.0
      %964 = vrot.lane.b32.xlu0 %v958, 12
      %v965 = vpop.permute.xlu0 %964
      %v966 = vrot.slane %v965, 7
      %vm967 = vcmask 97280
      %v968 = vsel %vm967, %v966, %v965
      %v970 = vlaneseq
      %vm971 = vcmp.ge.s32.totalorder %v970, 12
      %vm972 = vcmp.lt.s32.totalorder %v970, 268
      %vm973 = vmand %vm971, %vm972
      %974 = vst.msk [vmem:[#allocation2] ss:$8 sm:$0x7] %vm973, %v968
      %975 = vst.msk [vmem:[#allocation2] ss:$8 sm:$0x0] %vm973, %v968
      %976 = vst [vmem:[#allocation3 + $0x30] sm:$0xfe] 0.0
      %977 = vst [vmem:[#allocation3 + $0x38] sm:$0xfe] 0.0
      %v978 = vld [vmem:[#allocation2] ss:$8 sm:$0x3]
      %vm979 = vcmp.ge.s32.totalorder %v970, 0
      %vm980 = vcmp.lt.s32.totalorder %v970, 256
      %vm981 = vmand %vm979, %vm980
      %982 = vst.msk [vmem:[#allocation3] ss:$8 sm:$0x3] %vm981, %v978
      %983 = vst.msk [vmem:[#allocation3] ss:$8 sm:$0x0] %vm981, %v978
      %v984 = vld [vmem:[#allocation2] ss:$8 sm:$0x7]
      %986 = vrot.lane.b32.xlu0 %v984, 127
      %v987 = vpop.permute.xlu0 %986
      %v988 = vrot.slane %v987, 1
      %vm989 = vcmask 1039360
      %v990 = vsel %vm989, %v987, %v988
      %s992 = scalar_lea.vmem [#allocation3], 1
      %993 = vst.msk [vmem:[%s992] ss:$8 sm:$0x3] %vm981, %v990
      %994 = vst.msk [vmem:[%s992] ss:$8 sm:$0x0] %vm981, %v990
      %v995 = vld [vmem:[#allocation2] ss:$8 sm:$0x7]
      %997 = vrot.lane.b32.xlu0 %v995, 126
      %v998 = vpop.permute.xlu0 %997
      %v999 = vrot.slane %v998, 1
      %vm1000 = vcmask 1031168
      %v1001 = vsel %vm1000, %v998, %v999
      %s1003 = scalar_lea.vmem [#allocation3], 2
      %1004 = vst.msk [vmem:[%s1003] ss:$8 sm:$0x3] %vm981, %v1001
      %1005 = vst.msk [vmem:[%s1003] ss:$8 sm:$0x0] %vm981, %v1001
      %v1006 = vld [vmem:[#allocation2] ss:$8 sm:$0x7]
      %1008 = vrot.lane.b32.xlu0 %v1006, 125
      %v1009 = vpop.permute.xlu0 %1008
      %v1010 = vrot.slane %v1009, 1
      %vm1011 = vcmask 1022976
      %v1012 = vsel %vm1011, %v1009, %v1010
      %s1014 = scalar_lea.vmem [#allocation3], 3
      %1015 = vst.msk [vmem:[%s1014] ss:$8 sm:$0x3] %vm981, %v1012
      %1016 = vst.msk [vmem:[%s1014] ss:$8 sm:$0x0] %vm981, %v1012
      %v1017 = vld [vmem:[#allocation2] ss:$8 sm:$0x7]
      %1019 = vrot.lane.b32.xlu0 %v1017, 124
      %v1020 = vpop.permute.xlu0 %1019
      %v1021 = vrot.slane %v1020, 1
      %vm1022 = vcmask 1014784
      %v1023 = vsel %vm1022, %v1020, %v1021
      %s1025 = scalar_lea.vmem [#allocation3], 4
      %1026 = vst.msk [vmem:[%s1025] ss:$8 sm:$0x3] %vm981, %v1023
      %1027 = vst.msk [vmem:[%s1025] ss:$8 sm:$0x0] %vm981, %v1023
      %v1028 = vld [vmem:[#allocation2] ss:$8 sm:$0x7]
      %1030 = vrot.lane.b32.xlu0 %v1028, 123
      %v1031 = vpop.permute.xlu0 %1030
      %v1032 = vrot.slane %v1031, 1
      %vm1033 = vcmask 1006592
      %v1034 = vsel %vm1033, %v1031, %v1032
      %s1036 = scalar_lea.vmem [#allocation3], 5
      %1037 = vst.msk [vmem:[%s1036] ss:$8 sm:$0x3] %vm981, %v1034
      %1038 = vst.msk [vmem:[%s1036] ss:$8 sm:$0x0] %vm981, %v1034
      %v1039 = vld [vmem:[#allocation2] ss:$8 sm:$0x7]
      %1041 = vrot.lane.b32.xlu0 %v1039, 122
      %v1042 = vpop.permute.xlu0 %1041
      %v1043 = vrot.slane %v1042, 1
      %vm1044 = vcmask 998400
      %v1045 = vsel %vm1044, %v1042, %v1043
      %s1047 = scalar_lea.vmem [#allocation3], 6
      %1048 = vst.msk [vmem:[%s1047] ss:$8 sm:$0x3] %vm981, %v1045
      %1049 = vst.msk [vmem:[%s1047] ss:$8 sm:$0x0] %vm981, %v1045
      %v1050 = vld [vmem:[#allocation2] ss:$8 sm:$0x7]
      %1052 = vrot.lane.b32.xlu0 %v1050, 121
      %v1053 = vpop.permute.xlu0 %1052
      %v1054 = vrot.slane %v1053, 1
      %vm1055 = vcmask 990208
      %v1056 = vsel %vm1055, %v1053, %v1054
      %s1058 = scalar_lea.vmem [#allocation3], 7
      %1059 = vst.msk [vmem:[%s1058] ss:$8 sm:$0x3] %vm981, %v1056
      %1060 = vst.msk [vmem:[%s1058] ss:$8 sm:$0x0] %vm981, %v1056
      %v1061 = vld [vmem:[#allocation2] ss:$8 sm:$0x7]
      %1063 = vrot.lane.b32.xlu0 %v1061, 120
      %v1064 = vpop.permute.xlu0 %1063
      %v1065 = vrot.slane %v1064, 1
      %vm1066 = vcmask 982016
      %v1067 = vsel %vm1066, %v1064, %v1065
      %s1069 = scalar_lea.vmem [#allocation3], 16
      %1070 = vst.msk [vmem:[%s1069] ss:$8 sm:$0x3] %vm981, %v1067
      %1071 = vst.msk [vmem:[%s1069] ss:$8 sm:$0x0] %vm981, %v1067
      %v1072 = vld [vmem:[#allocation2] ss:$8 sm:$0x7]
      %1074 = vrot.lane.b32.xlu0 %v1072, 119
      %v1075 = vpop.permute.xlu0 %1074
      %v1076 = vrot.slane %v1075, 1
      %vm1077 = vcmask 973824
      %v1078 = vsel %vm1077, %v1075, %v1076
      %s1080 = scalar_lea.vmem [#allocation3], 17
      %1081 = vst.msk [vmem:[%s1080] ss:$8 sm:$0x3] %vm981, %v1078
      %1082 = vst.msk [vmem:[%s1080] ss:$8 sm:$0x0] %vm981, %v1078
      %v1083 = vld [vmem:[#allocation2] ss:$8 sm:$0x7]
      %1085 = vrot.lane.b32.xlu0 %v1083, 118
      %v1086 = vpop.permute.xlu0 %1085
      %v1087 = vrot.slane %v1086, 1
      %vm1088 = vcmask 965632
      %v1089 = vsel %vm1088, %v1086, %v1087
      %s1091 = scalar_lea.vmem [#allocation3], 18
      %1092 = vst.msk [vmem:[%s1091] ss:$8 sm:$0x3] %vm981, %v1089
      %1093 = vst.msk [vmem:[%s1091] ss:$8 sm:$0x0] %vm981, %v1089
      %v1094 = vld [vmem:[#allocation2] ss:$8 sm:$0x7]
      %1096 = vrot.lane.b32.xlu0 %v1094, 117
      %v1097 = vpop.permute.xlu0 %1096
      %v1098 = vrot.slane %v1097, 1
      %vm1099 = vcmask 957440
      %v1100 = vsel %vm1099, %v1097, %v1098
      %s1102 = scalar_lea.vmem [#allocation3], 19
      %1103 = vst.msk [vmem:[%s1102] ss:$8 sm:$0x3] %vm981, %v1100
      %1104 = vst.msk [vmem:[%s1102] ss:$8 sm:$0x0] %vm981, %v1100
      %v1105 = vld [vmem:[#allocation2] ss:$8 sm:$0x7]
      %1107 = vrot.lane.b32.xlu0 %v1105, 116
      %v1108 = vpop.permute.xlu0 %1107
      %v1109 = vrot.slane %v1108, 1
      %vm1110 = vcmask 949248
      %v1111 = vsel %vm1110, %v1108, %v1109
      %s1113 = scalar_lea.vmem [#allocation3], 20
      %1114 = vst.msk [vmem:[%s1113] ss:$8 sm:$0x3] %vm981, %v1111
      %1115 = vst.msk [vmem:[%s1113] ss:$8 sm:$0x0] %vm981, %v1111
      %v1116 = vld [vmem:[#allocation2] ss:$8 sm:$0x7]
      %1118 = vrot.lane.b32.xlu0 %v1116, 115
      %v1119 = vpop.permute.xlu0 %1118
      %v1120 = vrot.slane %v1119, 1
      %vm1121 = vcmask 941056
      %v1122 = vsel %vm1121, %v1119, %v1120
      %s1124 = scalar_lea.vmem [#allocation3], 21
      %1125 = vst.msk [vmem:[%s1124] ss:$8 sm:$0x3] %vm981, %v1122
      %1126 = vst.msk [vmem:[%s1124] ss:$8 sm:$0x0] %vm981, %v1122
      %v1127 = vld [vmem:[#allocation2] ss:$8 sm:$0x7]
      %1129 = vrot.lane.b32.xlu0 %v1127, 114
      %v1130 = vpop.permute.xlu0 %1129
      %v1131 = vrot.slane %v1130, 1
      %vm1132 = vcmask 932864
      %v1133 = vsel %vm1132, %v1130, %v1131
      %s1135 = scalar_lea.vmem [#allocation3], 22
      %1136 = vst.msk [vmem:[%s1135] ss:$8 sm:$0x3] %vm981, %v1133
      %1137 = vst.msk [vmem:[%s1135] ss:$8 sm:$0x0] %vm981, %v1133
      %v1138 = vld [vmem:[#allocation2] ss:$8 sm:$0x7]
      %1140 = vrot.lane.b32.xlu0 %v1138, 113
      %v1141 = vpop.permute.xlu0 %1140
      %v1142 = vrot.slane %v1141, 1
      %vm1143 = vcmask 924672
      %v1144 = vsel %vm1143, %v1141, %v1142
      %s1146 = scalar_lea.vmem [#allocation3], 23
      %1147 = vst.msk [vmem:[%s1146] ss:$8 sm:$0x3] %vm981, %v1144
      %1148 = vst.msk [vmem:[%s1146] ss:$8 sm:$0x0] %vm981, %v1144
      %v1149 = vld [vmem:[#allocation2] ss:$8 sm:$0x7]
      %1151 = vrot.lane.b32.xlu0 %v1149, 112
      %v1152 = vpop.permute.xlu0 %1151
      %v1153 = vrot.slane %v1152, 1
      %vm1154 = vcmask 916480
      %v1155 = vsel %vm1154, %v1152, %v1153
      %s1157 = scalar_lea.vmem [#allocation3], 32
      %1158 = vst.msk [vmem:[%s1157] ss:$8 sm:$0x3] %vm981, %v1155
      %1159 = vst.msk [vmem:[%s1157] ss:$8 sm:$0x0] %vm981, %v1155
      %v1160 = vld [vmem:[#allocation2] ss:$8 sm:$0x7]
      %1162 = vrot.lane.b32.xlu0 %v1160, 111
      %v1163 = vpop.permute.xlu0 %1162
      %v1164 = vrot.slane %v1163, 1
      %vm1165 = vcmask 908288
      %v1166 = vsel %vm1165, %v1163, %v1164
      %s1168 = scalar_lea.vmem [#allocation3], 33
      %1169 = vst.msk [vmem:[%s1168] ss:$8 sm:$0x3] %vm981, %v1166
      %1170 = vst.msk [vmem:[%s1168] ss:$8 sm:$0x0] %vm981, %v1166
      %v1171 = vld [vmem:[#allocation2] ss:$8 sm:$0x7]
      %1173 = vrot.lane.b32.xlu0 %v1171, 110
      %v1174 = vpop.permute.xlu0 %1173
      %v1175 = vrot.slane %v1174, 1
      %vm1176 = vcmask 900096
      %v1177 = vsel %vm1176, %v1174, %v1175
      %s1179 = scalar_lea.vmem [#allocation3], 34
      %1180 = vst.msk [vmem:[%s1179] ss:$8 sm:$0x3] %vm981, %v1177
      %1181 = vst.msk [vmem:[%s1179] ss:$8 sm:$0x0] %vm981, %v1177
      %v1182 = vld [vmem:[#allocation2] ss:$8 sm:$0x7]
      %1184 = vrot.lane.b32.xlu0 %v1182, 109
      %v1185 = vpop.permute.xlu0 %1184
      %v1186 = vrot.slane %v1185, 1
      %vm1187 = vcmask 891904
      %v1188 = vsel %vm1187, %v1185, %v1186
      %s1190 = scalar_lea.vmem [#allocation3], 35
      %1191 = vst.msk [vmem:[%s1190] ss:$8 sm:$0x3] %vm981, %v1188
      %1192 = vst.msk [vmem:[%s1190] ss:$8 sm:$0x0] %vm981, %v1188
      %v1193 = vld [vmem:[#allocation2] ss:$8 sm:$0x7]
      %1195 = vrot.lane.b32.xlu0 %v1193, 108
      %v1196 = vpop.permute.xlu0 %1195
      %v1197 = vrot.slane %v1196, 1
      %vm1198 = vcmask 883712
      %v1199 = vsel %vm1198, %v1196, %v1197
      %s1201 = scalar_lea.vmem [#allocation3], 36
      %1202 = vst.msk [vmem:[%s1201] ss:$8 sm:$0x3] %vm981, %v1199
      %1203 = vst.msk [vmem:[%s1201] ss:$8 sm:$0x0] %vm981, %v1199
      %v1204 = vld [vmem:[#allocation2] ss:$8 sm:$0x7]
      %1206 = vrot.lane.b32.xlu0 %v1204, 107
      %v1207 = vpop.permute.xlu0 %1206
      %v1208 = vrot.slane %v1207, 1
      %vm1209 = vcmask 875520
      %v1210 = vsel %vm1209, %v1207, %v1208
      %s1212 = scalar_lea.vmem [#allocation3], 37
      %1213 = vst.msk [vmem:[%s1212] ss:$8 sm:$0x3] %vm981, %v1210
      %1214 = vst.msk [vmem:[%s1212] ss:$8 sm:$0x0] %vm981, %v1210
      %v1215 = vld [vmem:[#allocation2] ss:$8 sm:$0x7]
      %1217 = vrot.lane.b32.xlu0 %v1215, 106
      %v1218 = vpop.permute.xlu0 %1217
      %v1219 = vrot.slane %v1218, 1
      %vm1220 = vcmask 867328
      %v1221 = vsel %vm1220, %v1218, %v1219
      %s1223 = scalar_lea.vmem [#allocation3], 38
      %1224 = vst.msk [vmem:[%s1223] ss:$8 sm:$0x3] %vm981, %v1221
      %1225 = vst.msk [vmem:[%s1223] ss:$8 sm:$0x0] %vm981, %v1221
      %v1226 = vld [vmem:[#allocation2] ss:$8 sm:$0x7]
      %1228 = vrot.lane.b32.xlu0 %v1226, 105
      %v1229 = vpop.permute.xlu0 %1228
      %v1230 = vrot.slane %v1229, 1
      %vm1231 = vcmask 859136
      %v1232 = vsel %vm1231, %v1229, %v1230
      %s1234 = scalar_lea.vmem [#allocation3], 39
      %1235 = vst.msk [vmem:[%s1234] ss:$8 sm:$0x3] %vm981, %v1232
      %1236 = vst.msk [vmem:[%s1234] ss:$8 sm:$0x0] %vm981, %v1232
      %v1237 = vld [vmem:[#allocation2] ss:$8 sm:$0x7]
      %1239 = vrot.lane.b32.xlu0 %v1237, 104
      %v1240 = vpop.permute.xlu0 %1239
      %v1241 = vrot.slane %v1240, 1
      %vm1242 = vcmask 850944
      %v1243 = vsel %vm1242, %v1240, %v1241
      %s1245 = scalar_lea.vmem [#allocation3], 48
      %1246 = vst.msk [vmem:[%s1245] ss:$8 sm:$0x3] %vm981, %v1243
      %1247 = vst.msk [vmem:[%s1245] ss:$8 sm:$0x0] %vm981, %v1243
      %v1248 = vld [vmem:[#allocation3] sm:$0xff]
      %v1249 = vld [vmem:[#allocation3 + $0x8] sm:$0xff]
      %v1250 = vld [vmem:[#allocation3 + $0x10] sm:$0xff]
      %v1251 = vld [vmem:[#allocation3 + $0x18] sm:$0xff]
      %v1252 = vld [vmem:[#allocation3 + $0x20] sm:$0xff]
      %v1253 = vld [vmem:[#allocation3 + $0x28] sm:$0xff]
      %v1254 = vld [vmem:[#allocation3 + $0x30] sm:$0xff]
      %v1255 = vld [vmem:[#allocation3 + $0x38] sm:$0xff]
      %v1256 = vld [vmem:[%s3] sm:$0xff]
      %v1257 = vld [vmem:[%s3 + $0x8] sm:$0xff]
      %v1258 = vld [vmem:[%s3 + $0x10] sm:$0xff]
      %vm1259 = vcmask 261120
      %v1261 = vsel %vm1259, %v1256, 0
      %v1264 = vsel %vm1259, %v1257, 0
      %v1267 = vsel %vm1259, %v1258, 0
      %1269 = vmatprep.subr.mxu0 0.0
      %1270 = vmatpush1.msra.mxu0 0.0
      %1271 = vmatprep.subr.mxu0 0.0
      %1272 = vmatpush1.msra.mxu0 0.0
      %1273 = vmatprep.subr.mxu0 0.0
      %1274 = vmatpush1.msra.mxu0 0.0
      %1275 = vmatprep.subr.mxu0 0.0
      %1276 = vmatpush1.msra.mxu0 0.0
      %1277 = vmatprep.subr.mxu0 0.0
      %1278 = vmatpush1.msra.mxu0 0.0
      %1279 = vmatprep.subr.mxu0 0.0
      %1280 = vmatpush1.msra.mxu0 0.0
      %1281 = vmatprep.subr.mxu0 0.0
      %1282 = vmatpush1.msra.mxu0 0.0
      %1283 = vmatprep.subr.mxu0 0.0
      %1284 = vmatpush1.msra.mxu0 0.0
      %1285 = vmatprep.subr.mxu0 0.0
      %1286 = vmatpush1.msra.mxu0 0.0
      %1287 = vmatprep.subr.mxu0 0.0
      %1288 = vmatpush1.msra.mxu0 0.0
      %1289 = vmatprep.subr.mxu0 0.0
      %1290 = vmatpush1.msra.mxu0 0.0
      %1291 = vmatprep.subr.mxu0 0.0
      %1292 = vmatpush1.msra.mxu0 0.0
      %1293 = vmatprep.subr.mxu0 %v1255
      %1294 = vmatpush1.msra.mxu0 %v1254
      %1295 = vmatprep.subr.mxu0 %v1253
      %1296 = vmatpush1.msra.mxu0 %v1252
      %1297 = vmatprep.subr.mxu0 %v1251
      %1298 = vmatpush1.msra.mxu0 %v1250
      %1299 = vmatprep.subr.mxu0 %v1249
      %1300 = vmatpush1.msra.mxu0 %v1248
      %1301 = vmatprep.subr.mxu0 0.0
      %1302 = vmatpush2.msra.mxu0 0.0
      %1303 = vmatprep.subr.mxu0 0.0
      %1304 = vmatpush2.msra.mxu0 0.0
      %1305 = vmatprep.subr.mxu0 0.0
      %1306 = vmatpush2.msra.mxu0 0.0
      %1307 = vmatprep.subr.mxu0 0.0
      %1308 = vmatpush2.msra.mxu0 0.0
      %1309 = vmatprep.subr.mxu0 0.0
      %1310 = vmatpush2.msra.mxu0 0.0
      %1311 = vmatprep.subr.mxu0 0.0
      %1312 = vmatpush2.msra.mxu0 0.0
      %1313 = vmatprep.subr.mxu0 0.0
      %1314 = vmatpush2.msra.mxu0 0.0
      %1315 = vmatprep.subr.mxu0 0.0
      %1316 = vmatpush2.msra.mxu0 0.0
      %1317 = vmatprep.subr.mxu0 0.0
      %1318 = vmatpush2.msra.mxu0 0.0
      %1319 = vmatprep.subr.mxu0 0.0
      %1320 = vmatpush2.msra.mxu0 0.0
      %1321 = vmatprep.subr.mxu0 0.0
      %1322 = vmatpush2.msra.mxu0 0.0
      %1323 = vmatprep.subr.mxu0 0.0
      %1324 = vmatpush2.msra.mxu0 0.0
      %1325 = vmatprep.subr.mxu0 0.0
      %1326 = vmatpush2.msra.mxu0 0.0
      %1327 = vmatprep.subr.mxu0 0.0
      %1328 = vmatpush2.msra.mxu0 0.0
      %1329 = vmatprep.subr.mxu0 0.0
      %1330 = vmatpush2.msra.mxu0 0.0
      %1331 = vmatprep.subr.mxu0 0.0
      %1332 = vmatpush2.msra.mxu0 0.0
      %1333 = vmatprep.mubr.f32.mxu0 0.0
      %1334 = vmatmul.mubr.f32.gmra.mxu0 %v1261
      %v1335 = vpop.f32.mrf.mxu0
      %v1336 = vadd.f32 0.0, %v1335
      %v1337 = vpop.f32.mrf.mxu0
      %v1338 = vadd.f32 0.0, %v1337
      %1339 = vmatprep.mubr.f32.mxu0 0.0
      %1340 = vmatmul.mubr.f32.gmra.mxu0 %v1264
      %v1341 = vpop.f32.mrf.mxu0
      %v1342 = vadd.f32 0.0, %v1341
      %v1343 = vpop.f32.mrf.mxu0
      %v1344 = vadd.f32 0.0, %v1343
      %1345 = vmatprep.mubr.f32.mxu0 0.0
      %1346 = vmatmul.mubr.f32.gmra.mxu0 %v1267
      %v1347 = vpop.f32.mrf.mxu0
      %v1348 = vadd.f32 0.0, %v1347
      %v1349 = vpop.f32.mrf.mxu0
      %v1350 = vadd.f32 0.0, %v1349
      %1351 = vdwg.mxu0
      %v1352 = vld [vmem:[%s5] sm:$0xff]
      %v1353 = vld [vmem:[%s5 + $0x8] sm:$0xff]
      %v1354 = vld [vmem:[%s5 + $0x10] sm:$0xff]
      %1356 = vset.pattern.permute.xlu0 0
      %1357 = vperm.xlu0 %1356, %v1352
      %v1358 = vpop.permute.xlu0 %1357
      %1361 = vset.pattern.permute.xlu0 0
      %1362 = vperm.xlu0 %1361, %v1353
      %v1363 = vpop.permute.xlu0 %1362
      %1366 = vset.pattern.permute.xlu0 0
      %1367 = vperm.xlu0 %1366, %v1354
      %v1368 = vpop.permute.xlu0 %1367
      %v1370 = vmul.f32 %v1336, %v1358
      %v1371 = vmul.f32 %v1338, %v1358
      %v1372 = vmul.f32 %v1342, %v1363
      %v1373 = vmul.f32 %v1344, %v1363
      %v1374 = vmul.f32 %v1348, %v1368
      %v1375 = vmul.f32 %v1350, %v1368
      %v1376 = vld [vmem:[%s7] sm:$0xff]
      %v1377 = vld [vmem:[%s7 + $0x8] sm:$0xff]
      %v1378 = vld [vmem:[%s7 + $0x10] sm:$0xff]
      %1380 = vset.pattern.permute.xlu0 0
      %1381 = vperm.xlu0 %1380, %v1376
      %v1382 = vpop.permute.xlu0 %1381
      %1385 = vset.pattern.permute.xlu0 0
      %1386 = vperm.xlu0 %1385, %v1377
      %v1387 = vpop.permute.xlu0 %1386
      %1390 = vset.pattern.permute.xlu0 0
      %1391 = vperm.xlu0 %1390, %v1378
      %v1392 = vpop.permute.xlu0 %1391
      %v1394 = vadd.f32 %v1370, %v1382
      %v1395 = vadd.f32 %v1371, %v1382
      %v1396 = vadd.f32 %v1372, %v1387
      %v1397 = vadd.f32 %v1373, %v1387
      %v1398 = vadd.f32 %v1374, %v1392
      %v1399 = vadd.f32 %v1375, %v1392
      %v1400 = vmax.f32 %v1394, 0.0
      %v1401 = vmax.f32 %v1395, 0.0
      %v1402 = vmax.f32 %v1396, 0.0
      %v1403 = vmax.f32 %v1397, 0.0
      %v1404 = vmax.f32 %v1398, 0.0
      %v1405 = vmax.f32 %v1399, 0.0
      %vm1406 = vcmask 23552
      %1407 = vst.msk [vmem:[#allocation2] sm:$0xff] %vm1406, 0.0
      %1408 = vst.msk [vmem:[#allocation2 + $0x18] sm:$0xff] %vm1406, 0.0
      %1409 = vst.msk [vmem:[#allocation2 + $0x30] sm:$0xff] %vm1406, 0.0
      %vm1410 = vcmask 48152
      %1411 = vst.msk [vmem:[#allocation2 + $0x10] sm:$0xff] %vm1410, 0.0
      %1412 = vst.msk [vmem:[#allocation2 + $0x28] sm:$0xff] %vm1410, 0.0
      %1413 = vst.msk [vmem:[#allocation2 + $0x40] sm:$0xff] %vm1410, 0.0
      %1420 = vrot.lane.b32.xlu0 %v1400, 3
      %v1421 = vpop.permute.xlu0 %1420
      %1422 = vrot.lane.b32.xlu0 %v1401, 3
      %v1423 = vpop.permute.xlu0 %1422
      %1424 = vrot.lane.b32.xlu0 %v1402, 3
      %v1425 = vpop.permute.xlu0 %1424
      %1426 = vrot.lane.b32.xlu0 %v1403, 3
      %v1427 = vpop.permute.xlu0 %1426
      %1428 = vrot.lane.b32.xlu0 %v1404, 3
      %v1429 = vpop.permute.xlu0 %1428
      %1430 = vrot.lane.b32.xlu0 %v1405, 3
      %v1431 = vpop.permute.xlu0 %1430
      %v1432 = vsel %vm1406, %v1421, %v1423
      %v1433 = vsel %vm1406, %v1425, %v1427
      %v1434 = vsel %vm1406, %v1429, %v1431
      %vm1444 = vcmask 1047576
      %1445 = vst.msk [vmem:[#allocation2] sm:$0xff] %vm1444, %v1421
      %1446 = vst [vmem:[#allocation2 + $0x8] sm:$0xff] %v1432
      %1447 = vst.msk [vmem:[#allocation2 + $0x10] sm:$0xff] %vm1406, %v1423
      %1448 = vst.msk [vmem:[#allocation2 + $0x18] sm:$0xff] %vm1444, %v1425
      %1449 = vst [vmem:[#allocation2 + $0x20] sm:$0xff] %v1433
      %1450 = vst.msk [vmem:[#allocation2 + $0x28] sm:$0xff] %vm1406, %v1427
      %1451 = vst.msk [vmem:[#allocation2 + $0x30] sm:$0xff] %vm1444, %v1429
      %1452 = vst [vmem:[#allocation2 + $0x38] sm:$0xff] %v1434
      %1453 = vst.msk [vmem:[#allocation2 + $0x40] sm:$0xff] %vm1406, %v1431
      %v1454 = vld [vmem:[#allocation2] sm:$0xff]
      %v1455 = vld [vmem:[#allocation2 + $0x8] sm:$0xff]
      %v1456 = vld [vmem:[#allocation2 + $0x18] sm:$0xff]
      %v1457 = vld [vmem:[#allocation2 + $0x20] sm:$0xff]
      %v1458 = vld [vmem:[#allocation2 + $0x30] sm:$0xff]
      %v1459 = vld [vmem:[#allocation2 + $0x38] sm:$0xff]
      %1460 = vst [vmem:[#allocation3] sm:$0xff] %v1454
      %1461 = vst [vmem:[#allocation3 + $0x8] sm:$0xff] %v1455
      %1462 = vst [vmem:[#allocation3 + $0x10] sm:$0xff] %v1456
      %1463 = vst [vmem:[#allocation3 + $0x18] sm:$0xff] %v1457
      %1464 = vst [vmem:[#allocation3 + $0x20] sm:$0xff] %v1458
      %1465 = vst [vmem:[#allocation3 + $0x28] sm:$0xff] %v1459
      %v1466 = vld [vmem:[#allocation2] sm:$0xff]
      %v1467 = vld [vmem:[#allocation2 + $0x8] sm:$0xff]
      %v1468 = vld [vmem:[#allocation2 + $0x10] sm:$0xff]
      %v1469 = vld [vmem:[#allocation2 + $0x18] sm:$0xff]
      %v1470 = vld [vmem:[#allocation2 + $0x20] sm:$0xff]
      %v1471 = vld [vmem:[#allocation2 + $0x28] sm:$0xff]
      %v1472 = vld [vmem:[#allocation2 + $0x30] sm:$0xff]
      %v1473 = vld [vmem:[#allocation2 + $0x38] sm:$0xff]
      %v1474 = vld [vmem:[#allocation2 + $0x40] sm:$0xff]
      %1484 = vrot.lane.b32.xlu0 %v1466, 127
      %v1485 = vpop.permute.xlu0 %1484
      %1486 = vrot.lane.b32.xlu0 %v1467, 127
      %v1487 = vpop.permute.xlu0 %1486
      %1488 = vrot.lane.b32.xlu0 %v1468, 127
      %v1489 = vpop.permute.xlu0 %1488
      %1490 = vrot.lane.b32.xlu0 %v1469, 127
      %v1491 = vpop.permute.xlu0 %1490
      %1492 = vrot.lane.b32.xlu0 %v1470, 127
      %v1493 = vpop.permute.xlu0 %1492
      %1494 = vrot.lane.b32.xlu0 %v1471, 127
      %v1495 = vpop.permute.xlu0 %1494
      %1496 = vrot.lane.b32.xlu0 %v1472, 127
      %v1497 = vpop.permute.xlu0 %1496
      %1498 = vrot.lane.b32.xlu0 %v1473, 127
      %v1499 = vpop.permute.xlu0 %1498
      %1500 = vrot.lane.b32.xlu0 %v1474, 127
      %v1501 = vpop.permute.xlu0 %1500
      %v1502 = vsel %vm989, %v1485, %v1487
      %v1503 = vsel %vm989, %v1487, %v1489
      %v1504 = vsel %vm989, %v1491, %v1493
      %v1505 = vsel %vm989, %v1493, %v1495
      %v1506 = vsel %vm989, %v1497, %v1499
      %v1507 = vsel %vm989, %v1499, %v1501
      %1514 = vst [vmem:[#allocation3 + $0x30] sm:$0xff] %v1502
      %1515 = vst [vmem:[#allocation3 + $0x38] sm:$0xff] %v1503
      %1516 = vst [vmem:[#allocation3 + $0x40] sm:$0xff] %v1504
      %1517 = vst [vmem:[#allocation3 + $0x48] sm:$0xff] %v1505
      %1518 = vst [vmem:[#allocation3 + $0x50] sm:$0xff] %v1506
      %1519 = vst [vmem:[#allocation3 + $0x58] sm:$0xff] %v1507
      %v1520 = vld [vmem:[#allocation2] sm:$0xff]
      %v1521 = vld [vmem:[#allocation2 + $0x8] sm:$0xff]
      %v1522 = vld [vmem:[#allocation2 + $0x10] sm:$0xff]
      %v1523 = vld [vmem:[#allocation2 + $0x18] sm:$0xff]
      %v1524 = vld [vmem:[#allocation2 + $0x20] sm:$0xff]
      %v1525 = vld [vmem:[#allocation2 + $0x28] sm:$0xff]
      %v1526 = vld [vmem:[#allocation2 + $0x30] sm:$0xff]
      %v1527 = vld [vmem:[#allocation2 + $0x38] sm:$0xff]
      %v1528 = vld [vmem:[#allocation2 + $0x40] sm:$0xff]
      %1538 = vrot.lane.b32.xlu0 %v1520, 126
      %v1539 = vpop.permute.xlu0 %1538
      %1540 = vrot.lane.b32.xlu0 %v1521, 126
      %v1541 = vpop.permute.xlu0 %1540
      %1542 = vrot.lane.b32.xlu0 %v1522, 126
      %v1543 = vpop.permute.xlu0 %1542
      %1544 = vrot.lane.b32.xlu0 %v1523, 126
      %v1545 = vpop.permute.xlu0 %1544
      %1546 = vrot.lane.b32.xlu0 %v1524, 126
      %v1547 = vpop.permute.xlu0 %1546
      %1548 = vrot.lane.b32.xlu0 %v1525, 126
      %v1549 = vpop.permute.xlu0 %1548
      %1550 = vrot.lane.b32.xlu0 %v1526, 126
      %v1551 = vpop.permute.xlu0 %1550
      %1552 = vrot.lane.b32.xlu0 %v1527, 126
      %v1553 = vpop.permute.xlu0 %1552
      %1554 = vrot.lane.b32.xlu0 %v1528, 126
      %v1555 = vpop.permute.xlu0 %1554
      %v1556 = vsel %vm1000, %v1539, %v1541
      %v1557 = vsel %vm1000, %v1541, %v1543
      %v1558 = vsel %vm1000, %v1545, %v1547
      %v1559 = vsel %vm1000, %v1547, %v1549
      %v1560 = vsel %vm1000, %v1551, %v1553
      %v1561 = vsel %vm1000, %v1553, %v1555
      %1568 = vst [vmem:[#allocation3 + $0x60] sm:$0xff] %v1556
      %1569 = vst [vmem:[#allocation3 + $0x68] sm:$0xff] %v1557
      %1570 = vst [vmem:[#allocation3 + $0x70] sm:$0xff] %v1558
      %1571 = vst [vmem:[#allocation3 + $0x78] sm:$0xff] %v1559
      %1572 = vst [vmem:[#allocation3 + $0x80] sm:$0xff] %v1560
      %1573 = vst [vmem:[#allocation3 + $0x88] sm:$0xff] %v1561
      %v1574 = vld [vmem:[#allocation2] sm:$0xff]
      %v1575 = vld [vmem:[#allocation2 + $0x8] sm:$0xff]
      %v1576 = vld [vmem:[#allocation2 + $0x10] sm:$0xff]
      %v1577 = vld [vmem:[#allocation2 + $0x18] sm:$0xff]
      %v1578 = vld [vmem:[#allocation2 + $0x20] sm:$0xff]
      %v1579 = vld [vmem:[#allocation2 + $0x28] sm:$0xff]
      %v1580 = vld [vmem:[#allocation2 + $0x30] sm:$0xff]
      %v1581 = vld [vmem:[#allocation2 + $0x38] sm:$0xff]
      %v1582 = vld [vmem:[#allocation2 + $0x40] sm:$0xff]
      %1592 = vrot.lane.b32.xlu0 %v1574, 125
      %v1593 = vpop.permute.xlu0 %1592
      %1594 = vrot.lane.b32.xlu0 %v1575, 125
      %v1595 = vpop.permute.xlu0 %1594
      %1596 = vrot.lane.b32.xlu0 %v1576, 125
      %v1597 = vpop.permute.xlu0 %1596
      %1598 = vrot.lane.b32.xlu0 %v1577, 125
      %v1599 = vpop.permute.xlu0 %1598
      %1600 = vrot.lane.b32.xlu0 %v1578, 125
      %v1601 = vpop.permute.xlu0 %1600
      %1602 = vrot.lane.b32.xlu0 %v1579, 125
      %v1603 = vpop.permute.xlu0 %1602
      %1604 = vrot.lane.b32.xlu0 %v1580, 125
      %v1605 = vpop.permute.xlu0 %1604
      %1606 = vrot.lane.b32.xlu0 %v1581, 125
      %v1607 = vpop.permute.xlu0 %1606
      %1608 = vrot.lane.b32.xlu0 %v1582, 125
      %v1609 = vpop.permute.xlu0 %1608
      %v1610 = vsel %vm1011, %v1593, %v1595
      %v1611 = vsel %vm1011, %v1595, %v1597
      %v1612 = vsel %vm1011, %v1599, %v1601
      %v1613 = vsel %vm1011, %v1601, %v1603
      %v1614 = vsel %vm1011, %v1605, %v1607
      %v1615 = vsel %vm1011, %v1607, %v1609
      %1622 = vst [vmem:[#allocation3 + $0x90] sm:$0xff] %v1610
      %1623 = vst [vmem:[#allocation3 + $0x98] sm:$0xff] %v1611
      %1624 = vst [vmem:[#allocation3 + $0xa0] sm:$0xff] %v1612
      %1625 = vst [vmem:[#allocation3 + $0xa8] sm:$0xff] %v1613
      %1626 = vst [vmem:[#allocation3 + $0xb0] sm:$0xff] %v1614
      %1627 = vst [vmem:[#allocation3 + $0xb8] sm:$0xff] %v1615
      %v1628 = vld [vmem:[#allocation2] sm:$0xff]
      %v1629 = vld [vmem:[#allocation2 + $0x8] sm:$0xff]
      %v1630 = vld [vmem:[#allocation2 + $0x10] sm:$0xff]
      %v1631 = vld [vmem:[#allocation2 + $0x18] sm:$0xff]
      %v1632 = vld [vmem:[#allocation2 + $0x20] sm:$0xff]
      %v1633 = vld [vmem:[#allocation2 + $0x28] sm:$0xff]
      %v1634 = vld [vmem:[#allocation2 + $0x30] sm:$0xff]
      %v1635 = vld [vmem:[#allocation2 + $0x38] sm:$0xff]
      %v1636 = vld [vmem:[#allocation2 + $0x40] sm:$0xff]
      %1646 = vrot.lane.b32.xlu0 %v1628, 124
      %v1647 = vpop.permute.xlu0 %1646
      %1648 = vrot.lane.b32.xlu0 %v1629, 124
      %v1649 = vpop.permute.xlu0 %1648
      %1650 = vrot.lane.b32.xlu0 %v1630, 124
      %v1651 = vpop.permute.xlu0 %1650
      %1652 = vrot.lane.b32.xlu0 %v1631, 124
      %v1653 = vpop.permute.xlu0 %1652
      %1654 = vrot.lane.b32.xlu0 %v1632, 124
      %v1655 = vpop.permute.xlu0 %1654
      %1656 = vrot.lane.b32.xlu0 %v1633, 124
      %v1657 = vpop.permute.xlu0 %1656
      %1658 = vrot.lane.b32.xlu0 %v1634, 124
      %v1659 = vpop.permute.xlu0 %1658
      %1660 = vrot.lane.b32.xlu0 %v1635, 124
      %v1661 = vpop.permute.xlu0 %1660
      %1662 = vrot.lane.b32.xlu0 %v1636, 124
      %v1663 = vpop.permute.xlu0 %1662
      %v1664 = vsel %vm1022, %v1647, %v1649
      %v1665 = vsel %vm1022, %v1649, %v1651
      %v1666 = vsel %vm1022, %v1653, %v1655
      %v1667 = vsel %vm1022, %v1655, %v1657
      %v1668 = vsel %vm1022, %v1659, %v1661
      %v1669 = vsel %vm1022, %v1661, %v1663
      %1676 = vst [vmem:[#allocation3 + $0xc0] sm:$0xff] %v1664
      %1677 = vst [vmem:[#allocation3 + $0xc8] sm:$0xff] %v1665
      %1678 = vst [vmem:[#allocation3 + $0xd0] sm:$0xff] %v1666
      %1679 = vst [vmem:[#allocation3 + $0xd8] sm:$0xff] %v1667
      %1680 = vst [vmem:[#allocation3 + $0xe0] sm:$0xff] %v1668
      %1681 = vst [vmem:[#allocation3 + $0xe8] sm:$0xff] %v1669
      %v1682 = vld [vmem:[#allocation2] sm:$0xff]
      %v1683 = vld [vmem:[#allocation2 + $0x8] sm:$0xff]
      %v1684 = vld [vmem:[#allocation2 + $0x10] sm:$0xff]
      %v1685 = vld [vmem:[#allocation2 + $0x18] sm:$0xff]
      %v1686 = vld [vmem:[#allocation2 + $0x20] sm:$0xff]
      %v1687 = vld [vmem:[#allocation2 + $0x28] sm:$0xff]
      %v1688 = vld [vmem:[#allocation2 + $0x30] sm:$0xff]
      %v1689 = vld [vmem:[#allocation2 + $0x38] sm:$0xff]
      %v1690 = vld [vmem:[#allocation2 + $0x40] sm:$0xff]
      %1700 = vrot.lane.b32.xlu0 %v1682, 123
      %v1701 = vpop.permute.xlu0 %1700
      %1702 = vrot.lane.b32.xlu0 %v1683, 123
      %v1703 = vpop.permute.xlu0 %1702
      %1704 = vrot.lane.b32.xlu0 %v1684, 123
      %v1705 = vpop.permute.xlu0 %1704
      %1706 = vrot.lane.b32.xlu0 %v1685, 123
      %v1707 = vpop.permute.xlu0 %1706
      %1708 = vrot.lane.b32.xlu0 %v1686, 123
      %v1709 = vpop.permute.xlu0 %1708
      %1710 = vrot.lane.b32.xlu0 %v1687, 123
      %v1711 = vpop.permute.xlu0 %1710
      %1712 = vrot.lane.b32.xlu0 %v1688, 123
      %v1713 = vpop.permute.xlu0 %1712
      %1714 = vrot.lane.b32.xlu0 %v1689, 123
      %v1715 = vpop.permute.xlu0 %1714
      %1716 = vrot.lane.b32.xlu0 %v1690, 123
      %v1717 = vpop.permute.xlu0 %1716
      %v1718 = vsel %vm1033, %v1701, %v1703
      %v1719 = vsel %vm1033, %v1703, %v1705
      %v1720 = vsel %vm1033, %v1707, %v1709
      %v1721 = vsel %vm1033, %v1709, %v1711
      %v1722 = vsel %vm1033, %v1713, %v1715
      %v1723 = vsel %vm1033, %v1715, %v1717
      %1730 = vst [vmem:[#allocation3 + $0xf0] sm:$0xff] %v1718
      %1731 = vst [vmem:[#allocation3 + $0xf8] sm:$0xff] %v1719
      %1732 = vst [vmem:[#allocation3 + $0x100] sm:$0xff] %v1720
      %1733 = vst [vmem:[#allocation3 + $0x108] sm:$0xff] %v1721
      %1734 = vst [vmem:[#allocation3 + $0x110] sm:$0xff] %v1722
      %1735 = vst [vmem:[#allocation3 + $0x118] sm:$0xff] %v1723
      %v1736 = vld [vmem:[#allocation2] sm:$0xff]
      %v1737 = vld [vmem:[#allocation2 + $0x8] sm:$0xff]
      %v1738 = vld [vmem:[#allocation2 + $0x10] sm:$0xff]
      %v1739 = vld [vmem:[#allocation2 + $0x18] sm:$0xff]
      %v1740 = vld [vmem:[#allocation2 + $0x20] sm:$0xff]
      %v1741 = vld [vmem:[#allocation2 + $0x28] sm:$0xff]
      %v1742 = vld [vmem:[#allocation2 + $0x30] sm:$0xff]
      %v1743 = vld [vmem:[#allocation2 + $0x38] sm:$0xff]
      %v1744 = vld [vmem:[#allocation2 + $0x40] sm:$0xff]
      %1754 = vrot.lane.b32.xlu0 %v1736, 122
      %v1755 = vpop.permute.xlu0 %1754
      %1756 = vrot.lane.b32.xlu0 %v1737, 122
      %v1757 = vpop.permute.xlu0 %1756
      %1758 = vrot.lane.b32.xlu0 %v1738, 122
      %v1759 = vpop.permute.xlu0 %1758
      %1760 = vrot.lane.b32.xlu0 %v1739, 122
      %v1761 = vpop.permute.xlu0 %1760
      %1762 = vrot.lane.b32.xlu0 %v1740, 122
      %v1763 = vpop.permute.xlu0 %1762
      %1764 = vrot.lane.b32.xlu0 %v1741, 122
      %v1765 = vpop.permute.xlu0 %1764
      %1766 = vrot.lane.b32.xlu0 %v1742, 122
      %v1767 = vpop.permute.xlu0 %1766
      %1768 = vrot.lane.b32.xlu0 %v1743, 122
      %v1769 = vpop.permute.xlu0 %1768
      %1770 = vrot.lane.b32.xlu0 %v1744, 122
      %v1771 = vpop.permute.xlu0 %1770
      %v1772 = vsel %vm1044, %v1755, %v1757
      %v1773 = vsel %vm1044, %v1757, %v1759
      %v1774 = vsel %vm1044, %v1761, %v1763
      %v1775 = vsel %vm1044, %v1763, %v1765
      %v1776 = vsel %vm1044, %v1767, %v1769
      %v1777 = vsel %vm1044, %v1769, %v1771
      %1784 = vst [vmem:[#allocation3 + $0x120] sm:$0xff] %v1772
      %1785 = vst [vmem:[#allocation3 + $0x128] sm:$0xff] %v1773
      %1786 = vst [vmem:[#allocation3 + $0x130] sm:$0xff] %v1774
      %1787 = vst [vmem:[#allocation3 + $0x138] sm:$0xff] %v1775
      %1788 = vst [vmem:[#allocation3 + $0x140] sm:$0xff] %v1776
      %1789 = vst [vmem:[#allocation3 + $0x148] sm:$0xff] %v1777
      %v1790 = vld [vmem:[#allocation3] sm:$0xff]
      %v1791 = vld [vmem:[#allocation3 + $0x8] sm:$0xff]
      %v1792 = vld [vmem:[#allocation3 + $0x10] sm:$0xff]
      %v1793 = vld [vmem:[#allocation3 + $0x18] sm:$0xff]
      %v1794 = vld [vmem:[#allocation3 + $0x20] sm:$0xff]
      %v1795 = vld [vmem:[#allocation3 + $0x28] sm:$0xff]
      %v1796 = vld [vmem:[#allocation3 + $0x30] sm:$0xff]
      %v1797 = vld [vmem:[#allocation3 + $0x38] sm:$0xff]
      %v1798 = vld [vmem:[#allocation3 + $0x40] sm:$0xff]
      %v1799 = vld [vmem:[#allocation3 + $0x48] sm:$0xff]
      %v1800 = vld [vmem:[#allocation3 + $0x50] sm:$0xff]
      %v1801 = vld [vmem:[#allocation3 + $0x58] sm:$0xff]
      %v1802 = vld [vmem:[#allocation3 + $0x60] sm:$0xff]
      %v1803 = vld [vmem:[#allocation3 + $0x68] sm:$0xff]
      %v1804 = vld [vmem:[#allocation3 + $0x70] sm:$0xff]
      %v1805 = vld [vmem:[#allocation3 + $0x78] sm:$0xff]
      %v1806 = vld [vmem:[#allocation3 + $0x80] sm:$0xff]
      %v1807 = vld [vmem:[#allocation3 + $0x88] sm:$0xff]
      %v1808 = vld [vmem:[#allocation3 + $0x90] sm:$0xff]
      %v1809 = vld [vmem:[#allocation3 + $0x98] sm:$0xff]
      %v1810 = vld [vmem:[#allocation3 + $0xa0] sm:$0xff]
      %v1811 = vld [vmem:[#allocation3 + $0xa8] sm:$0xff]
      %v1812 = vld [vmem:[#allocation3 + $0xb0] sm:$0xff]
      %v1813 = vld [vmem:[#allocation3 + $0xb8] sm:$0xff]
      %v1814 = vld [vmem:[#allocation3 + $0xc0] sm:$0xff]
      %v1815 = vld [vmem:[#allocation3 + $0xc8] sm:$0xff]
      %v1816 = vld [vmem:[#allocation3 + $0xd0] sm:$0xff]
      %v1817 = vld [vmem:[#allocation3 + $0xd8] sm:$0xff]
      %v1818 = vld [vmem:[#allocation3 + $0xe0] sm:$0xff]
      %v1819 = vld [vmem:[#allocation3 + $0xe8] sm:$0xff]
      %v1820 = vld [vmem:[#allocation3 + $0xf0] sm:$0xff]
      %v1821 = vld [vmem:[#allocation3 + $0xf8] sm:$0xff]
      %v1822 = vld [vmem:[#allocation3 + $0x100] sm:$0xff]
      %v1823 = vld [vmem:[#allocation3 + $0x108] sm:$0xff]
      %v1824 = vld [vmem:[#allocation3 + $0x110] sm:$0xff]
      %v1825 = vld [vmem:[#allocation3 + $0x118] sm:$0xff]
      %v1826 = vld [vmem:[#allocation3 + $0x120] sm:$0xff]
      %v1827 = vld [vmem:[#allocation3 + $0x128] sm:$0xff]
      %v1828 = vld [vmem:[#allocation3 + $0x130] sm:$0xff]
      %v1829 = vld [vmem:[#allocation3 + $0x138] sm:$0xff]
      %v1830 = vld [vmem:[#allocation3 + $0x140] sm:$0xff]
      %v1831 = vld [vmem:[#allocation3 + $0x148] sm:$0xff]
      %v1832 = vld [vmem:[%s9] sm:$0xff]
      %v1833 = vld [vmem:[%s9 + $0x8] sm:$0xff]
      %v1834 = vld [vmem:[%s9 + $0x10] sm:$0xff]
      %v1835 = vld [vmem:[%s9 + $0x18] sm:$0xff]
      %v1836 = vld [vmem:[%s9 + $0x20] sm:$0xff]
      %v1837 = vld [vmem:[%s9 + $0x28] sm:$0xff]
      %vm1838 = vcmask 326656
      %v1840 = vsel %vm1838, %v1833, 0
      %v1843 = vsel %vm1838, %v1835, 0
      %v1846 = vsel %vm1838, %v1837, 0
      %1848 = vmatprep.subr.mxu0 %v1821
      %1849 = vmatpush1.msra.mxu0 %v1820
      %1850 = vmatprep.subr.mxu0 %v1819
      %1851 = vmatpush1.msra.mxu0 %v1818
      %1852 = vmatprep.subr.mxu0 %v1817
      %1853 = vmatpush1.msra.mxu0 %v1816
      %1854 = vmatprep.subr.mxu0 %v1815
      %1855 = vmatpush1.msra.mxu0 %v1814
      %1856 = vmatprep.subr.mxu0 %v1813
      %1857 = vmatpush1.msra.mxu0 %v1812
      %1858 = vmatprep.subr.mxu0 %v1811
      %1859 = vmatpush1.msra.mxu0 %v1810
      %1860 = vmatprep.subr.mxu0 %v1809
      %1861 = vmatpush1.msra.mxu0 %v1808
      %1862 = vmatprep.subr.mxu0 %v1807
      %1863 = vmatpush1.msra.mxu0 %v1806
      %1864 = vmatprep.subr.mxu0 %v1805
      %1865 = vmatpush1.msra.mxu0 %v1804
      %1866 = vmatprep.subr.mxu0 %v1803
      %1867 = vmatpush1.msra.mxu0 %v1802
      %1868 = vmatprep.subr.mxu0 %v1801
      %1869 = vmatpush1.msra.mxu0 %v1800
      %1870 = vmatprep.subr.mxu0 %v1799
      %1871 = vmatpush1.msra.mxu0 %v1798
      %1872 = vmatprep.subr.mxu0 %v1797
      %1873 = vmatpush1.msra.mxu0 %v1796
      %1874 = vmatprep.subr.mxu0 %v1795
      %1875 = vmatpush1.msra.mxu0 %v1794
      %1876 = vmatprep.subr.mxu0 %v1793
      %1877 = vmatpush1.msra.mxu0 %v1792
      %1878 = vmatprep.subr.mxu0 %v1791
      %1879 = vmatpush1.msra.mxu0 %v1790
      %1880 = vmatprep.subr.mxu0 0.0
      %1881 = vmatpush2.msra.mxu0 0.0
      %1882 = vmatprep.subr.mxu0 0.0
      %1883 = vmatpush2.msra.mxu0 0.0
      %1884 = vmatprep.subr.mxu0 0.0
      %1885 = vmatpush2.msra.mxu0 0.0
      %1886 = vmatprep.subr.mxu0 0.0
      %1887 = vmatpush2.msra.mxu0 0.0
      %1888 = vmatprep.subr.mxu0 0.0
      %1889 = vmatpush2.msra.mxu0 0.0
      %1890 = vmatprep.subr.mxu0 0.0
      %1891 = vmatpush2.msra.mxu0 0.0
      %1892 = vmatprep.subr.mxu0 0.0
      %1893 = vmatpush2.msra.mxu0 0.0
      %1894 = vmatprep.subr.mxu0 0.0
      %1895 = vmatpush2.msra.mxu0 0.0
      %1896 = vmatprep.subr.mxu0 0.0
      %1897 = vmatpush2.msra.mxu0 0.0
      %1898 = vmatprep.subr.mxu0 0.0
      %1899 = vmatpush2.msra.mxu0 0.0
      %1900 = vmatprep.subr.mxu0 0.0
      %1901 = vmatpush2.msra.mxu0 0.0
      %1902 = vmatprep.subr.mxu0 %v1831
      %1903 = vmatpush2.msra.mxu0 %v1830
      %1904 = vmatprep.subr.mxu0 %v1829
      %1905 = vmatpush2.msra.mxu0 %v1828
      %1906 = vmatprep.subr.mxu0 %v1827
      %1907 = vmatpush2.msra.mxu0 %v1826
      %1908 = vmatprep.subr.mxu0 %v1825
      %1909 = vmatpush2.msra.mxu0 %v1824
      %1910 = vmatprep.subr.mxu0 %v1823
      %1911 = vmatpush2.msra.mxu0 %v1822
      %1912 = vmatprep.mubr.f32.mxu0 %v1840
      %1913 = vmatmul.mubr.f32.gmra.mxu0 %v1832
      %v1914 = vpop.f32.mrf.mxu0
      %v1915 = vadd.f32 0.0, %v1914
      %v1916 = vpop.f32.mrf.mxu0
      %v1917 = vadd.f32 0.0, %v1916
      %1918 = vmatprep.mubr.f32.mxu0 %v1843
      %1919 = vmatmul.mubr.f32.gmra.mxu0 %v1834
      %v1920 = vpop.f32.mrf.mxu0
      %v1921 = vadd.f32 0.0, %v1920
      %v1922 = vpop.f32.mrf.mxu0
      %v1923 = vadd.f32 0.0, %v1922
      %1924 = vmatprep.mubr.f32.mxu0 %v1846
      %1925 = vmatmul.mubr.f32.gmra.mxu0 %v1836
      %v1926 = vpop.f32.mrf.mxu0
      %v1927 = vadd.f32 0.0, %v1926
      %v1928 = vpop.f32.mrf.mxu0
      %v1929 = vadd.f32 0.0, %v1928
      %1930 = vdwg.mxu0
      %v1931 = vld [vmem:[%s11] sm:$0xff]
      %v1932 = vld [vmem:[%s11 + $0x8] sm:$0xff]
      %v1933 = vld [vmem:[%s11 + $0x10] sm:$0xff]
      %1935 = vset.pattern.permute.xlu0 0
      %1936 = vperm.xlu0 %1935, %v1931
      %v1937 = vpop.permute.xlu0 %1936
      %1940 = vset.pattern.permute.xlu0 0
      %1941 = vperm.xlu0 %1940, %v1932
      %v1942 = vpop.permute.xlu0 %1941
      %1945 = vset.pattern.permute.xlu0 0
      %1946 = vperm.xlu0 %1945, %v1933
      %v1947 = vpop.permute.xlu0 %1946
      %v1949 = vmul.f32 %v1915, %v1937
      %v1950 = vmul.f32 %v1917, %v1937
      %v1951 = vmul.f32 %v1921, %v1942
      %v1952 = vmul.f32 %v1923, %v1942
      %v1953 = vmul.f32 %v1927, %v1947
      %v1954 = vmul.f32 %v1929, %v1947
      %v1955 = vld [vmem:[%s13] sm:$0xff]
      %v1956 = vld [vmem:[%s13 + $0x8] sm:$0xff]
      %v1957 = vld [vmem:[%s13 + $0x10] sm:$0xff]
      %1959 = vset.pattern.permute.xlu0 0
      %1960 = vperm.xlu0 %1959, %v1955
      %v1961 = vpop.permute.xlu0 %1960
      %1964 = vset.pattern.permute.xlu0 0
      %1965 = vperm.xlu0 %1964, %v1956
      %v1966 = vpop.permute.xlu0 %1965
      %1969 = vset.pattern.permute.xlu0 0
      %1970 = vperm.xlu0 %1969, %v1957
      %v1971 = vpop.permute.xlu0 %1970
      %v1973 = vadd.f32 %v1949, %v1961
      %v1974 = vadd.f32 %v1950, %v1961
      %v1975 = vadd.f32 %v1951, %v1966
      %v1976 = vadd.f32 %v1952, %v1966
      %v1977 = vadd.f32 %v1953, %v1971
      %v1978 = vadd.f32 %v1954, %v1971
      %v1979 = vmax.f32 %v1973, 0.0
      %v1980 = vmax.f32 %v1974, 0.0
      %v1981 = vmax.f32 %v1975, 0.0
      %v1982 = vmax.f32 %v1976, 0.0
      %v1983 = vmax.f32 %v1977, 0.0
      %v1984 = vmax.f32 %v1978, 0.0
      %v1985 = vlaneseq
      %v1986 = vshrl.u32 %v1985, 7
      %v1987 = vadd.s32 %v1986, 8
      %v1988 = vadd.s32 %v1986, 16
      %v1989 = vadd.s32 %v1986, 24
      %v1990 = vadd.s32 %v1986, 32
      %v1991 = vadd.s32 %v1986, 40
      %v1992 = vadd.s32 %v1986, 48
      %v1993 = vadd.s32 %v1986, 56
      %v1994 = vadd.s32 %v1986, 64
      %v1995 = vadd.s32 %v1986, 72
      %v1996 = vadd.s32 %v1986, 80
      %v1997 = vadd.s32 %v1986, 88
      %v1998 = vadd.s32 %v1986, 96
      %v1999 = vadd.s32 %v1986, 104
      %v2000 = vadd.s32 %v1986, 112
      %v2001 = vadd.s32 %v1986, 120
      %v2002 = vadd.s32 %v1986, 128
      %v2003 = vadd.s32 %v1986, 136
      %v2004 = vadd.s32 %v1986, 144
      %v2005 = vadd.s32 %v1986, 152
      %v2006 = vadd.s32 %v1986, 160
      %v2007 = vadd.s32 %v1986, 168
      %v2008 = vadd.s32 %v1986, 176
      %v2009 = vadd.s32 %v1986, 184
      %v2010 = vadd.s32 %v1986, 192
      %v2011 = vadd.s32 %v1986, 200
      %v2012 = vadd.s32 %v1986, 208
      %v2013 = vadd.s32 %v1986, 216
      %v2014 = vadd.s32 %v1986, 224
      %v2015 = vadd.s32 %v1986, 232
      %v2016 = vadd.s32 %v1986, 240
      %v2017 = vadd.s32 %v1986, 248
      %v2018 = vlaneseq
      %v2019 = vand.u32 %v2018, 127
      %v2020 = vmul.u32 %v2019, 2
      %vm2021 = vcmp.eq.s32.totalorder %v1986, %v2020
      %vm2022 = vcmp.eq.s32.totalorder %v1987, %v2020
      %vm2023 = vcmp.eq.s32.totalorder %v1988, %v2020
      %vm2024 = vcmp.eq.s32.totalorder %v1989, %v2020
      %vm2025 = vcmp.eq.s32.totalorder %v1990, %v2020
      %vm2026 = vcmp.eq.s32.totalorder %v1991, %v2020
      %vm2027 = vcmp.eq.s32.totalorder %v1992, %v2020
      %vm2028 = vcmp.eq.s32.totalorder %v1993, %v2020
      %vm2029 = vcmp.eq.s32.totalorder %v1994, %v2020
      %vm2030 = vcmp.eq.s32.totalorder %v1995, %v2020
      %vm2031 = vcmp.eq.s32.totalorder %v1996, %v2020
      %vm2032 = vcmp.eq.s32.totalorder %v1997, %v2020
      %vm2033 = vcmp.eq.s32.totalorder %v1998, %v2020
      %vm2034 = vcmp.eq.s32.totalorder %v1999, %v2020
      %vm2035 = vcmp.eq.s32.totalorder %v2000, %v2020
      %vm2036 = vcmp.eq.s32.totalorder %v2001, %v2020
      %vm2037 = vcmp.eq.s32.totalorder %v2002, %v2020
      %vm2038 = vcmp.eq.s32.totalorder %v2003, %v2020
      %vm2039 = vcmp.eq.s32.totalorder %v2004, %v2020
      %vm2040 = vcmp.eq.s32.totalorder %v2005, %v2020
      %vm2041 = vcmp.eq.s32.totalorder %v2006, %v2020
      %vm2042 = vcmp.eq.s32.totalorder %v2007, %v2020
      %vm2043 = vcmp.eq.s32.totalorder %v2008, %v2020
      %vm2044 = vcmp.eq.s32.totalorder %v2009, %v2020
      %vm2045 = vcmp.eq.s32.totalorder %v2010, %v2020
      %vm2046 = vcmp.eq.s32.totalorder %v2011, %v2020
      %vm2047 = vcmp.eq.s32.totalorder %v2012, %v2020
      %vm2048 = vcmp.eq.s32.totalorder %v2013, %v2020
      %vm2049 = vcmp.eq.s32.totalorder %v2014, %v2020
      %vm2050 = vcmp.eq.s32.totalorder %v2015, %v2020
      %vm2051 = vcmp.eq.s32.totalorder %v2016, %v2020
      %vm2052 = vcmp.eq.s32.totalorder %v2017, %v2020
      %v2053 = vsel %vm2021, 1, 0
      %v2054 = vsel %vm2022, 1, 0
      %v2055 = vsel %vm2023, 1, 0
      %v2056 = vsel %vm2024, 1, 0
      %v2057 = vsel %vm2025, 1, 0
      %v2058 = vsel %vm2026, 1, 0
      %v2059 = vsel %vm2027, 1, 0
      %v2060 = vsel %vm2028, 1, 0
      %v2061 = vsel %vm2029, 1, 0
      %v2062 = vsel %vm2030, 1, 0
      %v2063 = vsel %vm2031, 1, 0
      %v2064 = vsel %vm2032, 1, 0
      %v2065 = vsel %vm2033, 1, 0
      %v2066 = vsel %vm2034, 1, 0
      %v2067 = vsel %vm2035, 1, 0
      %v2068 = vsel %vm2036, 1, 0
      %v2069 = vsel %vm2037, 1, 0
      %v2070 = vsel %vm2038, 1, 0
      %v2071 = vsel %vm2039, 1, 0
      %v2072 = vsel %vm2040, 1, 0
      %v2073 = vsel %vm2041, 1, 0
      %v2074 = vsel %vm2042, 1, 0
      %v2075 = vsel %vm2043, 1, 0
      %v2076 = vsel %vm2044, 1, 0
      %v2077 = vsel %vm2045, 1, 0
      %v2078 = vsel %vm2046, 1, 0
      %v2079 = vsel %vm2047, 1, 0
      %v2080 = vsel %vm2048, 1, 0
      %v2081 = vsel %vm2049, 1, 0
      %v2082 = vsel %vm2050, 1, 0
      %v2083 = vsel %vm2051, 1, 0
      %v2084 = vsel %vm2052, 1, 0
      %v2085 = vcvt.s32.f32 %v2053
      %v2086 = vcvt.s32.f32 %v2054
      %v2087 = vcvt.s32.f32 %v2055
      %v2088 = vcvt.s32.f32 %v2056
      %v2089 = vcvt.s32.f32 %v2057
      %v2090 = vcvt.s32.f32 %v2058
      %v2091 = vcvt.s32.f32 %v2059
      %v2092 = vcvt.s32.f32 %v2060
      %v2093 = vcvt.s32.f32 %v2061
      %v2094 = vcvt.s32.f32 %v2062
      %v2095 = vcvt.s32.f32 %v2063
      %v2096 = vcvt.s32.f32 %v2064
      %v2097 = vcvt.s32.f32 %v2065
      %v2098 = vcvt.s32.f32 %v2066
      %v2099 = vcvt.s32.f32 %v2067
      %v2100 = vcvt.s32.f32 %v2068
      %v2101 = vcvt.s32.f32 %v2069
      %v2102 = vcvt.s32.f32 %v2070
      %v2103 = vcvt.s32.f32 %v2071
      %v2104 = vcvt.s32.f32 %v2072
      %v2105 = vcvt.s32.f32 %v2073
      %v2106 = vcvt.s32.f32 %v2074
      %v2107 = vcvt.s32.f32 %v2075
      %v2108 = vcvt.s32.f32 %v2076
      %v2109 = vcvt.s32.f32 %v2077
      %v2110 = vcvt.s32.f32 %v2078
      %v2111 = vcvt.s32.f32 %v2079
      %v2112 = vcvt.s32.f32 %v2080
      %v2113 = vcvt.s32.f32 %v2081
      %v2114 = vcvt.s32.f32 %v2082
      %v2115 = vcvt.s32.f32 %v2083
      %v2116 = vcvt.s32.f32 %v2084
      %2117 = vmatprep.subr.mxu0 0.0
      %2118 = vmatpush1.msra.mxu0 %v2100
      %2119 = vmatprep.subr.mxu0 0.0
      %2120 = vmatpush1.msra.mxu0 %v2099
      %2121 = vmatprep.subr.mxu0 0.0
      %2122 = vmatpush1.msra.mxu0 %v2098
      %2123 = vmatprep.subr.mxu0 0.0
      %2124 = vmatpush1.msra.mxu0 %v2097
      %2125 = vmatprep.subr.mxu0 0.0
      %2126 = vmatpush1.msra.mxu0 %v2096
      %2127 = vmatprep.subr.mxu0 0.0
      %2128 = vmatpush1.msra.mxu0 %v2095
      %2129 = vmatprep.subr.mxu0 0.0
      %2130 = vmatpush1.msra.mxu0 %v2094
      %2131 = vmatprep.subr.mxu0 0.0
      %2132 = vmatpush1.msra.mxu0 %v2093
      %2133 = vmatprep.subr.mxu0 0.0
      %2134 = vmatpush1.msra.mxu0 %v2092
      %2135 = vmatprep.subr.mxu0 0.0
      %2136 = vmatpush1.msra.mxu0 %v2091
      %2137 = vmatprep.subr.mxu0 0.0
      %2138 = vmatpush1.msra.mxu0 %v2090
      %2139 = vmatprep.subr.mxu0 0.0
      %2140 = vmatpush1.msra.mxu0 %v2089
      %2141 = vmatprep.subr.mxu0 0.0
      %2142 = vmatpush1.msra.mxu0 %v2088
      %2143 = vmatprep.subr.mxu0 0.0
      %2144 = vmatpush1.msra.mxu0 %v2087
      %2145 = vmatprep.subr.mxu0 0.0
      %2146 = vmatpush1.msra.mxu0 %v2086
      %2147 = vmatprep.subr.mxu0 0.0
      %2148 = vmatpush1.msra.mxu0 %v2085
      %2149 = vmatprep.subr.mxu0 0.0
      %2150 = vmatpush2.msra.mxu0 %v2116
      %2151 = vmatprep.subr.mxu0 0.0
      %2152 = vmatpush2.msra.mxu0 %v2115
      %2153 = vmatprep.subr.mxu0 0.0
      %2154 = vmatpush2.msra.mxu0 %v2114
      %2155 = vmatprep.subr.mxu0 0.0
      %2156 = vmatpush2.msra.mxu0 %v2113
      %2157 = vmatprep.subr.mxu0 0.0
      %2158 = vmatpush2.msra.mxu0 %v2112
      %2159 = vmatprep.subr.mxu0 0.0
      %2160 = vmatpush2.msra.mxu0 %v2111
      %2161 = vmatprep.subr.mxu0 0.0
      %2162 = vmatpush2.msra.mxu0 %v2110
      %2163 = vmatprep.subr.mxu0 0.0
      %2164 = vmatpush2.msra.mxu0 %v2109
      %2165 = vmatprep.subr.mxu0 0.0
      %2166 = vmatpush2.msra.mxu0 %v2108
      %2167 = vmatprep.subr.mxu0 0.0
      %2168 = vmatpush2.msra.mxu0 %v2107
      %2169 = vmatprep.subr.mxu0 0.0
      %2170 = vmatpush2.msra.mxu0 %v2106
      %2171 = vmatprep.subr.mxu0 0.0
      %2172 = vmatpush2.msra.mxu0 %v2105
      %2173 = vmatprep.subr.mxu0 0.0
      %2174 = vmatpush2.msra.mxu0 %v2104
      %2175 = vmatprep.subr.mxu0 0.0
      %2176 = vmatpush2.msra.mxu0 %v2103
      %2177 = vmatprep.subr.mxu0 0.0
      %2178 = vmatpush2.msra.mxu0 %v2102
      %2179 = vmatprep.subr.mxu0 0.0
      %2180 = vmatpush2.msra.mxu0 %v2101
      %2181 = vmatprep.mubr.f32.mxu0 %v1980
      %2182 = vmatmul.mubr.f32.gmra.mxu0 %v1979
      %v2183 = vpop.f32.mrf.mxu0
      %v2184 = vadd.f32 0.0, %v2183
      %v2185 = vpop.f32.mrf.mxu0
      %2186 = vmatprep.mubr.f32.mxu0 %v1982
      %2187 = vmatmul.mubr.f32.gmra.mxu0 %v1981
      %v2188 = vpop.f32.mrf.mxu0
      %v2189 = vadd.f32 0.0, %v2188
      %v2190 = vpop.f32.mrf.mxu0
      %2191 = vmatprep.mubr.f32.mxu0 %v1984
      %2192 = vmatmul.mubr.f32.gmra.mxu0 %v1983
      %v2193 = vpop.f32.mrf.mxu0
      %v2194 = vadd.f32 0.0, %v2193
      %v2195 = vpop.f32.mrf.mxu0
      %2196 = vdwg.mxu0
      %v2197 = vadd.s32 %v2020, 1
      %vm2198 = vcmp.eq.s32.totalorder %v1986, %v2197
      %vm2199 = vcmp.eq.s32.totalorder %v1987, %v2197
      %vm2200 = vcmp.eq.s32.totalorder %v1988, %v2197
      %vm2201 = vcmp.eq.s32.totalorder %v1989, %v2197
      %vm2202 = vcmp.eq.s32.totalorder %v1990, %v2197
      %vm2203 = vcmp.eq.s32.totalorder %v1991, %v2197
      %vm2204 = vcmp.eq.s32.totalorder %v1992, %v2197
      %vm2205 = vcmp.eq.s32.totalorder %v1993, %v2197
      %vm2206 = vcmp.eq.s32.totalorder %v1994, %v2197
      %vm2207 = vcmp.eq.s32.totalorder %v1995, %v2197
      %vm2208 = vcmp.eq.s32.totalorder %v1996, %v2197
      %vm2209 = vcmp.eq.s32.totalorder %v1997, %v2197
      %vm2210 = vcmp.eq.s32.totalorder %v1998, %v2197
      %vm2211 = vcmp.eq.s32.totalorder %v1999, %v2197
      %vm2212 = vcmp.eq.s32.totalorder %v2000, %v2197
      %vm2213 = vcmp.eq.s32.totalorder %v2001, %v2197
      %vm2214 = vcmp.eq.s32.totalorder %v2002, %v2197
      %vm2215 = vcmp.eq.s32.totalorder %v2003, %v2197
      %vm2216 = vcmp.eq.s32.totalorder %v2004, %v2197
      %vm2217 = vcmp.eq.s32.totalorder %v2005, %v2197
      %vm2218 = vcmp.eq.s32.totalorder %v2006, %v2197
      %vm2219 = vcmp.eq.s32.totalorder %v2007, %v2197
      %vm2220 = vcmp.eq.s32.totalorder %v2008, %v2197
      %vm2221 = vcmp.eq.s32.totalorder %v2009, %v2197
      %vm2222 = vcmp.eq.s32.totalorder %v2010, %v2197
      %vm2223 = vcmp.eq.s32.totalorder %v2011, %v2197
      %vm2224 = vcmp.eq.s32.totalorder %v2012, %v2197
      %vm2225 = vcmp.eq.s32.totalorder %v2013, %v2197
      %vm2226 = vcmp.eq.s32.totalorder %v2014, %v2197
      %vm2227 = vcmp.eq.s32.totalorder %v2015, %v2197
      %vm2228 = vcmp.eq.s32.totalorder %v2016, %v2197
      %vm2229 = vcmp.eq.s32.totalorder %v2017, %v2197
      %v2230 = vsel %vm2198, 1, 0
      %v2231 = vsel %vm2199, 1, 0
      %v2232 = vsel %vm2200, 1, 0
      %v2233 = vsel %vm2201, 1, 0
      %v2234 = vsel %vm2202, 1, 0
      %v2235 = vsel %vm2203, 1, 0
      %v2236 = vsel %vm2204, 1, 0
      %v2237 = vsel %vm2205, 1, 0
      %v2238 = vsel %vm2206, 1, 0
      %v2239 = vsel %vm2207, 1, 0
      %v2240 = vsel %vm2208, 1, 0
      %v2241 = vsel %vm2209, 1, 0
      %v2242 = vsel %vm2210, 1, 0
      %v2243 = vsel %vm2211, 1, 0
      %v2244 = vsel %vm2212, 1, 0
      %v2245 = vsel %vm2213, 1, 0
      %v2246 = vsel %vm2214, 1, 0
      %v2247 = vsel %vm2215, 1, 0
      %v2248 = vsel %vm2216, 1, 0
      %v2249 = vsel %vm2217, 1, 0
      %v2250 = vsel %vm2218, 1, 0
      %v2251 = vsel %vm2219, 1, 0
      %v2252 = vsel %vm2220, 1, 0
      %v2253 = vsel %vm2221, 1, 0
      %v2254 = vsel %vm2222, 1, 0
      %v2255 = vsel %vm2223, 1, 0
      %v2256 = vsel %vm2224, 1, 0
      %v2257 = vsel %vm2225, 1, 0
      %v2258 = vsel %vm2226, 1, 0
      %v2259 = vsel %vm2227, 1, 0
      %v2260 = vsel %vm2228, 1, 0
      %v2261 = vsel %vm2229, 1, 0
      %v2262 = vcvt.s32.f32 %v2230
      %v2263 = vcvt.s32.f32 %v2231
      %v2264 = vcvt.s32.f32 %v2232
      %v2265 = vcvt.s32.f32 %v2233
      %v2266 = vcvt.s32.f32 %v2234
      %v2267 = vcvt.s32.f32 %v2235
      %v2268 = vcvt.s32.f32 %v2236
      %v2269 = vcvt.s32.f32 %v2237
      %v2270 = vcvt.s32.f32 %v2238
      %v2271 = vcvt.s32.f32 %v2239
      %v2272 = vcvt.s32.f32 %v2240
      %v2273 = vcvt.s32.f32 %v2241
      %v2274 = vcvt.s32.f32 %v2242
      %v2275 = vcvt.s32.f32 %v2243
      %v2276 = vcvt.s32.f32 %v2244
      %v2277 = vcvt.s32.f32 %v2245
      %v2278 = vcvt.s32.f32 %v2246
      %v2279 = vcvt.s32.f32 %v2247
      %v2280 = vcvt.s32.f32 %v2248
      %v2281 = vcvt.s32.f32 %v2249
      %v2282 = vcvt.s32.f32 %v2250
      %v2283 = vcvt.s32.f32 %v2251
      %v2284 = vcvt.s32.f32 %v2252
      %v2285 = vcvt.s32.f32 %v2253
      %v2286 = vcvt.s32.f32 %v2254
      %v2287 = vcvt.s32.f32 %v2255
      %v2288 = vcvt.s32.f32 %v2256
      %v2289 = vcvt.s32.f32 %v2257
      %v2290 = vcvt.s32.f32 %v2258
      %v2291 = vcvt.s32.f32 %v2259
      %v2292 = vcvt.s32.f32 %v2260
      %v2293 = vcvt.s32.f32 %v2261
      %2294 = vmatprep.subr.mxu0 0.0
      %2295 = vmatpush1.msra.mxu0 %v2277
      %2296 = vmatprep.subr.mxu0 0.0
      %2297 = vmatpush1.msra.mxu0 %v2276
      %2298 = vmatprep.subr.mxu0 0.0
      %2299 = vmatpush1.msra.mxu0 %v2275
      %2300 = vmatprep.subr.mxu0 0.0
      %2301 = vmatpush1.msra.mxu0 %v2274
      %2302 = vmatprep.subr.mxu0 0.0
      %2303 = vmatpush1.msra.mxu0 %v2273
      %2304 = vmatprep.subr.mxu0 0.0
      %2305 = vmatpush1.msra.mxu0 %v2272
      %2306 = vmatprep.subr.mxu0 0.0
      %2307 = vmatpush1.msra.mxu0 %v2271
      %2308 = vmatprep.subr.mxu0 0.0
      %2309 = vmatpush1.msra.mxu0 %v2270
      %2310 = vmatprep.subr.mxu0 0.0
      %2311 = vmatpush1.msra.mxu0 %v2269
      %2312 = vmatprep.subr.mxu0 0.0
      %2313 = vmatpush1.msra.mxu0 %v2268
      %2314 = vmatprep.subr.mxu0 0.0
      %2315 = vmatpush1.msra.mxu0 %v2267
      %2316 = vmatprep.subr.mxu0 0.0
      %2317 = vmatpush1.msra.mxu0 %v2266
      %2318 = vmatprep.subr.mxu0 0.0
      %2319 = vmatpush1.msra.mxu0 %v2265
      %2320 = vmatprep.subr.mxu0 0.0
      %2321 = vmatpush1.msra.mxu0 %v2264
      %2322 = vmatprep.subr.mxu0 0.0
      %2323 = vmatpush1.msra.mxu0 %v2263
      %2324 = vmatprep.subr.mxu0 0.0
      %2325 = vmatpush1.msra.mxu0 %v2262
      %2326 = vmatprep.subr.mxu0 0.0
      %2327 = vmatpush2.msra.mxu0 %v2293
      %2328 = vmatprep.subr.mxu0 0.0
      %2329 = vmatpush2.msra.mxu0 %v2292
      %2330 = vmatprep.subr.mxu0 0.0
      %2331 = vmatpush2.msra.mxu0 %v2291
      %2332 = vmatprep.subr.mxu0 0.0
      %2333 = vmatpush2.msra.mxu0 %v2290
      %2334 = vmatprep.subr.mxu0 0.0
      %2335 = vmatpush2.msra.mxu0 %v2289
      %2336 = vmatprep.subr.mxu0 0.0
      %2337 = vmatpush2.msra.mxu0 %v2288
      %2338 = vmatprep.subr.mxu0 0.0
      %2339 = vmatpush2.msra.mxu0 %v2287
      %2340 = vmatprep.subr.mxu0 0.0
      %2341 = vmatpush2.msra.mxu0 %v2286
      %2342 = vmatprep.subr.mxu0 0.0
      %2343 = vmatpush2.msra.mxu0 %v2285
      %2344 = vmatprep.subr.mxu0 0.0
      %2345 = vmatpush2.msra.mxu0 %v2284
      %2346 = vmatprep.subr.mxu0 0.0
      %2347 = vmatpush2.msra.mxu0 %v2283
      %2348 = vmatprep.subr.mxu0 0.0
      %2349 = vmatpush2.msra.mxu0 %v2282
      %2350 = vmatprep.subr.mxu0 0.0
      %2351 = vmatpush2.msra.mxu0 %v2281
      %2352 = vmatprep.subr.mxu0 0.0
      %2353 = vmatpush2.msra.mxu0 %v2280
      %2354 = vmatprep.subr.mxu0 0.0
      %2355 = vmatpush2.msra.mxu0 %v2279
      %2356 = vmatprep.subr.mxu0 0.0
      %2357 = vmatpush2.msra.mxu0 %v2278
      %2358 = vmatprep.mubr.f32.mxu0 %v1980
      %2359 = vmatmul.mubr.f32.gmra.mxu0 %v1979
      %v2360 = vpop.f32.mrf.mxu0
      %v2361 = vadd.f32 0.0, %v2360
      %v2362 = vpop.f32.mrf.mxu0
      %2363 = vmatprep.mubr.f32.mxu0 %v1982
      %2364 = vmatmul.mubr.f32.gmra.mxu0 %v1981
      %v2365 = vpop.f32.mrf.mxu0
      %v2366 = vadd.f32 0.0, %v2365
      %v2367 = vpop.f32.mrf.mxu0
      %2368 = vmatprep.mubr.f32.mxu0 %v1984
      %2369 = vmatmul.mubr.f32.gmra.mxu0 %v1983
      %v2370 = vpop.f32.mrf.mxu0
      %v2371 = vadd.f32 0.0, %v2370
      %v2372 = vpop.f32.mrf.mxu0
      %2373 = vdwg.mxu0
      %v2374 = vmax.f32 %v2184, %v2361
      %v2375 = vmax.f32 %v2189, %v2366
      %v2376 = vmax.f32 %v2194, %v2371
      %vm2377 = vcmask 15360
      %2378 = vst.msk [vmem:[#allocation2] sm:$0xff] %vm2377, 0.0
      %2379 = vst.msk [vmem:[#allocation2 + $0x18] sm:$0xff] %vm2377, 0.0
      %2380 = vst.msk [vmem:[#allocation2 + $0x30] sm:$0xff] %vm2377, 0.0
      %vm2381 = vcmask 31760
      %2382 = vst.msk [vmem:[#allocation2 + $0x8] sm:$0xff] %vm2381, 0.0
      %2383 = vst.msk [vmem:[#allocation2 + $0x20] sm:$0xff] %vm2381, 0.0
      %2384 = vst.msk [vmem:[#allocation2 + $0x38] sm:$0xff] %vm2381, 0.0
      %2388 = vrot.lane.b32.xlu0 %v2374, 2
      %v2389 = vpop.permute.xlu0 %2388
      %2390 = vrot.lane.b32.xlu0 %v2375, 2
      %v2391 = vpop.permute.xlu0 %2390
      %2392 = vrot.lane.b32.xlu0 %v2376, 2
      %v2393 = vpop.permute.xlu0 %2392
      %vm2397 = vcmask 1047568
      %2398 = vst.msk [vmem:[#allocation2] sm:$0xff] %vm2397, %v2389
      %2399 = vst.msk [vmem:[#allocation2 + $0x8] sm:$0xff] %vm2377, %v2389
      %2400 = vst.msk [vmem:[#allocation2 + $0x18] sm:$0xff] %vm2397, %v2391
      %2401 = vst.msk [vmem:[#allocation2 + $0x20] sm:$0xff] %vm2377, %v2391
      %2402 = vst.msk [vmem:[#allocation2 + $0x30] sm:$0xff] %vm2397, %v2393
      %2403 = vst.msk [vmem:[#allocation2 + $0x38] sm:$0xff] %vm2377, %v2393
      %v2404 = vld [vmem:[#allocation2] sm:$0xff]
      %v2405 = vld [vmem:[#allocation2 + $0x18] sm:$0xff]
      %v2406 = vld [vmem:[#allocation2 + $0x30] sm:$0xff]
      %2407 = vst [vmem:[#allocation3] sm:$0xff] %v2404
      %2408 = vst [vmem:[#allocation3 + $0x10] sm:$0xff] %v2405
      %2409 = vst [vmem:[#allocation3 + $0x20] sm:$0xff] %v2406
      %v2410 = vld [vmem:[#allocation2] sm:$0xff]
      %v2411 = vld [vmem:[#allocation2 + $0x8] sm:$0xff]
      %v2412 = vld [vmem:[#allocation2 + $0x18] sm:$0xff]
      %v2413 = vld [vmem:[#allocation2 + $0x20] sm:$0xff]
      %v2414 = vld [vmem:[#allocation2 + $0x30] sm:$0xff]
      %v2415 = vld [vmem:[#allocation2 + $0x38] sm:$0xff]
      %2422 = vrot.lane.b32.xlu0 %v2410, 127
      %v2423 = vpop.permute.xlu0 %2422
      %2424 = vrot.lane.b32.xlu0 %v2411, 127
      %v2425 = vpop.permute.xlu0 %2424
      %2426 = vrot.lane.b32.xlu0 %v2412, 127
      %v2427 = vpop.permute.xlu0 %2426
      %2428 = vrot.lane.b32.xlu0 %v2413, 127
      %v2429 = vpop.permute.xlu0 %2428
      %2430 = vrot.lane.b32.xlu0 %v2414, 127
      %v2431 = vpop.permute.xlu0 %2430
      %2432 = vrot.lane.b32.xlu0 %v2415, 127
      %v2433 = vpop.permute.xlu0 %2432
      %v2434 = vsel %vm989, %v2423, %v2425
      %v2435 = vsel %vm989, %v2427, %v2429
      %v2436 = vsel %vm989, %v2431, %v2433
      %2440 = vst [vmem:[#allocation3 + $0x30] sm:$0xff] %v2434
      %2441 = vst [vmem:[#allocation3 + $0x40] sm:$0xff] %v2435
      %2442 = vst [vmem:[#allocation3 + $0x50] sm:$0xff] %v2436
      %v2443 = vld [vmem:[#allocation2] sm:$0xff]
      %v2444 = vld [vmem:[#allocation2 + $0x8] sm:$0xff]
      %v2445 = vld [vmem:[#allocation2 + $0x18] sm:$0xff]
      %v2446 = vld [vmem:[#allocation2 + $0x20] sm:$0xff]
      %v2447 = vld [vmem:[#allocation2 + $0x30] sm:$0xff]
      %v2448 = vld [vmem:[#allocation2 + $0x38] sm:$0xff]
      %2455 = vrot.lane.b32.xlu0 %v2443, 126
      %v2456 = vpop.permute.xlu0 %2455
      %2457 = vrot.lane.b32.xlu0 %v2444, 126
      %v2458 = vpop.permute.xlu0 %2457
      %2459 = vrot.lane.b32.xlu0 %v2445, 126
      %v2460 = vpop.permute.xlu0 %2459
      %2461 = vrot.lane.b32.xlu0 %v2446, 126
      %v2462 = vpop.permute.xlu0 %2461
      %2463 = vrot.lane.b32.xlu0 %v2447, 126
      %v2464 = vpop.permute.xlu0 %2463
      %2465 = vrot.lane.b32.xlu0 %v2448, 126
      %v2466 = vpop.permute.xlu0 %2465
      %v2467 = vsel %vm1000, %v2456, %v2458
      %v2468 = vsel %vm1000, %v2460, %v2462
      %v2469 = vsel %vm1000, %v2464, %v2466
      %2473 = vst [vmem:[#allocation3 + $0x60] sm:$0xff] %v2467
      %2474 = vst [vmem:[#allocation3 + $0x70] sm:$0xff] %v2468
      %2475 = vst [vmem:[#allocation3 + $0x80] sm:$0xff] %v2469
      %v2476 = vld [vmem:[#allocation2] sm:$0xff]
      %v2477 = vld [vmem:[#allocation2 + $0x8] sm:$0xff]
      %v2478 = vld [vmem:[#allocation2 + $0x18] sm:$0xff]
      %v2479 = vld [vmem:[#allocation2 + $0x20] sm:$0xff]
      %v2480 = vld [vmem:[#allocation2 + $0x30] sm:$0xff]
      %v2481 = vld [vmem:[#allocation2 + $0x38] sm:$0xff]
      %2488 = vrot.lane.b32.xlu0 %v2476, 125
      %v2489 = vpop.permute.xlu0 %2488
      %2490 = vrot.lane.b32.xlu0 %v2477, 125
      %v2491 = vpop.permute.xlu0 %2490
      %2492 = vrot.lane.b32.xlu0 %v2478, 125
      %v2493 = vpop.permute.xlu0 %2492
      %2494 = vrot.lane.b32.xlu0 %v2479, 125
      %v2495 = vpop.permute.xlu0 %2494
      %2496 = vrot.lane.b32.xlu0 %v2480, 125
      %v2497 = vpop.permute.xlu0 %2496
      %2498 = vrot.lane.b32.xlu0 %v2481, 125
      %v2499 = vpop.permute.xlu0 %2498
      %v2500 = vsel %vm1011, %v2489, %v2491
      %v2501 = vsel %vm1011, %v2493, %v2495
      %v2502 = vsel %vm1011, %v2497, %v2499
      %2506 = vst [vmem:[#allocation3 + $0x90] sm:$0xff] %v2500
      %2507 = vst [vmem:[#allocation3 + $0xa0] sm:$0xff] %v2501
      %2508 = vst [vmem:[#allocation3 + $0xb0] sm:$0xff] %v2502
      %v2509 = vld [vmem:[#allocation2] sm:$0xff]
      %v2510 = vld [vmem:[#allocation2 + $0x8] sm:$0xff]
      %v2511 = vld [vmem:[#allocation2 + $0x18] sm:$0xff]
      %v2512 = vld [vmem:[#allocation2 + $0x20] sm:$0xff]
      %v2513 = vld [vmem:[#allocation2 + $0x30] sm:$0xff]
      %v2514 = vld [vmem:[#allocation2 + $0x38] sm:$0xff]
      %2521 = vrot.lane.b32.xlu0 %v2509, 124
      %v2522 = vpop.permute.xlu0 %2521
      %2523 = vrot.lane.b32.xlu0 %v2510, 124
      %v2524 = vpop.permute.xlu0 %2523
      %2525 = vrot.lane.b32.xlu0 %v2511, 124
      %v2526 = vpop.permute.xlu0 %2525
      %2527 = vrot.lane.b32.xlu0 %v2512, 124
      %v2528 = vpop.permute.xlu0 %2527
      %2529 = vrot.lane.b32.xlu0 %v2513, 124
      %v2530 = vpop.permute.xlu0 %2529
      %2531 = vrot.lane.b32.xlu0 %v2514, 124
      %v2532 = vpop.permute.xlu0 %2531
      %v2533 = vsel %vm1022, %v2522, %v2524
      %v2534 = vsel %vm1022, %v2526, %v2528
      %v2535 = vsel %vm1022, %v2530, %v2532
      %2539 = vst [vmem:[#allocation3 + $0xc0] sm:$0xff] %v2533
      %2540 = vst [vmem:[#allocation3 + $0xd0] sm:$0xff] %v2534
      %2541 = vst [vmem:[#allocation3 + $0xe0] sm:$0xff] %v2535
      %v2542 = vld [vmem:[#allocation3] sm:$0xff]
      %v2543 = vld [vmem:[#allocation3 + $0x10] sm:$0xff]
      %v2544 = vld [vmem:[#allocation3 + $0x20] sm:$0xff]
      %v2545 = vld [vmem:[#allocation3 + $0x30] sm:$0xff]
      %v2546 = vld [vmem:[#allocation3 + $0x40] sm:$0xff]
      %v2547 = vld [vmem:[#allocation3 + $0x50] sm:$0xff]
      %v2548 = vld [vmem:[#allocation3 + $0x60] sm:$0xff]
      %v2549 = vld [vmem:[#allocation3 + $0x70] sm:$0xff]
      %v2550 = vld [vmem:[#allocation3 + $0x80] sm:$0xff]
      %v2551 = vld [vmem:[#allocation3 + $0x90] sm:$0xff]
      %v2552 = vld [vmem:[#allocation3 + $0xa0] sm:$0xff]
      %v2553 = vld [vmem:[#allocation3 + $0xb0] sm:$0xff]
      %v2554 = vld [vmem:[#allocation3 + $0xc0] sm:$0xff]
      %v2555 = vld [vmem:[#allocation3 + $0xd0] sm:$0xff]
      %v2556 = vld [vmem:[#allocation3 + $0xe0] sm:$0xff]
      %v2557 = vld [vmem:[%s15] sm:$0xff]
      %v2558 = vld [vmem:[%s15 + $0x8] sm:$0xff]
      %v2559 = vld [vmem:[%s15 + $0x10] sm:$0xff]
      %v2561 = vsel %vm1066, %v2557, 0
      %v2564 = vsel %vm1066, %v2558, 0
      %v2567 = vsel %vm1066, %v2559, 0
      %2569 = vmatprep.subr.mxu0 0.0
      %2570 = vmatpush1.msra.mxu0 0.0
      %2571 = vmatprep.subr.mxu0 0.0
      %2572 = vmatpush1.msra.mxu0 %v2556
      %2573 = vmatprep.subr.mxu0 0.0
      %2574 = vmatpush1.msra.mxu0 %v2555
      %2575 = vmatprep.subr.mxu0 0.0
      %2576 = vmatpush1.msra.mxu0 %v2554
      %2577 = vmatprep.subr.mxu0 0.0
      %2578 = vmatpush1.msra.mxu0 %v2553
      %2579 = vmatprep.subr.mxu0 0.0
      %2580 = vmatpush1.msra.mxu0 %v2552
      %2581 = vmatprep.subr.mxu0 0.0
      %2582 = vmatpush1.msra.mxu0 %v2551
      %2583 = vmatprep.subr.mxu0 0.0
      %2584 = vmatpush1.msra.mxu0 %v2550
      %2585 = vmatprep.subr.mxu0 0.0
      %2586 = vmatpush1.msra.mxu0 %v2549
      %2587 = vmatprep.subr.mxu0 0.0
      %2588 = vmatpush1.msra.mxu0 %v2548
      %2589 = vmatprep.subr.mxu0 0.0
      %2590 = vmatpush1.msra.mxu0 %v2547
      %2591 = vmatprep.subr.mxu0 0.0
      %2592 = vmatpush1.msra.mxu0 %v2546
      %2593 = vmatprep.subr.mxu0 0.0
      %2594 = vmatpush1.msra.mxu0 %v2545
      %2595 = vmatprep.subr.mxu0 0.0
      %2596 = vmatpush1.msra.mxu0 %v2544
      %2597 = vmatprep.subr.mxu0 0.0
      %2598 = vmatpush1.msra.mxu0 %v2543
      %2599 = vmatprep.subr.mxu0 0.0
      %2600 = vmatpush1.msra.mxu0 %v2542
      %2601 = vmatprep.subr.mxu0 0.0
      %2602 = vmatpush2.msra.mxu0 0.0
      %2603 = vmatprep.subr.mxu0 0.0
      %2604 = vmatpush2.msra.mxu0 0.0
      %2605 = vmatprep.subr.mxu0 0.0
      %2606 = vmatpush2.msra.mxu0 0.0
      %2607 = vmatprep.subr.mxu0 0.0
      %2608 = vmatpush2.msra.mxu0 0.0
      %2609 = vmatprep.subr.mxu0 0.0
      %2610 = vmatpush2.msra.mxu0 0.0
      %2611 = vmatprep.subr.mxu0 0.0
      %2612 = vmatpush2.msra.mxu0 0.0
      %2613 = vmatprep.subr.mxu0 0.0
      %2614 = vmatpush2.msra.mxu0 0.0
      %2615 = vmatprep.subr.mxu0 0.0
      %2616 = vmatpush2.msra.mxu0 0.0
      %2617 = vmatprep.subr.mxu0 0.0
      %2618 = vmatpush2.msra.mxu0 0.0
      %2619 = vmatprep.subr.mxu0 0.0
      %2620 = vmatpush2.msra.mxu0 0.0
      %2621 = vmatprep.subr.mxu0 0.0
      %2622 = vmatpush2.msra.mxu0 0.0
      %2623 = vmatprep.subr.mxu0 0.0
      %2624 = vmatpush2.msra.mxu0 0.0
      %2625 = vmatprep.subr.mxu0 0.0
      %2626 = vmatpush2.msra.mxu0 0.0
      %2627 = vmatprep.subr.mxu0 0.0
      %2628 = vmatpush2.msra.mxu0 0.0
      %2629 = vmatprep.subr.mxu0 0.0
      %2630 = vmatpush2.msra.mxu0 0.0
      %2631 = vmatprep.subr.mxu0 0.0
      %2632 = vmatpush2.msra.mxu0 0.0
      %2633 = vmatprep.mubr.f32.mxu0 0.0
      %2634 = vmatmul.mubr.f32.gmra.mxu0 %v2561
      %v2635 = vpop.f32.mrf.mxu0
      %v2636 = vadd.f32 0.0, %v2635
      %v2637 = vpop.f32.mrf.mxu0
      %2638 = vmatprep.mubr.f32.mxu0 0.0
      %2639 = vmatmul.mubr.f32.gmra.mxu0 %v2564
      %v2640 = vpop.f32.mrf.mxu0
      %v2641 = vadd.f32 0.0, %v2640
      %v2642 = vpop.f32.mrf.mxu0
      %2643 = vmatprep.mubr.f32.mxu0 0.0
      %2644 = vmatmul.mubr.f32.gmra.mxu0 %v2567
      %v2645 = vpop.f32.mrf.mxu0
      %v2646 = vadd.f32 0.0, %v2645
      %v2647 = vpop.f32.mrf.mxu0
      %2648 = vdwg.mxu0
      %v2649 = vld [vmem:[%s17] sm:$0xff]
      %v2650 = vld [vmem:[%s17 + $0x8] sm:$0xff]
      %v2651 = vld [vmem:[%s17 + $0x10] sm:$0xff]
      %2653 = vset.pattern.permute.xlu0 0
      %2654 = vperm.xlu0 %2653, %v2649
      %v2655 = vpop.permute.xlu0 %2654
      %2658 = vset.pattern.permute.xlu0 0
      %2659 = vperm.xlu0 %2658, %v2650
      %v2660 = vpop.permute.xlu0 %2659
      %2663 = vset.pattern.permute.xlu0 0
      %2664 = vperm.xlu0 %2663, %v2651
      %v2665 = vpop.permute.xlu0 %2664
      %v2667 = vmul.f32 %v2636, %v2655
      %v2668 = vmul.f32 %v2641, %v2660
      %v2669 = vmul.f32 %v2646, %v2665
      %v2670 = vld [vmem:[%s19] sm:$0xff]
      %v2671 = vld [vmem:[%s19 + $0x8] sm:$0xff]
      %v2672 = vld [vmem:[%s19 + $0x10] sm:$0xff]
      %2674 = vset.pattern.permute.xlu0 0
      %2675 = vperm.xlu0 %2674, %v2670
      %v2676 = vpop.permute.xlu0 %2675
      %2679 = vset.pattern.permute.xlu0 0
      %2680 = vperm.xlu0 %2679, %v2671
      %v2681 = vpop.permute.xlu0 %2680
      %2684 = vset.pattern.permute.xlu0 0
      %2685 = vperm.xlu0 %2684, %v2672
      %v2686 = vpop.permute.xlu0 %2685
      %v2688 = vadd.f32 %v2667, %v2676
      %v2689 = vadd.f32 %v2668, %v2681
      %v2690 = vadd.f32 %v2669, %v2686
      %v2691 = vmax.f32 %v2688, 0.0
      %v2692 = vmax.f32 %v2689, 0.0
      %v2693 = vmax.f32 %v2690, 0.0
      %v2694 = vmul.u32 %v2019, 4
      %vm2695 = vcmp.eq.s32.totalorder %v1986, %v2694
      %vm2696 = vcmp.eq.s32.totalorder %v1987, %v2694
      %vm2697 = vcmp.eq.s32.totalorder %v1988, %v2694
      %vm2698 = vcmp.eq.s32.totalorder %v1989, %v2694
      %vm2699 = vcmp.eq.s32.totalorder %v1990, %v2694
      %vm2700 = vcmp.eq.s32.totalorder %v1991, %v2694
      %vm2701 = vcmp.eq.s32.totalorder %v1992, %v2694
      %vm2702 = vcmp.eq.s32.totalorder %v1993, %v2694
      %vm2703 = vcmp.eq.s32.totalorder %v1994, %v2694
      %vm2704 = vcmp.eq.s32.totalorder %v1995, %v2694
      %vm2705 = vcmp.eq.s32.totalorder %v1996, %v2694
      %vm2706 = vcmp.eq.s32.totalorder %v1997, %v2694
      %vm2707 = vcmp.eq.s32.totalorder %v1998, %v2694
      %vm2708 = vcmp.eq.s32.totalorder %v1999, %v2694
      %vm2709 = vcmp.eq.s32.totalorder %v2000, %v2694
      %vm2710 = vcmp.eq.s32.totalorder %v2001, %v2694
      %v2711 = vsel %vm2695, 1, 0
      %v2712 = vsel %vm2696, 1, 0
      %v2713 = vsel %vm2697, 1, 0
      %v2714 = vsel %vm2698, 1, 0
      %v2715 = vsel %vm2699, 1, 0
      %v2716 = vsel %vm2700, 1, 0
      %v2717 = vsel %vm2701, 1, 0
      %v2718 = vsel %vm2702, 1, 0
      %v2719 = vsel %vm2703, 1, 0
      %v2720 = vsel %vm2704, 1, 0
      %v2721 = vsel %vm2705, 1, 0
      %v2722 = vsel %vm2706, 1, 0
      %v2723 = vsel %vm2707, 1, 0
      %v2724 = vsel %vm2708, 1, 0
      %v2725 = vsel %vm2709, 1, 0
      %v2726 = vsel %vm2710, 1, 0
      %v2727 = vcvt.s32.f32 %v2711
      %v2728 = vcvt.s32.f32 %v2712
      %v2729 = vcvt.s32.f32 %v2713
      %v2730 = vcvt.s32.f32 %v2714
      %v2731 = vcvt.s32.f32 %v2715
      %v2732 = vcvt.s32.f32 %v2716
      %v2733 = vcvt.s32.f32 %v2717
      %v2734 = vcvt.s32.f32 %v2718
      %v2735 = vcvt.s32.f32 %v2719
      %v2736 = vcvt.s32.f32 %v2720
      %v2737 = vcvt.s32.f32 %v2721
      %v2738 = vcvt.s32.f32 %v2722
      %v2739 = vcvt.s32.f32 %v2723
      %v2740 = vcvt.s32.f32 %v2724
      %v2741 = vcvt.s32.f32 %v2725
      %v2742 = vcvt.s32.f32 %v2726
      %2743 = vmatprep.subr.mxu0 0.0
      %2744 = vmatpush1.msra.mxu0 %v2742
      %2745 = vmatprep.subr.mxu0 0.0
      %2746 = vmatpush1.msra.mxu0 %v2741
      %2747 = vmatprep.subr.mxu0 0.0
      %2748 = vmatpush1.msra.mxu0 %v2740
      %2749 = vmatprep.subr.mxu0 0.0
      %2750 = vmatpush1.msra.mxu0 %v2739
      %2751 = vmatprep.subr.mxu0 0.0
      %2752 = vmatpush1.msra.mxu0 %v2738
      %2753 = vmatprep.subr.mxu0 0.0
      %2754 = vmatpush1.msra.mxu0 %v2737
      %2755 = vmatprep.subr.mxu0 0.0
      %2756 = vmatpush1.msra.mxu0 %v2736
      %2757 = vmatprep.subr.mxu0 0.0
      %2758 = vmatpush1.msra.mxu0 %v2735
      %2759 = vmatprep.subr.mxu0 0.0
      %2760 = vmatpush1.msra.mxu0 %v2734
      %2761 = vmatprep.subr.mxu0 0.0
      %2762 = vmatpush1.msra.mxu0 %v2733
      %2763 = vmatprep.subr.mxu0 0.0
      %2764 = vmatpush1.msra.mxu0 %v2732
      %2765 = vmatprep.subr.mxu0 0.0
      %2766 = vmatpush1.msra.mxu0 %v2731
      %2767 = vmatprep.subr.mxu0 0.0
      %2768 = vmatpush1.msra.mxu0 %v2730
      %2769 = vmatprep.subr.mxu0 0.0
      %2770 = vmatpush1.msra.mxu0 %v2729
      %2771 = vmatprep.subr.mxu0 0.0
      %2772 = vmatpush1.msra.mxu0 %v2728
      %2773 = vmatprep.subr.mxu0 0.0
      %2774 = vmatpush1.msra.mxu0 %v2727
      %2775 = vmatprep.subr.mxu0 0.0
      %2776 = vmatpush2.msra.mxu0 0.0
      %2777 = vmatprep.subr.mxu0 0.0
      %2778 = vmatpush2.msra.mxu0 0.0
      %2779 = vmatprep.subr.mxu0 0.0
      %2780 = vmatpush2.msra.mxu0 0.0
      %2781 = vmatprep.subr.mxu0 0.0
      %2782 = vmatpush2.msra.mxu0 0.0
      %2783 = vmatprep.subr.mxu0 0.0
      %2784 = vmatpush2.msra.mxu0 0.0
      %2785 = vmatprep.subr.mxu0 0.0
      %2786 = vmatpush2.msra.mxu0 0.0
      %2787 = vmatprep.subr.mxu0 0.0
      %2788 = vmatpush2.msra.mxu0 0.0
      %2789 = vmatprep.subr.mxu0 0.0
      %2790 = vmatpush2.msra.mxu0 0.0
      %2791 = vmatprep.subr.mxu0 0.0
      %2792 = vmatpush2.msra.mxu0 0.0
      %2793 = vmatprep.subr.mxu0 0.0
      %2794 = vmatpush2.msra.mxu0 0.0
      %2795 = vmatprep.subr.mxu0 0.0
      %2796 = vmatpush2.msra.mxu0 0.0
      %2797 = vmatprep.subr.mxu0 0.0
      %2798 = vmatpush2.msra.mxu0 0.0
      %2799 = vmatprep.subr.mxu0 0.0
      %2800 = vmatpush2.msra.mxu0 0.0
      %2801 = vmatprep.subr.mxu0 0.0
      %2802 = vmatpush2.msra.mxu0 0.0
      %2803 = vmatprep.subr.mxu0 0.0
      %2804 = vmatpush2.msra.mxu0 0.0
      %2805 = vmatprep.subr.mxu0 0.0
      %2806 = vmatpush2.msra.mxu0 0.0
      %2807 = vmatprep.mubr.f32.mxu0 0.0
      %2808 = vmatmul.mubr.f32.gmra.mxu0 %v2691
      %v2809 = vpop.f32.mrf.mxu0
      %v2810 = vadd.f32 0.0, %v2809
      %v2811 = vpop.f32.mrf.mxu0
      %2812 = vmatprep.mubr.f32.mxu0 0.0
      %2813 = vmatmul.mubr.f32.gmra.mxu0 %v2692
      %v2814 = vpop.f32.mrf.mxu0
      %v2815 = vadd.f32 0.0, %v2814
      %v2816 = vpop.f32.mrf.mxu0
      %2817 = vmatprep.mubr.f32.mxu0 0.0
      %2818 = vmatmul.mubr.f32.gmra.mxu0 %v2693
      %v2819 = vpop.f32.mrf.mxu0
      %v2820 = vadd.f32 0.0, %v2819
      %v2821 = vpop.f32.mrf.mxu0
      %2822 = vdwg.mxu0
      %v2823 = vadd.s32 %v2694, 1
      %vm2824 = vcmp.eq.s32.totalorder %v1986, %v2823
      %vm2825 = vcmp.eq.s32.totalorder %v1987, %v2823
      %vm2826 = vcmp.eq.s32.totalorder %v1988, %v2823
      %vm2827 = vcmp.eq.s32.totalorder %v1989, %v2823
      %vm2828 = vcmp.eq.s32.totalorder %v1990, %v2823
      %vm2829 = vcmp.eq.s32.totalorder %v1991, %v2823
      %vm2830 = vcmp.eq.s32.totalorder %v1992, %v2823
      %vm2831 = vcmp.eq.s32.totalorder %v1993, %v2823
      %vm2832 = vcmp.eq.s32.totalorder %v1994, %v2823
      %vm2833 = vcmp.eq.s32.totalorder %v1995, %v2823
      %vm2834 = vcmp.eq.s32.totalorder %v1996, %v2823
      %vm2835 = vcmp.eq.s32.totalorder %v1997, %v2823
      %vm2836 = vcmp.eq.s32.totalorder %v1998, %v2823
      %vm2837 = vcmp.eq.s32.totalorder %v1999, %v2823
      %vm2838 = vcmp.eq.s32.totalorder %v2000, %v2823
      %vm2839 = vcmp.eq.s32.totalorder %v2001, %v2823
      %v2840 = vsel %vm2824, 1, 0
      %v2841 = vsel %vm2825, 1, 0
      %v2842 = vsel %vm2826, 1, 0
      %v2843 = vsel %vm2827, 1, 0
      %v2844 = vsel %vm2828, 1, 0
      %v2845 = vsel %vm2829, 1, 0
      %v2846 = vsel %vm2830, 1, 0
      %v2847 = vsel %vm2831, 1, 0
      %v2848 = vsel %vm2832, 1, 0
      %v2849 = vsel %vm2833, 1, 0
      %v2850 = vsel %vm2834, 1, 0
      %v2851 = vsel %vm2835, 1, 0
      %v2852 = vsel %vm2836, 1, 0
      %v2853 = vsel %vm2837, 1, 0
      %v2854 = vsel %vm2838, 1, 0
      %v2855 = vsel %vm2839, 1, 0
      %v2856 = vcvt.s32.f32 %v2840
      %v2857 = vcvt.s32.f32 %v2841
      %v2858 = vcvt.s32.f32 %v2842
      %v2859 = vcvt.s32.f32 %v2843
      %v2860 = vcvt.s32.f32 %v2844
      %v2861 = vcvt.s32.f32 %v2845
      %v2862 = vcvt.s32.f32 %v2846
      %v2863 = vcvt.s32.f32 %v2847
      %v2864 = vcvt.s32.f32 %v2848
      %v2865 = vcvt.s32.f32 %v2849
      %v2866 = vcvt.s32.f32 %v2850
      %v2867 = vcvt.s32.f32 %v2851
      %v2868 = vcvt.s32.f32 %v2852
      %v2869 = vcvt.s32.f32 %v2853
      %v2870 = vcvt.s32.f32 %v2854
      %v2871 = vcvt.s32.f32 %v2855
      %2872 = vmatprep.subr.mxu0 0.0
      %2873 = vmatpush1.msra.mxu0 %v2871
      %2874 = vmatprep.subr.mxu0 0.0
      %2875 = vmatpush1.msra.mxu0 %v2870
      %2876 = vmatprep.subr.mxu0 0.0
      %2877 = vmatpush1.msra.mxu0 %v2869
      %2878 = vmatprep.subr.mxu0 0.0
      %2879 = vmatpush1.msra.mxu0 %v2868
      %2880 = vmatprep.subr.mxu0 0.0
      %2881 = vmatpush1.msra.mxu0 %v2867
      %2882 = vmatprep.subr.mxu0 0.0
      %2883 = vmatpush1.msra.mxu0 %v2866
      %2884 = vmatprep.subr.mxu0 0.0
      %2885 = vmatpush1.msra.mxu0 %v2865
      %2886 = vmatprep.subr.mxu0 0.0
      %2887 = vmatpush1.msra.mxu0 %v2864
      %2888 = vmatprep.subr.mxu0 0.0
      %2889 = vmatpush1.msra.mxu0 %v2863
      %2890 = vmatprep.subr.mxu0 0.0
      %2891 = vmatpush1.msra.mxu0 %v2862
      %2892 = vmatprep.subr.mxu0 0.0
      %2893 = vmatpush1.msra.mxu0 %v2861
      %2894 = vmatprep.subr.mxu0 0.0
      %2895 = vmatpush1.msra.mxu0 %v2860
      %2896 = vmatprep.subr.mxu0 0.0
      %2897 = vmatpush1.msra.mxu0 %v2859
      %2898 = vmatprep.subr.mxu0 0.0
      %2899 = vmatpush1.msra.mxu0 %v2858
      %2900 = vmatprep.subr.mxu0 0.0
      %2901 = vmatpush1.msra.mxu0 %v2857
      %2902 = vmatprep.subr.mxu0 0.0
      %2903 = vmatpush1.msra.mxu0 %v2856
      %2904 = vmatprep.subr.mxu0 0.0
      %2905 = vmatpush2.msra.mxu0 0.0
      %2906 = vmatprep.subr.mxu0 0.0
      %2907 = vmatpush2.msra.mxu0 0.0
      %2908 = vmatprep.subr.mxu0 0.0
      %2909 = vmatpush2.msra.mxu0 0.0
      %2910 = vmatprep.subr.mxu0 0.0
      %2911 = vmatpush2.msra.mxu0 0.0
      %2912 = vmatprep.subr.mxu0 0.0
      %2913 = vmatpush2.msra.mxu0 0.0
      %2914 = vmatprep.subr.mxu0 0.0
      %2915 = vmatpush2.msra.mxu0 0.0
      %2916 = vmatprep.subr.mxu0 0.0
      %2917 = vmatpush2.msra.mxu0 0.0
      %2918 = vmatprep.subr.mxu0 0.0
      %2919 = vmatpush2.msra.mxu0 0.0
      %2920 = vmatprep.subr.mxu0 0.0
      %2921 = vmatpush2.msra.mxu0 0.0
      %2922 = vmatprep.subr.mxu0 0.0
      %2923 = vmatpush2.msra.mxu0 0.0
      %2924 = vmatprep.subr.mxu0 0.0
      %2925 = vmatpush2.msra.mxu0 0.0
      %2926 = vmatprep.subr.mxu0 0.0
      %2927 = vmatpush2.msra.mxu0 0.0
      %2928 = vmatprep.subr.mxu0 0.0
      %2929 = vmatpush2.msra.mxu0 0.0
      %2930 = vmatprep.subr.mxu0 0.0
      %2931 = vmatpush2.msra.mxu0 0.0
      %2932 = vmatprep.subr.mxu0 0.0
      %2933 = vmatpush2.msra.mxu0 0.0
      %2934 = vmatprep.subr.mxu0 0.0
      %2935 = vmatpush2.msra.mxu0 0.0
      %2936 = vmatprep.mubr.f32.mxu0 0.0
      %2937 = vmatmul.mubr.f32.gmra.mxu0 %v2691
      %v2938 = vpop.f32.mrf.mxu0
      %v2939 = vadd.f32 0.0, %v2938
      %v2940 = vpop.f32.mrf.mxu0
      %2941 = vmatprep.mubr.f32.mxu0 0.0
      %2942 = vmatmul.mubr.f32.gmra.mxu0 %v2692
      %v2943 = vpop.f32.mrf.mxu0
      %v2944 = vadd.f32 0.0, %v2943
      %v2945 = vpop.f32.mrf.mxu0
      %2946 = vmatprep.mubr.f32.mxu0 0.0
      %2947 = vmatmul.mubr.f32.gmra.mxu0 %v2693
      %v2948 = vpop.f32.mrf.mxu0
      %v2949 = vadd.f32 0.0, %v2948
      %v2950 = vpop.f32.mrf.mxu0
      %2951 = vdwg.mxu0
      %v2952 = vmax.f32 %v2810, %v2939
      %v2953 = vmax.f32 %v2815, %v2944
      %v2954 = vmax.f32 %v2820, %v2949
      %v2955 = vadd.s32 %v2694, 2
      %vm2956 = vcmp.eq.s32.totalorder %v1986, %v2955
      %vm2957 = vcmp.eq.s32.totalorder %v1987, %v2955
      %vm2958 = vcmp.eq.s32.totalorder %v1988, %v2955
      %vm2959 = vcmp.eq.s32.totalorder %v1989, %v2955
      %vm2960 = vcmp.eq.s32.totalorder %v1990, %v2955
      %vm2961 = vcmp.eq.s32.totalorder %v1991, %v2955
      %vm2962 = vcmp.eq.s32.totalorder %v1992, %v2955
      %vm2963 = vcmp.eq.s32.totalorder %v1993, %v2955
      %vm2964 = vcmp.eq.s32.totalorder %v1994, %v2955
      %vm2965 = vcmp.eq.s32.totalorder %v1995, %v2955
      %vm2966 = vcmp.eq.s32.totalorder %v1996, %v2955
      %vm2967 = vcmp.eq.s32.totalorder %v1997, %v2955
      %vm2968 = vcmp.eq.s32.totalorder %v1998, %v2955
      %vm2969 = vcmp.eq.s32.totalorder %v1999, %v2955
      %vm2970 = vcmp.eq.s32.totalorder %v2000, %v2955
      %vm2971 = vcmp.eq.s32.totalorder %v2001, %v2955
      %v2972 = vsel %vm2956, 1, 0
      %v2973 = vsel %vm2957, 1, 0
      %v2974 = vsel %vm2958, 1, 0
      %v2975 = vsel %vm2959, 1, 0
      %v2976 = vsel %vm2960, 1, 0
      %v2977 = vsel %vm2961, 1, 0
      %v2978 = vsel %vm2962, 1, 0
      %v2979 = vsel %vm2963, 1, 0
      %v2980 = vsel %vm2964, 1, 0
      %v2981 = vsel %vm2965, 1, 0
      %v2982 = vsel %vm2966, 1, 0
      %v2983 = vsel %vm2967, 1, 0
      %v2984 = vsel %vm2968, 1, 0
      %v2985 = vsel %vm2969, 1, 0
      %v2986 = vsel %vm2970, 1, 0
      %v2987 = vsel %vm2971, 1, 0
      %v2988 = vcvt.s32.f32 %v2972
      %v2989 = vcvt.s32.f32 %v2973
      %v2990 = vcvt.s32.f32 %v2974
      %v2991 = vcvt.s32.f32 %v2975
      %v2992 = vcvt.s32.f32 %v2976
      %v2993 = vcvt.s32.f32 %v2977
      %v2994 = vcvt.s32.f32 %v2978
      %v2995 = vcvt.s32.f32 %v2979
      %v2996 = vcvt.s32.f32 %v2980
      %v2997 = vcvt.s32.f32 %v2981
      %v2998 = vcvt.s32.f32 %v2982
      %v2999 = vcvt.s32.f32 %v2983
      %v3000 = vcvt.s32.f32 %v2984
      %v3001 = vcvt.s32.f32 %v2985
      %v3002 = vcvt.s32.f32 %v2986
      %v3003 = vcvt.s32.f32 %v2987
      %3004 = vmatprep.subr.mxu0 0.0
      %3005 = vmatpush1.msra.mxu0 %v3003
      %3006 = vmatprep.subr.mxu0 0.0
      %3007 = vmatpush1.msra.mxu0 %v3002
      %3008 = vmatprep.subr.mxu0 0.0
      %3009 = vmatpush1.msra.mxu0 %v3001
      %3010 = vmatprep.subr.mxu0 0.0
      %3011 = vmatpush1.msra.mxu0 %v3000
      %3012 = vmatprep.subr.mxu0 0.0
      %3013 = vmatpush1.msra.mxu0 %v2999
      %3014 = vmatprep.subr.mxu0 0.0
      %3015 = vmatpush1.msra.mxu0 %v2998
      %3016 = vmatprep.subr.mxu0 0.0
      %3017 = vmatpush1.msra.mxu0 %v2997
      %3018 = vmatprep.subr.mxu0 0.0
      %3019 = vmatpush1.msra.mxu0 %v2996
      %3020 = vmatprep.subr.mxu0 0.0
      %3021 = vmatpush1.msra.mxu0 %v2995
      %3022 = vmatprep.subr.mxu0 0.0
      %3023 = vmatpush1.msra.mxu0 %v2994
      %3024 = vmatprep.subr.mxu0 0.0
      %3025 = vmatpush1.msra.mxu0 %v2993
      %3026 = vmatprep.subr.mxu0 0.0
      %3027 = vmatpush1.msra.mxu0 %v2992
      %3028 = vmatprep.subr.mxu0 0.0
      %3029 = vmatpush1.msra.mxu0 %v2991
      %3030 = vmatprep.subr.mxu0 0.0
      %3031 = vmatpush1.msra.mxu0 %v2990
      %3032 = vmatprep.subr.mxu0 0.0
      %3033 = vmatpush1.msra.mxu0 %v2989
      %3034 = vmatprep.subr.mxu0 0.0
      %3035 = vmatpush1.msra.mxu0 %v2988
      %3036 = vmatprep.subr.mxu0 0.0
      %3037 = vmatpush2.msra.mxu0 0.0
      %3038 = vmatprep.subr.mxu0 0.0
      %3039 = vmatpush2.msra.mxu0 0.0
      %3040 = vmatprep.subr.mxu0 0.0
      %3041 = vmatpush2.msra.mxu0 0.0
      %3042 = vmatprep.subr.mxu0 0.0
      %3043 = vmatpush2.msra.mxu0 0.0
      %3044 = vmatprep.subr.mxu0 0.0
      %3045 = vmatpush2.msra.mxu0 0.0
      %3046 = vmatprep.subr.mxu0 0.0
      %3047 = vmatpush2.msra.mxu0 0.0
      %3048 = vmatprep.subr.mxu0 0.0
      %3049 = vmatpush2.msra.mxu0 0.0
      %3050 = vmatprep.subr.mxu0 0.0
      %3051 = vmatpush2.msra.mxu0 0.0
      %3052 = vmatprep.subr.mxu0 0.0
      %3053 = vmatpush2.msra.mxu0 0.0
      %3054 = vmatprep.subr.mxu0 0.0
      %3055 = vmatpush2.msra.mxu0 0.0
      %3056 = vmatprep.subr.mxu0 0.0
      %3057 = vmatpush2.msra.mxu0 0.0
      %3058 = vmatprep.subr.mxu0 0.0
      %3059 = vmatpush2.msra.mxu0 0.0
      %3060 = vmatprep.subr.mxu0 0.0
      %3061 = vmatpush2.msra.mxu0 0.0
      %3062 = vmatprep.subr.mxu0 0.0
      %3063 = vmatpush2.msra.mxu0 0.0
      %3064 = vmatprep.subr.mxu0 0.0
      %3065 = vmatpush2.msra.mxu0 0.0
      %3066 = vmatprep.subr.mxu0 0.0
      %3067 = vmatpush2.msra.mxu0 0.0
      %3068 = vmatprep.mubr.f32.mxu0 0.0
      %3069 = vmatmul.mubr.f32.gmra.mxu0 %v2691
      %v3070 = vpop.f32.mrf.mxu0
      %v3071 = vadd.f32 0.0, %v3070
      %v3072 = vpop.f32.mrf.mxu0
      %3073 = vmatprep.mubr.f32.mxu0 0.0
      %3074 = vmatmul.mubr.f32.gmra.mxu0 %v2692
      %v3075 = vpop.f32.mrf.mxu0
      %v3076 = vadd.f32 0.0, %v3075
      %v3077 = vpop.f32.mrf.mxu0
      %3078 = vmatprep.mubr.f32.mxu0 0.0
      %3079 = vmatmul.mubr.f32.gmra.mxu0 %v2693
      %v3080 = vpop.f32.mrf.mxu0
      %v3081 = vadd.f32 0.0, %v3080
      %v3082 = vpop.f32.mrf.mxu0
      %3083 = vdwg.mxu0
      %v3084 = vmax.f32 %v2952, %v3071
      %v3085 = vmax.f32 %v2953, %v3076
      %v3086 = vmax.f32 %v2954, %v3081
      %v3087 = vadd.s32 %v2694, 3
      %vm3088 = vcmp.eq.s32.totalorder %v1986, %v3087
      %vm3089 = vcmp.eq.s32.totalorder %v1987, %v3087
      %vm3090 = vcmp.eq.s32.totalorder %v1988, %v3087
      %vm3091 = vcmp.eq.s32.totalorder %v1989, %v3087
      %vm3092 = vcmp.eq.s32.totalorder %v1990, %v3087
      %vm3093 = vcmp.eq.s32.totalorder %v1991, %v3087
      %vm3094 = vcmp.eq.s32.totalorder %v1992, %v3087
      %vm3095 = vcmp.eq.s32.totalorder %v1993, %v3087
      %vm3096 = vcmp.eq.s32.totalorder %v1994, %v3087
      %vm3097 = vcmp.eq.s32.totalorder %v1995, %v3087
      %vm3098 = vcmp.eq.s32.totalorder %v1996, %v3087
      %vm3099 = vcmp.eq.s32.totalorder %v1997, %v3087
      %vm3100 = vcmp.eq.s32.totalorder %v1998, %v3087
      %vm3101 = vcmp.eq.s32.totalorder %v1999, %v3087
      %vm3102 = vcmp.eq.s32.totalorder %v2000, %v3087
      %vm3103 = vcmp.eq.s32.totalorder %v2001, %v3087
      %v3104 = vsel %vm3088, 1, 0
      %v3105 = vsel %vm3089, 1, 0
      %v3106 = vsel %vm3090, 1, 0
      %v3107 = vsel %vm3091, 1, 0
      %v3108 = vsel %vm3092, 1, 0
      %v3109 = vsel %vm3093, 1, 0
      %v3110 = vsel %vm3094, 1, 0
      %v3111 = vsel %vm3095, 1, 0
      %v3112 = vsel %vm3096, 1, 0
      %v3113 = vsel %vm3097, 1, 0
      %v3114 = vsel %vm3098, 1, 0
      %v3115 = vsel %vm3099, 1, 0
      %v3116 = vsel %vm3100, 1, 0
      %v3117 = vsel %vm3101, 1, 0
      %v3118 = vsel %vm3102, 1, 0
      %v3119 = vsel %vm3103, 1, 0
      %v3120 = vcvt.s32.f32 %v3104
      %v3121 = vcvt.s32.f32 %v3105
      %v3122 = vcvt.s32.f32 %v3106
      %v3123 = vcvt.s32.f32 %v3107
      %v3124 = vcvt.s32.f32 %v3108
      %v3125 = vcvt.s32.f32 %v3109
      %v3126 = vcvt.s32.f32 %v3110
      %v3127 = vcvt.s32.f32 %v3111
      %v3128 = vcvt.s32.f32 %v3112
      %v3129 = vcvt.s32.f32 %v3113
      %v3130 = vcvt.s32.f32 %v3114
      %v3131 = vcvt.s32.f32 %v3115
      %v3132 = vcvt.s32.f32 %v3116
      %v3133 = vcvt.s32.f32 %v3117
      %v3134 = vcvt.s32.f32 %v3118
      %v3135 = vcvt.s32.f32 %v3119
      %3136 = vmatprep.subr.mxu0 0.0
      %3137 = vmatpush1.msra.mxu0 %v3135
      %3138 = vmatprep.subr.mxu0 0.0
      %3139 = vmatpush1.msra.mxu0 %v3134
      %3140 = vmatprep.subr.mxu0 0.0
      %3141 = vmatpush1.msra.mxu0 %v3133
      %3142 = vmatprep.subr.mxu0 0.0
      %3143 = vmatpush1.msra.mxu0 %v3132
      %3144 = vmatprep.subr.mxu0 0.0
      %3145 = vmatpush1.msra.mxu0 %v3131
      %3146 = vmatprep.subr.mxu0 0.0
      %3147 = vmatpush1.msra.mxu0 %v3130
      %3148 = vmatprep.subr.mxu0 0.0
      %3149 = vmatpush1.msra.mxu0 %v3129
      %3150 = vmatprep.subr.mxu0 0.0
      %3151 = vmatpush1.msra.mxu0 %v3128
      %3152 = vmatprep.subr.mxu0 0.0
      %3153 = vmatpush1.msra.mxu0 %v3127
      %3154 = vmatprep.subr.mxu0 0.0
      %3155 = vmatpush1.msra.mxu0 %v3126
      %3156 = vmatprep.subr.mxu0 0.0
      %3157 = vmatpush1.msra.mxu0 %v3125
      %3158 = vmatprep.subr.mxu0 0.0
      %3159 = vmatpush1.msra.mxu0 %v3124
      %3160 = vmatprep.subr.mxu0 0.0
      %3161 = vmatpush1.msra.mxu0 %v3123
      %3162 = vmatprep.subr.mxu0 0.0
      %3163 = vmatpush1.msra.mxu0 %v3122
      %3164 = vmatprep.subr.mxu0 0.0
      %3165 = vmatpush1.msra.mxu0 %v3121
      %3166 = vmatprep.subr.mxu0 0.0
      %3167 = vmatpush1.msra.mxu0 %v3120
      %3168 = vmatprep.subr.mxu0 0.0
      %3169 = vmatpush2.msra.mxu0 0.0
      %3170 = vmatprep.subr.mxu0 0.0
      %3171 = vmatpush2.msra.mxu0 0.0
      %3172 = vmatprep.subr.mxu0 0.0
      %3173 = vmatpush2.msra.mxu0 0.0
      %3174 = vmatprep.subr.mxu0 0.0
      %3175 = vmatpush2.msra.mxu0 0.0
      %3176 = vmatprep.subr.mxu0 0.0
      %3177 = vmatpush2.msra.mxu0 0.0
      %3178 = vmatprep.subr.mxu0 0.0
      %3179 = vmatpush2.msra.mxu0 0.0
      %3180 = vmatprep.subr.mxu0 0.0
      %3181 = vmatpush2.msra.mxu0 0.0
      %3182 = vmatprep.subr.mxu0 0.0
      %3183 = vmatpush2.msra.mxu0 0.0
      %3184 = vmatprep.subr.mxu0 0.0
      %3185 = vmatpush2.msra.mxu0 0.0
      %3186 = vmatprep.subr.mxu0 0.0
      %3187 = vmatpush2.msra.mxu0 0.0
      %3188 = vmatprep.subr.mxu0 0.0
      %3189 = vmatpush2.msra.mxu0 0.0
      %3190 = vmatprep.subr.mxu0 0.0
      %3191 = vmatpush2.msra.mxu0 0.0
      %3192 = vmatprep.subr.mxu0 0.0
      %3193 = vmatpush2.msra.mxu0 0.0
      %3194 = vmatprep.subr.mxu0 0.0
      %3195 = vmatpush2.msra.mxu0 0.0
      %3196 = vmatprep.subr.mxu0 0.0
      %3197 = vmatpush2.msra.mxu0 0.0
      %3198 = vmatprep.subr.mxu0 0.0
      %3199 = vmatpush2.msra.mxu0 0.0
      %3200 = vmatprep.mubr.f32.mxu0 0.0
      %3201 = vmatmul.mubr.f32.gmra.mxu0 %v2691
      %v3202 = vpop.f32.mrf.mxu0
      %v3203 = vadd.f32 0.0, %v3202
      %v3204 = vpop.f32.mrf.mxu0
      %3205 = vmatprep.mubr.f32.mxu0 0.0
      %3206 = vmatmul.mubr.f32.gmra.mxu0 %v2692
      %v3207 = vpop.f32.mrf.mxu0
      %v3208 = vadd.f32 0.0, %v3207
      %v3209 = vpop.f32.mrf.mxu0
      %3210 = vmatprep.mubr.f32.mxu0 0.0
      %3211 = vmatmul.mubr.f32.gmra.mxu0 %v2693
      %v3212 = vpop.f32.mrf.mxu0
      %v3213 = vadd.f32 0.0, %v3212
      %v3214 = vpop.f32.mrf.mxu0
      %3215 = vdwg.mxu0
      %v3216 = vmax.f32 %v3084, %v3203
      %v3217 = vmax.f32 %v3085, %v3208
      %v3218 = vmax.f32 %v3086, %v3213
      %vm3219 = vcmask 7168
      %3220 = vst.msk [vmem:[#allocation2] sm:$0xff] %vm3219, 0.0
      %3221 = vst.msk [vmem:[#allocation2 + $0x18] sm:$0xff] %vm3219, 0.0
      %3222 = vst.msk [vmem:[#allocation2 + $0x30] sm:$0xff] %vm3219, 0.0
      %vm3223 = vcmask 277768
      %3224 = vst.msk [vmem:[#allocation2] sm:$0xff] %vm3223, 0.0
      %3225 = vst.msk [vmem:[#allocation2 + $0x18] sm:$0xff] %vm3223, 0.0
      %3226 = vst.msk [vmem:[#allocation2 + $0x30] sm:$0xff] %vm3223, 0.0
      %3230 = vrot.lane.b32.xlu0 %v3216, 1
      %v3231 = vpop.permute.xlu0 %3230
      %3232 = vrot.lane.b32.xlu0 %v3217, 1
      %v3233 = vpop.permute.xlu0 %3232
      %3234 = vrot.lane.b32.xlu0 %v3218, 1
      %v3235 = vpop.permute.xlu0 %3234
      %vm3239 = vcmask 269320
      %3240 = vst.msk [vmem:[#allocation2] sm:$0xff] %vm3239, %v3231
      %3241 = vst.msk [vmem:[#allocation2 + $0x18] sm:$0xff] %vm3239, %v3233
      %3242 = vst.msk [vmem:[#allocation2 + $0x30] sm:$0xff] %vm3239, %v3235
      %v3243 = vld [vmem:[#allocation2] sm:$0xff]
      %v3244 = vld [vmem:[#allocation2 + $0x18] sm:$0xff]
      %v3245 = vld [vmem:[#allocation2 + $0x30] sm:$0xff]
      %3246 = vst.msk [vmem:[#allocation3] sm:$0xff] %vm1259, %v3243
      %3247 = vst.msk [vmem:[#allocation3 + $0x10] sm:$0xff] %vm1259, %v3244
      %3248 = vst.msk [vmem:[#allocation3 + $0x20] sm:$0xff] %vm1259, %v3245
      %v3249 = vld [vmem:[#allocation2] sm:$0xff]
      %v3250 = vld [vmem:[#allocation2 + $0x18] sm:$0xff]
      %v3251 = vld [vmem:[#allocation2 + $0x30] sm:$0xff]
      %3255 = vrot.lane.b32.xlu0 %v3249, 127
      %v3256 = vpop.permute.xlu0 %3255
      %3257 = vrot.lane.b32.xlu0 %v3250, 127
      %v3258 = vpop.permute.xlu0 %3257
      %3259 = vrot.lane.b32.xlu0 %v3251, 127
      %v3260 = vpop.permute.xlu0 %3259
      %3264 = vst.msk [vmem:[#allocation3 + $0x30] sm:$0xff] %vm1259, %v3256
      %3265 = vst.msk [vmem:[#allocation3 + $0x40] sm:$0xff] %vm1259, %v3258
      %3266 = vst.msk [vmem:[#allocation3 + $0x50] sm:$0xff] %vm1259, %v3260
      %v3267 = vld [vmem:[#allocation2] sm:$0xff]
      %v3268 = vld [vmem:[#allocation2 + $0x18] sm:$0xff]
      %v3269 = vld [vmem:[#allocation2 + $0x30] sm:$0xff]
      %3273 = vrot.lane.b32.xlu0 %v3267, 126
      %v3274 = vpop.permute.xlu0 %3273
      %3275 = vrot.lane.b32.xlu0 %v3268, 126
      %v3276 = vpop.permute.xlu0 %3275
      %3277 = vrot.lane.b32.xlu0 %v3269, 126
      %v3278 = vpop.permute.xlu0 %3277
      %3282 = vst.msk [vmem:[#allocation3 + $0x60] sm:$0xff] %vm1259, %v3274
      %3283 = vst.msk [vmem:[#allocation3 + $0x70] sm:$0xff] %vm1259, %v3276
      %3284 = vst.msk [vmem:[#allocation3 + $0x80] sm:$0xff] %vm1259, %v3278
      %v3285 = vld [vmem:[#allocation3] sm:$0xff]
      %v3286 = vld [vmem:[#allocation3 + $0x10] sm:$0xff]
      %v3287 = vld [vmem:[#allocation3 + $0x20] sm:$0xff]
      %v3288 = vld [vmem:[#allocation3 + $0x30] sm:$0xff]
      %v3289 = vld [vmem:[#allocation3 + $0x40] sm:$0xff]
      %v3290 = vld [vmem:[#allocation3 + $0x50] sm:$0xff]
      %v3291 = vld [vmem:[#allocation3 + $0x60] sm:$0xff]
      %v3292 = vld [vmem:[#allocation3 + $0x70] sm:$0xff]
      %v3293 = vld [vmem:[#allocation3 + $0x80] sm:$0xff]
      %v3294 = vld [vmem:[%s21] sm:$0xff]
      %v3295 = vld [vmem:[%s21 + $0x8] sm:$0xff]
      %v3296 = vld [vmem:[%s21 + $0x10] sm:$0xff]
      %vm3297 = vcmask 588800
      %v3299 = vsel %vm3297, %v3294, 0
      %v3302 = vsel %vm3297, %v3295, 0
      %v3305 = vsel %vm3297, %v3296, 0
      %3307 = vmatprep.subr.mxu0 0.0
      %3308 = vmatpush1.msra.mxu0 0.0
      %3309 = vmatprep.subr.mxu0 0.0
      %3310 = vmatpush1.msra.mxu0 0.0
      %3311 = vmatprep.subr.mxu0 0.0
      %3312 = vmatpush1.msra.mxu0 0.0
      %3313 = vmatprep.subr.mxu0 0.0
      %3314 = vmatpush1.msra.mxu0 0.0
      %3315 = vmatprep.subr.mxu0 0.0
      %3316 = vmatpush1.msra.mxu0 0.0
      %3317 = vmatprep.subr.mxu0 0.0
      %3318 = vmatpush1.msra.mxu0 0.0
      %3319 = vmatprep.subr.mxu0 0.0
      %3320 = vmatpush1.msra.mxu0 0.0
      %3321 = vmatprep.subr.mxu0 0.0
      %3322 = vmatpush1.msra.mxu0 %v3293
      %3323 = vmatprep.subr.mxu0 0.0
      %3324 = vmatpush1.msra.mxu0 %v3292
      %3325 = vmatprep.subr.mxu0 0.0
      %3326 = vmatpush1.msra.mxu0 %v3291
      %3327 = vmatprep.subr.mxu0 0.0
      %3328 = vmatpush1.msra.mxu0 %v3290
      %3329 = vmatprep.subr.mxu0 0.0
      %3330 = vmatpush1.msra.mxu0 %v3289
      %3331 = vmatprep.subr.mxu0 0.0
      %3332 = vmatpush1.msra.mxu0 %v3288
      %3333 = vmatprep.subr.mxu0 0.0
      %3334 = vmatpush1.msra.mxu0 %v3287
      %3335 = vmatprep.subr.mxu0 0.0
      %3336 = vmatpush1.msra.mxu0 %v3286
      %3337 = vmatprep.subr.mxu0 0.0
      %3338 = vmatpush1.msra.mxu0 %v3285
      %3339 = vmatprep.subr.mxu0 0.0
      %3340 = vmatpush2.msra.mxu0 0.0
      %3341 = vmatprep.subr.mxu0 0.0
      %3342 = vmatpush2.msra.mxu0 0.0
      %3343 = vmatprep.subr.mxu0 0.0
      %3344 = vmatpush2.msra.mxu0 0.0
      %3345 = vmatprep.subr.mxu0 0.0
      %3346 = vmatpush2.msra.mxu0 0.0
      %3347 = vmatprep.subr.mxu0 0.0
      %3348 = vmatpush2.msra.mxu0 0.0
      %3349 = vmatprep.subr.mxu0 0.0
      %3350 = vmatpush2.msra.mxu0 0.0
      %3351 = vmatprep.subr.mxu0 0.0
      %3352 = vmatpush2.msra.mxu0 0.0
      %3353 = vmatprep.subr.mxu0 0.0
      %3354 = vmatpush2.msra.mxu0 0.0
      %3355 = vmatprep.subr.mxu0 0.0
      %3356 = vmatpush2.msra.mxu0 0.0
      %3357 = vmatprep.subr.mxu0 0.0
      %3358 = vmatpush2.msra.mxu0 0.0
      %3359 = vmatprep.subr.mxu0 0.0
      %3360 = vmatpush2.msra.mxu0 0.0
      %3361 = vmatprep.subr.mxu0 0.0
      %3362 = vmatpush2.msra.mxu0 0.0
      %3363 = vmatprep.subr.mxu0 0.0
      %3364 = vmatpush2.msra.mxu0 0.0
      %3365 = vmatprep.subr.mxu0 0.0
      %3366 = vmatpush2.msra.mxu0 0.0
      %3367 = vmatprep.subr.mxu0 0.0
      %3368 = vmatpush2.msra.mxu0 0.0
      %3369 = vmatprep.subr.mxu0 0.0
      %3370 = vmatpush2.msra.mxu0 0.0
      %3371 = vmatprep.mubr.f32.mxu0 0.0
      %3372 = vmatmul.mubr.f32.gmra.mxu0 %v3299
      %v3373 = vpop.f32.mrf.mxu0
      %v3374 = vadd.f32 0.0, %v3373
      %v3375 = vpop.f32.mrf.mxu0
      %3376 = vmatprep.mubr.f32.mxu0 0.0
      %3377 = vmatmul.mubr.f32.gmra.mxu0 %v3302
      %v3378 = vpop.f32.mrf.mxu0
      %v3379 = vadd.f32 0.0, %v3378
      %v3380 = vpop.f32.mrf.mxu0
      %3381 = vmatprep.mubr.f32.mxu0 0.0
      %3382 = vmatmul.mubr.f32.gmra.mxu0 %v3305
      %v3383 = vpop.f32.mrf.mxu0
      %v3384 = vadd.f32 0.0, %v3383
      %v3385 = vpop.f32.mrf.mxu0
      %3386 = vdwg.mxu0
      %v3387 = vld [vmem:[%s23] sm:$0xff]
      %v3388 = vld [vmem:[%s23 + $0x8] sm:$0xff]
      %v3389 = vld [vmem:[%s23 + $0x10] sm:$0xff]
      %3391 = vset.pattern.permute.xlu0 0
      %3392 = vperm.xlu0 %3391, %v3387
      %v3393 = vpop.permute.xlu0 %3392
      %3396 = vset.pattern.permute.xlu0 0
      %3397 = vperm.xlu0 %3396, %v3388
      %v3398 = vpop.permute.xlu0 %3397
      %3401 = vset.pattern.permute.xlu0 0
      %3402 = vperm.xlu0 %3401, %v3389
      %v3403 = vpop.permute.xlu0 %3402
      %v3405 = vmul.f32 %v3374, %v3393
      %v3406 = vmul.f32 %v3379, %v3398
      %v3407 = vmul.f32 %v3384, %v3403
      %v3408 = vld [vmem:[%s25] sm:$0xff]
      %v3409 = vld [vmem:[%s25 + $0x8] sm:$0xff]
      %v3410 = vld [vmem:[%s25 + $0x10] sm:$0xff]
      %3412 = vset.pattern.permute.xlu0 0
      %3413 = vperm.xlu0 %3412, %v3408
      %v3414 = vpop.permute.xlu0 %3413
      %3417 = vset.pattern.permute.xlu0 0
      %3418 = vperm.xlu0 %3417, %v3409
      %v3419 = vpop.permute.xlu0 %3418
      %3422 = vset.pattern.permute.xlu0 0
      %3423 = vperm.xlu0 %3422, %v3410
      %v3424 = vpop.permute.xlu0 %3423
      %v3426 = vadd.f32 %v3405, %v3414
      %v3427 = vadd.f32 %v3406, %v3419
      %v3428 = vadd.f32 %v3407, %v3424
      %v3429 = vmax.f32 %v3426, 0.0
      %v3430 = vmax.f32 %v3427, 0.0
      %v3431 = vmax.f32 %v3428, 0.0
      %v3433 = vsel %vm1259, %v3429, 0
      %v3436 = vsel %vm1259, %v3430, 0
      %v3439 = vsel %vm1259, %v3431, 0
      %3441 = vmatprep.subr.mxu0 0.0
      %3442 = vmatpush1.msra.mxu0 0.0
      %3443 = vmatprep.subr.mxu0 0.0
      %3444 = vmatpush1.msra.mxu0 0.0
      %3445 = vmatprep.subr.mxu0 0.0
      %3446 = vmatpush1.msra.mxu0 0.0
      %3447 = vmatprep.subr.mxu0 0.0
      %3448 = vmatpush1.msra.mxu0 0.0
      %3449 = vmatprep.subr.mxu0 0.0
      %3450 = vmatpush1.msra.mxu0 0.0
      %3451 = vmatprep.subr.mxu0 0.0
      %3452 = vmatpush1.msra.mxu0 0.0
      %3453 = vmatprep.subr.mxu0 0.0
      %3454 = vmatpush1.msra.mxu0 0.0
      %3455 = vmatprep.subr.mxu0 0.0
      %3456 = vmatpush1.msra.mxu0 0.0
      %3457 = vmatprep.subr.mxu0 0.0
      %3458 = vmatpush1.msra.mxu0 0.0
      %3459 = vmatprep.subr.mxu0 0.0
      %3460 = vmatpush1.msra.mxu0 0.0
      %3461 = vmatprep.subr.mxu0 0.0
      %3462 = vmatpush1.msra.mxu0 0.0
      %3463 = vmatprep.subr.mxu0 0.0
      %3464 = vmatpush1.msra.mxu0 0.0
      %3465 = vmatprep.subr.mxu0 0.0
      %3466 = vmatpush1.msra.mxu0 %v2730
      %3467 = vmatprep.subr.mxu0 0.0
      %3468 = vmatpush1.msra.mxu0 %v2729
      %3469 = vmatprep.subr.mxu0 0.0
      %3470 = vmatpush1.msra.mxu0 %v2728
      %3471 = vmatprep.subr.mxu0 0.0
      %3472 = vmatpush1.msra.mxu0 %v2727
      %3473 = vmatprep.subr.mxu0 0.0
      %3474 = vmatpush2.msra.mxu0 0.0
      %3475 = vmatprep.subr.mxu0 0.0
      %3476 = vmatpush2.msra.mxu0 0.0
      %3477 = vmatprep.subr.mxu0 0.0
      %3478 = vmatpush2.msra.mxu0 0.0
      %3479 = vmatprep.subr.mxu0 0.0
      %3480 = vmatpush2.msra.mxu0 0.0
      %3481 = vmatprep.subr.mxu0 0.0
      %3482 = vmatpush2.msra.mxu0 0.0
      %3483 = vmatprep.subr.mxu0 0.0
      %3484 = vmatpush2.msra.mxu0 0.0
      %3485 = vmatprep.subr.mxu0 0.0
      %3486 = vmatpush2.msra.mxu0 0.0
      %3487 = vmatprep.subr.mxu0 0.0
      %3488 = vmatpush2.msra.mxu0 0.0
      %3489 = vmatprep.subr.mxu0 0.0
      %3490 = vmatpush2.msra.mxu0 0.0
      %3491 = vmatprep.subr.mxu0 0.0
      %3492 = vmatpush2.msra.mxu0 0.0
      %3493 = vmatprep.subr.mxu0 0.0
      %3494 = vmatpush2.msra.mxu0 0.0
      %3495 = vmatprep.subr.mxu0 0.0
      %3496 = vmatpush2.msra.mxu0 0.0
      %3497 = vmatprep.subr.mxu0 0.0
      %3498 = vmatpush2.msra.mxu0 0.0
      %3499 = vmatprep.subr.mxu0 0.0
      %3500 = vmatpush2.msra.mxu0 0.0
      %3501 = vmatprep.subr.mxu0 0.0
      %3502 = vmatpush2.msra.mxu0 0.0
      %3503 = vmatprep.subr.mxu0 0.0
      %3504 = vmatpush2.msra.mxu0 0.0
      %3505 = vmatprep.mubr.f32.mxu0 0.0
      %3506 = vmatmul.mubr.f32.gmra.mxu0 %v3433
      %v3507 = vpop.f32.mrf.mxu0
      %v3508 = vadd.f32 0.0, %v3507
      %v3509 = vpop.f32.mrf.mxu0
      %3510 = vmatprep.mubr.f32.mxu0 0.0
      %3511 = vmatmul.mubr.f32.gmra.mxu0 %v3436
      %v3512 = vpop.f32.mrf.mxu0
      %v3513 = vadd.f32 0.0, %v3512
      %v3514 = vpop.f32.mrf.mxu0
      %3515 = vmatprep.mubr.f32.mxu0 0.0
      %3516 = vmatmul.mubr.f32.gmra.mxu0 %v3439
      %v3517 = vpop.f32.mrf.mxu0
      %v3518 = vadd.f32 0.0, %v3517
      %v3519 = vpop.f32.mrf.mxu0
      %3520 = vdwg.mxu0
      %3521 = vmatprep.subr.mxu0 0.0
      %3522 = vmatpush1.msra.mxu0 0.0
      %3523 = vmatprep.subr.mxu0 0.0
      %3524 = vmatpush1.msra.mxu0 0.0
      %3525 = vmatprep.subr.mxu0 0.0
      %3526 = vmatpush1.msra.mxu0 0.0
      %3527 = vmatprep.subr.mxu0 0.0
      %3528 = vmatpush1.msra.mxu0 0.0
      %3529 = vmatprep.subr.mxu0 0.0
      %3530 = vmatpush1.msra.mxu0 0.0
      %3531 = vmatprep.subr.mxu0 0.0
      %3532 = vmatpush1.msra.mxu0 0.0
      %3533 = vmatprep.subr.mxu0 0.0
      %3534 = vmatpush1.msra.mxu0 0.0
      %3535 = vmatprep.subr.mxu0 0.0
      %3536 = vmatpush1.msra.mxu0 0.0
      %3537 = vmatprep.subr.mxu0 0.0
      %3538 = vmatpush1.msra.mxu0 0.0
      %3539 = vmatprep.subr.mxu0 0.0
      %3540 = vmatpush1.msra.mxu0 0.0
      %3541 = vmatprep.subr.mxu0 0.0
      %3542 = vmatpush1.msra.mxu0 0.0
      %3543 = vmatprep.subr.mxu0 0.0
      %3544 = vmatpush1.msra.mxu0 0.0
      %3545 = vmatprep.subr.mxu0 0.0
      %3546 = vmatpush1.msra.mxu0 %v2859
      %3547 = vmatprep.subr.mxu0 0.0
      %3548 = vmatpush1.msra.mxu0 %v2858
      %3549 = vmatprep.subr.mxu0 0.0
      %3550 = vmatpush1.msra.mxu0 %v2857
      %3551 = vmatprep.subr.mxu0 0.0
      %3552 = vmatpush1.msra.mxu0 %v2856
      %3553 = vmatprep.subr.mxu0 0.0
      %3554 = vmatpush2.msra.mxu0 0.0
      %3555 = vmatprep.subr.mxu0 0.0
      %3556 = vmatpush2.msra.mxu0 0.0
      %3557 = vmatprep.subr.mxu0 0.0
      %3558 = vmatpush2.msra.mxu0 0.0
      %3559 = vmatprep.subr.mxu0 0.0
      %3560 = vmatpush2.msra.mxu0 0.0
      %3561 = vmatprep.subr.mxu0 0.0
      %3562 = vmatpush2.msra.mxu0 0.0
      %3563 = vmatprep.subr.mxu0 0.0
      %3564 = vmatpush2.msra.mxu0 0.0
      %3565 = vmatprep.subr.mxu0 0.0
      %3566 = vmatpush2.msra.mxu0 0.0
      %3567 = vmatprep.subr.mxu0 0.0
      %3568 = vmatpush2.msra.mxu0 0.0
      %3569 = vmatprep.subr.mxu0 0.0
      %3570 = vmatpush2.msra.mxu0 0.0
      %3571 = vmatprep.subr.mxu0 0.0
      %3572 = vmatpush2.msra.mxu0 0.0
      %3573 = vmatprep.subr.mxu0 0.0
      %3574 = vmatpush2.msra.mxu0 0.0
      %3575 = vmatprep.subr.mxu0 0.0
      %3576 = vmatpush2.msra.mxu0 0.0
      %3577 = vmatprep.subr.mxu0 0.0
      %3578 = vmatpush2.msra.mxu0 0.0
      %3579 = vmatprep.subr.mxu0 0.0
      %3580 = vmatpush2.msra.mxu0 0.0
      %3581 = vmatprep.subr.mxu0 0.0
      %3582 = vmatpush2.msra.mxu0 0.0
      %3583 = vmatprep.subr.mxu0 0.0
      %3584 = vmatpush2.msra.mxu0 0.0
      %3585 = vmatprep.mubr.f32.mxu0 0.0
      %3586 = vmatmul.mubr.f32.gmra.mxu0 %v3433
      %v3587 = vpop.f32.mrf.mxu0
      %v3588 = vadd.f32 0.0, %v3587
      %v3589 = vpop.f32.mrf.mxu0
      %3590 = vmatprep.mubr.f32.mxu0 0.0
      %3591 = vmatmul.mubr.f32.gmra.mxu0 %v3436
      %v3592 = vpop.f32.mrf.mxu0
      %v3593 = vadd.f32 0.0, %v3592
      %v3594 = vpop.f32.mrf.mxu0
      %3595 = vmatprep.mubr.f32.mxu0 0.0
      %3596 = vmatmul.mubr.f32.gmra.mxu0 %v3439
      %v3597 = vpop.f32.mrf.mxu0
      %v3598 = vadd.f32 0.0, %v3597
      %v3599 = vpop.f32.mrf.mxu0
      %3600 = vdwg.mxu0
      %v3601 = vmax.f32 %v3508, %v3588
      %v3602 = vmax.f32 %v3513, %v3593
      %v3603 = vmax.f32 %v3518, %v3598
      %3604 = vmatprep.subr.mxu0 0.0
      %3605 = vmatpush1.msra.mxu0 0.0
      %3606 = vmatprep.subr.mxu0 0.0
      %3607 = vmatpush1.msra.mxu0 0.0
      %3608 = vmatprep.subr.mxu0 0.0
      %3609 = vmatpush1.msra.mxu0 0.0
      %3610 = vmatprep.subr.mxu0 0.0
      %3611 = vmatpush1.msra.mxu0 0.0
      %3612 = vmatprep.subr.mxu0 0.0
      %3613 = vmatpush1.msra.mxu0 0.0
      %3614 = vmatprep.subr.mxu0 0.0
      %3615 = vmatpush1.msra.mxu0 0.0
      %3616 = vmatprep.subr.mxu0 0.0
      %3617 = vmatpush1.msra.mxu0 0.0
      %3618 = vmatprep.subr.mxu0 0.0
      %3619 = vmatpush1.msra.mxu0 0.0
      %3620 = vmatprep.subr.mxu0 0.0
      %3621 = vmatpush1.msra.mxu0 0.0
      %3622 = vmatprep.subr.mxu0 0.0
      %3623 = vmatpush1.msra.mxu0 0.0
      %3624 = vmatprep.subr.mxu0 0.0
      %3625 = vmatpush1.msra.mxu0 0.0
      %3626 = vmatprep.subr.mxu0 0.0
      %3627 = vmatpush1.msra.mxu0 0.0
      %3628 = vmatprep.subr.mxu0 0.0
      %3629 = vmatpush1.msra.mxu0 %v2991
      %3630 = vmatprep.subr.mxu0 0.0
      %3631 = vmatpush1.msra.mxu0 %v2990
      %3632 = vmatprep.subr.mxu0 0.0
      %3633 = vmatpush1.msra.mxu0 %v2989
      %3634 = vmatprep.subr.mxu0 0.0
      %3635 = vmatpush1.msra.mxu0 %v2988
      %3636 = vmatprep.subr.mxu0 0.0
      %3637 = vmatpush2.msra.mxu0 0.0
      %3638 = vmatprep.subr.mxu0 0.0
      %3639 = vmatpush2.msra.mxu0 0.0
      %3640 = vmatprep.subr.mxu0 0.0
      %3641 = vmatpush2.msra.mxu0 0.0
      %3642 = vmatprep.subr.mxu0 0.0
      %3643 = vmatpush2.msra.mxu0 0.0
      %3644 = vmatprep.subr.mxu0 0.0
      %3645 = vmatpush2.msra.mxu0 0.0
      %3646 = vmatprep.subr.mxu0 0.0
      %3647 = vmatpush2.msra.mxu0 0.0
      %3648 = vmatprep.subr.mxu0 0.0
      %3649 = vmatpush2.msra.mxu0 0.0
      %3650 = vmatprep.subr.mxu0 0.0
      %3651 = vmatpush2.msra.mxu0 0.0
      %3652 = vmatprep.subr.mxu0 0.0
      %3653 = vmatpush2.msra.mxu0 0.0
      %3654 = vmatprep.subr.mxu0 0.0
      %3655 = vmatpush2.msra.mxu0 0.0
      %3656 = vmatprep.subr.mxu0 0.0
      %3657 = vmatpush2.msra.mxu0 0.0
      %3658 = vmatprep.subr.mxu0 0.0
      %3659 = vmatpush2.msra.mxu0 0.0
      %3660 = vmatprep.subr.mxu0 0.0
      %3661 = vmatpush2.msra.mxu0 0.0
      %3662 = vmatprep.subr.mxu0 0.0
      %3663 = vmatpush2.msra.mxu0 0.0
      %3664 = vmatprep.subr.mxu0 0.0
      %3665 = vmatpush2.msra.mxu0 0.0
      %3666 = vmatprep.subr.mxu0 0.0
      %3667 = vmatpush2.msra.mxu0 0.0
      %3668 = vmatprep.mubr.f32.mxu0 0.0
      %3669 = vmatmul.mubr.f32.gmra.mxu0 %v3433
      %v3670 = vpop.f32.mrf.mxu0
      %v3671 = vadd.f32 0.0, %v3670
      %v3672 = vpop.f32.mrf.mxu0
      %3673 = vmatprep.mubr.f32.mxu0 0.0
      %3674 = vmatmul.mubr.f32.gmra.mxu0 %v3436
      %v3675 = vpop.f32.mrf.mxu0
      %v3676 = vadd.f32 0.0, %v3675
      %v3677 = vpop.f32.mrf.mxu0
      %3678 = vmatprep.mubr.f32.mxu0 0.0
      %3679 = vmatmul.mubr.f32.gmra.mxu0 %v3439
      %v3680 = vpop.f32.mrf.mxu0
      %v3681 = vadd.f32 0.0, %v3680
      %v3682 = vpop.f32.mrf.mxu0
      %3683 = vdwg.mxu0
      %v3684 = vmax.f32 %v3601, %v3671
      %v3685 = vmax.f32 %v3602, %v3676
      %v3686 = vmax.f32 %v3603, %v3681
      %3687 = vmatprep.subr.mxu0 0.0
      %3688 = vmatpush1.msra.mxu0 0.0
      %3689 = vmatprep.subr.mxu0 0.0
      %3690 = vmatpush1.msra.mxu0 0.0
      %3691 = vmatprep.subr.mxu0 0.0
      %3692 = vmatpush1.msra.mxu0 0.0
      %3693 = vmatprep.subr.mxu0 0.0
      %3694 = vmatpush1.msra.mxu0 0.0
      %3695 = vmatprep.subr.mxu0 0.0
      %3696 = vmatpush1.msra.mxu0 0.0
      %3697 = vmatprep.subr.mxu0 0.0
      %3698 = vmatpush1.msra.mxu0 0.0
      %3699 = vmatprep.subr.mxu0 0.0
      %3700 = vmatpush1.msra.mxu0 0.0
      %3701 = vmatprep.subr.mxu0 0.0
      %3702 = vmatpush1.msra.mxu0 0.0
      %3703 = vmatprep.subr.mxu0 0.0
      %3704 = vmatpush1.msra.mxu0 0.0
      %3705 = vmatprep.subr.mxu0 0.0
      %3706 = vmatpush1.msra.mxu0 0.0
      %3707 = vmatprep.subr.mxu0 0.0
      %3708 = vmatpush1.msra.mxu0 0.0
      %3709 = vmatprep.subr.mxu0 0.0
      %3710 = vmatpush1.msra.mxu0 0.0
      %3711 = vmatprep.subr.mxu0 0.0
      %3712 = vmatpush1.msra.mxu0 %v3123
      %3713 = vmatprep.subr.mxu0 0.0
      %3714 = vmatpush1.msra.mxu0 %v3122
      %3715 = vmatprep.subr.mxu0 0.0
      %3716 = vmatpush1.msra.mxu0 %v3121
      %3717 = vmatprep.subr.mxu0 0.0
      %3718 = vmatpush1.msra.mxu0 %v3120
      %3719 = vmatprep.subr.mxu0 0.0
      %3720 = vmatpush2.msra.mxu0 0.0
      %3721 = vmatprep.subr.mxu0 0.0
      %3722 = vmatpush2.msra.mxu0 0.0
      %3723 = vmatprep.subr.mxu0 0.0
      %3724 = vmatpush2.msra.mxu0 0.0
      %3725 = vmatprep.subr.mxu0 0.0
      %3726 = vmatpush2.msra.mxu0 0.0
      %3727 = vmatprep.subr.mxu0 0.0
      %3728 = vmatpush2.msra.mxu0 0.0
      %3729 = vmatprep.subr.mxu0 0.0
      %3730 = vmatpush2.msra.mxu0 0.0
      %3731 = vmatprep.subr.mxu0 0.0
      %3732 = vmatpush2.msra.mxu0 0.0
      %3733 = vmatprep.subr.mxu0 0.0
      %3734 = vmatpush2.msra.mxu0 0.0
      %3735 = vmatprep.subr.mxu0 0.0
      %3736 = vmatpush2.msra.mxu0 0.0
      %3737 = vmatprep.subr.mxu0 0.0
      %3738 = vmatpush2.msra.mxu0 0.0
      %3739 = vmatprep.subr.mxu0 0.0
      %3740 = vmatpush2.msra.mxu0 0.0
      %3741 = vmatprep.subr.mxu0 0.0
      %3742 = vmatpush2.msra.mxu0 0.0
      %3743 = vmatprep.subr.mxu0 0.0
      %3744 = vmatpush2.msra.mxu0 0.0
      %3745 = vmatprep.subr.mxu0 0.0
      %3746 = vmatpush2.msra.mxu0 0.0
      %3747 = vmatprep.subr.mxu0 0.0
      %3748 = vmatpush2.msra.mxu0 0.0
      %3749 = vmatprep.subr.mxu0 0.0
      %3750 = vmatpush2.msra.mxu0 0.0
      %3751 = vmatprep.mubr.f32.mxu0 0.0
      %3752 = vmatmul.mubr.f32.gmra.mxu0 %v3433
      %v3753 = vpop.f32.mrf.mxu0
      %v3754 = vadd.f32 0.0, %v3753
      %v3755 = vpop.f32.mrf.mxu0
      %3756 = vmatprep.mubr.f32.mxu0 0.0
      %3757 = vmatmul.mubr.f32.gmra.mxu0 %v3436
      %v3758 = vpop.f32.mrf.mxu0
      %v3759 = vadd.f32 0.0, %v3758
      %v3760 = vpop.f32.mrf.mxu0
      %3761 = vmatprep.mubr.f32.mxu0 0.0
      %3762 = vmatmul.mubr.f32.gmra.mxu0 %v3439
      %v3763 = vpop.f32.mrf.mxu0
      %v3764 = vadd.f32 0.0, %v3763
      %v3765 = vpop.f32.mrf.mxu0
      %3766 = vdwg.mxu0
      %v3767 = vmax.f32 %v3684, %v3754
      %v3768 = vmax.f32 %v3685, %v3759
      %v3769 = vmax.f32 %v3686, %v3764
      %v3770 = vld [vmem:[%s27] sm:$0xff]
      %v3771 = vld [vmem:[%s27 + $0x8] sm:$0xff]
      %v3772 = vld [vmem:[%s27 + $0x10] sm:$0xff]
      %v3773 = vld [vmem:[%s27 + $0x18] sm:$0xff]
      %v3774 = vld [vmem:[%s27 + $0x20] sm:$0xff]
      %v3775 = vld [vmem:[%s27 + $0x28] sm:$0xff]
      %v3776 = vld [vmem:[%s27 + $0x30] sm:$0xff]
      %v3777 = vld [vmem:[%s27 + $0x38] sm:$0xff]
      %v3778 = vld [vmem:[%s27 + $0x40] sm:$0xff]
      %v3779 = vld [vmem:[%s27 + $0x48] sm:$0xff]
      %v3780 = vld [vmem:[%s27 + $0x50] sm:$0xff]
      %v3781 = vld [vmem:[%s27 + $0x58] sm:$0xff]
      %vm3782 = vcmask 195584
      %v3784 = vsel %vm3782, %v3770, 0
      %v3787 = vsel %vm3782, %v3771, 0
      %v3790 = vsel %vm3782, %v3772, 0
      %3792 = vmatprep.subr.mxu0 0.0
      %3793 = vmatpush1.msra.mxu0 0.0
      %3794 = vmatprep.subr.mxu0 0.0
      %3795 = vmatpush1.msra.mxu0 0.0
      %3796 = vmatprep.subr.mxu0 0.0
      %3797 = vmatpush1.msra.mxu0 0.0
      %3798 = vmatprep.subr.mxu0 0.0
      %3799 = vmatpush1.msra.mxu0 0.0
      %3800 = vmatprep.subr.mxu0 0.0
      %3801 = vmatpush1.msra.mxu0 0.0
      %3802 = vmatprep.subr.mxu0 0.0
      %3803 = vmatpush1.msra.mxu0 0.0
      %3804 = vmatprep.subr.mxu0 0.0
      %3805 = vmatpush1.msra.mxu0 0.0
      %3806 = vmatprep.subr.mxu0 0.0
      %3807 = vmatpush1.msra.mxu0 0.0
      %3808 = vmatprep.subr.mxu0 0.0
      %3809 = vmatpush1.msra.mxu0 0.0
      %3810 = vmatprep.subr.mxu0 0.0
      %3811 = vmatpush1.msra.mxu0 0.0
      %3812 = vmatprep.subr.mxu0 0.0
      %3813 = vmatpush1.msra.mxu0 0.0
      %3814 = vmatprep.subr.mxu0 0.0
      %3815 = vmatpush1.msra.mxu0 0.0
      %3816 = vmatprep.subr.mxu0 0.0
      %3817 = vmatpush1.msra.mxu0 0.0
      %3818 = vmatprep.subr.mxu0 0.0
      %3819 = vmatpush1.msra.mxu0 %v3769
      %3820 = vmatprep.subr.mxu0 0.0
      %3821 = vmatpush1.msra.mxu0 %v3768
      %3822 = vmatprep.subr.mxu0 0.0
      %3823 = vmatpush1.msra.mxu0 %v3767
      %3824 = vmatprep.subr.mxu0 0.0
      %3825 = vmatpush2.msra.mxu0 0.0
      %3826 = vmatprep.subr.mxu0 0.0
      %3827 = vmatpush2.msra.mxu0 0.0
      %3828 = vmatprep.subr.mxu0 0.0
      %3829 = vmatpush2.msra.mxu0 0.0
      %3830 = vmatprep.subr.mxu0 0.0
      %3831 = vmatpush2.msra.mxu0 0.0
      %3832 = vmatprep.subr.mxu0 0.0
      %3833 = vmatpush2.msra.mxu0 0.0
      %3834 = vmatprep.subr.mxu0 0.0
      %3835 = vmatpush2.msra.mxu0 0.0
      %3836 = vmatprep.subr.mxu0 0.0
      %3837 = vmatpush2.msra.mxu0 0.0
      %3838 = vmatprep.subr.mxu0 0.0
      %3839 = vmatpush2.msra.mxu0 0.0
      %3840 = vmatprep.subr.mxu0 0.0
      %3841 = vmatpush2.msra.mxu0 0.0
      %3842 = vmatprep.subr.mxu0 0.0
      %3843 = vmatpush2.msra.mxu0 0.0
      %3844 = vmatprep.subr.mxu0 0.0
      %3845 = vmatpush2.msra.mxu0 0.0
      %3846 = vmatprep.subr.mxu0 0.0
      %3847 = vmatpush2.msra.mxu0 0.0
      %3848 = vmatprep.subr.mxu0 0.0
      %3849 = vmatpush2.msra.mxu0 0.0
      %3850 = vmatprep.subr.mxu0 0.0
      %3851 = vmatpush2.msra.mxu0 0.0
      %3852 = vmatprep.subr.mxu0 0.0
      %3853 = vmatpush2.msra.mxu0 0.0
      %3854 = vmatprep.subr.mxu0 0.0
      %3855 = vmatpush2.msra.mxu0 0.0
      %3856 = vmatprep.mubr.f32.mxu0 0.0
      %3857 = vmatmul.mubr.f32.gmra.mxu0 %v3784
      %v3858 = vpop.f32.mrf.mxu0
      %v3859 = vadd.f32 0.0, %v3858
      %v3860 = vpop.f32.mrf.mxu0
      %3861 = vmatprep.mubr.f32.mxu0 0.0
      %3862 = vmatmul.mubr.f32.gmra.mxu0 %v3787
      %v3863 = vpop.f32.mrf.mxu0
      %v3864 = vadd.f32 0.0, %v3863
      %v3865 = vpop.f32.mrf.mxu0
      %3866 = vmatprep.mubr.f32.mxu0 0.0
      %3867 = vmatmul.mubr.f32.gmra.mxu0 %v3790
      %v3868 = vpop.f32.mrf.mxu0
      %v3869 = vadd.f32 0.0, %v3868
      %v3870 = vpop.f32.mrf.mxu0
      %3871 = vdwg.mxu0
      %v3872 = vmul.u32 %v1986, 4
      %vm3873 = vcmp.eq.s32.totalorder %v2019, %v3872
      %v3874 = vsel %vm3873, 1, 0
      %v3875 = vcvt.s32.f32 %v3874
      %v3877 = vsel %vm3782, %v3773, 0
      %v3880 = vsel %vm3782, %v3774, 0
      %v3883 = vsel %vm3782, %v3775, 0
      %3885 = vmatprep.subr.mxu0 0.0
      %3886 = vmatpush1.msra.mxu0 0.0
      %3887 = vmatprep.subr.mxu0 0.0
      %3888 = vmatpush1.msra.mxu0 0.0
      %3889 = vmatprep.subr.mxu0 0.0
      %3890 = vmatpush1.msra.mxu0 0.0
      %3891 = vmatprep.subr.mxu0 0.0
      %3892 = vmatpush1.msra.mxu0 0.0
      %3893 = vmatprep.subr.mxu0 0.0
      %3894 = vmatpush1.msra.mxu0 0.0
      %3895 = vmatprep.subr.mxu0 0.0
      %3896 = vmatpush1.msra.mxu0 0.0
      %3897 = vmatprep.subr.mxu0 0.0
      %3898 = vmatpush1.msra.mxu0 0.0
      %3899 = vmatprep.subr.mxu0 0.0
      %3900 = vmatpush1.msra.mxu0 0.0
      %3901 = vmatprep.subr.mxu0 0.0
      %3902 = vmatpush1.msra.mxu0 0.0
      %3903 = vmatprep.subr.mxu0 0.0
      %3904 = vmatpush1.msra.mxu0 0.0
      %3905 = vmatprep.subr.mxu0 0.0
      %3906 = vmatpush1.msra.mxu0 0.0
      %3907 = vmatprep.subr.mxu0 0.0
      %3908 = vmatpush1.msra.mxu0 0.0
      %3909 = vmatprep.subr.mxu0 0.0
      %3910 = vmatpush1.msra.mxu0 0.0
      %3911 = vmatprep.subr.mxu0 0.0
      %3912 = vmatpush1.msra.mxu0 %v3769
      %3913 = vmatprep.subr.mxu0 0.0
      %3914 = vmatpush1.msra.mxu0 %v3768
      %3915 = vmatprep.subr.mxu0 0.0
      %3916 = vmatpush1.msra.mxu0 %v3767
      %3917 = vmatprep.subr.mxu0 0.0
      %3918 = vmatpush2.msra.mxu0 0.0
      %3919 = vmatprep.subr.mxu0 0.0
      %3920 = vmatpush2.msra.mxu0 0.0
      %3921 = vmatprep.subr.mxu0 0.0
      %3922 = vmatpush2.msra.mxu0 0.0
      %3923 = vmatprep.subr.mxu0 0.0
      %3924 = vmatpush2.msra.mxu0 0.0
      %3925 = vmatprep.subr.mxu0 0.0
      %3926 = vmatpush2.msra.mxu0 0.0
      %3927 = vmatprep.subr.mxu0 0.0
      %3928 = vmatpush2.msra.mxu0 0.0
      %3929 = vmatprep.subr.mxu0 0.0
      %3930 = vmatpush2.msra.mxu0 0.0
      %3931 = vmatprep.subr.mxu0 0.0
      %3932 = vmatpush2.msra.mxu0 0.0
      %3933 = vmatprep.subr.mxu0 0.0
      %3934 = vmatpush2.msra.mxu0 0.0
      %3935 = vmatprep.subr.mxu0 0.0
      %3936 = vmatpush2.msra.mxu0 0.0
      %3937 = vmatprep.subr.mxu0 0.0
      %3938 = vmatpush2.msra.mxu0 0.0
      %3939 = vmatprep.subr.mxu0 0.0
      %3940 = vmatpush2.msra.mxu0 0.0
      %3941 = vmatprep.subr.mxu0 0.0
      %3942 = vmatpush2.msra.mxu0 0.0
      %3943 = vmatprep.subr.mxu0 0.0
      %3944 = vmatpush2.msra.mxu0 0.0
      %3945 = vmatprep.subr.mxu0 0.0
      %3946 = vmatpush2.msra.mxu0 0.0
      %3947 = vmatprep.subr.mxu0 0.0
      %3948 = vmatpush2.msra.mxu0 0.0
      %3949 = vmatprep.mubr.f32.mxu0 0.0
      %3950 = vmatmul.mubr.f32.gmra.mxu0 %v3877
      %v3951 = vpop.f32.mrf.mxu0
      %v3952 = vadd.f32 0.0, %v3951
      %v3953 = vpop.f32.mrf.mxu0
      %3954 = vmatprep.mubr.f32.mxu0 0.0
      %3955 = vmatmul.mubr.f32.gmra.mxu0 %v3880
      %v3956 = vpop.f32.mrf.mxu0
      %v3957 = vadd.f32 0.0, %v3956
      %v3958 = vpop.f32.mrf.mxu0
      %3959 = vmatprep.mubr.f32.mxu0 0.0
      %3960 = vmatmul.mubr.f32.gmra.mxu0 %v3883
      %v3961 = vpop.f32.mrf.mxu0
      %v3962 = vadd.f32 0.0, %v3961
      %v3963 = vpop.f32.mrf.mxu0
      %3964 = vdwg.mxu0
      %v3965 = vadd.s32 %v3872, 1
      %vm3966 = vcmp.eq.s32.totalorder %v2019, %v3965
      %v3967 = vsel %vm3966, 1, 0
      %v3968 = vcvt.s32.f32 %v3967
      %vm3969 = vcmask 64512
      %v3971 = vsel %vm3969, %v3952, 0
      %v3974 = vsel %vm3969, %v3957, 0
      %v3977 = vsel %vm3969, %v3962, 0
      %3979 = vmatprep.subr.mxu0 0.0
      %3980 = vmatpush1.msra.mxu0 0.0
      %3981 = vmatprep.subr.mxu0 0.0
      %3982 = vmatpush1.msra.mxu0 0.0
      %3983 = vmatprep.subr.mxu0 0.0
      %3984 = vmatpush1.msra.mxu0 0.0
      %3985 = vmatprep.subr.mxu0 0.0
      %3986 = vmatpush1.msra.mxu0 0.0
      %3987 = vmatprep.subr.mxu0 0.0
      %3988 = vmatpush1.msra.mxu0 0.0
      %3989 = vmatprep.subr.mxu0 0.0
      %3990 = vmatpush1.msra.mxu0 0.0
      %3991 = vmatprep.subr.mxu0 0.0
      %3992 = vmatpush1.msra.mxu0 0.0
      %3993 = vmatprep.subr.mxu0 0.0
      %3994 = vmatpush1.msra.mxu0 0.0
      %3995 = vmatprep.subr.mxu0 0.0
      %3996 = vmatpush1.msra.mxu0 0.0
      %3997 = vmatprep.subr.mxu0 0.0
      %3998 = vmatpush1.msra.mxu0 0.0
      %3999 = vmatprep.subr.mxu0 0.0
      %4000 = vmatpush1.msra.mxu0 0.0
      %4001 = vmatprep.subr.mxu0 0.0
      %4002 = vmatpush1.msra.mxu0 0.0
      %4003 = vmatprep.subr.mxu0 0.0
      %4004 = vmatpush1.msra.mxu0 0.0
      %4005 = vmatprep.subr.mxu0 0.0
      %4006 = vmatpush1.msra.mxu0 0.0
      %4007 = vmatprep.subr.mxu0 0.0
      %4008 = vmatpush1.msra.mxu0 0.0
      %4009 = vmatprep.subr.mxu0 0.0
      %4010 = vmatpush1.msra.mxu0 %v3968
      %4011 = vmatprep.subr.mxu0 0.0
      %4012 = vmatpush2.msra.mxu0 0.0
      %4013 = vmatprep.subr.mxu0 0.0
      %4014 = vmatpush2.msra.mxu0 0.0
      %4015 = vmatprep.subr.mxu0 0.0
      %4016 = vmatpush2.msra.mxu0 0.0
      %4017 = vmatprep.subr.mxu0 0.0
      %4018 = vmatpush2.msra.mxu0 0.0
      %4019 = vmatprep.subr.mxu0 0.0
      %4020 = vmatpush2.msra.mxu0 0.0
      %4021 = vmatprep.subr.mxu0 0.0
      %4022 = vmatpush2.msra.mxu0 0.0
      %4023 = vmatprep.subr.mxu0 0.0
      %4024 = vmatpush2.msra.mxu0 0.0
      %4025 = vmatprep.subr.mxu0 0.0
      %4026 = vmatpush2.msra.mxu0 0.0
      %4027 = vmatprep.subr.mxu0 0.0
      %4028 = vmatpush2.msra.mxu0 0.0
      %4029 = vmatprep.subr.mxu0 0.0
      %4030 = vmatpush2.msra.mxu0 0.0
      %4031 = vmatprep.subr.mxu0 0.0
      %4032 = vmatpush2.msra.mxu0 0.0
      %4033 = vmatprep.subr.mxu0 0.0
      %4034 = vmatpush2.msra.mxu0 0.0
      %4035 = vmatprep.subr.mxu0 0.0
      %4036 = vmatpush2.msra.mxu0 0.0
      %4037 = vmatprep.subr.mxu0 0.0
      %4038 = vmatpush2.msra.mxu0 0.0
      %4039 = vmatprep.subr.mxu0 0.0
      %4040 = vmatpush2.msra.mxu0 0.0
      %4041 = vmatprep.subr.mxu0 0.0
      %4042 = vmatpush2.msra.mxu0 0.0
      %4043 = vmatprep.mubr.f32.mxu0 0.0
      %4044 = vmatmul.mubr.f32.gmra.mxu0 %v3971
      %v4045 = vpop.f32.mrf.mxu0
      %v4046 = vadd.f32 0.0, %v4045
      %v4047 = vpop.f32.mrf.mxu0
      %4048 = vmatprep.mubr.f32.mxu0 0.0
      %4049 = vmatmul.mubr.f32.gmra.mxu0 %v3974
      %v4050 = vpop.f32.mrf.mxu0
      %v4051 = vadd.f32 0.0, %v4050
      %v4052 = vpop.f32.mrf.mxu0
      %4053 = vmatprep.mubr.f32.mxu0 0.0
      %4054 = vmatmul.mubr.f32.gmra.mxu0 %v3977
      %v4055 = vpop.f32.mrf.mxu0
      %v4056 = vadd.f32 0.0, %v4055
      %v4057 = vpop.f32.mrf.mxu0
      %4058 = vdwg.mxu0
      %v4060 = vsel %vm3969, %v3859, 0
      %v4063 = vsel %vm3969, %v3864, 0
      %v4066 = vsel %vm3969, %v3869, 0
      %4068 = vmatprep.subr.mxu0 0.0
      %4069 = vmatpush1.msra.mxu0 0.0
      %4070 = vmatprep.subr.mxu0 0.0
      %4071 = vmatpush1.msra.mxu0 0.0
      %4072 = vmatprep.subr.mxu0 0.0
      %4073 = vmatpush1.msra.mxu0 0.0
      %4074 = vmatprep.subr.mxu0 0.0
      %4075 = vmatpush1.msra.mxu0 0.0
      %4076 = vmatprep.subr.mxu0 0.0
      %4077 = vmatpush1.msra.mxu0 0.0
      %4078 = vmatprep.subr.mxu0 0.0
      %4079 = vmatpush1.msra.mxu0 0.0
      %4080 = vmatprep.subr.mxu0 0.0
      %4081 = vmatpush1.msra.mxu0 0.0
      %4082 = vmatprep.subr.mxu0 0.0
      %4083 = vmatpush1.msra.mxu0 0.0
      %4084 = vmatprep.subr.mxu0 0.0
      %4085 = vmatpush1.msra.mxu0 0.0
      %4086 = vmatprep.subr.mxu0 0.0
      %4087 = vmatpush1.msra.mxu0 0.0
      %4088 = vmatprep.subr.mxu0 0.0
      %4089 = vmatpush1.msra.mxu0 0.0
      %4090 = vmatprep.subr.mxu0 0.0
      %4091 = vmatpush1.msra.mxu0 0.0
      %4092 = vmatprep.subr.mxu0 0.0
      %4093 = vmatpush1.msra.mxu0 0.0
      %4094 = vmatprep.subr.mxu0 0.0
      %4095 = vmatpush1.msra.mxu0 0.0
      %4096 = vmatprep.subr.mxu0 0.0
      %4097 = vmatpush1.msra.mxu0 0.0
      %4098 = vmatprep.subr.mxu0 0.0
      %4099 = vmatpush1.msra.mxu0 %v3875
      %4100 = vmatprep.subr.mxu0 0.0
      %4101 = vmatpush2.msra.mxu0 0.0
      %4102 = vmatprep.subr.mxu0 0.0
      %4103 = vmatpush2.msra.mxu0 0.0
      %4104 = vmatprep.subr.mxu0 0.0
      %4105 = vmatpush2.msra.mxu0 0.0
      %4106 = vmatprep.subr.mxu0 0.0
      %4107 = vmatpush2.msra.mxu0 0.0
      %4108 = vmatprep.subr.mxu0 0.0
      %4109 = vmatpush2.msra.mxu0 0.0
      %4110 = vmatprep.subr.mxu0 0.0
      %4111 = vmatpush2.msra.mxu0 0.0
      %4112 = vmatprep.subr.mxu0 0.0
      %4113 = vmatpush2.msra.mxu0 0.0
      %4114 = vmatprep.subr.mxu0 0.0
      %4115 = vmatpush2.msra.mxu0 0.0
      %4116 = vmatprep.subr.mxu0 0.0
      %4117 = vmatpush2.msra.mxu0 0.0
      %4118 = vmatprep.subr.mxu0 0.0
      %4119 = vmatpush2.msra.mxu0 0.0
      %4120 = vmatprep.subr.mxu0 0.0
      %4121 = vmatpush2.msra.mxu0 0.0
      %4122 = vmatprep.subr.mxu0 0.0
      %4123 = vmatpush2.msra.mxu0 0.0
      %4124 = vmatprep.subr.mxu0 0.0
      %4125 = vmatpush2.msra.mxu0 0.0
      %4126 = vmatprep.subr.mxu0 0.0
      %4127 = vmatpush2.msra.mxu0 0.0
      %4128 = vmatprep.subr.mxu0 0.0
      %4129 = vmatpush2.msra.mxu0 0.0
      %4130 = vmatprep.subr.mxu0 0.0
      %4131 = vmatpush2.msra.mxu0 0.0
      %4132 = vmatprep.mubr.f32.mxu0 0.0
      %4133 = vmatmul.mubr.f32.gmra.mxu0 %v4060
      %v4134 = vpop.f32.mrf.mxu0
      %v4135 = vadd.f32 %v4046, %v4134
      %v4136 = vpop.f32.mrf.mxu0
      %4137 = vmatprep.mubr.f32.mxu0 0.0
      %4138 = vmatmul.mubr.f32.gmra.mxu0 %v4063
      %v4139 = vpop.f32.mrf.mxu0
      %v4140 = vadd.f32 %v4051, %v4139
      %v4141 = vpop.f32.mrf.mxu0
      %4142 = vmatprep.mubr.f32.mxu0 0.0
      %4143 = vmatmul.mubr.f32.gmra.mxu0 %v4066
      %v4144 = vpop.f32.mrf.mxu0
      %v4145 = vadd.f32 %v4056, %v4144
      %v4146 = vpop.f32.mrf.mxu0
      %4147 = vdwg.mxu0
      %v4149 = vsel %vm3782, %v3776, 0
      %v4152 = vsel %vm3782, %v3777, 0
      %v4155 = vsel %vm3782, %v3778, 0
      %4157 = vmatprep.subr.mxu0 0.0
      %4158 = vmatpush1.msra.mxu0 0.0
      %4159 = vmatprep.subr.mxu0 0.0
      %4160 = vmatpush1.msra.mxu0 0.0
      %4161 = vmatprep.subr.mxu0 0.0
      %4162 = vmatpush1.msra.mxu0 0.0
      %4163 = vmatprep.subr.mxu0 0.0
      %4164 = vmatpush1.msra.mxu0 0.0
      %4165 = vmatprep.subr.mxu0 0.0
      %4166 = vmatpush1.msra.mxu0 0.0
      %4167 = vmatprep.subr.mxu0 0.0
      %4168 = vmatpush1.msra.mxu0 0.0
      %4169 = vmatprep.subr.mxu0 0.0
      %4170 = vmatpush1.msra.mxu0 0.0
      %4171 = vmatprep.subr.mxu0 0.0
      %4172 = vmatpush1.msra.mxu0 0.0
      %4173 = vmatprep.subr.mxu0 0.0
      %4174 = vmatpush1.msra.mxu0 0.0
      %4175 = vmatprep.subr.mxu0 0.0
      %4176 = vmatpush1.msra.mxu0 0.0
      %4177 = vmatprep.subr.mxu0 0.0
      %4178 = vmatpush1.msra.mxu0 0.0
      %4179 = vmatprep.subr.mxu0 0.0
      %4180 = vmatpush1.msra.mxu0 0.0
      %4181 = vmatprep.subr.mxu0 0.0
      %4182 = vmatpush1.msra.mxu0 0.0
      %4183 = vmatprep.subr.mxu0 0.0
      %4184 = vmatpush1.msra.mxu0 %v3769
      %4185 = vmatprep.subr.mxu0 0.0
      %4186 = vmatpush1.msra.mxu0 %v3768
      %4187 = vmatprep.subr.mxu0 0.0
      %4188 = vmatpush1.msra.mxu0 %v3767
      %4189 = vmatprep.subr.mxu0 0.0
      %4190 = vmatpush2.msra.mxu0 0.0
      %4191 = vmatprep.subr.mxu0 0.0
      %4192 = vmatpush2.msra.mxu0 0.0
      %4193 = vmatprep.subr.mxu0 0.0
      %4194 = vmatpush2.msra.mxu0 0.0
      %4195 = vmatprep.subr.mxu0 0.0
      %4196 = vmatpush2.msra.mxu0 0.0
      %4197 = vmatprep.subr.mxu0 0.0
      %4198 = vmatpush2.msra.mxu0 0.0
      %4199 = vmatprep.subr.mxu0 0.0
      %4200 = vmatpush2.msra.mxu0 0.0
      %4201 = vmatprep.subr.mxu0 0.0
      %4202 = vmatpush2.msra.mxu0 0.0
      %4203 = vmatprep.subr.mxu0 0.0
      %4204 = vmatpush2.msra.mxu0 0.0
      %4205 = vmatprep.subr.mxu0 0.0
      %4206 = vmatpush2.msra.mxu0 0.0
      %4207 = vmatprep.subr.mxu0 0.0
      %4208 = vmatpush2.msra.mxu0 0.0
      %4209 = vmatprep.subr.mxu0 0.0
      %4210 = vmatpush2.msra.mxu0 0.0
      %4211 = vmatprep.subr.mxu0 0.0
      %4212 = vmatpush2.msra.mxu0 0.0
      %4213 = vmatprep.subr.mxu0 0.0
      %4214 = vmatpush2.msra.mxu0 0.0
      %4215 = vmatprep.subr.mxu0 0.0
      %4216 = vmatpush2.msra.mxu0 0.0
      %4217 = vmatprep.subr.mxu0 0.0
      %4218 = vmatpush2.msra.mxu0 0.0
      %4219 = vmatprep.subr.mxu0 0.0
      %4220 = vmatpush2.msra.mxu0 0.0
      %4221 = vmatprep.mubr.f32.mxu0 0.0
      %4222 = vmatmul.mubr.f32.gmra.mxu0 %v4149
      %v4223 = vpop.f32.mrf.mxu0
      %v4224 = vadd.f32 0.0, %v4223
      %v4225 = vpop.f32.mrf.mxu0
      %4226 = vmatprep.mubr.f32.mxu0 0.0
      %4227 = vmatmul.mubr.f32.gmra.mxu0 %v4152
      %v4228 = vpop.f32.mrf.mxu0
      %v4229 = vadd.f32 0.0, %v4228
      %v4230 = vpop.f32.mrf.mxu0
      %4231 = vmatprep.mubr.f32.mxu0 0.0
      %4232 = vmatmul.mubr.f32.gmra.mxu0 %v4155
      %v4233 = vpop.f32.mrf.mxu0
      %v4234 = vadd.f32 0.0, %v4233
      %v4235 = vpop.f32.mrf.mxu0
      %4236 = vdwg.mxu0
      %v4237 = vadd.s32 %v3872, 2
      %vm4238 = vcmp.eq.s32.totalorder %v2019, %v4237
      %v4239 = vsel %vm4238, 1, 0
      %v4240 = vcvt.s32.f32 %v4239
      %v4242 = vsel %vm3969, %v4224, 0
      %v4245 = vsel %vm3969, %v4229, 0
      %v4248 = vsel %vm3969, %v4234, 0
      %4250 = vmatprep.subr.mxu0 0.0
      %4251 = vmatpush1.msra.mxu0 0.0
      %4252 = vmatprep.subr.mxu0 0.0
      %4253 = vmatpush1.msra.mxu0 0.0
      %4254 = vmatprep.subr.mxu0 0.0
      %4255 = vmatpush1.msra.mxu0 0.0
      %4256 = vmatprep.subr.mxu0 0.0
      %4257 = vmatpush1.msra.mxu0 0.0
      %4258 = vmatprep.subr.mxu0 0.0
      %4259 = vmatpush1.msra.mxu0 0.0
      %4260 = vmatprep.subr.mxu0 0.0
      %4261 = vmatpush1.msra.mxu0 0.0
      %4262 = vmatprep.subr.mxu0 0.0
      %4263 = vmatpush1.msra.mxu0 0.0
      %4264 = vmatprep.subr.mxu0 0.0
      %4265 = vmatpush1.msra.mxu0 0.0
      %4266 = vmatprep.subr.mxu0 0.0
      %4267 = vmatpush1.msra.mxu0 0.0
      %4268 = vmatprep.subr.mxu0 0.0
      %4269 = vmatpush1.msra.mxu0 0.0
      %4270 = vmatprep.subr.mxu0 0.0
      %4271 = vmatpush1.msra.mxu0 0.0
      %4272 = vmatprep.subr.mxu0 0.0
      %4273 = vmatpush1.msra.mxu0 0.0
      %4274 = vmatprep.subr.mxu0 0.0
      %4275 = vmatpush1.msra.mxu0 0.0
      %4276 = vmatprep.subr.mxu0 0.0
      %4277 = vmatpush1.msra.mxu0 0.0
      %4278 = vmatprep.subr.mxu0 0.0
      %4279 = vmatpush1.msra.mxu0 0.0
      %4280 = vmatprep.subr.mxu0 0.0
      %4281 = vmatpush1.msra.mxu0 %v4240
      %4282 = vmatprep.subr.mxu0 0.0
      %4283 = vmatpush2.msra.mxu0 0.0
      %4284 = vmatprep.subr.mxu0 0.0
      %4285 = vmatpush2.msra.mxu0 0.0
      %4286 = vmatprep.subr.mxu0 0.0
      %4287 = vmatpush2.msra.mxu0 0.0
      %4288 = vmatprep.subr.mxu0 0.0
      %4289 = vmatpush2.msra.mxu0 0.0
      %4290 = vmatprep.subr.mxu0 0.0
      %4291 = vmatpush2.msra.mxu0 0.0
      %4292 = vmatprep.subr.mxu0 0.0
      %4293 = vmatpush2.msra.mxu0 0.0
      %4294 = vmatprep.subr.mxu0 0.0
      %4295 = vmatpush2.msra.mxu0 0.0
      %4296 = vmatprep.subr.mxu0 0.0
      %4297 = vmatpush2.msra.mxu0 0.0
      %4298 = vmatprep.subr.mxu0 0.0
      %4299 = vmatpush2.msra.mxu0 0.0
      %4300 = vmatprep.subr.mxu0 0.0
      %4301 = vmatpush2.msra.mxu0 0.0
      %4302 = vmatprep.subr.mxu0 0.0
      %4303 = vmatpush2.msra.mxu0 0.0
      %4304 = vmatprep.subr.mxu0 0.0
      %4305 = vmatpush2.msra.mxu0 0.0
      %4306 = vmatprep.subr.mxu0 0.0
      %4307 = vmatpush2.msra.mxu0 0.0
      %4308 = vmatprep.subr.mxu0 0.0
      %4309 = vmatpush2.msra.mxu0 0.0
      %4310 = vmatprep.subr.mxu0 0.0
      %4311 = vmatpush2.msra.mxu0 0.0
      %4312 = vmatprep.subr.mxu0 0.0
      %4313 = vmatpush2.msra.mxu0 0.0
      %4314 = vmatprep.mubr.f32.mxu0 0.0
      %4315 = vmatmul.mubr.f32.gmra.mxu0 %v4242
      %v4316 = vpop.f32.mrf.mxu0
      %v4317 = vadd.f32 0.0, %v4316
      %v4318 = vpop.f32.mrf.mxu0
      %4319 = vmatprep.mubr.f32.mxu0 0.0
      %4320 = vmatmul.mubr.f32.gmra.mxu0 %v4245
      %v4321 = vpop.f32.mrf.mxu0
      %v4322 = vadd.f32 0.0, %v4321
      %v4323 = vpop.f32.mrf.mxu0
      %4324 = vmatprep.mubr.f32.mxu0 0.0
      %4325 = vmatmul.mubr.f32.gmra.mxu0 %v4248
      %v4326 = vpop.f32.mrf.mxu0
      %v4327 = vadd.f32 0.0, %v4326
      %v4328 = vpop.f32.mrf.mxu0
      %4329 = vdwg.mxu0
      %v4330 = vadd.f32 %v4135, %v4317
      %v4331 = vadd.f32 %v4140, %v4322
      %v4332 = vadd.f32 %v4145, %v4327
      %v4334 = vsel %vm3782, %v3779, 0
      %v4337 = vsel %vm3782, %v3780, 0
      %v4340 = vsel %vm3782, %v3781, 0
      %4342 = vmatprep.subr.mxu0 0.0
      %4343 = vmatpush1.msra.mxu0 0.0
      %4344 = vmatprep.subr.mxu0 0.0
      %4345 = vmatpush1.msra.mxu0 0.0
      %4346 = vmatprep.subr.mxu0 0.0
      %4347 = vmatpush1.msra.mxu0 0.0
      %4348 = vmatprep.subr.mxu0 0.0
      %4349 = vmatpush1.msra.mxu0 0.0
      %4350 = vmatprep.subr.mxu0 0.0
      %4351 = vmatpush1.msra.mxu0 0.0
      %4352 = vmatprep.subr.mxu0 0.0
      %4353 = vmatpush1.msra.mxu0 0.0
      %4354 = vmatprep.subr.mxu0 0.0
      %4355 = vmatpush1.msra.mxu0 0.0
      %4356 = vmatprep.subr.mxu0 0.0
      %4357 = vmatpush1.msra.mxu0 0.0
      %4358 = vmatprep.subr.mxu0 0.0
      %4359 = vmatpush1.msra.mxu0 0.0
      %4360 = vmatprep.subr.mxu0 0.0
      %4361 = vmatpush1.msra.mxu0 0.0
      %4362 = vmatprep.subr.mxu0 0.0
      %4363 = vmatpush1.msra.mxu0 0.0
      %4364 = vmatprep.subr.mxu0 0.0
      %4365 = vmatpush1.msra.mxu0 0.0
      %4366 = vmatprep.subr.mxu0 0.0
      %4367 = vmatpush1.msra.mxu0 0.0
      %4368 = vmatprep.subr.mxu0 0.0
      %4369 = vmatpush1.msra.mxu0 %v3769
      %4370 = vmatprep.subr.mxu0 0.0
      %4371 = vmatpush1.msra.mxu0 %v3768
      %4372 = vmatprep.subr.mxu0 0.0
      %4373 = vmatpush1.msra.mxu0 %v3767
      %4374 = vmatprep.subr.mxu0 0.0
      %4375 = vmatpush2.msra.mxu0 0.0
      %4376 = vmatprep.subr.mxu0 0.0
      %4377 = vmatpush2.msra.mxu0 0.0
      %4378 = vmatprep.subr.mxu0 0.0
      %4379 = vmatpush2.msra.mxu0 0.0
      %4380 = vmatprep.subr.mxu0 0.0
      %4381 = vmatpush2.msra.mxu0 0.0
      %4382 = vmatprep.subr.mxu0 0.0
      %4383 = vmatpush2.msra.mxu0 0.0
      %4384 = vmatprep.subr.mxu0 0.0
      %4385 = vmatpush2.msra.mxu0 0.0
      %4386 = vmatprep.subr.mxu0 0.0
      %4387 = vmatpush2.msra.mxu0 0.0
      %4388 = vmatprep.subr.mxu0 0.0
      %4389 = vmatpush2.msra.mxu0 0.0
      %4390 = vmatprep.subr.mxu0 0.0
      %4391 = vmatpush2.msra.mxu0 0.0
      %4392 = vmatprep.subr.mxu0 0.0
      %4393 = vmatpush2.msra.mxu0 0.0
      %4394 = vmatprep.subr.mxu0 0.0
      %4395 = vmatpush2.msra.mxu0 0.0
      %4396 = vmatprep.subr.mxu0 0.0
      %4397 = vmatpush2.msra.mxu0 0.0
      %4398 = vmatprep.subr.mxu0 0.0
      %4399 = vmatpush2.msra.mxu0 0.0
      %4400 = vmatprep.subr.mxu0 0.0
      %4401 = vmatpush2.msra.mxu0 0.0
      %4402 = vmatprep.subr.mxu0 0.0
      %4403 = vmatpush2.msra.mxu0 0.0
      %4404 = vmatprep.subr.mxu0 0.0
      %4405 = vmatpush2.msra.mxu0 0.0
      %4406 = vmatprep.mubr.f32.mxu0 0.0
      %4407 = vmatmul.mubr.f32.gmra.mxu0 %v4334
      %v4408 = vpop.f32.mrf.mxu0
      %v4409 = vadd.f32 0.0, %v4408
      %v4410 = vpop.f32.mrf.mxu0
      %4411 = vmatprep.mubr.f32.mxu0 0.0
      %4412 = vmatmul.mubr.f32.gmra.mxu0 %v4337
      %v4413 = vpop.f32.mrf.mxu0
      %v4414 = vadd.f32 0.0, %v4413
      %v4415 = vpop.f32.mrf.mxu0
      %4416 = vmatprep.mubr.f32.mxu0 0.0
      %4417 = vmatmul.mubr.f32.gmra.mxu0 %v4340
      %v4418 = vpop.f32.mrf.mxu0
      %v4419 = vadd.f32 0.0, %v4418
      %v4420 = vpop.f32.mrf.mxu0
      %4421 = vdwg.mxu0
      %v4422 = vadd.s32 %v3872, 3
      %vm4423 = vcmp.eq.s32.totalorder %v2019, %v4422
      %v4424 = vsel %vm4423, 1, 0
      %v4425 = vcvt.s32.f32 %v4424
      %v4427 = vsel %vm3969, %v4409, 0
      %v4430 = vsel %vm3969, %v4414, 0
      %v4433 = vsel %vm3969, %v4419, 0
      %4435 = vmatprep.subr.mxu0 0.0
      %4436 = vmatpush1.msra.mxu0 0.0
      %4437 = vmatprep.subr.mxu0 0.0
      %4438 = vmatpush1.msra.mxu0 0.0
      %4439 = vmatprep.subr.mxu0 0.0
      %4440 = vmatpush1.msra.mxu0 0.0
      %4441 = vmatprep.subr.mxu0 0.0
      %4442 = vmatpush1.msra.mxu0 0.0
      %4443 = vmatprep.subr.mxu0 0.0
      %4444 = vmatpush1.msra.mxu0 0.0
      %4445 = vmatprep.subr.mxu0 0.0
      %4446 = vmatpush1.msra.mxu0 0.0
      %4447 = vmatprep.subr.mxu0 0.0
      %4448 = vmatpush1.msra.mxu0 0.0
      %4449 = vmatprep.subr.mxu0 0.0
      %4450 = vmatpush1.msra.mxu0 0.0
      %4451 = vmatprep.subr.mxu0 0.0
      %4452 = vmatpush1.msra.mxu0 0.0
      %4453 = vmatprep.subr.mxu0 0.0
      %4454 = vmatpush1.msra.mxu0 0.0
      %4455 = vmatprep.subr.mxu0 0.0
      %4456 = vmatpush1.msra.mxu0 0.0
      %4457 = vmatprep.subr.mxu0 0.0
      %4458 = vmatpush1.msra.mxu0 0.0
      %4459 = vmatprep.subr.mxu0 0.0
      %4460 = vmatpush1.msra.mxu0 0.0
      %4461 = vmatprep.subr.mxu0 0.0
      %4462 = vmatpush1.msra.mxu0 0.0
      %4463 = vmatprep.subr.mxu0 0.0
      %4464 = vmatpush1.msra.mxu0 0.0
      %4465 = vmatprep.subr.mxu0 0.0
      %4466 = vmatpush1.msra.mxu0 %v4425
      %4467 = vmatprep.subr.mxu0 0.0
      %4468 = vmatpush2.msra.mxu0 0.0
      %4469 = vmatprep.subr.mxu0 0.0
      %4470 = vmatpush2.msra.mxu0 0.0
      %4471 = vmatprep.subr.mxu0 0.0
      %4472 = vmatpush2.msra.mxu0 0.0
      %4473 = vmatprep.subr.mxu0 0.0
      %4474 = vmatpush2.msra.mxu0 0.0
      %4475 = vmatprep.subr.mxu0 0.0
      %4476 = vmatpush2.msra.mxu0 0.0
      %4477 = vmatprep.subr.mxu0 0.0
      %4478 = vmatpush2.msra.mxu0 0.0
      %4479 = vmatprep.subr.mxu0 0.0
      %4480 = vmatpush2.msra.mxu0 0.0
      %4481 = vmatprep.subr.mxu0 0.0
      %4482 = vmatpush2.msra.mxu0 0.0
      %4483 = vmatprep.subr.mxu0 0.0
      %4484 = vmatpush2.msra.mxu0 0.0
      %4485 = vmatprep.subr.mxu0 0.0
      %4486 = vmatpush2.msra.mxu0 0.0
      %4487 = vmatprep.subr.mxu0 0.0
      %4488 = vmatpush2.msra.mxu0 0.0
      %4489 = vmatprep.subr.mxu0 0.0
      %4490 = vmatpush2.msra.mxu0 0.0
      %4491 = vmatprep.subr.mxu0 0.0
      %4492 = vmatpush2.msra.mxu0 0.0
      %4493 = vmatprep.subr.mxu0 0.0
      %4494 = vmatpush2.msra.mxu0 0.0
      %4495 = vmatprep.subr.mxu0 0.0
      %4496 = vmatpush2.msra.mxu0 0.0
      %4497 = vmatprep.subr.mxu0 0.0
      %4498 = vmatpush2.msra.mxu0 0.0
      %4499 = vmatprep.mubr.f32.mxu0 0.0
      %4500 = vmatmul.mubr.f32.gmra.mxu0 %v4427
      %v4501 = vpop.f32.mrf.mxu0
      %v4502 = vadd.f32 0.0, %v4501
      %v4503 = vpop.f32.mrf.mxu0
      %4504 = vmatprep.mubr.f32.mxu0 0.0
      %4505 = vmatmul.mubr.f32.gmra.mxu0 %v4430
      %v4506 = vpop.f32.mrf.mxu0
      %v4507 = vadd.f32 0.0, %v4506
      %v4508 = vpop.f32.mrf.mxu0
      %4509 = vmatprep.mubr.f32.mxu0 0.0
      %4510 = vmatmul.mubr.f32.gmra.mxu0 %v4433
      %v4511 = vpop.f32.mrf.mxu0
      %v4512 = vadd.f32 0.0, %v4511
      %v4513 = vpop.f32.mrf.mxu0
      %4514 = vdwg.mxu0
      %v4515 = vadd.f32 %v4330, %v4502
      %v4516 = vadd.f32 %v4331, %v4507
      %v4517 = vadd.f32 %v4332, %v4512
      %v4518 = vld [vmem:[%s29] sm:$0xff]
      %v4519 = vld [vmem:[%s29 + $0x8] sm:$0xff]
      %v4520 = vld [vmem:[%s29 + $0x10] sm:$0xff]
      %4522 = vset.pattern.permute.xlu0 0
      %4523 = vperm.xlu0 %4522, %v4518
      %v4524 = vpop.permute.xlu0 %4523
      %4527 = vset.pattern.permute.xlu0 0
      %4528 = vperm.xlu0 %4527, %v4519
      %v4529 = vpop.permute.xlu0 %4528
      %4532 = vset.pattern.permute.xlu0 0
      %4533 = vperm.xlu0 %4532, %v4520
      %v4534 = vpop.permute.xlu0 %4533
      %v4536 = vadd.f32 %v4515, %v4524
      %v4537 = vadd.f32 %v4516, %v4529
      %v4538 = vadd.f32 %v4517, %v4534
      %4539 = vst.msk [vmem:[#allocation2] sm:$0xff] %vm2377, 0.0
      %4540 = vst.msk [vmem:[#allocation2 + $0x18] sm:$0xff] %vm2377, 0.0
      %4541 = vst.msk [vmem:[#allocation2 + $0x30] sm:$0xff] %vm2377, 0.0
      %vm4542 = vcmask 294160
      %4543 = vst.msk [vmem:[#allocation2] sm:$0xff] %vm4542, 0.0
      %4544 = vst.msk [vmem:[#allocation2 + $0x18] sm:$0xff] %vm4542, 0.0
      %4545 = vst.msk [vmem:[#allocation2 + $0x30] sm:$0xff] %vm4542, 0.0
      %4549 = vrot.lane.b32.xlu0 %v4536, 2
      %v4550 = vpop.permute.xlu0 %4549
      %4551 = vrot.lane.b32.xlu0 %v4537, 2
      %v4552 = vpop.permute.xlu0 %4551
      %4553 = vrot.lane.b32.xlu0 %v4538, 2
      %v4554 = vpop.permute.xlu0 %4553
      %vm4558 = vcmask 277520
      %4559 = vst.msk [vmem:[#allocation2] sm:$0xff] %vm4558, %v4550
      %4560 = vst.msk [vmem:[#allocation2 + $0x18] sm:$0xff] %vm4558, %v4552
      %4561 = vst.msk [vmem:[#allocation2 + $0x30] sm:$0xff] %vm4558, %v4554
      %v4562 = vld [vmem:[#allocation2] sm:$0xff]
      %v4563 = vld [vmem:[#allocation2 + $0x18] sm:$0xff]
      %v4564 = vld [vmem:[#allocation2 + $0x30] sm:$0xff]
      %4565 = vst.msk [vmem:[#allocation3] sm:$0xff] %vm1259, %v4562
      %4566 = vst.msk [vmem:[#allocation3 + $0x10] sm:$0xff] %vm1259, %v4563
      %4567 = vst.msk [vmem:[#allocation3 + $0x20] sm:$0xff] %vm1259, %v4564
      %v4568 = vld [vmem:[#allocation2] sm:$0xff]
      %v4569 = vld [vmem:[#allocation2 + $0x18] sm:$0xff]
      %v4570 = vld [vmem:[#allocation2 + $0x30] sm:$0xff]
      %4574 = vrot.lane.b32.xlu0 %v4568, 127
      %v4575 = vpop.permute.xlu0 %4574
      %4576 = vrot.lane.b32.xlu0 %v4569, 127
      %v4577 = vpop.permute.xlu0 %4576
      %4578 = vrot.lane.b32.xlu0 %v4570, 127
      %v4579 = vpop.permute.xlu0 %4578
      %4583 = vst.msk [vmem:[#allocation3 + $0x30] sm:$0xff] %vm1259, %v4575
      %4584 = vst.msk [vmem:[#allocation3 + $0x40] sm:$0xff] %vm1259, %v4577
      %4585 = vst.msk [vmem:[#allocation3 + $0x50] sm:$0xff] %vm1259, %v4579
      %v4586 = vld [vmem:[#allocation2] sm:$0xff]
      %v4587 = vld [vmem:[#allocation2 + $0x18] sm:$0xff]
      %v4588 = vld [vmem:[#allocation2 + $0x30] sm:$0xff]
      %4592 = vrot.lane.b32.xlu0 %v4586, 126
      %v4593 = vpop.permute.xlu0 %4592
      %4594 = vrot.lane.b32.xlu0 %v4587, 126
      %v4595 = vpop.permute.xlu0 %4594
      %4596 = vrot.lane.b32.xlu0 %v4588, 126
      %v4597 = vpop.permute.xlu0 %4596
      %4601 = vst.msk [vmem:[#allocation3 + $0x60] sm:$0xff] %vm1259, %v4593
      %4602 = vst.msk [vmem:[#allocation3 + $0x70] sm:$0xff] %vm1259, %v4595
      %4603 = vst.msk [vmem:[#allocation3 + $0x80] sm:$0xff] %vm1259, %v4597
      %v4604 = vld [vmem:[#allocation2] sm:$0xff]
      %v4605 = vld [vmem:[#allocation2 + $0x18] sm:$0xff]
      %v4606 = vld [vmem:[#allocation2 + $0x30] sm:$0xff]
      %4610 = vrot.lane.b32.xlu0 %v4604, 125
      %v4611 = vpop.permute.xlu0 %4610
      %4612 = vrot.lane.b32.xlu0 %v4605, 125
      %v4613 = vpop.permute.xlu0 %4612
      %4614 = vrot.lane.b32.xlu0 %v4606, 125
      %v4615 = vpop.permute.xlu0 %4614
      %4619 = vst.msk [vmem:[#allocation3 + $0x90] sm:$0xff] %vm1259, %v4611
      %4620 = vst.msk [vmem:[#allocation3 + $0xa0] sm:$0xff] %vm1259, %v4613
      %4621 = vst.msk [vmem:[#allocation3 + $0xb0] sm:$0xff] %vm1259, %v4615
      %v4622 = vld [vmem:[#allocation2] sm:$0xff]
      %v4623 = vld [vmem:[#allocation2 + $0x18] sm:$0xff]
      %v4624 = vld [vmem:[#allocation2 + $0x30] sm:$0xff]
      %4628 = vrot.lane.b32.xlu0 %v4622, 124
      %v4629 = vpop.permute.xlu0 %4628
      %4630 = vrot.lane.b32.xlu0 %v4623, 124
      %v4631 = vpop.permute.xlu0 %4630
      %4632 = vrot.lane.b32.xlu0 %v4624, 124
      %v4633 = vpop.permute.xlu0 %4632
      %4637 = vst.msk [vmem:[#allocation3 + $0xc0] sm:$0xff] %vm1259, %v4629
      %4638 = vst.msk [vmem:[#allocation3 + $0xd0] sm:$0xff] %vm1259, %v4631
      %4639 = vst.msk [vmem:[#allocation3 + $0xe0] sm:$0xff] %vm1259, %v4633
      %v4640 = vld [vmem:[#allocation3] sm:$0xff]
      %v4641 = vld [vmem:[#allocation3 + $0x10] sm:$0xff]
      %v4642 = vld [vmem:[#allocation3 + $0x20] sm:$0xff]
      %v4643 = vld [vmem:[#allocation3 + $0x30] sm:$0xff]
      %v4644 = vld [vmem:[#allocation3 + $0x40] sm:$0xff]
      %v4645 = vld [vmem:[#allocation3 + $0x50] sm:$0xff]
      %v4646 = vld [vmem:[#allocation3 + $0x60] sm:$0xff]
      %v4647 = vld [vmem:[#allocation3 + $0x70] sm:$0xff]
      %v4648 = vld [vmem:[#allocation3 + $0x80] sm:$0xff]
      %v4649 = vld [vmem:[#allocation3 + $0x90] sm:$0xff]
      %v4650 = vld [vmem:[#allocation3 + $0xa0] sm:$0xff]
      %v4651 = vld [vmem:[#allocation3 + $0xb0] sm:$0xff]
      %v4652 = vld [vmem:[#allocation3 + $0xc0] sm:$0xff]
      %v4653 = vld [vmem:[#allocation3 + $0xd0] sm:$0xff]
      %v4654 = vld [vmem:[#allocation3 + $0xe0] sm:$0xff]
      %v4655 = vld [vmem:[%s31] sm:$0xff]
      %v4656 = vld [vmem:[%s31 + $0x8] sm:$0xff]
      %v4657 = vld [vmem:[%s31 + $0x10] sm:$0xff]
      %v4659 = vsel %vm1066, %v4655, 0
      %v4662 = vsel %vm1066, %v4656, 0
      %v4665 = vsel %vm1066, %v4657, 0
      %4667 = vmatprep.subr.mxu0 0.0
      %4668 = vmatpush1.msra.mxu0 0.0
      %4669 = vmatprep.subr.mxu0 0.0
      %4670 = vmatpush1.msra.mxu0 %v4654
      %4671 = vmatprep.subr.mxu0 0.0
      %4672 = vmatpush1.msra.mxu0 %v4653
      %4673 = vmatprep.subr.mxu0 0.0
      %4674 = vmatpush1.msra.mxu0 %v4652
      %4675 = vmatprep.subr.mxu0 0.0
      %4676 = vmatpush1.msra.mxu0 %v4651
      %4677 = vmatprep.subr.mxu0 0.0
      %4678 = vmatpush1.msra.mxu0 %v4650
      %4679 = vmatprep.subr.mxu0 0.0
      %4680 = vmatpush1.msra.mxu0 %v4649
      %4681 = vmatprep.subr.mxu0 0.0
      %4682 = vmatpush1.msra.mxu0 %v4648
      %4683 = vmatprep.subr.mxu0 0.0
      %4684 = vmatpush1.msra.mxu0 %v4647
      %4685 = vmatprep.subr.mxu0 0.0
      %4686 = vmatpush1.msra.mxu0 %v4646
      %4687 = vmatprep.subr.mxu0 0.0
      %4688 = vmatpush1.msra.mxu0 %v4645
      %4689 = vmatprep.subr.mxu0 0.0
      %4690 = vmatpush1.msra.mxu0 %v4644
      %4691 = vmatprep.subr.mxu0 0.0
      %4692 = vmatpush1.msra.mxu0 %v4643
      %4693 = vmatprep.subr.mxu0 0.0
      %4694 = vmatpush1.msra.mxu0 %v4642
      %4695 = vmatprep.subr.mxu0 0.0
      %4696 = vmatpush1.msra.mxu0 %v4641
      %4697 = vmatprep.subr.mxu0 0.0
      %4698 = vmatpush1.msra.mxu0 %v4640
      %4699 = vmatprep.subr.mxu0 0.0
      %4700 = vmatpush2.msra.mxu0 0.0
      %4701 = vmatprep.subr.mxu0 0.0
      %4702 = vmatpush2.msra.mxu0 0.0
      %4703 = vmatprep.subr.mxu0 0.0
      %4704 = vmatpush2.msra.mxu0 0.0
      %4705 = vmatprep.subr.mxu0 0.0
      %4706 = vmatpush2.msra.mxu0 0.0
      %4707 = vmatprep.subr.mxu0 0.0
      %4708 = vmatpush2.msra.mxu0 0.0
      %4709 = vmatprep.subr.mxu0 0.0
      %4710 = vmatpush2.msra.mxu0 0.0
      %4711 = vmatprep.subr.mxu0 0.0
      %4712 = vmatpush2.msra.mxu0 0.0
      %4713 = vmatprep.subr.mxu0 0.0
      %4714 = vmatpush2.msra.mxu0 0.0
      %4715 = vmatprep.subr.mxu0 0.0
      %4716 = vmatpush2.msra.mxu0 0.0
      %4717 = vmatprep.subr.mxu0 0.0
      %4718 = vmatpush2.msra.mxu0 0.0
      %4719 = vmatprep.subr.mxu0 0.0
      %4720 = vmatpush2.msra.mxu0 0.0
      %4721 = vmatprep.subr.mxu0 0.0
      %4722 = vmatpush2.msra.mxu0 0.0
      %4723 = vmatprep.subr.mxu0 0.0
      %4724 = vmatpush2.msra.mxu0 0.0
      %4725 = vmatprep.subr.mxu0 0.0
      %4726 = vmatpush2.msra.mxu0 0.0
      %4727 = vmatprep.subr.mxu0 0.0
      %4728 = vmatpush2.msra.mxu0 0.0
      %4729 = vmatprep.subr.mxu0 0.0
      %4730 = vmatpush2.msra.mxu0 0.0
      %4731 = vmatprep.mubr.f32.mxu0 0.0
      %4732 = vmatmul.mubr.f32.gmra.mxu0 %v4659
      %v4733 = vpop.f32.mrf.mxu0
      %v4734 = vadd.f32 0.0, %v4733
      %v4735 = vpop.f32.mrf.mxu0
      %4736 = vmatprep.mubr.f32.mxu0 0.0
      %4737 = vmatmul.mubr.f32.gmra.mxu0 %v4662
      %v4738 = vpop.f32.mrf.mxu0
      %v4739 = vadd.f32 0.0, %v4738
      %v4740 = vpop.f32.mrf.mxu0
      %4741 = vmatprep.mubr.f32.mxu0 0.0
      %4742 = vmatmul.mubr.f32.gmra.mxu0 %v4665
      %v4743 = vpop.f32.mrf.mxu0
      %v4744 = vadd.f32 0.0, %v4743
      %v4745 = vpop.f32.mrf.mxu0
      %4746 = vdwg.mxu0
      %v4747 = vld [vmem:[%s33] sm:$0xff]
      %v4748 = vld [vmem:[%s33 + $0x8] sm:$0xff]
      %v4749 = vld [vmem:[%s33 + $0x10] sm:$0xff]
      %4751 = vset.pattern.permute.xlu0 0
      %4752 = vperm.xlu0 %4751, %v4747
      %v4753 = vpop.permute.xlu0 %4752
      %4756 = vset.pattern.permute.xlu0 0
      %4757 = vperm.xlu0 %4756, %v4748
      %v4758 = vpop.permute.xlu0 %4757
      %4761 = vset.pattern.permute.xlu0 0
      %4762 = vperm.xlu0 %4761, %v4749
      %v4763 = vpop.permute.xlu0 %4762
      %v4765 = vmul.f32 %v4734, %v4753
      %v4766 = vmul.f32 %v4739, %v4758
      %v4767 = vmul.f32 %v4744, %v4763
      %v4768 = vld [vmem:[%s35] sm:$0xff]
      %v4769 = vld [vmem:[%s35 + $0x8] sm:$0xff]
      %v4770 = vld [vmem:[%s35 + $0x10] sm:$0xff]
      %4772 = vset.pattern.permute.xlu0 0
      %4773 = vperm.xlu0 %4772, %v4768
      %v4774 = vpop.permute.xlu0 %4773
      %4777 = vset.pattern.permute.xlu0 0
      %4778 = vperm.xlu0 %4777, %v4769
      %v4779 = vpop.permute.xlu0 %4778
      %4782 = vset.pattern.permute.xlu0 0
      %4783 = vperm.xlu0 %4782, %v4770
      %v4784 = vpop.permute.xlu0 %4783
      %v4786 = vadd.f32 %v4765, %v4774
      %v4787 = vadd.f32 %v4766, %v4779
      %v4788 = vadd.f32 %v4767, %v4784
      %v4789 = vmax.f32 %v4786, 0.0
      %v4790 = vmax.f32 %v4787, 0.0
      %v4791 = vmax.f32 %v4788, 0.0
      %v4792 = vld [vmem:[%s37] sm:$0xff]
      %v4793 = vld [vmem:[%s37 + $0x8] sm:$0xff]
      %v4794 = vld [vmem:[%s37 + $0x10] sm:$0xff]
      %v4795 = vld [vmem:[%s37 + $0x18] sm:$0xff]
      %v4796 = vld [vmem:[%s37 + $0x20] sm:$0xff]
      %v4797 = vld [vmem:[%s37 + $0x28] sm:$0xff]
      %v4798 = vld [vmem:[%s37 + $0x30] sm:$0xff]
      %v4799 = vld [vmem:[%s37 + $0x38] sm:$0xff]
      %v4800 = vld [vmem:[%s37 + $0x40] sm:$0xff]
      %v4801 = vld [vmem:[%s37 + $0x48] sm:$0xff]
      %v4802 = vld [vmem:[%s37 + $0x50] sm:$0xff]
      %v4803 = vld [vmem:[%s37 + $0x58] sm:$0xff]
      %4807 = vrot.lane.b32.xlu0 %v4792, 104
      %v4808 = vpop.permute.xlu0 %4807
      %4809 = vrot.lane.b32.xlu0 %v4793, 104
      %v4810 = vpop.permute.xlu0 %4809
      %4811 = vrot.lane.b32.xlu0 %v4794, 104
      %v4812 = vpop.permute.xlu0 %4811
      %v4813 = vsel %vm3782, %v4808, 0
      %v4815 = vsel %vm3782, %v4810, 0
      %v4817 = vsel %vm3782, %v4812, 0
      %4819 = vmatprep.subr.mxu0 0.0
      %4820 = vmatpush1.msra.mxu0 0.0
      %4821 = vmatprep.subr.mxu0 0.0
      %4822 = vmatpush1.msra.mxu0 0.0
      %4823 = vmatprep.subr.mxu0 0.0
      %4824 = vmatpush1.msra.mxu0 0.0
      %4825 = vmatprep.subr.mxu0 0.0
      %4826 = vmatpush1.msra.mxu0 0.0
      %4827 = vmatprep.subr.mxu0 0.0
      %4828 = vmatpush1.msra.mxu0 0.0
      %4829 = vmatprep.subr.mxu0 0.0
      %4830 = vmatpush1.msra.mxu0 0.0
      %4831 = vmatprep.subr.mxu0 0.0
      %4832 = vmatpush1.msra.mxu0 0.0
      %4833 = vmatprep.subr.mxu0 0.0
      %4834 = vmatpush1.msra.mxu0 0.0
      %4835 = vmatprep.subr.mxu0 0.0
      %4836 = vmatpush1.msra.mxu0 0.0
      %4837 = vmatprep.subr.mxu0 0.0
      %4838 = vmatpush1.msra.mxu0 0.0
      %4839 = vmatprep.subr.mxu0 0.0
      %4840 = vmatpush1.msra.mxu0 0.0
      %4841 = vmatprep.subr.mxu0 0.0
      %4842 = vmatpush1.msra.mxu0 0.0
      %4843 = vmatprep.subr.mxu0 0.0
      %4844 = vmatpush1.msra.mxu0 0.0
      %4845 = vmatprep.subr.mxu0 0.0
      %4846 = vmatpush1.msra.mxu0 %v3218
      %4847 = vmatprep.subr.mxu0 0.0
      %4848 = vmatpush1.msra.mxu0 %v3217
      %4849 = vmatprep.subr.mxu0 0.0
      %4850 = vmatpush1.msra.mxu0 %v3216
      %4851 = vmatprep.subr.mxu0 0.0
      %4852 = vmatpush2.msra.mxu0 0.0
      %4853 = vmatprep.subr.mxu0 0.0
      %4854 = vmatpush2.msra.mxu0 0.0
      %4855 = vmatprep.subr.mxu0 0.0
      %4856 = vmatpush2.msra.mxu0 0.0
      %4857 = vmatprep.subr.mxu0 0.0
      %4858 = vmatpush2.msra.mxu0 0.0
      %4859 = vmatprep.subr.mxu0 0.0
      %4860 = vmatpush2.msra.mxu0 0.0
      %4861 = vmatprep.subr.mxu0 0.0
      %4862 = vmatpush2.msra.mxu0 0.0
      %4863 = vmatprep.subr.mxu0 0.0
      %4864 = vmatpush2.msra.mxu0 0.0
      %4865 = vmatprep.subr.mxu0 0.0
      %4866 = vmatpush2.msra.mxu0 0.0
      %4867 = vmatprep.subr.mxu0 0.0
      %4868 = vmatpush2.msra.mxu0 0.0
      %4869 = vmatprep.subr.mxu0 0.0
      %4870 = vmatpush2.msra.mxu0 0.0
      %4871 = vmatprep.subr.mxu0 0.0
      %4872 = vmatpush2.msra.mxu0 0.0
      %4873 = vmatprep.subr.mxu0 0.0
      %4874 = vmatpush2.msra.mxu0 0.0
      %4875 = vmatprep.subr.mxu0 0.0
      %4876 = vmatpush2.msra.mxu0 0.0
      %4877 = vmatprep.subr.mxu0 0.0
      %4878 = vmatpush2.msra.mxu0 0.0
      %4879 = vmatprep.subr.mxu0 0.0
      %4880 = vmatpush2.msra.mxu0 0.0
      %4881 = vmatprep.subr.mxu0 0.0
      %4882 = vmatpush2.msra.mxu0 0.0
      %4883 = vmatprep.mubr.f32.mxu0 0.0
      %4884 = vmatmul.mubr.f32.gmra.mxu0 %v4813
      %v4885 = vpop.f32.mrf.mxu0
      %v4886 = vadd.f32 0.0, %v4885
      %v4887 = vpop.f32.mrf.mxu0
      %4888 = vmatprep.mubr.f32.mxu0 0.0
      %4889 = vmatmul.mubr.f32.gmra.mxu0 %v4815
      %v4890 = vpop.f32.mrf.mxu0
      %v4891 = vadd.f32 0.0, %v4890
      %v4892 = vpop.f32.mrf.mxu0
      %4893 = vmatprep.mubr.f32.mxu0 0.0
      %4894 = vmatmul.mubr.f32.gmra.mxu0 %v4817
      %v4895 = vpop.f32.mrf.mxu0
      %v4896 = vadd.f32 0.0, %v4895
      %v4897 = vpop.f32.mrf.mxu0
      %4898 = vdwg.mxu0
      %v4899 = vsel %vm3782, %v4792, 0
      %v4901 = vsel %vm3782, %v4793, 0
      %v4903 = vsel %vm3782, %v4794, 0
      %4905 = vmatprep.subr.mxu0 0.0
      %4906 = vmatpush1.msra.mxu0 0.0
      %4907 = vmatprep.subr.mxu0 0.0
      %4908 = vmatpush1.msra.mxu0 0.0
      %4909 = vmatprep.subr.mxu0 0.0
      %4910 = vmatpush1.msra.mxu0 0.0
      %4911 = vmatprep.subr.mxu0 0.0
      %4912 = vmatpush1.msra.mxu0 0.0
      %4913 = vmatprep.subr.mxu0 0.0
      %4914 = vmatpush1.msra.mxu0 0.0
      %4915 = vmatprep.subr.mxu0 0.0
      %4916 = vmatpush1.msra.mxu0 0.0
      %4917 = vmatprep.subr.mxu0 0.0
      %4918 = vmatpush1.msra.mxu0 0.0
      %4919 = vmatprep.subr.mxu0 0.0
      %4920 = vmatpush1.msra.mxu0 0.0
      %4921 = vmatprep.subr.mxu0 0.0
      %4922 = vmatpush1.msra.mxu0 0.0
      %4923 = vmatprep.subr.mxu0 0.0
      %4924 = vmatpush1.msra.mxu0 0.0
      %4925 = vmatprep.subr.mxu0 0.0
      %4926 = vmatpush1.msra.mxu0 0.0
      %4927 = vmatprep.subr.mxu0 0.0
      %4928 = vmatpush1.msra.mxu0 0.0
      %4929 = vmatprep.subr.mxu0 0.0
      %4930 = vmatpush1.msra.mxu0 0.0
      %4931 = vmatprep.subr.mxu0 0.0
      %4932 = vmatpush1.msra.mxu0 %v4791
      %4933 = vmatprep.subr.mxu0 0.0
      %4934 = vmatpush1.msra.mxu0 %v4790
      %4935 = vmatprep.subr.mxu0 0.0
      %4936 = vmatpush1.msra.mxu0 %v4789
      %4937 = vmatprep.subr.mxu0 0.0
      %4938 = vmatpush2.msra.mxu0 0.0
      %4939 = vmatprep.subr.mxu0 0.0
      %4940 = vmatpush2.msra.mxu0 0.0
      %4941 = vmatprep.subr.mxu0 0.0
      %4942 = vmatpush2.msra.mxu0 0.0
      %4943 = vmatprep.subr.mxu0 0.0
      %4944 = vmatpush2.msra.mxu0 0.0
      %4945 = vmatprep.subr.mxu0 0.0
      %4946 = vmatpush2.msra.mxu0 0.0
      %4947 = vmatprep.subr.mxu0 0.0
      %4948 = vmatpush2.msra.mxu0 0.0
      %4949 = vmatprep.subr.mxu0 0.0
      %4950 = vmatpush2.msra.mxu0 0.0
      %4951 = vmatprep.subr.mxu0 0.0
      %4952 = vmatpush2.msra.mxu0 0.0
      %4953 = vmatprep.subr.mxu0 0.0
      %4954 = vmatpush2.msra.mxu0 0.0
      %4955 = vmatprep.subr.mxu0 0.0
      %4956 = vmatpush2.msra.mxu0 0.0
      %4957 = vmatprep.subr.mxu0 0.0
      %4958 = vmatpush2.msra.mxu0 0.0
      %4959 = vmatprep.subr.mxu0 0.0
      %4960 = vmatpush2.msra.mxu0 0.0
      %4961 = vmatprep.subr.mxu0 0.0
      %4962 = vmatpush2.msra.mxu0 0.0
      %4963 = vmatprep.subr.mxu0 0.0
      %4964 = vmatpush2.msra.mxu0 0.0
      %4965 = vmatprep.subr.mxu0 0.0
      %4966 = vmatpush2.msra.mxu0 0.0
      %4967 = vmatprep.subr.mxu0 0.0
      %4968 = vmatpush2.msra.mxu0 0.0
      %4969 = vmatprep.mubr.f32.mxu0 0.0
      %4970 = vmatmul.mubr.f32.gmra.mxu0 %v4899
      %v4971 = vpop.f32.mrf.mxu0
      %v4972 = vadd.f32 %v4886, %v4971
      %v4973 = vpop.f32.mrf.mxu0
      %4974 = vmatprep.mubr.f32.mxu0 0.0
      %4975 = vmatmul.mubr.f32.gmra.mxu0 %v4901
      %v4976 = vpop.f32.mrf.mxu0
      %v4977 = vadd.f32 %v4891, %v4976
      %v4978 = vpop.f32.mrf.mxu0
      %4979 = vmatprep.mubr.f32.mxu0 0.0
      %4980 = vmatmul.mubr.f32.gmra.mxu0 %v4903
      %v4981 = vpop.f32.mrf.mxu0
      %v4982 = vadd.f32 %v4896, %v4981
      %v4983 = vpop.f32.mrf.mxu0
      %4984 = vdwg.mxu0
      %v4985 = vmul.u32 %v1987, 4
      %v4986 = vmul.u32 %v1988, 4
      %v4987 = vmul.u32 %v1989, 4
      %vm4988 = vcmp.eq.s32.totalorder %v2019, %v4985
      %vm4989 = vcmp.eq.s32.totalorder %v2019, %v4986
      %vm4990 = vcmp.eq.s32.totalorder %v2019, %v4987
      %v4991 = vsel %vm4988, 1, 0
      %v4992 = vsel %vm4989, 1, 0
      %v4993 = vsel %vm4990, 1, 0
      %v4994 = vcvt.s32.f32 %v4991
      %v4995 = vcvt.s32.f32 %v4992
      %v4996 = vcvt.s32.f32 %v4993
      %5000 = vrot.lane.b32.xlu0 %v4795, 104
      %v5001 = vpop.permute.xlu0 %5000
      %5002 = vrot.lane.b32.xlu0 %v4796, 104
      %v5003 = vpop.permute.xlu0 %5002
      %5004 = vrot.lane.b32.xlu0 %v4797, 104
      %v5005 = vpop.permute.xlu0 %5004
      %v5006 = vsel %vm3782, %v5001, 0
      %v5008 = vsel %vm3782, %v5003, 0
      %v5010 = vsel %vm3782, %v5005, 0
      %5012 = vmatprep.subr.mxu0 0.0
      %5013 = vmatpush1.msra.mxu0 0.0
      %5014 = vmatprep.subr.mxu0 0.0
      %5015 = vmatpush1.msra.mxu0 0.0
      %5016 = vmatprep.subr.mxu0 0.0
      %5017 = vmatpush1.msra.mxu0 0.0
      %5018 = vmatprep.subr.mxu0 0.0
      %5019 = vmatpush1.msra.mxu0 0.0
      %5020 = vmatprep.subr.mxu0 0.0
      %5021 = vmatpush1.msra.mxu0 0.0
      %5022 = vmatprep.subr.mxu0 0.0
      %5023 = vmatpush1.msra.mxu0 0.0
      %5024 = vmatprep.subr.mxu0 0.0
      %5025 = vmatpush1.msra.mxu0 0.0
      %5026 = vmatprep.subr.mxu0 0.0
      %5027 = vmatpush1.msra.mxu0 0.0
      %5028 = vmatprep.subr.mxu0 0.0
      %5029 = vmatpush1.msra.mxu0 0.0
      %5030 = vmatprep.subr.mxu0 0.0
      %5031 = vmatpush1.msra.mxu0 0.0
      %5032 = vmatprep.subr.mxu0 0.0
      %5033 = vmatpush1.msra.mxu0 0.0
      %5034 = vmatprep.subr.mxu0 0.0
      %5035 = vmatpush1.msra.mxu0 0.0
      %5036 = vmatprep.subr.mxu0 0.0
      %5037 = vmatpush1.msra.mxu0 0.0
      %5038 = vmatprep.subr.mxu0 0.0
      %5039 = vmatpush1.msra.mxu0 %v3218
      %5040 = vmatprep.subr.mxu0 0.0
      %5041 = vmatpush1.msra.mxu0 %v3217
      %5042 = vmatprep.subr.mxu0 0.0
      %5043 = vmatpush1.msra.mxu0 %v3216
      %5044 = vmatprep.subr.mxu0 0.0
      %5045 = vmatpush2.msra.mxu0 0.0
      %5046 = vmatprep.subr.mxu0 0.0
      %5047 = vmatpush2.msra.mxu0 0.0
      %5048 = vmatprep.subr.mxu0 0.0
      %5049 = vmatpush2.msra.mxu0 0.0
      %5050 = vmatprep.subr.mxu0 0.0
      %5051 = vmatpush2.msra.mxu0 0.0
      %5052 = vmatprep.subr.mxu0 0.0
      %5053 = vmatpush2.msra.mxu0 0.0
      %5054 = vmatprep.subr.mxu0 0.0
      %5055 = vmatpush2.msra.mxu0 0.0
      %5056 = vmatprep.subr.mxu0 0.0
      %5057 = vmatpush2.msra.mxu0 0.0
      %5058 = vmatprep.subr.mxu0 0.0
      %5059 = vmatpush2.msra.mxu0 0.0
      %5060 = vmatprep.subr.mxu0 0.0
      %5061 = vmatpush2.msra.mxu0 0.0
      %5062 = vmatprep.subr.mxu0 0.0
      %5063 = vmatpush2.msra.mxu0 0.0
      %5064 = vmatprep.subr.mxu0 0.0
      %5065 = vmatpush2.msra.mxu0 0.0
      %5066 = vmatprep.subr.mxu0 0.0
      %5067 = vmatpush2.msra.mxu0 0.0
      %5068 = vmatprep.subr.mxu0 0.0
      %5069 = vmatpush2.msra.mxu0 0.0
      %5070 = vmatprep.subr.mxu0 0.0
      %5071 = vmatpush2.msra.mxu0 0.0
      %5072 = vmatprep.subr.mxu0 0.0
      %5073 = vmatpush2.msra.mxu0 0.0
      %5074 = vmatprep.subr.mxu0 0.0
      %5075 = vmatpush2.msra.mxu0 0.0
      %5076 = vmatprep.mubr.f32.mxu0 0.0
      %5077 = vmatmul.mubr.f32.gmra.mxu0 %v5006
      %v5078 = vpop.f32.mrf.mxu0
      %v5079 = vadd.f32 0.0, %v5078
      %v5080 = vpop.f32.mrf.mxu0
      %5081 = vmatprep.mubr.f32.mxu0 0.0
      %5082 = vmatmul.mubr.f32.gmra.mxu0 %v5008
      %v5083 = vpop.f32.mrf.mxu0
      %v5084 = vadd.f32 0.0, %v5083
      %v5085 = vpop.f32.mrf.mxu0
      %5086 = vmatprep.mubr.f32.mxu0 0.0
      %5087 = vmatmul.mubr.f32.gmra.mxu0 %v5010
      %v5088 = vpop.f32.mrf.mxu0
      %v5089 = vadd.f32 0.0, %v5088
      %v5090 = vpop.f32.mrf.mxu0
      %5091 = vdwg.mxu0
      %v5092 = vsel %vm3782, %v4795, 0
      %v5094 = vsel %vm3782, %v4796, 0
      %v5096 = vsel %vm3782, %v4797, 0
      %5098 = vmatprep.subr.mxu0 0.0
      %5099 = vmatpush1.msra.mxu0 0.0
      %5100 = vmatprep.subr.mxu0 0.0
      %5101 = vmatpush1.msra.mxu0 0.0
      %5102 = vmatprep.subr.mxu0 0.0
      %5103 = vmatpush1.msra.mxu0 0.0
      %5104 = vmatprep.subr.mxu0 0.0
      %5105 = vmatpush1.msra.mxu0 0.0
      %5106 = vmatprep.subr.mxu0 0.0
      %5107 = vmatpush1.msra.mxu0 0.0
      %5108 = vmatprep.subr.mxu0 0.0
      %5109 = vmatpush1.msra.mxu0 0.0
      %5110 = vmatprep.subr.mxu0 0.0
      %5111 = vmatpush1.msra.mxu0 0.0
      %5112 = vmatprep.subr.mxu0 0.0
      %5113 = vmatpush1.msra.mxu0 0.0
      %5114 = vmatprep.subr.mxu0 0.0
      %5115 = vmatpush1.msra.mxu0 0.0
      %5116 = vmatprep.subr.mxu0 0.0
      %5117 = vmatpush1.msra.mxu0 0.0
      %5118 = vmatprep.subr.mxu0 0.0
      %5119 = vmatpush1.msra.mxu0 0.0
      %5120 = vmatprep.subr.mxu0 0.0
      %5121 = vmatpush1.msra.mxu0 0.0
      %5122 = vmatprep.subr.mxu0 0.0
      %5123 = vmatpush1.msra.mxu0 0.0
      %5124 = vmatprep.subr.mxu0 0.0
      %5125 = vmatpush1.msra.mxu0 %v4791
      %5126 = vmatprep.subr.mxu0 0.0
      %5127 = vmatpush1.msra.mxu0 %v4790
      %5128 = vmatprep.subr.mxu0 0.0
      %5129 = vmatpush1.msra.mxu0 %v4789
      %5130 = vmatprep.subr.mxu0 0.0
      %5131 = vmatpush2.msra.mxu0 0.0
      %5132 = vmatprep.subr.mxu0 0.0
      %5133 = vmatpush2.msra.mxu0 0.0
      %5134 = vmatprep.subr.mxu0 0.0
      %5135 = vmatpush2.msra.mxu0 0.0
      %5136 = vmatprep.subr.mxu0 0.0
      %5137 = vmatpush2.msra.mxu0 0.0
      %5138 = vmatprep.subr.mxu0 0.0
      %5139 = vmatpush2.msra.mxu0 0.0
      %5140 = vmatprep.subr.mxu0 0.0
      %5141 = vmatpush2.msra.mxu0 0.0
      %5142 = vmatprep.subr.mxu0 0.0
      %5143 = vmatpush2.msra.mxu0 0.0
      %5144 = vmatprep.subr.mxu0 0.0
      %5145 = vmatpush2.msra.mxu0 0.0
      %5146 = vmatprep.subr.mxu0 0.0
      %5147 = vmatpush2.msra.mxu0 0.0
      %5148 = vmatprep.subr.mxu0 0.0
      %5149 = vmatpush2.msra.mxu0 0.0
      %5150 = vmatprep.subr.mxu0 0.0
      %5151 = vmatpush2.msra.mxu0 0.0
      %5152 = vmatprep.subr.mxu0 0.0
      %5153 = vmatpush2.msra.mxu0 0.0
      %5154 = vmatprep.subr.mxu0 0.0
      %5155 = vmatpush2.msra.mxu0 0.0
      %5156 = vmatprep.subr.mxu0 0.0
      %5157 = vmatpush2.msra.mxu0 0.0
      %5158 = vmatprep.subr.mxu0 0.0
      %5159 = vmatpush2.msra.mxu0 0.0
      %5160 = vmatprep.subr.mxu0 0.0
      %5161 = vmatpush2.msra.mxu0 0.0
      %5162 = vmatprep.mubr.f32.mxu0 0.0
      %5163 = vmatmul.mubr.f32.gmra.mxu0 %v5092
      %v5164 = vpop.f32.mrf.mxu0
      %v5165 = vadd.f32 %v5079, %v5164
      %v5166 = vpop.f32.mrf.mxu0
      %5167 = vmatprep.mubr.f32.mxu0 0.0
      %5168 = vmatmul.mubr.f32.gmra.mxu0 %v5094
      %v5169 = vpop.f32.mrf.mxu0
      %v5170 = vadd.f32 %v5084, %v5169
      %v5171 = vpop.f32.mrf.mxu0
      %5172 = vmatprep.mubr.f32.mxu0 0.0
      %5173 = vmatmul.mubr.f32.gmra.mxu0 %v5096
      %v5174 = vpop.f32.mrf.mxu0
      %v5175 = vadd.f32 %v5089, %v5174
      %v5176 = vpop.f32.mrf.mxu0
      %5177 = vdwg.mxu0
      %v5178 = vadd.s32 %v4985, 1
      %v5179 = vadd.s32 %v4986, 1
      %v5180 = vadd.s32 %v4987, 1
      %vm5181 = vcmp.eq.s32.totalorder %v2019, %v5178
      %vm5182 = vcmp.eq.s32.totalorder %v2019, %v5179
      %vm5183 = vcmp.eq.s32.totalorder %v2019, %v5180
      %v5184 = vsel %vm5181, 1, 0
      %v5185 = vsel %vm5182, 1, 0
      %v5186 = vsel %vm5183, 1, 0
      %v5187 = vcvt.s32.f32 %v5184
      %v5188 = vcvt.s32.f32 %v5185
      %v5189 = vcvt.s32.f32 %v5186
      %v5191 = vsel %vm1259, %v5165, 0
      %v5194 = vsel %vm1259, %v5170, 0
      %v5197 = vsel %vm1259, %v5175, 0
      %5199 = vmatprep.subr.mxu0 0.0
      %5200 = vmatpush1.msra.mxu0 0.0
      %5201 = vmatprep.subr.mxu0 0.0
      %5202 = vmatpush1.msra.mxu0 0.0
      %5203 = vmatprep.subr.mxu0 0.0
      %5204 = vmatpush1.msra.mxu0 0.0
      %5205 = vmatprep.subr.mxu0 0.0
      %5206 = vmatpush1.msra.mxu0 0.0
      %5207 = vmatprep.subr.mxu0 0.0
      %5208 = vmatpush1.msra.mxu0 0.0
      %5209 = vmatprep.subr.mxu0 0.0
      %5210 = vmatpush1.msra.mxu0 0.0
      %5211 = vmatprep.subr.mxu0 0.0
      %5212 = vmatpush1.msra.mxu0 0.0
      %5213 = vmatprep.subr.mxu0 0.0
      %5214 = vmatpush1.msra.mxu0 0.0
      %5215 = vmatprep.subr.mxu0 0.0
      %5216 = vmatpush1.msra.mxu0 0.0
      %5217 = vmatprep.subr.mxu0 0.0
      %5218 = vmatpush1.msra.mxu0 0.0
      %5219 = vmatprep.subr.mxu0 0.0
      %5220 = vmatpush1.msra.mxu0 0.0
      %5221 = vmatprep.subr.mxu0 0.0
      %5222 = vmatpush1.msra.mxu0 0.0
      %5223 = vmatprep.subr.mxu0 0.0
      %5224 = vmatpush1.msra.mxu0 %v5189
      %5225 = vmatprep.subr.mxu0 0.0
      %5226 = vmatpush1.msra.mxu0 %v5188
      %5227 = vmatprep.subr.mxu0 0.0
      %5228 = vmatpush1.msra.mxu0 %v5187
      %5229 = vmatprep.subr.mxu0 0.0
      %5230 = vmatpush1.msra.mxu0 %v3968
      %5231 = vmatprep.subr.mxu0 0.0
      %5232 = vmatpush2.msra.mxu0 0.0
      %5233 = vmatprep.subr.mxu0 0.0
      %5234 = vmatpush2.msra.mxu0 0.0
      %5235 = vmatprep.subr.mxu0 0.0
      %5236 = vmatpush2.msra.mxu0 0.0
      %5237 = vmatprep.subr.mxu0 0.0
      %5238 = vmatpush2.msra.mxu0 0.0
      %5239 = vmatprep.subr.mxu0 0.0
      %5240 = vmatpush2.msra.mxu0 0.0
      %5241 = vmatprep.subr.mxu0 0.0
      %5242 = vmatpush2.msra.mxu0 0.0
      %5243 = vmatprep.subr.mxu0 0.0
      %5244 = vmatpush2.msra.mxu0 0.0
      %5245 = vmatprep.subr.mxu0 0.0
      %5246 = vmatpush2.msra.mxu0 0.0
      %5247 = vmatprep.subr.mxu0 0.0
      %5248 = vmatpush2.msra.mxu0 0.0
      %5249 = vmatprep.subr.mxu0 0.0
      %5250 = vmatpush2.msra.mxu0 0.0
      %5251 = vmatprep.subr.mxu0 0.0
      %5252 = vmatpush2.msra.mxu0 0.0
      %5253 = vmatprep.subr.mxu0 0.0
      %5254 = vmatpush2.msra.mxu0 0.0
      %5255 = vmatprep.subr.mxu0 0.0
      %5256 = vmatpush2.msra.mxu0 0.0
      %5257 = vmatprep.subr.mxu0 0.0
      %5258 = vmatpush2.msra.mxu0 0.0
      %5259 = vmatprep.subr.mxu0 0.0
      %5260 = vmatpush2.msra.mxu0 0.0
      %5261 = vmatprep.subr.mxu0 0.0
      %5262 = vmatpush2.msra.mxu0 0.0
      %5263 = vmatprep.mubr.f32.mxu0 0.0
      %5264 = vmatmul.mubr.f32.gmra.mxu0 %v5191
      %v5265 = vpop.f32.mrf.mxu0
      %v5266 = vadd.f32 0.0, %v5265
      %v5267 = vpop.f32.mrf.mxu0
      %5268 = vmatprep.mubr.f32.mxu0 0.0
      %5269 = vmatmul.mubr.f32.gmra.mxu0 %v5194
      %v5270 = vpop.f32.mrf.mxu0
      %v5271 = vadd.f32 0.0, %v5270
      %v5272 = vpop.f32.mrf.mxu0
      %5273 = vmatprep.mubr.f32.mxu0 0.0
      %5274 = vmatmul.mubr.f32.gmra.mxu0 %v5197
      %v5275 = vpop.f32.mrf.mxu0
      %v5276 = vadd.f32 0.0, %v5275
      %v5277 = vpop.f32.mrf.mxu0
      %5278 = vdwg.mxu0
      %v5280 = vsel %vm1259, %v4972, 0
      %v5283 = vsel %vm1259, %v4977, 0
      %v5286 = vsel %vm1259, %v4982, 0
      %5288 = vmatprep.subr.mxu0 0.0
      %5289 = vmatpush1.msra.mxu0 0.0
      %5290 = vmatprep.subr.mxu0 0.0
      %5291 = vmatpush1.msra.mxu0 0.0
      %5292 = vmatprep.subr.mxu0 0.0
      %5293 = vmatpush1.msra.mxu0 0.0
      %5294 = vmatprep.subr.mxu0 0.0
      %5295 = vmatpush1.msra.mxu0 0.0
      %5296 = vmatprep.subr.mxu0 0.0
      %5297 = vmatpush1.msra.mxu0 0.0
      %5298 = vmatprep.subr.mxu0 0.0
      %5299 = vmatpush1.msra.mxu0 0.0
      %5300 = vmatprep.subr.mxu0 0.0
      %5301 = vmatpush1.msra.mxu0 0.0
      %5302 = vmatprep.subr.mxu0 0.0
      %5303 = vmatpush1.msra.mxu0 0.0
      %5304 = vmatprep.subr.mxu0 0.0
      %5305 = vmatpush1.msra.mxu0 0.0
      %5306 = vmatprep.subr.mxu0 0.0
      %5307 = vmatpush1.msra.mxu0 0.0
      %5308 = vmatprep.subr.mxu0 0.0
      %5309 = vmatpush1.msra.mxu0 0.0
      %5310 = vmatprep.subr.mxu0 0.0
      %5311 = vmatpush1.msra.mxu0 0.0
      %5312 = vmatprep.subr.mxu0 0.0
      %5313 = vmatpush1.msra.mxu0 %v4996
      %5314 = vmatprep.subr.mxu0 0.0
      %5315 = vmatpush1.msra.mxu0 %v4995
      %5316 = vmatprep.subr.mxu0 0.0
      %5317 = vmatpush1.msra.mxu0 %v4994
      %5318 = vmatprep.subr.mxu0 0.0
      %5319 = vmatpush1.msra.mxu0 %v3875
      %5320 = vmatprep.subr.mxu0 0.0
      %5321 = vmatpush2.msra.mxu0 0.0
      %5322 = vmatprep.subr.mxu0 0.0
      %5323 = vmatpush2.msra.mxu0 0.0
      %5324 = vmatprep.subr.mxu0 0.0
      %5325 = vmatpush2.msra.mxu0 0.0
      %5326 = vmatprep.subr.mxu0 0.0
      %5327 = vmatpush2.msra.mxu0 0.0
      %5328 = vmatprep.subr.mxu0 0.0
      %5329 = vmatpush2.msra.mxu0 0.0
      %5330 = vmatprep.subr.mxu0 0.0
      %5331 = vmatpush2.msra.mxu0 0.0
      %5332 = vmatprep.subr.mxu0 0.0
      %5333 = vmatpush2.msra.mxu0 0.0
      %5334 = vmatprep.subr.mxu0 0.0
      %5335 = vmatpush2.msra.mxu0 0.0
      %5336 = vmatprep.subr.mxu0 0.0
      %5337 = vmatpush2.msra.mxu0 0.0
      %5338 = vmatprep.subr.mxu0 0.0
      %5339 = vmatpush2.msra.mxu0 0.0
      %5340 = vmatprep.subr.mxu0 0.0
      %5341 = vmatpush2.msra.mxu0 0.0
      %5342 = vmatprep.subr.mxu0 0.0
      %5343 = vmatpush2.msra.mxu0 0.0
      %5344 = vmatprep.subr.mxu0 0.0
      %5345 = vmatpush2.msra.mxu0 0.0
      %5346 = vmatprep.subr.mxu0 0.0
      %5347 = vmatpush2.msra.mxu0 0.0
      %5348 = vmatprep.subr.mxu0 0.0
      %5349 = vmatpush2.msra.mxu0 0.0
      %5350 = vmatprep.subr.mxu0 0.0
      %5351 = vmatpush2.msra.mxu0 0.0
      %5352 = vmatprep.mubr.f32.mxu0 0.0
      %5353 = vmatmul.mubr.f32.gmra.mxu0 %v5280
      %v5354 = vpop.f32.mrf.mxu0
      %v5355 = vadd.f32 %v5266, %v5354
      %v5356 = vpop.f32.mrf.mxu0
      %5357 = vmatprep.mubr.f32.mxu0 0.0
      %5358 = vmatmul.mubr.f32.gmra.mxu0 %v5283
      %v5359 = vpop.f32.mrf.mxu0
      %v5360 = vadd.f32 %v5271, %v5359
      %v5361 = vpop.f32.mrf.mxu0
      %5362 = vmatprep.mubr.f32.mxu0 0.0
      %5363 = vmatmul.mubr.f32.gmra.mxu0 %v5286
      %v5364 = vpop.f32.mrf.mxu0
      %v5365 = vadd.f32 %v5276, %v5364
      %v5366 = vpop.f32.mrf.mxu0
      %5367 = vdwg.mxu0
      %5371 = vrot.lane.b32.xlu0 %v4798, 104
      %v5372 = vpop.permute.xlu0 %5371
      %5373 = vrot.lane.b32.xlu0 %v4799, 104
      %v5374 = vpop.permute.xlu0 %5373
      %5375 = vrot.lane.b32.xlu0 %v4800, 104
      %v5376 = vpop.permute.xlu0 %5375
      %v5377 = vsel %vm3782, %v5372, 0
      %v5379 = vsel %vm3782, %v5374, 0
      %v5381 = vsel %vm3782, %v5376, 0
      %5383 = vmatprep.subr.mxu0 0.0
      %5384 = vmatpush1.msra.mxu0 0.0
      %5385 = vmatprep.subr.mxu0 0.0
      %5386 = vmatpush1.msra.mxu0 0.0
      %5387 = vmatprep.subr.mxu0 0.0
      %5388 = vmatpush1.msra.mxu0 0.0
      %5389 = vmatprep.subr.mxu0 0.0
      %5390 = vmatpush1.msra.mxu0 0.0
      %5391 = vmatprep.subr.mxu0 0.0
      %5392 = vmatpush1.msra.mxu0 0.0
      %5393 = vmatprep.subr.mxu0 0.0
      %5394 = vmatpush1.msra.mxu0 0.0
      %5395 = vmatprep.subr.mxu0 0.0
      %5396 = vmatpush1.msra.mxu0 0.0
      %5397 = vmatprep.subr.mxu0 0.0
      %5398 = vmatpush1.msra.mxu0 0.0
      %5399 = vmatprep.subr.mxu0 0.0
      %5400 = vmatpush1.msra.mxu0 0.0
      %5401 = vmatprep.subr.mxu0 0.0
      %5402 = vmatpush1.msra.mxu0 0.0
      %5403 = vmatprep.subr.mxu0 0.0
      %5404 = vmatpush1.msra.mxu0 0.0
      %5405 = vmatprep.subr.mxu0 0.0
      %5406 = vmatpush1.msra.mxu0 0.0
      %5407 = vmatprep.subr.mxu0 0.0
      %5408 = vmatpush1.msra.mxu0 0.0
      %5409 = vmatprep.subr.mxu0 0.0
      %5410 = vmatpush1.msra.mxu0 %v3218
      %5411 = vmatprep.subr.mxu0 0.0
      %5412 = vmatpush1.msra.mxu0 %v3217
      %5413 = vmatprep.subr.mxu0 0.0
      %5414 = vmatpush1.msra.mxu0 %v3216
      %5415 = vmatprep.subr.mxu0 0.0
      %5416 = vmatpush2.msra.mxu0 0.0
      %5417 = vmatprep.subr.mxu0 0.0
      %5418 = vmatpush2.msra.mxu0 0.0
      %5419 = vmatprep.subr.mxu0 0.0
      %5420 = vmatpush2.msra.mxu0 0.0
      %5421 = vmatprep.subr.mxu0 0.0
      %5422 = vmatpush2.msra.mxu0 0.0
      %5423 = vmatprep.subr.mxu0 0.0
      %5424 = vmatpush2.msra.mxu0 0.0
      %5425 = vmatprep.subr.mxu0 0.0
      %5426 = vmatpush2.msra.mxu0 0.0
      %5427 = vmatprep.subr.mxu0 0.0
      %5428 = vmatpush2.msra.mxu0 0.0
      %5429 = vmatprep.subr.mxu0 0.0
      %5430 = vmatpush2.msra.mxu0 0.0
      %5431 = vmatprep.subr.mxu0 0.0
      %5432 = vmatpush2.msra.mxu0 0.0
      %5433 = vmatprep.subr.mxu0 0.0
      %5434 = vmatpush2.msra.mxu0 0.0
      %5435 = vmatprep.subr.mxu0 0.0
      %5436 = vmatpush2.msra.mxu0 0.0
      %5437 = vmatprep.subr.mxu0 0.0
      %5438 = vmatpush2.msra.mxu0 0.0
      %5439 = vmatprep.subr.mxu0 0.0
      %5440 = vmatpush2.msra.mxu0 0.0
      %5441 = vmatprep.subr.mxu0 0.0
      %5442 = vmatpush2.msra.mxu0 0.0
      %5443 = vmatprep.subr.mxu0 0.0
      %5444 = vmatpush2.msra.mxu0 0.0
      %5445 = vmatprep.subr.mxu0 0.0
      %5446 = vmatpush2.msra.mxu0 0.0
      %5447 = vmatprep.mubr.f32.mxu0 0.0
      %5448 = vmatmul.mubr.f32.gmra.mxu0 %v5377
      %v5449 = vpop.f32.mrf.mxu0
      %v5450 = vadd.f32 0.0, %v5449
      %v5451 = vpop.f32.mrf.mxu0
      %5452 = vmatprep.mubr.f32.mxu0 0.0
      %5453 = vmatmul.mubr.f32.gmra.mxu0 %v5379
      %v5454 = vpop.f32.mrf.mxu0
      %v5455 = vadd.f32 0.0, %v5454
      %v5456 = vpop.f32.mrf.mxu0
      %5457 = vmatprep.mubr.f32.mxu0 0.0
      %5458 = vmatmul.mubr.f32.gmra.mxu0 %v5381
      %v5459 = vpop.f32.mrf.mxu0
      %v5460 = vadd.f32 0.0, %v5459
      %v5461 = vpop.f32.mrf.mxu0
      %5462 = vdwg.mxu0
      %v5463 = vsel %vm3782, %v4798, 0
      %v5465 = vsel %vm3782, %v4799, 0
      %v5467 = vsel %vm3782, %v4800, 0
      %5469 = vmatprep.subr.mxu0 0.0
      %5470 = vmatpush1.msra.mxu0 0.0
      %5471 = vmatprep.subr.mxu0 0.0
      %5472 = vmatpush1.msra.mxu0 0.0
      %5473 = vmatprep.subr.mxu0 0.0
      %5474 = vmatpush1.msra.mxu0 0.0
      %5475 = vmatprep.subr.mxu0 0.0
      %5476 = vmatpush1.msra.mxu0 0.0
      %5477 = vmatprep.subr.mxu0 0.0
      %5478 = vmatpush1.msra.mxu0 0.0
      %5479 = vmatprep.subr.mxu0 0.0
      %5480 = vmatpush1.msra.mxu0 0.0
      %5481 = vmatprep.subr.mxu0 0.0
      %5482 = vmatpush1.msra.mxu0 0.0
      %5483 = vmatprep.subr.mxu0 0.0
      %5484 = vmatpush1.msra.mxu0 0.0
      %5485 = vmatprep.subr.mxu0 0.0
      %5486 = vmatpush1.msra.mxu0 0.0
      %5487 = vmatprep.subr.mxu0 0.0
      %5488 = vmatpush1.msra.mxu0 0.0
      %5489 = vmatprep.subr.mxu0 0.0
      %5490 = vmatpush1.msra.mxu0 0.0
      %5491 = vmatprep.subr.mxu0 0.0
      %5492 = vmatpush1.msra.mxu0 0.0
      %5493 = vmatprep.subr.mxu0 0.0
      %5494 = vmatpush1.msra.mxu0 0.0
      %5495 = vmatprep.subr.mxu0 0.0
      %5496 = vmatpush1.msra.mxu0 %v4791
      %5497 = vmatprep.subr.mxu0 0.0
      %5498 = vmatpush1.msra.mxu0 %v4790
      %5499 = vmatprep.subr.mxu0 0.0
      %5500 = vmatpush1.msra.mxu0 %v4789
      %5501 = vmatprep.subr.mxu0 0.0
      %5502 = vmatpush2.msra.mxu0 0.0
      %5503 = vmatprep.subr.mxu0 0.0
      %5504 = vmatpush2.msra.mxu0 0.0
      %5505 = vmatprep.subr.mxu0 0.0
      %5506 = vmatpush2.msra.mxu0 0.0
      %5507 = vmatprep.subr.mxu0 0.0
      %5508 = vmatpush2.msra.mxu0 0.0
      %5509 = vmatprep.subr.mxu0 0.0
      %5510 = vmatpush2.msra.mxu0 0.0
      %5511 = vmatprep.subr.mxu0 0.0
      %5512 = vmatpush2.msra.mxu0 0.0
      %5513 = vmatprep.subr.mxu0 0.0
      %5514 = vmatpush2.msra.mxu0 0.0
      %5515 = vmatprep.subr.mxu0 0.0
      %5516 = vmatpush2.msra.mxu0 0.0
      %5517 = vmatprep.subr.mxu0 0.0
      %5518 = vmatpush2.msra.mxu0 0.0
      %5519 = vmatprep.subr.mxu0 0.0
      %5520 = vmatpush2.msra.mxu0 0.0
      %5521 = vmatprep.subr.mxu0 0.0
      %5522 = vmatpush2.msra.mxu0 0.0
      %5523 = vmatprep.subr.mxu0 0.0
      %5524 = vmatpush2.msra.mxu0 0.0
      %5525 = vmatprep.subr.mxu0 0.0
      %5526 = vmatpush2.msra.mxu0 0.0
      %5527 = vmatprep.subr.mxu0 0.0
      %5528 = vmatpush2.msra.mxu0 0.0
      %5529 = vmatprep.subr.mxu0 0.0
      %5530 = vmatpush2.msra.mxu0 0.0
      %5531 = vmatprep.subr.mxu0 0.0
      %5532 = vmatpush2.msra.mxu0 0.0
      %5533 = vmatprep.mubr.f32.mxu0 0.0
      %5534 = vmatmul.mubr.f32.gmra.mxu0 %v5463
      %v5535 = vpop.f32.mrf.mxu0
      %v5536 = vadd.f32 %v5450, %v5535
      %v5537 = vpop.f32.mrf.mxu0
      %5538 = vmatprep.mubr.f32.mxu0 0.0
      %5539 = vmatmul.mubr.f32.gmra.mxu0 %v5465
      %v5540 = vpop.f32.mrf.mxu0
      %v5541 = vadd.f32 %v5455, %v5540
      %v5542 = vpop.f32.mrf.mxu0
      %5543 = vmatprep.mubr.f32.mxu0 0.0
      %5544 = vmatmul.mubr.f32.gmra.mxu0 %v5467
      %v5545 = vpop.f32.mrf.mxu0
      %v5546 = vadd.f32 %v5460, %v5545
      %v5547 = vpop.f32.mrf.mxu0
      %5548 = vdwg.mxu0
      %v5549 = vadd.s32 %v4985, 2
      %v5550 = vadd.s32 %v4986, 2
      %v5551 = vadd.s32 %v4987, 2
      %vm5552 = vcmp.eq.s32.totalorder %v2019, %v5549
      %vm5553 = vcmp.eq.s32.totalorder %v2019, %v5550
      %vm5554 = vcmp.eq.s32.totalorder %v2019, %v5551
      %v5555 = vsel %vm5552, 1, 0
      %v5556 = vsel %vm5553, 1, 0
      %v5557 = vsel %vm5554, 1, 0
      %v5558 = vcvt.s32.f32 %v5555
      %v5559 = vcvt.s32.f32 %v5556
      %v5560 = vcvt.s32.f32 %v5557
      %v5562 = vsel %vm1259, %v5536, 0
      %v5565 = vsel %vm1259, %v5541, 0
      %v5568 = vsel %vm1259, %v5546, 0
      %5570 = vmatprep.subr.mxu0 0.0
      %5571 = vmatpush1.msra.mxu0 0.0
      %5572 = vmatprep.subr.mxu0 0.0
      %5573 = vmatpush1.msra.mxu0 0.0
      %5574 = vmatprep.subr.mxu0 0.0
      %5575 = vmatpush1.msra.mxu0 0.0
      %5576 = vmatprep.subr.mxu0 0.0
      %5577 = vmatpush1.msra.mxu0 0.0
      %5578 = vmatprep.subr.mxu0 0.0
      %5579 = vmatpush1.msra.mxu0 0.0
      %5580 = vmatprep.subr.mxu0 0.0
      %5581 = vmatpush1.msra.mxu0 0.0
      %5582 = vmatprep.subr.mxu0 0.0
      %5583 = vmatpush1.msra.mxu0 0.0
      %5584 = vmatprep.subr.mxu0 0.0
      %5585 = vmatpush1.msra.mxu0 0.0
      %5586 = vmatprep.subr.mxu0 0.0
      %5587 = vmatpush1.msra.mxu0 0.0
      %5588 = vmatprep.subr.mxu0 0.0
      %5589 = vmatpush1.msra.mxu0 0.0
      %5590 = vmatprep.subr.mxu0 0.0
      %5591 = vmatpush1.msra.mxu0 0.0
      %5592 = vmatprep.subr.mxu0 0.0
      %5593 = vmatpush1.msra.mxu0 0.0
      %5594 = vmatprep.subr.mxu0 0.0
      %5595 = vmatpush1.msra.mxu0 %v5560
      %5596 = vmatprep.subr.mxu0 0.0
      %5597 = vmatpush1.msra.mxu0 %v5559
      %5598 = vmatprep.subr.mxu0 0.0
      %5599 = vmatpush1.msra.mxu0 %v5558
      %5600 = vmatprep.subr.mxu0 0.0
      %5601 = vmatpush1.msra.mxu0 %v4240
      %5602 = vmatprep.subr.mxu0 0.0
      %5603 = vmatpush2.msra.mxu0 0.0
      %5604 = vmatprep.subr.mxu0 0.0
      %5605 = vmatpush2.msra.mxu0 0.0
      %5606 = vmatprep.subr.mxu0 0.0
      %5607 = vmatpush2.msra.mxu0 0.0
      %5608 = vmatprep.subr.mxu0 0.0
      %5609 = vmatpush2.msra.mxu0 0.0
      %5610 = vmatprep.subr.mxu0 0.0
      %5611 = vmatpush2.msra.mxu0 0.0
      %5612 = vmatprep.subr.mxu0 0.0
      %5613 = vmatpush2.msra.mxu0 0.0
      %5614 = vmatprep.subr.mxu0 0.0
      %5615 = vmatpush2.msra.mxu0 0.0
      %5616 = vmatprep.subr.mxu0 0.0
      %5617 = vmatpush2.msra.mxu0 0.0
      %5618 = vmatprep.subr.mxu0 0.0
      %5619 = vmatpush2.msra.mxu0 0.0
      %5620 = vmatprep.subr.mxu0 0.0
      %5621 = vmatpush2.msra.mxu0 0.0
      %5622 = vmatprep.subr.mxu0 0.0
      %5623 = vmatpush2.msra.mxu0 0.0
      %5624 = vmatprep.subr.mxu0 0.0
      %5625 = vmatpush2.msra.mxu0 0.0
      %5626 = vmatprep.subr.mxu0 0.0
      %5627 = vmatpush2.msra.mxu0 0.0
      %5628 = vmatprep.subr.mxu0 0.0
      %5629 = vmatpush2.msra.mxu0 0.0
      %5630 = vmatprep.subr.mxu0 0.0
      %5631 = vmatpush2.msra.mxu0 0.0
      %5632 = vmatprep.subr.mxu0 0.0
      %5633 = vmatpush2.msra.mxu0 0.0
      %5634 = vmatprep.mubr.f32.mxu0 0.0
      %5635 = vmatmul.mubr.f32.gmra.mxu0 %v5562
      %v5636 = vpop.f32.mrf.mxu0
      %v5637 = vadd.f32 0.0, %v5636
      %v5638 = vpop.f32.mrf.mxu0
      %5639 = vmatprep.mubr.f32.mxu0 0.0
      %5640 = vmatmul.mubr.f32.gmra.mxu0 %v5565
      %v5641 = vpop.f32.mrf.mxu0
      %v5642 = vadd.f32 0.0, %v5641
      %v5643 = vpop.f32.mrf.mxu0
      %5644 = vmatprep.mubr.f32.mxu0 0.0
      %5645 = vmatmul.mubr.f32.gmra.mxu0 %v5568
      %v5646 = vpop.f32.mrf.mxu0
      %v5647 = vadd.f32 0.0, %v5646
      %v5648 = vpop.f32.mrf.mxu0
      %5649 = vdwg.mxu0
      %v5650 = vadd.f32 %v5355, %v5637
      %v5651 = vadd.f32 %v5360, %v5642
      %v5652 = vadd.f32 %v5365, %v5647
      %5656 = vrot.lane.b32.xlu0 %v4801, 104
      %v5657 = vpop.permute.xlu0 %5656
      %5658 = vrot.lane.b32.xlu0 %v4802, 104
      %v5659 = vpop.permute.xlu0 %5658
      %5660 = vrot.lane.b32.xlu0 %v4803, 104
      %v5661 = vpop.permute.xlu0 %5660
      %v5662 = vsel %vm3782, %v5657, 0
      %v5664 = vsel %vm3782, %v5659, 0
      %v5666 = vsel %vm3782, %v5661, 0
      %5668 = vmatprep.subr.mxu0 0.0
      %5669 = vmatpush1.msra.mxu0 0.0
      %5670 = vmatprep.subr.mxu0 0.0
      %5671 = vmatpush1.msra.mxu0 0.0
      %5672 = vmatprep.subr.mxu0 0.0
      %5673 = vmatpush1.msra.mxu0 0.0
      %5674 = vmatprep.subr.mxu0 0.0
      %5675 = vmatpush1.msra.mxu0 0.0
      %5676 = vmatprep.subr.mxu0 0.0
      %5677 = vmatpush1.msra.mxu0 0.0
      %5678 = vmatprep.subr.mxu0 0.0
      %5679 = vmatpush1.msra.mxu0 0.0
      %5680 = vmatprep.subr.mxu0 0.0
      %5681 = vmatpush1.msra.mxu0 0.0
      %5682 = vmatprep.subr.mxu0 0.0
      %5683 = vmatpush1.msra.mxu0 0.0
      %5684 = vmatprep.subr.mxu0 0.0
      %5685 = vmatpush1.msra.mxu0 0.0
      %5686 = vmatprep.subr.mxu0 0.0
      %5687 = vmatpush1.msra.mxu0 0.0
      %5688 = vmatprep.subr.mxu0 0.0
      %5689 = vmatpush1.msra.mxu0 0.0
      %5690 = vmatprep.subr.mxu0 0.0
      %5691 = vmatpush1.msra.mxu0 0.0
      %5692 = vmatprep.subr.mxu0 0.0
      %5693 = vmatpush1.msra.mxu0 0.0
      %5694 = vmatprep.subr.mxu0 0.0
      %5695 = vmatpush1.msra.mxu0 %v3218
      %5696 = vmatprep.subr.mxu0 0.0
      %5697 = vmatpush1.msra.mxu0 %v3217
      %5698 = vmatprep.subr.mxu0 0.0
      %5699 = vmatpush1.msra.mxu0 %v3216
      %5700 = vmatprep.subr.mxu0 0.0
      %5701 = vmatpush2.msra.mxu0 0.0
      %5702 = vmatprep.subr.mxu0 0.0
      %5703 = vmatpush2.msra.mxu0 0.0
      %5704 = vmatprep.subr.mxu0 0.0
      %5705 = vmatpush2.msra.mxu0 0.0
      %5706 = vmatprep.subr.mxu0 0.0
      %5707 = vmatpush2.msra.mxu0 0.0
      %5708 = vmatprep.subr.mxu0 0.0
      %5709 = vmatpush2.msra.mxu0 0.0
      %5710 = vmatprep.subr.mxu0 0.0
      %5711 = vmatpush2.msra.mxu0 0.0
      %5712 = vmatprep.subr.mxu0 0.0
      %5713 = vmatpush2.msra.mxu0 0.0
      %5714 = vmatprep.subr.mxu0 0.0
      %5715 = vmatpush2.msra.mxu0 0.0
      %5716 = vmatprep.subr.mxu0 0.0
      %5717 = vmatpush2.msra.mxu0 0.0
      %5718 = vmatprep.subr.mxu0 0.0
      %5719 = vmatpush2.msra.mxu0 0.0
      %5720 = vmatprep.subr.mxu0 0.0
      %5721 = vmatpush2.msra.mxu0 0.0
      %5722 = vmatprep.subr.mxu0 0.0
      %5723 = vmatpush2.msra.mxu0 0.0
      %5724 = vmatprep.subr.mxu0 0.0
      %5725 = vmatpush2.msra.mxu0 0.0
      %5726 = vmatprep.subr.mxu0 0.0
      %5727 = vmatpush2.msra.mxu0 0.0
      %5728 = vmatprep.subr.mxu0 0.0
      %5729 = vmatpush2.msra.mxu0 0.0
      %5730 = vmatprep.subr.mxu0 0.0
      %5731 = vmatpush2.msra.mxu0 0.0
      %5732 = vmatprep.mubr.f32.mxu0 0.0
      %5733 = vmatmul.mubr.f32.gmra.mxu0 %v5662
      %v5734 = vpop.f32.mrf.mxu0
      %v5735 = vadd.f32 0.0, %v5734
      %v5736 = vpop.f32.mrf.mxu0
      %5737 = vmatprep.mubr.f32.mxu0 0.0
      %5738 = vmatmul.mubr.f32.gmra.mxu0 %v5664
      %v5739 = vpop.f32.mrf.mxu0
      %v5740 = vadd.f32 0.0, %v5739
      %v5741 = vpop.f32.mrf.mxu0
      %5742 = vmatprep.mubr.f32.mxu0 0.0
      %5743 = vmatmul.mubr.f32.gmra.mxu0 %v5666
      %v5744 = vpop.f32.mrf.mxu0
      %v5745 = vadd.f32 0.0, %v5744
      %v5746 = vpop.f32.mrf.mxu0
      %5747 = vdwg.mxu0
      %v5748 = vsel %vm3782, %v4801, 0
      %v5750 = vsel %vm3782, %v4802, 0
      %v5752 = vsel %vm3782, %v4803, 0
      %5754 = vmatprep.subr.mxu0 0.0
      %5755 = vmatpush1.msra.mxu0 0.0
      %5756 = vmatprep.subr.mxu0 0.0
      %5757 = vmatpush1.msra.mxu0 0.0
      %5758 = vmatprep.subr.mxu0 0.0
      %5759 = vmatpush1.msra.mxu0 0.0
      %5760 = vmatprep.subr.mxu0 0.0
      %5761 = vmatpush1.msra.mxu0 0.0
      %5762 = vmatprep.subr.mxu0 0.0
      %5763 = vmatpush1.msra.mxu0 0.0
      %5764 = vmatprep.subr.mxu0 0.0
      %5765 = vmatpush1.msra.mxu0 0.0
      %5766 = vmatprep.subr.mxu0 0.0
      %5767 = vmatpush1.msra.mxu0 0.0
      %5768 = vmatprep.subr.mxu0 0.0
      %5769 = vmatpush1.msra.mxu0 0.0
      %5770 = vmatprep.subr.mxu0 0.0
      %5771 = vmatpush1.msra.mxu0 0.0
      %5772 = vmatprep.subr.mxu0 0.0
      %5773 = vmatpush1.msra.mxu0 0.0
      %5774 = vmatprep.subr.mxu0 0.0
      %5775 = vmatpush1.msra.mxu0 0.0
      %5776 = vmatprep.subr.mxu0 0.0
      %5777 = vmatpush1.msra.mxu0 0.0
      %5778 = vmatprep.subr.mxu0 0.0
      %5779 = vmatpush1.msra.mxu0 0.0
      %5780 = vmatprep.subr.mxu0 0.0
      %5781 = vmatpush1.msra.mxu0 %v4791
      %5782 = vmatprep.subr.mxu0 0.0
      %5783 = vmatpush1.msra.mxu0 %v4790
      %5784 = vmatprep.subr.mxu0 0.0
      %5785 = vmatpush1.msra.mxu0 %v4789
      %5786 = vmatprep.subr.mxu0 0.0
      %5787 = vmatpush2.msra.mxu0 0.0
      %5788 = vmatprep.subr.mxu0 0.0
      %5789 = vmatpush2.msra.mxu0 0.0
      %5790 = vmatprep.subr.mxu0 0.0
      %5791 = vmatpush2.msra.mxu0 0.0
      %5792 = vmatprep.subr.mxu0 0.0
      %5793 = vmatpush2.msra.mxu0 0.0
      %5794 = vmatprep.subr.mxu0 0.0
      %5795 = vmatpush2.msra.mxu0 0.0
      %5796 = vmatprep.subr.mxu0 0.0
      %5797 = vmatpush2.msra.mxu0 0.0
      %5798 = vmatprep.subr.mxu0 0.0
      %5799 = vmatpush2.msra.mxu0 0.0
      %5800 = vmatprep.subr.mxu0 0.0
      %5801 = vmatpush2.msra.mxu0 0.0
      %5802 = vmatprep.subr.mxu0 0.0
      %5803 = vmatpush2.msra.mxu0 0.0
      %5804 = vmatprep.subr.mxu0 0.0
      %5805 = vmatpush2.msra.mxu0 0.0
      %5806 = vmatprep.subr.mxu0 0.0
      %5807 = vmatpush2.msra.mxu0 0.0
      %5808 = vmatprep.subr.mxu0 0.0
      %5809 = vmatpush2.msra.mxu0 0.0
      %5810 = vmatprep.subr.mxu0 0.0
      %5811 = vmatpush2.msra.mxu0 0.0
      %5812 = vmatprep.subr.mxu0 0.0
      %5813 = vmatpush2.msra.mxu0 0.0
      %5814 = vmatprep.subr.mxu0 0.0
      %5815 = vmatpush2.msra.mxu0 0.0
      %5816 = vmatprep.subr.mxu0 0.0
      %5817 = vmatpush2.msra.mxu0 0.0
      %5818 = vmatprep.mubr.f32.mxu0 0.0
      %5819 = vmatmul.mubr.f32.gmra.mxu0 %v5748
      %v5820 = vpop.f32.mrf.mxu0
      %v5821 = vadd.f32 %v5735, %v5820
      %v5822 = vpop.f32.mrf.mxu0
      %5823 = vmatprep.mubr.f32.mxu0 0.0
      %5824 = vmatmul.mubr.f32.gmra.mxu0 %v5750
      %v5825 = vpop.f32.mrf.mxu0
      %v5826 = vadd.f32 %v5740, %v5825
      %v5827 = vpop.f32.mrf.mxu0
      %5828 = vmatprep.mubr.f32.mxu0 0.0
      %5829 = vmatmul.mubr.f32.gmra.mxu0 %v5752
      %v5830 = vpop.f32.mrf.mxu0
      %v5831 = vadd.f32 %v5745, %v5830
      %v5832 = vpop.f32.mrf.mxu0
      %5833 = vdwg.mxu0
      %v5834 = vadd.s32 %v4985, 3
      %v5835 = vadd.s32 %v4986, 3
      %v5836 = vadd.s32 %v4987, 3
      %vm5837 = vcmp.eq.s32.totalorder %v2019, %v5834
      %vm5838 = vcmp.eq.s32.totalorder %v2019, %v5835
      %vm5839 = vcmp.eq.s32.totalorder %v2019, %v5836
      %v5840 = vsel %vm5837, 1, 0
      %v5841 = vsel %vm5838, 1, 0
      %v5842 = vsel %vm5839, 1, 0
      %v5843 = vcvt.s32.f32 %v5840
      %v5844 = vcvt.s32.f32 %v5841
      %v5845 = vcvt.s32.f32 %v5842
      %v5847 = vsel %vm1259, %v5821, 0
      %v5850 = vsel %vm1259, %v5826, 0
      %v5853 = vsel %vm1259, %v5831, 0
      %5855 = vmatprep.subr.mxu0 0.0
      %5856 = vmatpush1.msra.mxu0 0.0
      %5857 = vmatprep.subr.mxu0 0.0
      %5858 = vmatpush1.msra.mxu0 0.0
      %5859 = vmatprep.subr.mxu0 0.0
      %5860 = vmatpush1.msra.mxu0 0.0
      %5861 = vmatprep.subr.mxu0 0.0
      %5862 = vmatpush1.msra.mxu0 0.0
      %5863 = vmatprep.subr.mxu0 0.0
      %5864 = vmatpush1.msra.mxu0 0.0
      %5865 = vmatprep.subr.mxu0 0.0
      %5866 = vmatpush1.msra.mxu0 0.0
      %5867 = vmatprep.subr.mxu0 0.0
      %5868 = vmatpush1.msra.mxu0 0.0
      %5869 = vmatprep.subr.mxu0 0.0
      %5870 = vmatpush1.msra.mxu0 0.0
      %5871 = vmatprep.subr.mxu0 0.0
      %5872 = vmatpush1.msra.mxu0 0.0
      %5873 = vmatprep.subr.mxu0 0.0
      %5874 = vmatpush1.msra.mxu0 0.0
      %5875 = vmatprep.subr.mxu0 0.0
      %5876 = vmatpush1.msra.mxu0 0.0
      %5877 = vmatprep.subr.mxu0 0.0
      %5878 = vmatpush1.msra.mxu0 0.0
      %5879 = vmatprep.subr.mxu0 0.0
      %5880 = vmatpush1.msra.mxu0 %v5845
      %5881 = vmatprep.subr.mxu0 0.0
      %5882 = vmatpush1.msra.mxu0 %v5844
      %5883 = vmatprep.subr.mxu0 0.0
      %5884 = vmatpush1.msra.mxu0 %v5843
      %5885 = vmatprep.subr.mxu0 0.0
      %5886 = vmatpush1.msra.mxu0 %v4425
      %5887 = vmatprep.subr.mxu0 0.0
      %5888 = vmatpush2.msra.mxu0 0.0
      %5889 = vmatprep.subr.mxu0 0.0
      %5890 = vmatpush2.msra.mxu0 0.0
      %5891 = vmatprep.subr.mxu0 0.0
      %5892 = vmatpush2.msra.mxu0 0.0
      %5893 = vmatprep.subr.mxu0 0.0
      %5894 = vmatpush2.msra.mxu0 0.0
      %5895 = vmatprep.subr.mxu0 0.0
      %5896 = vmatpush2.msra.mxu0 0.0
      %5897 = vmatprep.subr.mxu0 0.0
      %5898 = vmatpush2.msra.mxu0 0.0
      %5899 = vmatprep.subr.mxu0 0.0
      %5900 = vmatpush2.msra.mxu0 0.0
      %5901 = vmatprep.subr.mxu0 0.0
      %5902 = vmatpush2.msra.mxu0 0.0
      %5903 = vmatprep.subr.mxu0 0.0
      %5904 = vmatpush2.msra.mxu0 0.0
      %5905 = vmatprep.subr.mxu0 0.0
      %5906 = vmatpush2.msra.mxu0 0.0
      %5907 = vmatprep.subr.mxu0 0.0
      %5908 = vmatpush2.msra.mxu0 0.0
      %5909 = vmatprep.subr.mxu0 0.0
      %5910 = vmatpush2.msra.mxu0 0.0
      %5911 = vmatprep.subr.mxu0 0.0
      %5912 = vmatpush2.msra.mxu0 0.0
      %5913 = vmatprep.subr.mxu0 0.0
      %5914 = vmatpush2.msra.mxu0 0.0
      %5915 = vmatprep.subr.mxu0 0.0
      %5916 = vmatpush2.msra.mxu0 0.0
      %5917 = vmatprep.subr.mxu0 0.0
      %5918 = vmatpush2.msra.mxu0 0.0
      %5919 = vmatprep.mubr.f32.mxu0 0.0
      %5920 = vmatmul.mubr.f32.gmra.mxu0 %v5847
      %v5921 = vpop.f32.mrf.mxu0
      %v5922 = vadd.f32 0.0, %v5921
      %v5923 = vpop.f32.mrf.mxu0
      %5924 = vmatprep.mubr.f32.mxu0 0.0
      %5925 = vmatmul.mubr.f32.gmra.mxu0 %v5850
      %v5926 = vpop.f32.mrf.mxu0
      %v5927 = vadd.f32 0.0, %v5926
      %v5928 = vpop.f32.mrf.mxu0
      %5929 = vmatprep.mubr.f32.mxu0 0.0
      %5930 = vmatmul.mubr.f32.gmra.mxu0 %v5853
      %v5931 = vpop.f32.mrf.mxu0
      %v5932 = vadd.f32 0.0, %v5931
      %v5933 = vpop.f32.mrf.mxu0
      %5934 = vdwg.mxu0
      %v5935 = vadd.f32 %v5650, %v5922
      %v5936 = vadd.f32 %v5651, %v5927
      %v5937 = vadd.f32 %v5652, %v5932
      %v5938 = vld [vmem:[%s39] sm:$0xff]
      %v5939 = vld [vmem:[%s39 + $0x8] sm:$0xff]
      %v5940 = vld [vmem:[%s39 + $0x10] sm:$0xff]
      %5942 = vset.pattern.permute.xlu0 0
      %5943 = vperm.xlu0 %5942, %v5938
      %v5944 = vpop.permute.xlu0 %5943
      %5947 = vset.pattern.permute.xlu0 0
      %5948 = vperm.xlu0 %5947, %v5939
      %v5949 = vpop.permute.xlu0 %5948
      %5952 = vset.pattern.permute.xlu0 0
      %5953 = vperm.xlu0 %5952, %v5940
      %v5954 = vpop.permute.xlu0 %5953
      %v5956 = vadd.f32 %v5935, %v5944
      %v5957 = vadd.f32 %v5936, %v5949
      %v5958 = vadd.f32 %v5937, %v5954
      %5959 = vst.msk [vmem:[#allocation2] sm:$0xff] %vm2377, 0.0
      %5960 = vst.msk [vmem:[#allocation2 + $0x18] sm:$0xff] %vm2377, 0.0
      %5961 = vst.msk [vmem:[#allocation2 + $0x30] sm:$0xff] %vm2377, 0.0
      %5962 = vst.msk [vmem:[#allocation2 + $0x8] sm:$0xff] %vm2381, 0.0
      %5963 = vst.msk [vmem:[#allocation2 + $0x20] sm:$0xff] %vm2381, 0.0
      %5964 = vst.msk [vmem:[#allocation2 + $0x38] sm:$0xff] %vm2381, 0.0
      %5968 = vrot.lane.b32.xlu0 %v5956, 2
      %v5969 = vpop.permute.xlu0 %5968
      %5970 = vrot.lane.b32.xlu0 %v5957, 2
      %v5971 = vpop.permute.xlu0 %5970
      %5972 = vrot.lane.b32.xlu0 %v5958, 2
      %v5973 = vpop.permute.xlu0 %5972
      %5977 = vst.msk [vmem:[#allocation2] sm:$0xff] %vm2397, %v5969
      %5978 = vst.msk [vmem:[#allocation2 + $0x8] sm:$0xff] %vm2377, %v5969
      %5979 = vst.msk [vmem:[#allocation2 + $0x18] sm:$0xff] %vm2397, %v5971
      %5980 = vst.msk [vmem:[#allocation2 + $0x20] sm:$0xff] %vm2377, %v5971
      %5981 = vst.msk [vmem:[#allocation2 + $0x30] sm:$0xff] %vm2397, %v5973
      %5982 = vst.msk [vmem:[#allocation2 + $0x38] sm:$0xff] %vm2377, %v5973
      %v5983 = vld [vmem:[#allocation2] sm:$0xff]
      %v5984 = vld [vmem:[#allocation2 + $0x18] sm:$0xff]
      %v5985 = vld [vmem:[#allocation2 + $0x30] sm:$0xff]
      %5986 = vst [vmem:[#allocation3] sm:$0xff] %v5983
      %5987 = vst [vmem:[#allocation3 + $0x10] sm:$0xff] %v5984
      %5988 = vst [vmem:[#allocation3 + $0x20] sm:$0xff] %v5985
      %v5989 = vld [vmem:[#allocation2] sm:$0xff]
      %v5990 = vld [vmem:[#allocation2 + $0x8] sm:$0xff]
      %v5991 = vld [vmem:[#allocation2 + $0x18] sm:$0xff]
      %v5992 = vld [vmem:[#allocation2 + $0x20] sm:$0xff]
      %v5993 = vld [vmem:[#allocation2 + $0x30] sm:$0xff]
      %v5994 = vld [vmem:[#allocation2 + $0x38] sm:$0xff]
      %6001 = vrot.lane.b32.xlu0 %v5989, 127
      %v6002 = vpop.permute.xlu0 %6001
      %6003 = vrot.lane.b32.xlu0 %v5990, 127
      %v6004 = vpop.permute.xlu0 %6003
      %6005 = vrot.lane.b32.xlu0 %v5991, 127
      %v6006 = vpop.permute.xlu0 %6005
      %6007 = vrot.lane.b32.xlu0 %v5992, 127
      %v6008 = vpop.permute.xlu0 %6007
      %6009 = vrot.lane.b32.xlu0 %v5993, 127
      %v6010 = vpop.permute.xlu0 %6009
      %6011 = vrot.lane.b32.xlu0 %v5994, 127
      %v6012 = vpop.permute.xlu0 %6011
      %v6013 = vsel %vm989, %v6002, %v6004
      %v6014 = vsel %vm989, %v6006, %v6008
      %v6015 = vsel %vm989, %v6010, %v6012
      %6019 = vst [vmem:[#allocation3 + $0x30] sm:$0xff] %v6013
      %6020 = vst [vmem:[#allocation3 + $0x40] sm:$0xff] %v6014
      %6021 = vst [vmem:[#allocation3 + $0x50] sm:$0xff] %v6015
      %v6022 = vld [vmem:[#allocation2] sm:$0xff]
      %v6023 = vld [vmem:[#allocation2 + $0x8] sm:$0xff]
      %v6024 = vld [vmem:[#allocation2 + $0x18] sm:$0xff]
      %v6025 = vld [vmem:[#allocation2 + $0x20] sm:$0xff]
      %v6026 = vld [vmem:[#allocation2 + $0x30] sm:$0xff]
      %v6027 = vld [vmem:[#allocation2 + $0x38] sm:$0xff]
      %6034 = vrot.lane.b32.xlu0 %v6022, 126
      %v6035 = vpop.permute.xlu0 %6034
      %6036 = vrot.lane.b32.xlu0 %v6023, 126
      %v6037 = vpop.permute.xlu0 %6036
      %6038 = vrot.lane.b32.xlu0 %v6024, 126
      %v6039 = vpop.permute.xlu0 %6038
      %6040 = vrot.lane.b32.xlu0 %v6025, 126
      %v6041 = vpop.permute.xlu0 %6040
      %6042 = vrot.lane.b32.xlu0 %v6026, 126
      %v6043 = vpop.permute.xlu0 %6042
      %6044 = vrot.lane.b32.xlu0 %v6027, 126
      %v6045 = vpop.permute.xlu0 %6044
      %v6046 = vsel %vm1000, %v6035, %v6037
      %v6047 = vsel %vm1000, %v6039, %v6041
      %v6048 = vsel %vm1000, %v6043, %v6045
      %6052 = vst [vmem:[#allocation3 + $0x60] sm:$0xff] %v6046
      %6053 = vst [vmem:[#allocation3 + $0x70] sm:$0xff] %v6047
      %6054 = vst [vmem:[#allocation3 + $0x80] sm:$0xff] %v6048
      %v6055 = vld [vmem:[#allocation2] sm:$0xff]
      %v6056 = vld [vmem:[#allocation2 + $0x8] sm:$0xff]
      %v6057 = vld [vmem:[#allocation2 + $0x18] sm:$0xff]
      %v6058 = vld [vmem:[#allocation2 + $0x20] sm:$0xff]
      %v6059 = vld [vmem:[#allocation2 + $0x30] sm:$0xff]
      %v6060 = vld [vmem:[#allocation2 + $0x38] sm:$0xff]
      %6067 = vrot.lane.b32.xlu0 %v6055, 125
      %v6068 = vpop.permute.xlu0 %6067
      %6069 = vrot.lane.b32.xlu0 %v6056, 125
      %v6070 = vpop.permute.xlu0 %6069
      %6071 = vrot.lane.b32.xlu0 %v6057, 125
      %v6072 = vpop.permute.xlu0 %6071
      %6073 = vrot.lane.b32.xlu0 %v6058, 125
      %v6074 = vpop.permute.xlu0 %6073
      %6075 = vrot.lane.b32.xlu0 %v6059, 125
      %v6076 = vpop.permute.xlu0 %6075
      %6077 = vrot.lane.b32.xlu0 %v6060, 125
      %v6078 = vpop.permute.xlu0 %6077
      %v6079 = vsel %vm1011, %v6068, %v6070
      %v6080 = vsel %vm1011, %v6072, %v6074
      %v6081 = vsel %vm1011, %v6076, %v6078
      %6085 = vst [vmem:[#allocation3 + $0x90] sm:$0xff] %v6079
      %6086 = vst [vmem:[#allocation3 + $0xa0] sm:$0xff] %v6080
      %6087 = vst [vmem:[#allocation3 + $0xb0] sm:$0xff] %v6081
      %v6088 = vld [vmem:[#allocation2] sm:$0xff]
      %v6089 = vld [vmem:[#allocation2 + $0x8] sm:$0xff]
      %v6090 = vld [vmem:[#allocation2 + $0x18] sm:$0xff]
      %v6091 = vld [vmem:[#allocation2 + $0x20] sm:$0xff]
      %v6092 = vld [vmem:[#allocation2 + $0x30] sm:$0xff]
      %v6093 = vld [vmem:[#allocation2 + $0x38] sm:$0xff]
      %6100 = vrot.lane.b32.xlu0 %v6088, 124
      %v6101 = vpop.permute.xlu0 %6100
      %6102 = vrot.lane.b32.xlu0 %v6089, 124
      %v6103 = vpop.permute.xlu0 %6102
      %6104 = vrot.lane.b32.xlu0 %v6090, 124
      %v6105 = vpop.permute.xlu0 %6104
      %6106 = vrot.lane.b32.xlu0 %v6091, 124
      %v6107 = vpop.permute.xlu0 %6106
      %6108 = vrot.lane.b32.xlu0 %v6092, 124
      %v6109 = vpop.permute.xlu0 %6108
      %6110 = vrot.lane.b32.xlu0 %v6093, 124
      %v6111 = vpop.permute.xlu0 %6110
      %v6112 = vsel %vm1022, %v6101, %v6103
      %v6113 = vsel %vm1022, %v6105, %v6107
      %v6114 = vsel %vm1022, %v6109, %v6111
      %6118 = vst [vmem:[#allocation3 + $0xc0] sm:$0xff] %v6112
      %6119 = vst [vmem:[#allocation3 + $0xd0] sm:$0xff] %v6113
      %6120 = vst [vmem:[#allocation3 + $0xe0] sm:$0xff] %v6114
      %v6121 = vld [vmem:[#allocation3] sm:$0xff]
      %v6122 = vld [vmem:[#allocation3 + $0x10] sm:$0xff]
      %v6123 = vld [vmem:[#allocation3 + $0x20] sm:$0xff]
      %v6124 = vld [vmem:[#allocation3 + $0x30] sm:$0xff]
      %v6125 = vld [vmem:[#allocation3 + $0x40] sm:$0xff]
      %v6126 = vld [vmem:[#allocation3 + $0x50] sm:$0xff]
      %v6127 = vld [vmem:[#allocation3 + $0x60] sm:$0xff]
      %v6128 = vld [vmem:[#allocation3 + $0x70] sm:$0xff]
      %v6129 = vld [vmem:[#allocation3 + $0x80] sm:$0xff]
      %v6130 = vld [vmem:[#allocation3 + $0x90] sm:$0xff]
      %v6131 = vld [vmem:[#allocation3 + $0xa0] sm:$0xff]
      %v6132 = vld [vmem:[#allocation3 + $0xb0] sm:$0xff]
      %v6133 = vld [vmem:[#allocation3 + $0xc0] sm:$0xff]
      %v6134 = vld [vmem:[#allocation3 + $0xd0] sm:$0xff]
      %v6135 = vld [vmem:[#allocation3 + $0xe0] sm:$0xff]
      %v6136 = vld [vmem:[%s41] sm:$0xff]
      %v6137 = vld [vmem:[%s41 + $0x8] sm:$0xff]
      %v6138 = vld [vmem:[%s41 + $0x10] sm:$0xff]
      %v6140 = vsel %vm1066, %v6136, 0
      %v6143 = vsel %vm1066, %v6137, 0
      %v6146 = vsel %vm1066, %v6138, 0
      %6148 = vmatprep.subr.mxu0 0.0
      %6149 = vmatpush1.msra.mxu0 0.0
      %6150 = vmatprep.subr.mxu0 0.0
      %6151 = vmatpush1.msra.mxu0 %v6135
      %6152 = vmatprep.subr.mxu0 0.0
      %6153 = vmatpush1.msra.mxu0 %v6134
      %6154 = vmatprep.subr.mxu0 0.0
      %6155 = vmatpush1.msra.mxu0 %v6133
      %6156 = vmatprep.subr.mxu0 0.0
      %6157 = vmatpush1.msra.mxu0 %v6132
      %6158 = vmatprep.subr.mxu0 0.0
      %6159 = vmatpush1.msra.mxu0 %v6131
      %6160 = vmatprep.subr.mxu0 0.0
      %6161 = vmatpush1.msra.mxu0 %v6130
      %6162 = vmatprep.subr.mxu0 0.0
      %6163 = vmatpush1.msra.mxu0 %v6129
      %6164 = vmatprep.subr.mxu0 0.0
      %6165 = vmatpush1.msra.mxu0 %v6128
      %6166 = vmatprep.subr.mxu0 0.0
      %6167 = vmatpush1.msra.mxu0 %v6127
      %6168 = vmatprep.subr.mxu0 0.0
      %6169 = vmatpush1.msra.mxu0 %v6126
      %6170 = vmatprep.subr.mxu0 0.0
      %6171 = vmatpush1.msra.mxu0 %v6125
      %6172 = vmatprep.subr.mxu0 0.0
      %6173 = vmatpush1.msra.mxu0 %v6124
      %6174 = vmatprep.subr.mxu0 0.0
      %6175 = vmatpush1.msra.mxu0 %v6123
      %6176 = vmatprep.subr.mxu0 0.0
      %6177 = vmatpush1.msra.mxu0 %v6122
      %6178 = vmatprep.subr.mxu0 0.0
      %6179 = vmatpush1.msra.mxu0 %v6121
      %6180 = vmatprep.subr.mxu0 0.0
      %6181 = vmatpush2.msra.mxu0 0.0
      %6182 = vmatprep.subr.mxu0 0.0
      %6183 = vmatpush2.msra.mxu0 0.0
      %6184 = vmatprep.subr.mxu0 0.0
      %6185 = vmatpush2.msra.mxu0 0.0
      %6186 = vmatprep.subr.mxu0 0.0
      %6187 = vmatpush2.msra.mxu0 0.0
      %6188 = vmatprep.subr.mxu0 0.0
      %6189 = vmatpush2.msra.mxu0 0.0
      %6190 = vmatprep.subr.mxu0 0.0
      %6191 = vmatpush2.msra.mxu0 0.0
      %6192 = vmatprep.subr.mxu0 0.0
      %6193 = vmatpush2.msra.mxu0 0.0
      %6194 = vmatprep.subr.mxu0 0.0
      %6195 = vmatpush2.msra.mxu0 0.0
      %6196 = vmatprep.subr.mxu0 0.0
      %6197 = vmatpush2.msra.mxu0 0.0
      %6198 = vmatprep.subr.mxu0 0.0
      %6199 = vmatpush2.msra.mxu0 0.0
      %6200 = vmatprep.subr.mxu0 0.0
      %6201 = vmatpush2.msra.mxu0 0.0
      %6202 = vmatprep.subr.mxu0 0.0
      %6203 = vmatpush2.msra.mxu0 0.0
      %6204 = vmatprep.subr.mxu0 0.0
      %6205 = vmatpush2.msra.mxu0 0.0
      %6206 = vmatprep.subr.mxu0 0.0
      %6207 = vmatpush2.msra.mxu0 0.0
      %6208 = vmatprep.subr.mxu0 0.0
      %6209 = vmatpush2.msra.mxu0 0.0
      %6210 = vmatprep.subr.mxu0 0.0
      %6211 = vmatpush2.msra.mxu0 0.0
      %6212 = vmatprep.mubr.f32.mxu0 0.0
      %6213 = vmatmul.mubr.f32.gmra.mxu0 %v6140
      %v6214 = vpop.f32.mrf.mxu0
      %v6215 = vadd.f32 0.0, %v6214
      %v6216 = vpop.f32.mrf.mxu0
      %6217 = vmatprep.mubr.f32.mxu0 0.0
      %6218 = vmatmul.mubr.f32.gmra.mxu0 %v6143
      %v6219 = vpop.f32.mrf.mxu0
      %v6220 = vadd.f32 0.0, %v6219
      %v6221 = vpop.f32.mrf.mxu0
      %6222 = vmatprep.mubr.f32.mxu0 0.0
      %6223 = vmatmul.mubr.f32.gmra.mxu0 %v6146
      %v6224 = vpop.f32.mrf.mxu0
      %v6225 = vadd.f32 0.0, %v6224
      %v6226 = vpop.f32.mrf.mxu0
      %6227 = vdwg.mxu0
      %v6228 = vld [vmem:[%s43] sm:$0xff]
      %v6229 = vld [vmem:[%s43 + $0x8] sm:$0xff]
      %v6230 = vld [vmem:[%s43 + $0x10] sm:$0xff]
      %6232 = vset.pattern.permute.xlu0 0
      %6233 = vperm.xlu0 %6232, %v6228
      %v6234 = vpop.permute.xlu0 %6233
      %6237 = vset.pattern.permute.xlu0 0
      %6238 = vperm.xlu0 %6237, %v6229
      %v6239 = vpop.permute.xlu0 %6238
      %6242 = vset.pattern.permute.xlu0 0
      %6243 = vperm.xlu0 %6242, %v6230
      %v6244 = vpop.permute.xlu0 %6243
      %v6246 = vmul.f32 %v6215, %v6234
      %v6247 = vmul.f32 %v6220, %v6239
      %v6248 = vmul.f32 %v6225, %v6244
      %v6249 = vld [vmem:[%s45] sm:$0xff]
      %v6250 = vld [vmem:[%s45 + $0x8] sm:$0xff]
      %v6251 = vld [vmem:[%s45 + $0x10] sm:$0xff]
      %6253 = vset.pattern.permute.xlu0 0
      %6254 = vperm.xlu0 %6253, %v6249
      %v6255 = vpop.permute.xlu0 %6254
      %6258 = vset.pattern.permute.xlu0 0
      %6259 = vperm.xlu0 %6258, %v6250
      %v6260 = vpop.permute.xlu0 %6259
      %6263 = vset.pattern.permute.xlu0 0
      %6264 = vperm.xlu0 %6263, %v6251
      %v6265 = vpop.permute.xlu0 %6264
      %v6267 = vadd.f32 %v6246, %v6255
      %v6268 = vadd.f32 %v6247, %v6260
      %v6269 = vadd.f32 %v6248, %v6265
      %v6270 = vmax.f32 %v6267, 0.0
      %v6271 = vmax.f32 %v6268, 0.0
      %v6272 = vmax.f32 %v6269, 0.0
      %v6273 = vadd.s32 %v2019, 128
      %v6274 = vld [vmem:[%s47] sm:$0xff]
      %v6275 = vld [vmem:[%s47 + $0x8] sm:$0xff]
      %v6276 = vld [vmem:[%s47 + $0x10] sm:$0xff]
      %v6277 = vld [vmem:[%s47 + $0x18] sm:$0xff]
      %v6278 = vld [vmem:[%s47 + $0x20] sm:$0xff]
      %v6279 = vld [vmem:[%s47 + $0x28] sm:$0xff]
      %6283 = vrot.lane.b32.xlu0 %v6274, 104
      %v6284 = vpop.permute.xlu0 %6283
      %6285 = vrot.lane.b32.xlu0 %v6275, 104
      %v6286 = vpop.permute.xlu0 %6285
      %6287 = vrot.lane.b32.xlu0 %v6276, 104
      %v6288 = vpop.permute.xlu0 %6287
      %v6289 = vsel %vm3782, %v6284, 0
      %v6291 = vsel %vm3782, %v6286, 0
      %v6293 = vsel %vm3782, %v6288, 0
      %6295 = vmatprep.subr.mxu0 0.0
      %6296 = vmatpush1.msra.mxu0 0.0
      %6297 = vmatprep.subr.mxu0 0.0
      %6298 = vmatpush1.msra.mxu0 0.0
      %6299 = vmatprep.subr.mxu0 0.0
      %6300 = vmatpush1.msra.mxu0 0.0
      %6301 = vmatprep.subr.mxu0 0.0
      %6302 = vmatpush1.msra.mxu0 0.0
      %6303 = vmatprep.subr.mxu0 0.0
      %6304 = vmatpush1.msra.mxu0 0.0
      %6305 = vmatprep.subr.mxu0 0.0
      %6306 = vmatpush1.msra.mxu0 0.0
      %6307 = vmatprep.subr.mxu0 0.0
      %6308 = vmatpush1.msra.mxu0 0.0
      %6309 = vmatprep.subr.mxu0 0.0
      %6310 = vmatpush1.msra.mxu0 0.0
      %6311 = vmatprep.subr.mxu0 0.0
      %6312 = vmatpush1.msra.mxu0 0.0
      %6313 = vmatprep.subr.mxu0 0.0
      %6314 = vmatpush1.msra.mxu0 0.0
      %6315 = vmatprep.subr.mxu0 0.0
      %6316 = vmatpush1.msra.mxu0 0.0
      %6317 = vmatprep.subr.mxu0 0.0
      %6318 = vmatpush1.msra.mxu0 0.0
      %6319 = vmatprep.subr.mxu0 0.0
      %6320 = vmatpush1.msra.mxu0 0.0
      %6321 = vmatprep.subr.mxu0 0.0
      %6322 = vmatpush1.msra.mxu0 %v2376
      %6323 = vmatprep.subr.mxu0 0.0
      %6324 = vmatpush1.msra.mxu0 %v2375
      %6325 = vmatprep.subr.mxu0 0.0
      %6326 = vmatpush1.msra.mxu0 %v2374
      %6327 = vmatprep.subr.mxu0 0.0
      %6328 = vmatpush2.msra.mxu0 0.0
      %6329 = vmatprep.subr.mxu0 0.0
      %6330 = vmatpush2.msra.mxu0 0.0
      %6331 = vmatprep.subr.mxu0 0.0
      %6332 = vmatpush2.msra.mxu0 0.0
      %6333 = vmatprep.subr.mxu0 0.0
      %6334 = vmatpush2.msra.mxu0 0.0
      %6335 = vmatprep.subr.mxu0 0.0
      %6336 = vmatpush2.msra.mxu0 0.0
      %6337 = vmatprep.subr.mxu0 0.0
      %6338 = vmatpush2.msra.mxu0 0.0
      %6339 = vmatprep.subr.mxu0 0.0
      %6340 = vmatpush2.msra.mxu0 0.0
      %6341 = vmatprep.subr.mxu0 0.0
      %6342 = vmatpush2.msra.mxu0 0.0
      %6343 = vmatprep.subr.mxu0 0.0
      %6344 = vmatpush2.msra.mxu0 0.0
      %6345 = vmatprep.subr.mxu0 0.0
      %6346 = vmatpush2.msra.mxu0 0.0
      %6347 = vmatprep.subr.mxu0 0.0
      %6348 = vmatpush2.msra.mxu0 0.0
      %6349 = vmatprep.subr.mxu0 0.0
      %6350 = vmatpush2.msra.mxu0 0.0
      %6351 = vmatprep.subr.mxu0 0.0
      %6352 = vmatpush2.msra.mxu0 0.0
      %6353 = vmatprep.subr.mxu0 0.0
      %6354 = vmatpush2.msra.mxu0 0.0
      %6355 = vmatprep.subr.mxu0 0.0
      %6356 = vmatpush2.msra.mxu0 0.0
      %6357 = vmatprep.subr.mxu0 0.0
      %6358 = vmatpush2.msra.mxu0 0.0
      %6359 = vmatprep.mubr.f32.mxu0 0.0
      %6360 = vmatmul.mubr.f32.gmra.mxu0 %v6289
      %v6361 = vpop.f32.mrf.mxu0
      %v6362 = vadd.f32 0.0, %v6361
      %v6363 = vpop.f32.mrf.mxu0
      %6364 = vmatprep.mubr.f32.mxu0 0.0
      %6365 = vmatmul.mubr.f32.gmra.mxu0 %v6291
      %v6366 = vpop.f32.mrf.mxu0
      %v6367 = vadd.f32 0.0, %v6366
      %v6368 = vpop.f32.mrf.mxu0
      %6369 = vmatprep.mubr.f32.mxu0 0.0
      %6370 = vmatmul.mubr.f32.gmra.mxu0 %v6293
      %v6371 = vpop.f32.mrf.mxu0
      %v6372 = vadd.f32 0.0, %v6371
      %v6373 = vpop.f32.mrf.mxu0
      %6374 = vdwg.mxu0
      %v6375 = vsel %vm3782, %v6274, 0
      %v6377 = vsel %vm3782, %v6275, 0
      %v6379 = vsel %vm3782, %v6276, 0
      %6381 = vmatprep.subr.mxu0 0.0
      %6382 = vmatpush1.msra.mxu0 0.0
      %6383 = vmatprep.subr.mxu0 0.0
      %6384 = vmatpush1.msra.mxu0 0.0
      %6385 = vmatprep.subr.mxu0 0.0
      %6386 = vmatpush1.msra.mxu0 0.0
      %6387 = vmatprep.subr.mxu0 0.0
      %6388 = vmatpush1.msra.mxu0 0.0
      %6389 = vmatprep.subr.mxu0 0.0
      %6390 = vmatpush1.msra.mxu0 0.0
      %6391 = vmatprep.subr.mxu0 0.0
      %6392 = vmatpush1.msra.mxu0 0.0
      %6393 = vmatprep.subr.mxu0 0.0
      %6394 = vmatpush1.msra.mxu0 0.0
      %6395 = vmatprep.subr.mxu0 0.0
      %6396 = vmatpush1.msra.mxu0 0.0
      %6397 = vmatprep.subr.mxu0 0.0
      %6398 = vmatpush1.msra.mxu0 0.0
      %6399 = vmatprep.subr.mxu0 0.0
      %6400 = vmatpush1.msra.mxu0 0.0
      %6401 = vmatprep.subr.mxu0 0.0
      %6402 = vmatpush1.msra.mxu0 0.0
      %6403 = vmatprep.subr.mxu0 0.0
      %6404 = vmatpush1.msra.mxu0 0.0
      %6405 = vmatprep.subr.mxu0 0.0
      %6406 = vmatpush1.msra.mxu0 0.0
      %6407 = vmatprep.subr.mxu0 0.0
      %6408 = vmatpush1.msra.mxu0 %v6272
      %6409 = vmatprep.subr.mxu0 0.0
      %6410 = vmatpush1.msra.mxu0 %v6271
      %6411 = vmatprep.subr.mxu0 0.0
      %6412 = vmatpush1.msra.mxu0 %v6270
      %6413 = vmatprep.subr.mxu0 0.0
      %6414 = vmatpush2.msra.mxu0 0.0
      %6415 = vmatprep.subr.mxu0 0.0
      %6416 = vmatpush2.msra.mxu0 0.0
      %6417 = vmatprep.subr.mxu0 0.0
      %6418 = vmatpush2.msra.mxu0 0.0
      %6419 = vmatprep.subr.mxu0 0.0
      %6420 = vmatpush2.msra.mxu0 0.0
      %6421 = vmatprep.subr.mxu0 0.0
      %6422 = vmatpush2.msra.mxu0 0.0
      %6423 = vmatprep.subr.mxu0 0.0
      %6424 = vmatpush2.msra.mxu0 0.0
      %6425 = vmatprep.subr.mxu0 0.0
      %6426 = vmatpush2.msra.mxu0 0.0
      %6427 = vmatprep.subr.mxu0 0.0
      %6428 = vmatpush2.msra.mxu0 0.0
      %6429 = vmatprep.subr.mxu0 0.0
      %6430 = vmatpush2.msra.mxu0 0.0
      %6431 = vmatprep.subr.mxu0 0.0
      %6432 = vmatpush2.msra.mxu0 0.0
      %6433 = vmatprep.subr.mxu0 0.0
      %6434 = vmatpush2.msra.mxu0 0.0
      %6435 = vmatprep.subr.mxu0 0.0
      %6436 = vmatpush2.msra.mxu0 0.0
      %6437 = vmatprep.subr.mxu0 0.0
      %6438 = vmatpush2.msra.mxu0 0.0
      %6439 = vmatprep.subr.mxu0 0.0
      %6440 = vmatpush2.msra.mxu0 0.0
      %6441 = vmatprep.subr.mxu0 0.0
      %6442 = vmatpush2.msra.mxu0 0.0
      %6443 = vmatprep.subr.mxu0 0.0
      %6444 = vmatpush2.msra.mxu0 0.0
      %6445 = vmatprep.mubr.f32.mxu0 0.0
      %6446 = vmatmul.mubr.f32.gmra.mxu0 %v6375
      %v6447 = vpop.f32.mrf.mxu0
      %v6448 = vadd.f32 %v6362, %v6447
      %v6449 = vpop.f32.mrf.mxu0
      %6450 = vmatprep.mubr.f32.mxu0 0.0
      %6451 = vmatmul.mubr.f32.gmra.mxu0 %v6377
      %v6452 = vpop.f32.mrf.mxu0
      %v6453 = vadd.f32 %v6367, %v6452
      %v6454 = vpop.f32.mrf.mxu0
      %6455 = vmatprep.mubr.f32.mxu0 0.0
      %6456 = vmatmul.mubr.f32.gmra.mxu0 %v6379
      %v6457 = vpop.f32.mrf.mxu0
      %v6458 = vadd.f32 %v6372, %v6457
      %v6459 = vpop.f32.mrf.mxu0
      %6460 = vdwg.mxu0
      %v6461 = vmul.u32 %v1986, 2
      %v6462 = vmul.u32 %v1987, 2
      %v6463 = vmul.u32 %v1988, 2
      %v6464 = vmul.u32 %v1989, 2
      %v6465 = vmul.u32 %v1990, 2
      %v6466 = vmul.u32 %v1991, 2
      %v6467 = vmul.u32 %v1992, 2
      %v6468 = vmul.u32 %v1993, 2
      %v6469 = vmul.u32 %v1994, 2
      %v6470 = vmul.u32 %v1995, 2
      %v6471 = vmul.u32 %v1996, 2
      %v6472 = vmul.u32 %v1997, 2
      %v6473 = vmul.u32 %v1998, 2
      %v6474 = vmul.u32 %v1999, 2
      %v6475 = vmul.u32 %v2000, 2
      %v6476 = vmul.u32 %v2001, 2
      %vm6477 = vcmp.eq.s32.totalorder %v2019, %v6461
      %vm6478 = vcmp.eq.s32.totalorder %v6273, %v6461
      %vm6479 = vcmp.eq.s32.totalorder %v2019, %v6462
      %vm6480 = vcmp.eq.s32.totalorder %v6273, %v6462
      %vm6481 = vcmp.eq.s32.totalorder %v2019, %v6463
      %vm6482 = vcmp.eq.s32.totalorder %v6273, %v6463
      %vm6483 = vcmp.eq.s32.totalorder %v2019, %v6464
      %vm6484 = vcmp.eq.s32.totalorder %v6273, %v6464
      %vm6485 = vcmp.eq.s32.totalorder %v2019, %v6465
      %vm6486 = vcmp.eq.s32.totalorder %v6273, %v6465
      %vm6487 = vcmp.eq.s32.totalorder %v2019, %v6466
      %vm6488 = vcmp.eq.s32.totalorder %v6273, %v6466
      %vm6489 = vcmp.eq.s32.totalorder %v2019, %v6467
      %vm6490 = vcmp.eq.s32.totalorder %v6273, %v6467
      %vm6491 = vcmp.eq.s32.totalorder %v2019, %v6468
      %vm6492 = vcmp.eq.s32.totalorder %v6273, %v6468
      %vm6493 = vcmp.eq.s32.totalorder %v2019, %v6469
      %vm6494 = vcmp.eq.s32.totalorder %v6273, %v6469
      %vm6495 = vcmp.eq.s32.totalorder %v2019, %v6470
      %vm6496 = vcmp.eq.s32.totalorder %v6273, %v6470
      %vm6497 = vcmp.eq.s32.totalorder %v2019, %v6471
      %vm6498 = vcmp.eq.s32.totalorder %v6273, %v6471
      %vm6499 = vcmp.eq.s32.totalorder %v2019, %v6472
      %vm6500 = vcmp.eq.s32.totalorder %v6273, %v6472
      %vm6501 = vcmp.eq.s32.totalorder %v2019, %v6473
      %vm6502 = vcmp.eq.s32.totalorder %v6273, %v6473
      %vm6503 = vcmp.eq.s32.totalorder %v2019, %v6474
      %vm6504 = vcmp.eq.s32.totalorder %v6273, %v6474
      %vm6505 = vcmp.eq.s32.totalorder %v2019, %v6475
      %vm6506 = vcmp.eq.s32.totalorder %v6273, %v6475
      %vm6507 = vcmp.eq.s32.totalorder %v2019, %v6476
      %vm6508 = vcmp.eq.s32.totalorder %v6273, %v6476
      %v6509 = vsel %vm6477, 1, 0
      %v6510 = vsel %vm6478, 1, 0
      %v6511 = vsel %vm6479, 1, 0
      %v6512 = vsel %vm6480, 1, 0
      %v6513 = vsel %vm6481, 1, 0
      %v6514 = vsel %vm6482, 1, 0
      %v6515 = vsel %vm6483, 1, 0
      %v6516 = vsel %vm6484, 1, 0
      %v6517 = vsel %vm6485, 1, 0
      %v6518 = vsel %vm6486, 1, 0
      %v6519 = vsel %vm6487, 1, 0
      %v6520 = vsel %vm6488, 1, 0
      %v6521 = vsel %vm6489, 1, 0
      %v6522 = vsel %vm6490, 1, 0
      %v6523 = vsel %vm6491, 1, 0
      %v6524 = vsel %vm6492, 1, 0
      %v6525 = vsel %vm6493, 1, 0
      %v6526 = vsel %vm6494, 1, 0
      %v6527 = vsel %vm6495, 1, 0
      %v6528 = vsel %vm6496, 1, 0
      %v6529 = vsel %vm6497, 1, 0
      %v6530 = vsel %vm6498, 1, 0
      %v6531 = vsel %vm6499, 1, 0
      %v6532 = vsel %vm6500, 1, 0
      %v6533 = vsel %vm6501, 1, 0
      %v6534 = vsel %vm6502, 1, 0
      %v6535 = vsel %vm6503, 1, 0
      %v6536 = vsel %vm6504, 1, 0
      %v6537 = vsel %vm6505, 1, 0
      %v6538 = vsel %vm6506, 1, 0
      %v6539 = vsel %vm6507, 1, 0
      %v6540 = vsel %vm6508, 1, 0
      %v6541 = vcvt.s32.f32 %v6509
      %v6542 = vcvt.s32.f32 %v6510
      %v6543 = vcvt.s32.f32 %v6511
      %v6544 = vcvt.s32.f32 %v6512
      %v6545 = vcvt.s32.f32 %v6513
      %v6546 = vcvt.s32.f32 %v6514
      %v6547 = vcvt.s32.f32 %v6515
      %v6548 = vcvt.s32.f32 %v6516
      %v6549 = vcvt.s32.f32 %v6517
      %v6550 = vcvt.s32.f32 %v6518
      %v6551 = vcvt.s32.f32 %v6519
      %v6552 = vcvt.s32.f32 %v6520
      %v6553 = vcvt.s32.f32 %v6521
      %v6554 = vcvt.s32.f32 %v6522
      %v6555 = vcvt.s32.f32 %v6523
      %v6556 = vcvt.s32.f32 %v6524
      %v6557 = vcvt.s32.f32 %v6525
      %v6558 = vcvt.s32.f32 %v6526
      %v6559 = vcvt.s32.f32 %v6527
      %v6560 = vcvt.s32.f32 %v6528
      %v6561 = vcvt.s32.f32 %v6529
      %v6562 = vcvt.s32.f32 %v6530
      %v6563 = vcvt.s32.f32 %v6531
      %v6564 = vcvt.s32.f32 %v6532
      %v6565 = vcvt.s32.f32 %v6533
      %v6566 = vcvt.s32.f32 %v6534
      %v6567 = vcvt.s32.f32 %v6535
      %v6568 = vcvt.s32.f32 %v6536
      %v6569 = vcvt.s32.f32 %v6537
      %v6570 = vcvt.s32.f32 %v6538
      %v6571 = vcvt.s32.f32 %v6539
      %v6572 = vcvt.s32.f32 %v6540
      %6576 = vrot.lane.b32.xlu0 %v6277, 104
      %v6577 = vpop.permute.xlu0 %6576
      %6578 = vrot.lane.b32.xlu0 %v6278, 104
      %v6579 = vpop.permute.xlu0 %6578
      %6580 = vrot.lane.b32.xlu0 %v6279, 104
      %v6581 = vpop.permute.xlu0 %6580
      %v6582 = vsel %vm3782, %v6577, 0
      %v6584 = vsel %vm3782, %v6579, 0
      %v6586 = vsel %vm3782, %v6581, 0
      %6588 = vmatprep.subr.mxu0 0.0
      %6589 = vmatpush1.msra.mxu0 0.0
      %6590 = vmatprep.subr.mxu0 0.0
      %6591 = vmatpush1.msra.mxu0 0.0
      %6592 = vmatprep.subr.mxu0 0.0
      %6593 = vmatpush1.msra.mxu0 0.0
      %6594 = vmatprep.subr.mxu0 0.0
      %6595 = vmatpush1.msra.mxu0 0.0
      %6596 = vmatprep.subr.mxu0 0.0
      %6597 = vmatpush1.msra.mxu0 0.0
      %6598 = vmatprep.subr.mxu0 0.0
      %6599 = vmatpush1.msra.mxu0 0.0
      %6600 = vmatprep.subr.mxu0 0.0
      %6601 = vmatpush1.msra.mxu0 0.0
      %6602 = vmatprep.subr.mxu0 0.0
      %6603 = vmatpush1.msra.mxu0 0.0
      %6604 = vmatprep.subr.mxu0 0.0
      %6605 = vmatpush1.msra.mxu0 0.0
      %6606 = vmatprep.subr.mxu0 0.0
      %6607 = vmatpush1.msra.mxu0 0.0
      %6608 = vmatprep.subr.mxu0 0.0
      %6609 = vmatpush1.msra.mxu0 0.0
      %6610 = vmatprep.subr.mxu0 0.0
      %6611 = vmatpush1.msra.mxu0 0.0
      %6612 = vmatprep.subr.mxu0 0.0
      %6613 = vmatpush1.msra.mxu0 0.0
      %6614 = vmatprep.subr.mxu0 0.0
      %6615 = vmatpush1.msra.mxu0 %v2376
      %6616 = vmatprep.subr.mxu0 0.0
      %6617 = vmatpush1.msra.mxu0 %v2375
      %6618 = vmatprep.subr.mxu0 0.0
      %6619 = vmatpush1.msra.mxu0 %v2374
      %6620 = vmatprep.subr.mxu0 0.0
      %6621 = vmatpush2.msra.mxu0 0.0
      %6622 = vmatprep.subr.mxu0 0.0
      %6623 = vmatpush2.msra.mxu0 0.0
      %6624 = vmatprep.subr.mxu0 0.0
      %6625 = vmatpush2.msra.mxu0 0.0
      %6626 = vmatprep.subr.mxu0 0.0
      %6627 = vmatpush2.msra.mxu0 0.0
      %6628 = vmatprep.subr.mxu0 0.0
      %6629 = vmatpush2.msra.mxu0 0.0
      %6630 = vmatprep.subr.mxu0 0.0
      %6631 = vmatpush2.msra.mxu0 0.0
      %6632 = vmatprep.subr.mxu0 0.0
      %6633 = vmatpush2.msra.mxu0 0.0
      %6634 = vmatprep.subr.mxu0 0.0
      %6635 = vmatpush2.msra.mxu0 0.0
      %6636 = vmatprep.subr.mxu0 0.0
      %6637 = vmatpush2.msra.mxu0 0.0
      %6638 = vmatprep.subr.mxu0 0.0
      %6639 = vmatpush2.msra.mxu0 0.0
      %6640 = vmatprep.subr.mxu0 0.0
      %6641 = vmatpush2.msra.mxu0 0.0
      %6642 = vmatprep.subr.mxu0 0.0
      %6643 = vmatpush2.msra.mxu0 0.0
      %6644 = vmatprep.subr.mxu0 0.0
      %6645 = vmatpush2.msra.mxu0 0.0
      %6646 = vmatprep.subr.mxu0 0.0
      %6647 = vmatpush2.msra.mxu0 0.0
      %6648 = vmatprep.subr.mxu0 0.0
      %6649 = vmatpush2.msra.mxu0 0.0
      %6650 = vmatprep.subr.mxu0 0.0
      %6651 = vmatpush2.msra.mxu0 0.0
      %6652 = vmatprep.mubr.f32.mxu0 0.0
      %6653 = vmatmul.mubr.f32.gmra.mxu0 %v6582
      %v6654 = vpop.f32.mrf.mxu0
      %v6655 = vadd.f32 0.0, %v6654
      %v6656 = vpop.f32.mrf.mxu0
      %6657 = vmatprep.mubr.f32.mxu0 0.0
      %6658 = vmatmul.mubr.f32.gmra.mxu0 %v6584
      %v6659 = vpop.f32.mrf.mxu0
      %v6660 = vadd.f32 0.0, %v6659
      %v6661 = vpop.f32.mrf.mxu0
      %6662 = vmatprep.mubr.f32.mxu0 0.0
      %6663 = vmatmul.mubr.f32.gmra.mxu0 %v6586
      %v6664 = vpop.f32.mrf.mxu0
      %v6665 = vadd.f32 0.0, %v6664
      %v6666 = vpop.f32.mrf.mxu0
      %6667 = vdwg.mxu0
      %v6668 = vsel %vm3782, %v6277, 0
      %v6670 = vsel %vm3782, %v6278, 0
      %v6672 = vsel %vm3782, %v6279, 0
      %6674 = vmatprep.subr.mxu0 0.0
      %6675 = vmatpush1.msra.mxu0 0.0
      %6676 = vmatprep.subr.mxu0 0.0
      %6677 = vmatpush1.msra.mxu0 0.0
      %6678 = vmatprep.subr.mxu0 0.0
      %6679 = vmatpush1.msra.mxu0 0.0
      %6680 = vmatprep.subr.mxu0 0.0
      %6681 = vmatpush1.msra.mxu0 0.0
      %6682 = vmatprep.subr.mxu0 0.0
      %6683 = vmatpush1.msra.mxu0 0.0
      %6684 = vmatprep.subr.mxu0 0.0
      %6685 = vmatpush1.msra.mxu0 0.0
      %6686 = vmatprep.subr.mxu0 0.0
      %6687 = vmatpush1.msra.mxu0 0.0
      %6688 = vmatprep.subr.mxu0 0.0
      %6689 = vmatpush1.msra.mxu0 0.0
      %6690 = vmatprep.subr.mxu0 0.0
      %6691 = vmatpush1.msra.mxu0 0.0
      %6692 = vmatprep.subr.mxu0 0.0
      %6693 = vmatpush1.msra.mxu0 0.0
      %6694 = vmatprep.subr.mxu0 0.0
      %6695 = vmatpush1.msra.mxu0 0.0
      %6696 = vmatprep.subr.mxu0 0.0
      %6697 = vmatpush1.msra.mxu0 0.0
      %6698 = vmatprep.subr.mxu0 0.0
      %6699 = vmatpush1.msra.mxu0 0.0
      %6700 = vmatprep.subr.mxu0 0.0
      %6701 = vmatpush1.msra.mxu0 %v6272
      %6702 = vmatprep.subr.mxu0 0.0
      %6703 = vmatpush1.msra.mxu0 %v6271
      %6704 = vmatprep.subr.mxu0 0.0
      %6705 = vmatpush1.msra.mxu0 %v6270
      %6706 = vmatprep.subr.mxu0 0.0
      %6707 = vmatpush2.msra.mxu0 0.0
      %6708 = vmatprep.subr.mxu0 0.0
      %6709 = vmatpush2.msra.mxu0 0.0
      %6710 = vmatprep.subr.mxu0 0.0
      %6711 = vmatpush2.msra.mxu0 0.0
      %6712 = vmatprep.subr.mxu0 0.0
      %6713 = vmatpush2.msra.mxu0 0.0
      %6714 = vmatprep.subr.mxu0 0.0
      %6715 = vmatpush2.msra.mxu0 0.0
      %6716 = vmatprep.subr.mxu0 0.0
      %6717 = vmatpush2.msra.mxu0 0.0
      %6718 = vmatprep.subr.mxu0 0.0
      %6719 = vmatpush2.msra.mxu0 0.0
      %6720 = vmatprep.subr.mxu0 0.0
      %6721 = vmatpush2.msra.mxu0 0.0
      %6722 = vmatprep.subr.mxu0 0.0
      %6723 = vmatpush2.msra.mxu0 0.0
      %6724 = vmatprep.subr.mxu0 0.0
      %6725 = vmatpush2.msra.mxu0 0.0
      %6726 = vmatprep.subr.mxu0 0.0
      %6727 = vmatpush2.msra.mxu0 0.0
      %6728 = vmatprep.subr.mxu0 0.0
      %6729 = vmatpush2.msra.mxu0 0.0
      %6730 = vmatprep.subr.mxu0 0.0
      %6731 = vmatpush2.msra.mxu0 0.0
      %6732 = vmatprep.subr.mxu0 0.0
      %6733 = vmatpush2.msra.mxu0 0.0
      %6734 = vmatprep.subr.mxu0 0.0
      %6735 = vmatpush2.msra.mxu0 0.0
      %6736 = vmatprep.subr.mxu0 0.0
      %6737 = vmatpush2.msra.mxu0 0.0
      %6738 = vmatprep.mubr.f32.mxu0 0.0
      %6739 = vmatmul.mubr.f32.gmra.mxu0 %v6668
      %v6740 = vpop.f32.mrf.mxu0
      %v6741 = vadd.f32 %v6655, %v6740
      %v6742 = vpop.f32.mrf.mxu0
      %6743 = vmatprep.mubr.f32.mxu0 0.0
      %6744 = vmatmul.mubr.f32.gmra.mxu0 %v6670
      %v6745 = vpop.f32.mrf.mxu0
      %v6746 = vadd.f32 %v6660, %v6745
      %v6747 = vpop.f32.mrf.mxu0
      %6748 = vmatprep.mubr.f32.mxu0 0.0
      %6749 = vmatmul.mubr.f32.gmra.mxu0 %v6672
      %v6750 = vpop.f32.mrf.mxu0
      %v6751 = vadd.f32 %v6665, %v6750
      %v6752 = vpop.f32.mrf.mxu0
      %6753 = vdwg.mxu0
      %v6754 = vadd.s32 %v6461, 1
      %v6755 = vadd.s32 %v6462, 1
      %v6756 = vadd.s32 %v6463, 1
      %v6757 = vadd.s32 %v6464, 1
      %v6758 = vadd.s32 %v6465, 1
      %v6759 = vadd.s32 %v6466, 1
      %v6760 = vadd.s32 %v6467, 1
      %v6761 = vadd.s32 %v6468, 1
      %v6762 = vadd.s32 %v6469, 1
      %v6763 = vadd.s32 %v6470, 1
      %v6764 = vadd.s32 %v6471, 1
      %v6765 = vadd.s32 %v6472, 1
      %v6766 = vadd.s32 %v6473, 1
      %v6767 = vadd.s32 %v6474, 1
      %v6768 = vadd.s32 %v6475, 1
      %v6769 = vadd.s32 %v6476, 1
      %vm6770 = vcmp.eq.s32.totalorder %v2019, %v6754
      %vm6771 = vcmp.eq.s32.totalorder %v6273, %v6754
      %vm6772 = vcmp.eq.s32.totalorder %v2019, %v6755
      %vm6773 = vcmp.eq.s32.totalorder %v6273, %v6755
      %vm6774 = vcmp.eq.s32.totalorder %v2019, %v6756
      %vm6775 = vcmp.eq.s32.totalorder %v6273, %v6756
      %vm6776 = vcmp.eq.s32.totalorder %v2019, %v6757
      %vm6777 = vcmp.eq.s32.totalorder %v6273, %v6757
      %vm6778 = vcmp.eq.s32.totalorder %v2019, %v6758
      %vm6779 = vcmp.eq.s32.totalorder %v6273, %v6758
      %vm6780 = vcmp.eq.s32.totalorder %v2019, %v6759
      %vm6781 = vcmp.eq.s32.totalorder %v6273, %v6759
      %vm6782 = vcmp.eq.s32.totalorder %v2019, %v6760
      %vm6783 = vcmp.eq.s32.totalorder %v6273, %v6760
      %vm6784 = vcmp.eq.s32.totalorder %v2019, %v6761
      %vm6785 = vcmp.eq.s32.totalorder %v6273, %v6761
      %vm6786 = vcmp.eq.s32.totalorder %v2019, %v6762
      %vm6787 = vcmp.eq.s32.totalorder %v6273, %v6762
      %vm6788 = vcmp.eq.s32.totalorder %v2019, %v6763
      %vm6789 = vcmp.eq.s32.totalorder %v6273, %v6763
      %vm6790 = vcmp.eq.s32.totalorder %v2019, %v6764
      %vm6791 = vcmp.eq.s32.totalorder %v6273, %v6764
      %vm6792 = vcmp.eq.s32.totalorder %v2019, %v6765
      %vm6793 = vcmp.eq.s32.totalorder %v6273, %v6765
      %vm6794 = vcmp.eq.s32.totalorder %v2019, %v6766
      %vm6795 = vcmp.eq.s32.totalorder %v6273, %v6766
      %vm6796 = vcmp.eq.s32.totalorder %v2019, %v6767
      %vm6797 = vcmp.eq.s32.totalorder %v6273, %v6767
      %vm6798 = vcmp.eq.s32.totalorder %v2019, %v6768
      %vm6799 = vcmp.eq.s32.totalorder %v6273, %v6768
      %vm6800 = vcmp.eq.s32.totalorder %v2019, %v6769
      %vm6801 = vcmp.eq.s32.totalorder %v6273, %v6769
      %v6802 = vsel %vm6770, 1, 0
      %v6803 = vsel %vm6771, 1, 0
      %v6804 = vsel %vm6772, 1, 0
      %v6805 = vsel %vm6773, 1, 0
      %v6806 = vsel %vm6774, 1, 0
      %v6807 = vsel %vm6775, 1, 0
      %v6808 = vsel %vm6776, 1, 0
      %v6809 = vsel %vm6777, 1, 0
      %v6810 = vsel %vm6778, 1, 0
      %v6811 = vsel %vm6779, 1, 0
      %v6812 = vsel %vm6780, 1, 0
      %v6813 = vsel %vm6781, 1, 0
      %v6814 = vsel %vm6782, 1, 0
      %v6815 = vsel %vm6783, 1, 0
      %v6816 = vsel %vm6784, 1, 0
      %v6817 = vsel %vm6785, 1, 0
      %v6818 = vsel %vm6786, 1, 0
      %v6819 = vsel %vm6787, 1, 0
      %v6820 = vsel %vm6788, 1, 0
      %v6821 = vsel %vm6789, 1, 0
      %v6822 = vsel %vm6790, 1, 0
      %v6823 = vsel %vm6791, 1, 0
      %v6824 = vsel %vm6792, 1, 0
      %v6825 = vsel %vm6793, 1, 0
      %v6826 = vsel %vm6794, 1, 0
      %v6827 = vsel %vm6795, 1, 0
      %v6828 = vsel %vm6796, 1, 0
      %v6829 = vsel %vm6797, 1, 0
      %v6830 = vsel %vm6798, 1, 0
      %v6831 = vsel %vm6799, 1, 0
      %v6832 = vsel %vm6800, 1, 0
      %v6833 = vsel %vm6801, 1, 0
      %v6834 = vcvt.s32.f32 %v6802
      %v6835 = vcvt.s32.f32 %v6803
      %v6836 = vcvt.s32.f32 %v6804
      %v6837 = vcvt.s32.f32 %v6805
      %v6838 = vcvt.s32.f32 %v6806
      %v6839 = vcvt.s32.f32 %v6807
      %v6840 = vcvt.s32.f32 %v6808
      %v6841 = vcvt.s32.f32 %v6809
      %v6842 = vcvt.s32.f32 %v6810
      %v6843 = vcvt.s32.f32 %v6811
      %v6844 = vcvt.s32.f32 %v6812
      %v6845 = vcvt.s32.f32 %v6813
      %v6846 = vcvt.s32.f32 %v6814
      %v6847 = vcvt.s32.f32 %v6815
      %v6848 = vcvt.s32.f32 %v6816
      %v6849 = vcvt.s32.f32 %v6817
      %v6850 = vcvt.s32.f32 %v6818
      %v6851 = vcvt.s32.f32 %v6819
      %v6852 = vcvt.s32.f32 %v6820
      %v6853 = vcvt.s32.f32 %v6821
      %v6854 = vcvt.s32.f32 %v6822
      %v6855 = vcvt.s32.f32 %v6823
      %v6856 = vcvt.s32.f32 %v6824
      %v6857 = vcvt.s32.f32 %v6825
      %v6858 = vcvt.s32.f32 %v6826
      %v6859 = vcvt.s32.f32 %v6827
      %v6860 = vcvt.s32.f32 %v6828
      %v6861 = vcvt.s32.f32 %v6829
      %v6862 = vcvt.s32.f32 %v6830
      %v6863 = vcvt.s32.f32 %v6831
      %v6864 = vcvt.s32.f32 %v6832
      %v6865 = vcvt.s32.f32 %v6833
      %6866 = vmatprep.subr.mxu0 %v6865
      %6867 = vmatpush1.msra.mxu0 %v6864
      %6868 = vmatprep.subr.mxu0 %v6863
      %6869 = vmatpush1.msra.mxu0 %v6862
      %6870 = vmatprep.subr.mxu0 %v6861
      %6871 = vmatpush1.msra.mxu0 %v6860
      %6872 = vmatprep.subr.mxu0 %v6859
      %6873 = vmatpush1.msra.mxu0 %v6858
      %6874 = vmatprep.subr.mxu0 %v6857
      %6875 = vmatpush1.msra.mxu0 %v6856
      %6876 = vmatprep.subr.mxu0 %v6855
      %6877 = vmatpush1.msra.mxu0 %v6854
      %6878 = vmatprep.subr.mxu0 %v6853
      %6879 = vmatpush1.msra.mxu0 %v6852
      %6880 = vmatprep.subr.mxu0 %v6851
      %6881 = vmatpush1.msra.mxu0 %v6850
      %6882 = vmatprep.subr.mxu0 %v6849
      %6883 = vmatpush1.msra.mxu0 %v6848
      %6884 = vmatprep.subr.mxu0 %v6847
      %6885 = vmatpush1.msra.mxu0 %v6846
      %6886 = vmatprep.subr.mxu0 %v6845
      %6887 = vmatpush1.msra.mxu0 %v6844
      %6888 = vmatprep.subr.mxu0 %v6843
      %6889 = vmatpush1.msra.mxu0 %v6842
      %6890 = vmatprep.subr.mxu0 %v6841
      %6891 = vmatpush1.msra.mxu0 %v6840
      %6892 = vmatprep.subr.mxu0 %v6839
      %6893 = vmatpush1.msra.mxu0 %v6838
      %6894 = vmatprep.subr.mxu0 %v6837
      %6895 = vmatpush1.msra.mxu0 %v6836
      %6896 = vmatprep.subr.mxu0 %v6835
      %6897 = vmatpush1.msra.mxu0 %v6834
      %6898 = vmatprep.subr.mxu0 0.0
      %6899 = vmatpush2.msra.mxu0 0.0
      %6900 = vmatprep.subr.mxu0 0.0
      %6901 = vmatpush2.msra.mxu0 0.0
      %6902 = vmatprep.subr.mxu0 0.0
      %6903 = vmatpush2.msra.mxu0 0.0
      %6904 = vmatprep.subr.mxu0 0.0
      %6905 = vmatpush2.msra.mxu0 0.0
      %6906 = vmatprep.subr.mxu0 0.0
      %6907 = vmatpush2.msra.mxu0 0.0
      %6908 = vmatprep.subr.mxu0 0.0
      %6909 = vmatpush2.msra.mxu0 0.0
      %6910 = vmatprep.subr.mxu0 0.0
      %6911 = vmatpush2.msra.mxu0 0.0
      %6912 = vmatprep.subr.mxu0 0.0
      %6913 = vmatpush2.msra.mxu0 0.0
      %6914 = vmatprep.subr.mxu0 0.0
      %6915 = vmatpush2.msra.mxu0 0.0
      %6916 = vmatprep.subr.mxu0 0.0
      %6917 = vmatpush2.msra.mxu0 0.0
      %6918 = vmatprep.subr.mxu0 0.0
      %6919 = vmatpush2.msra.mxu0 0.0
      %6920 = vmatprep.subr.mxu0 0.0
      %6921 = vmatpush2.msra.mxu0 0.0
      %6922 = vmatprep.subr.mxu0 0.0
      %6923 = vmatpush2.msra.mxu0 0.0
      %6924 = vmatprep.subr.mxu0 0.0
      %6925 = vmatpush2.msra.mxu0 0.0
      %6926 = vmatprep.subr.mxu0 0.0
      %6927 = vmatpush2.msra.mxu0 0.0
      %6928 = vmatprep.subr.mxu0 0.0
      %6929 = vmatpush2.msra.mxu0 0.0
      %6930 = vmatprep.mubr.f32.mxu0 0.0
      %6931 = vmatmul.mubr.f32.gmra.mxu0 %v6741
      %v6932 = vpop.f32.mrf.mxu0
      %v6933 = vadd.f32 0.0, %v6932
      %v6934 = vpop.f32.mrf.mxu0
      %v6935 = vadd.f32 0.0, %v6934
      %6936 = vmatprep.mubr.f32.mxu0 0.0
      %6937 = vmatmul.mubr.f32.gmra.mxu0 %v6746
      %v6938 = vpop.f32.mrf.mxu0
      %v6939 = vadd.f32 0.0, %v6938
      %v6940 = vpop.f32.mrf.mxu0
      %v6941 = vadd.f32 0.0, %v6940
      %6942 = vmatprep.mubr.f32.mxu0 0.0
      %6943 = vmatmul.mubr.f32.gmra.mxu0 %v6751
      %v6944 = vpop.f32.mrf.mxu0
      %v6945 = vadd.f32 0.0, %v6944
      %v6946 = vpop.f32.mrf.mxu0
      %v6947 = vadd.f32 0.0, %v6946
      %6948 = vdwg.mxu0
      %6949 = vmatprep.subr.mxu0 %v6572
      %6950 = vmatpush1.msra.mxu0 %v6571
      %6951 = vmatprep.subr.mxu0 %v6570
      %6952 = vmatpush1.msra.mxu0 %v6569
      %6953 = vmatprep.subr.mxu0 %v6568
      %6954 = vmatpush1.msra.mxu0 %v6567
      %6955 = vmatprep.subr.mxu0 %v6566
      %6956 = vmatpush1.msra.mxu0 %v6565
      %6957 = vmatprep.subr.mxu0 %v6564
      %6958 = vmatpush1.msra.mxu0 %v6563
      %6959 = vmatprep.subr.mxu0 %v6562
      %6960 = vmatpush1.msra.mxu0 %v6561
      %6961 = vmatprep.subr.mxu0 %v6560
      %6962 = vmatpush1.msra.mxu0 %v6559
      %6963 = vmatprep.subr.mxu0 %v6558
      %6964 = vmatpush1.msra.mxu0 %v6557
      %6965 = vmatprep.subr.mxu0 %v6556
      %6966 = vmatpush1.msra.mxu0 %v6555
      %6967 = vmatprep.subr.mxu0 %v6554
      %6968 = vmatpush1.msra.mxu0 %v6553
      %6969 = vmatprep.subr.mxu0 %v6552
      %6970 = vmatpush1.msra.mxu0 %v6551
      %6971 = vmatprep.subr.mxu0 %v6550
      %6972 = vmatpush1.msra.mxu0 %v6549
      %6973 = vmatprep.subr.mxu0 %v6548
      %6974 = vmatpush1.msra.mxu0 %v6547
      %6975 = vmatprep.subr.mxu0 %v6546
      %6976 = vmatpush1.msra.mxu0 %v6545
      %6977 = vmatprep.subr.mxu0 %v6544
      %6978 = vmatpush1.msra.mxu0 %v6543
      %6979 = vmatprep.subr.mxu0 %v6542
      %6980 = vmatpush1.msra.mxu0 %v6541
      %6981 = vmatprep.subr.mxu0 0.0
      %6982 = vmatpush2.msra.mxu0 0.0
      %6983 = vmatprep.subr.mxu0 0.0
      %6984 = vmatpush2.msra.mxu0 0.0
      %6985 = vmatprep.subr.mxu0 0.0
      %6986 = vmatpush2.msra.mxu0 0.0
      %6987 = vmatprep.subr.mxu0 0.0
      %6988 = vmatpush2.msra.mxu0 0.0
      %6989 = vmatprep.subr.mxu0 0.0
      %6990 = vmatpush2.msra.mxu0 0.0
      %6991 = vmatprep.subr.mxu0 0.0
      %6992 = vmatpush2.msra.mxu0 0.0
      %6993 = vmatprep.subr.mxu0 0.0
      %6994 = vmatpush2.msra.mxu0 0.0
      %6995 = vmatprep.subr.mxu0 0.0
      %6996 = vmatpush2.msra.mxu0 0.0
      %6997 = vmatprep.subr.mxu0 0.0
      %6998 = vmatpush2.msra.mxu0 0.0
      %6999 = vmatprep.subr.mxu0 0.0
      %7000 = vmatpush2.msra.mxu0 0.0
      %7001 = vmatprep.subr.mxu0 0.0
      %7002 = vmatpush2.msra.mxu0 0.0
      %7003 = vmatprep.subr.mxu0 0.0
      %7004 = vmatpush2.msra.mxu0 0.0
      %7005 = vmatprep.subr.mxu0 0.0
      %7006 = vmatpush2.msra.mxu0 0.0
      %7007 = vmatprep.subr.mxu0 0.0
      %7008 = vmatpush2.msra.mxu0 0.0
      %7009 = vmatprep.subr.mxu0 0.0
      %7010 = vmatpush2.msra.mxu0 0.0
      %7011 = vmatprep.subr.mxu0 0.0
      %7012 = vmatpush2.msra.mxu0 0.0
      %7013 = vmatprep.mubr.f32.mxu0 0.0
      %7014 = vmatmul.mubr.f32.gmra.mxu0 %v6448
      %v7015 = vpop.f32.mrf.mxu0
      %v7016 = vadd.f32 %v6933, %v7015
      %v7017 = vpop.f32.mrf.mxu0
      %v7018 = vadd.f32 %v6935, %v7017
      %7019 = vmatprep.mubr.f32.mxu0 0.0
      %7020 = vmatmul.mubr.f32.gmra.mxu0 %v6453
      %v7021 = vpop.f32.mrf.mxu0
      %v7022 = vadd.f32 %v6939, %v7021
      %v7023 = vpop.f32.mrf.mxu0
      %v7024 = vadd.f32 %v6941, %v7023
      %7025 = vmatprep.mubr.f32.mxu0 0.0
      %7026 = vmatmul.mubr.f32.gmra.mxu0 %v6458
      %v7027 = vpop.f32.mrf.mxu0
      %v7028 = vadd.f32 %v6945, %v7027
      %v7029 = vpop.f32.mrf.mxu0
      %v7030 = vadd.f32 %v6947, %v7029
      %7031 = vdwg.mxu0
      %v7032 = vld [vmem:[%s49] sm:$0xff]
      %v7033 = vld [vmem:[%s49 + $0x8] sm:$0xff]
      %v7034 = vld [vmem:[%s49 + $0x10] sm:$0xff]
      %7036 = vset.pattern.permute.xlu0 0
      %7037 = vperm.xlu0 %7036, %v7032
      %v7038 = vpop.permute.xlu0 %7037
      %7041 = vset.pattern.permute.xlu0 0
      %7042 = vperm.xlu0 %7041, %v7033
      %v7043 = vpop.permute.xlu0 %7042
      %7046 = vset.pattern.permute.xlu0 0
      %7047 = vperm.xlu0 %7046, %v7034
      %v7048 = vpop.permute.xlu0 %7047
      %v7050 = vadd.f32 %v7016, %v7038
      %v7051 = vadd.f32 %v7018, %v7038
      %v7052 = vadd.f32 %v7022, %v7043
      %v7053 = vadd.f32 %v7024, %v7043
      %v7054 = vadd.f32 %v7028, %v7048
      %v7055 = vadd.f32 %v7030, %v7048
      %7056 = vst.msk [vmem:[#allocation2] sm:$0xff] %vm2377, 0.0
      %7057 = vst.msk [vmem:[#allocation2 + $0x18] sm:$0xff] %vm2377, 0.0
      %7058 = vst.msk [vmem:[#allocation2 + $0x30] sm:$0xff] %vm2377, 0.0
      %7059 = vst.msk [vmem:[#allocation2 + $0x10] sm:$0xff] %vm2381, 0.0
      %7060 = vst.msk [vmem:[#allocation2 + $0x28] sm:$0xff] %vm2381, 0.0
      %7061 = vst.msk [vmem:[#allocation2 + $0x40] sm:$0xff] %vm2381, 0.0
      %7068 = vrot.lane.b32.xlu0 %v7050, 2
      %v7069 = vpop.permute.xlu0 %7068
      %7070 = vrot.lane.b32.xlu0 %v7051, 2
      %v7071 = vpop.permute.xlu0 %7070
      %7072 = vrot.lane.b32.xlu0 %v7052, 2
      %v7073 = vpop.permute.xlu0 %7072
      %7074 = vrot.lane.b32.xlu0 %v7053, 2
      %v7075 = vpop.permute.xlu0 %7074
      %7076 = vrot.lane.b32.xlu0 %v7054, 2
      %v7077 = vpop.permute.xlu0 %7076
      %7078 = vrot.lane.b32.xlu0 %v7055, 2
      %v7079 = vpop.permute.xlu0 %7078
      %v7080 = vsel %vm2377, %v7069, %v7071
      %v7081 = vsel %vm2377, %v7073, %v7075
      %v7082 = vsel %vm2377, %v7077, %v7079
      %7092 = vst.msk [vmem:[#allocation2] sm:$0xff] %vm2397, %v7069
      %7093 = vst [vmem:[#allocation2 + $0x8] sm:$0xff] %v7080
      %7094 = vst.msk [vmem:[#allocation2 + $0x10] sm:$0xff] %vm2377, %v7071
      %7095 = vst.msk [vmem:[#allocation2 + $0x18] sm:$0xff] %vm2397, %v7073
      %7096 = vst [vmem:[#allocation2 + $0x20] sm:$0xff] %v7081
      %7097 = vst.msk [vmem:[#allocation2 + $0x28] sm:$0xff] %vm2377, %v7075
      %7098 = vst.msk [vmem:[#allocation2 + $0x30] sm:$0xff] %vm2397, %v7077
      %7099 = vst [vmem:[#allocation2 + $0x38] sm:$0xff] %v7082
      %7100 = vst.msk [vmem:[#allocation2 + $0x40] sm:$0xff] %vm2377, %v7079
      %v7101 = vld [vmem:[#allocation2] sm:$0xff]
      %v7102 = vld [vmem:[#allocation2 + $0x8] sm:$0xff]
      %v7103 = vld [vmem:[#allocation2 + $0x18] sm:$0xff]
      %v7104 = vld [vmem:[#allocation2 + $0x20] sm:$0xff]
      %v7105 = vld [vmem:[#allocation2 + $0x30] sm:$0xff]
      %v7106 = vld [vmem:[#allocation2 + $0x38] sm:$0xff]
      %7107 = vst [vmem:[#allocation3] sm:$0xff] %v7101
      %7108 = vst [vmem:[#allocation3 + $0x8] sm:$0xff] %v7102
      %7109 = vst [vmem:[#allocation3 + $0x10] sm:$0xff] %v7103
      %7110 = vst [vmem:[#allocation3 + $0x18] sm:$0xff] %v7104
      %7111 = vst [vmem:[#allocation3 + $0x20] sm:$0xff] %v7105
      %7112 = vst [vmem:[#allocation3 + $0x28] sm:$0xff] %v7106
      %v7113 = vld [vmem:[#allocation2] sm:$0xff]
      %v7114 = vld [vmem:[#allocation2 + $0x8] sm:$0xff]
      %v7115 = vld [vmem:[#allocation2 + $0x10] sm:$0xff]
      %v7116 = vld [vmem:[#allocation2 + $0x18] sm:$0xff]
      %v7117 = vld [vmem:[#allocation2 + $0x20] sm:$0xff]
      %v7118 = vld [vmem:[#allocation2 + $0x28] sm:$0xff]
      %v7119 = vld [vmem:[#allocation2 + $0x30] sm:$0xff]
      %v7120 = vld [vmem:[#allocation2 + $0x38] sm:$0xff]
      %v7121 = vld [vmem:[#allocation2 + $0x40] sm:$0xff]
      %7131 = vrot.lane.b32.xlu0 %v7113, 127
      %v7132 = vpop.permute.xlu0 %7131
      %7133 = vrot.lane.b32.xlu0 %v7114, 127
      %v7134 = vpop.permute.xlu0 %7133
      %7135 = vrot.lane.b32.xlu0 %v7115, 127
      %v7136 = vpop.permute.xlu0 %7135
      %7137 = vrot.lane.b32.xlu0 %v7116, 127
      %v7138 = vpop.permute.xlu0 %7137
      %7139 = vrot.lane.b32.xlu0 %v7117, 127
      %v7140 = vpop.permute.xlu0 %7139
      %7141 = vrot.lane.b32.xlu0 %v7118, 127
      %v7142 = vpop.permute.xlu0 %7141
      %7143 = vrot.lane.b32.xlu0 %v7119, 127
      %v7144 = vpop.permute.xlu0 %7143
      %7145 = vrot.lane.b32.xlu0 %v7120, 127
      %v7146 = vpop.permute.xlu0 %7145
      %7147 = vrot.lane.b32.xlu0 %v7121, 127
      %v7148 = vpop.permute.xlu0 %7147
      %v7149 = vsel %vm989, %v7132, %v7134
      %v7150 = vsel %vm989, %v7134, %v7136
      %v7151 = vsel %vm989, %v7138, %v7140
      %v7152 = vsel %vm989, %v7140, %v7142
      %v7153 = vsel %vm989, %v7144, %v7146
      %v7154 = vsel %vm989, %v7146, %v7148
      %7161 = vst [vmem:[#allocation3 + $0x30] sm:$0xff] %v7149
      %7162 = vst [vmem:[#allocation3 + $0x38] sm:$0xff] %v7150
      %7163 = vst [vmem:[#allocation3 + $0x40] sm:$0xff] %v7151
      %7164 = vst [vmem:[#allocation3 + $0x48] sm:$0xff] %v7152
      %7165 = vst [vmem:[#allocation3 + $0x50] sm:$0xff] %v7153
      %7166 = vst [vmem:[#allocation3 + $0x58] sm:$0xff] %v7154
      %v7167 = vld [vmem:[#allocation2] sm:$0xff]
      %v7168 = vld [vmem:[#allocation2 + $0x8] sm:$0xff]
      %v7169 = vld [vmem:[#allocation2 + $0x10] sm:$0xff]
      %v7170 = vld [vmem:[#allocation2 + $0x18] sm:$0xff]
      %v7171 = vld [vmem:[#allocation2 + $0x20] sm:$0xff]
      %v7172 = vld [vmem:[#allocation2 + $0x28] sm:$0xff]
      %v7173 = vld [vmem:[#allocation2 + $0x30] sm:$0xff]
      %v7174 = vld [vmem:[#allocation2 + $0x38] sm:$0xff]
      %v7175 = vld [vmem:[#allocation2 + $0x40] sm:$0xff]
      %7185 = vrot.lane.b32.xlu0 %v7167, 126
      %v7186 = vpop.permute.xlu0 %7185
      %7187 = vrot.lane.b32.xlu0 %v7168, 126
      %v7188 = vpop.permute.xlu0 %7187
      %7189 = vrot.lane.b32.xlu0 %v7169, 126
      %v7190 = vpop.permute.xlu0 %7189
      %7191 = vrot.lane.b32.xlu0 %v7170, 126
      %v7192 = vpop.permute.xlu0 %7191
      %7193 = vrot.lane.b32.xlu0 %v7171, 126
      %v7194 = vpop.permute.xlu0 %7193
      %7195 = vrot.lane.b32.xlu0 %v7172, 126
      %v7196 = vpop.permute.xlu0 %7195
      %7197 = vrot.lane.b32.xlu0 %v7173, 126
      %v7198 = vpop.permute.xlu0 %7197
      %7199 = vrot.lane.b32.xlu0 %v7174, 126
      %v7200 = vpop.permute.xlu0 %7199
      %7201 = vrot.lane.b32.xlu0 %v7175, 126
      %v7202 = vpop.permute.xlu0 %7201
      %v7203 = vsel %vm1000, %v7186, %v7188
      %v7204 = vsel %vm1000, %v7188, %v7190
      %v7205 = vsel %vm1000, %v7192, %v7194
      %v7206 = vsel %vm1000, %v7194, %v7196
      %v7207 = vsel %vm1000, %v7198, %v7200
      %v7208 = vsel %vm1000, %v7200, %v7202
      %7215 = vst [vmem:[#allocation3 + $0x60] sm:$0xff] %v7203
      %7216 = vst [vmem:[#allocation3 + $0x68] sm:$0xff] %v7204
      %7217 = vst [vmem:[#allocation3 + $0x70] sm:$0xff] %v7205
      %7218 = vst [vmem:[#allocation3 + $0x78] sm:$0xff] %v7206
      %7219 = vst [vmem:[#allocation3 + $0x80] sm:$0xff] %v7207
      %7220 = vst [vmem:[#allocation3 + $0x88] sm:$0xff] %v7208
      %v7221 = vld [vmem:[#allocation2] sm:$0xff]
      %v7222 = vld [vmem:[#allocation2 + $0x8] sm:$0xff]
      %v7223 = vld [vmem:[#allocation2 + $0x10] sm:$0xff]
      %v7224 = vld [vmem:[#allocation2 + $0x18] sm:$0xff]
      %v7225 = vld [vmem:[#allocation2 + $0x20] sm:$0xff]
      %v7226 = vld [vmem:[#allocation2 + $0x28] sm:$0xff]
      %v7227 = vld [vmem:[#allocation2 + $0x30] sm:$0xff]
      %v7228 = vld [vmem:[#allocation2 + $0x38] sm:$0xff]
      %v7229 = vld [vmem:[#allocation2 + $0x40] sm:$0xff]
      %7239 = vrot.lane.b32.xlu0 %v7221, 125
      %v7240 = vpop.permute.xlu0 %7239
      %7241 = vrot.lane.b32.xlu0 %v7222, 125
      %v7242 = vpop.permute.xlu0 %7241
      %7243 = vrot.lane.b32.xlu0 %v7223, 125
      %v7244 = vpop.permute.xlu0 %7243
      %7245 = vrot.lane.b32.xlu0 %v7224, 125
      %v7246 = vpop.permute.xlu0 %7245
      %7247 = vrot.lane.b32.xlu0 %v7225, 125
      %v7248 = vpop.permute.xlu0 %7247
      %7249 = vrot.lane.b32.xlu0 %v7226, 125
      %v7250 = vpop.permute.xlu0 %7249
      %7251 = vrot.lane.b32.xlu0 %v7227, 125
      %v7252 = vpop.permute.xlu0 %7251
      %7253 = vrot.lane.b32.xlu0 %v7228, 125
      %v7254 = vpop.permute.xlu0 %7253
      %7255 = vrot.lane.b32.xlu0 %v7229, 125
      %v7256 = vpop.permute.xlu0 %7255
      %v7257 = vsel %vm1011, %v7240, %v7242
      %v7258 = vsel %vm1011, %v7242, %v7244
      %v7259 = vsel %vm1011, %v7246, %v7248
      %v7260 = vsel %vm1011, %v7248, %v7250
      %v7261 = vsel %vm1011, %v7252, %v7254
      %v7262 = vsel %vm1011, %v7254, %v7256
      %7269 = vst [vmem:[#allocation3 + $0x90] sm:$0xff] %v7257
      %7270 = vst [vmem:[#allocation3 + $0x98] sm:$0xff] %v7258
      %7271 = vst [vmem:[#allocation3 + $0xa0] sm:$0xff] %v7259
      %7272 = vst [vmem:[#allocation3 + $0xa8] sm:$0xff] %v7260
      %7273 = vst [vmem:[#allocation3 + $0xb0] sm:$0xff] %v7261
      %7274 = vst [vmem:[#allocation3 + $0xb8] sm:$0xff] %v7262
      %v7275 = vld [vmem:[#allocation2] sm:$0xff]
      %v7276 = vld [vmem:[#allocation2 + $0x8] sm:$0xff]
      %v7277 = vld [vmem:[#allocation2 + $0x10] sm:$0xff]
      %v7278 = vld [vmem:[#allocation2 + $0x18] sm:$0xff]
      %v7279 = vld [vmem:[#allocation2 + $0x20] sm:$0xff]
      %v7280 = vld [vmem:[#allocation2 + $0x28] sm:$0xff]
      %v7281 = vld [vmem:[#allocation2 + $0x30] sm:$0xff]
      %v7282 = vld [vmem:[#allocation2 + $0x38] sm:$0xff]
      %v7283 = vld [vmem:[#allocation2 + $0x40] sm:$0xff]
      %7293 = vrot.lane.b32.xlu0 %v7275, 124
      %v7294 = vpop.permute.xlu0 %7293
      %7295 = vrot.lane.b32.xlu0 %v7276, 124
      %v7296 = vpop.permute.xlu0 %7295
      %7297 = vrot.lane.b32.xlu0 %v7277, 124
      %v7298 = vpop.permute.xlu0 %7297
      %7299 = vrot.lane.b32.xlu0 %v7278, 124
      %v7300 = vpop.permute.xlu0 %7299
      %7301 = vrot.lane.b32.xlu0 %v7279, 124
      %v7302 = vpop.permute.xlu0 %7301
      %7303 = vrot.lane.b32.xlu0 %v7280, 124
      %v7304 = vpop.permute.xlu0 %7303
      %7305 = vrot.lane.b32.xlu0 %v7281, 124
      %v7306 = vpop.permute.xlu0 %7305
      %7307 = vrot.lane.b32.xlu0 %v7282, 124
      %v7308 = vpop.permute.xlu0 %7307
      %7309 = vrot.lane.b32.xlu0 %v7283, 124
      %v7310 = vpop.permute.xlu0 %7309
      %v7311 = vsel %vm1022, %v7294, %v7296
      %v7312 = vsel %vm1022, %v7296, %v7298
      %v7313 = vsel %vm1022, %v7300, %v7302
      %v7314 = vsel %vm1022, %v7302, %v7304
      %v7315 = vsel %vm1022, %v7306, %v7308
      %v7316 = vsel %vm1022, %v7308, %v7310
      %7323 = vst [vmem:[#allocation3 + $0xc0] sm:$0xff] %v7311
      %7324 = vst [vmem:[#allocation3 + $0xc8] sm:$0xff] %v7312
      %7325 = vst [vmem:[#allocation3 + $0xd0] sm:$0xff] %v7313
      %7326 = vst [vmem:[#allocation3 + $0xd8] sm:$0xff] %v7314
      %7327 = vst [vmem:[#allocation3 + $0xe0] sm:$0xff] %v7315
      %7328 = vst [vmem:[#allocation3 + $0xe8] sm:$0xff] %v7316
      %v7329 = vld [vmem:[#allocation3] sm:$0xff]
      %v7330 = vld [vmem:[#allocation3 + $0x8] sm:$0xff]
      %v7331 = vld [vmem:[#allocation3 + $0x10] sm:$0xff]
      %v7332 = vld [vmem:[#allocation3 + $0x18] sm:$0xff]
      %v7333 = vld [vmem:[#allocation3 + $0x20] sm:$0xff]
      %v7334 = vld [vmem:[#allocation3 + $0x28] sm:$0xff]
      %v7335 = vld [vmem:[#allocation3 + $0x30] sm:$0xff]
      %v7336 = vld [vmem:[#allocation3 + $0x38] sm:$0xff]
      %v7337 = vld [vmem:[#allocation3 + $0x40] sm:$0xff]
      %v7338 = vld [vmem:[#allocation3 + $0x48] sm:$0xff]
      %v7339 = vld [vmem:[#allocation3 + $0x50] sm:$0xff]
      %v7340 = vld [vmem:[#allocation3 + $0x58] sm:$0xff]
      %v7341 = vld [vmem:[#allocation3 + $0x60] sm:$0xff]
      %v7342 = vld [vmem:[#allocation3 + $0x68] sm:$0xff]
      %v7343 = vld [vmem:[#allocation3 + $0x70] sm:$0xff]
      %v7344 = vld [vmem:[#allocation3 + $0x78] sm:$0xff]
      %v7345 = vld [vmem:[#allocation3 + $0x80] sm:$0xff]
      %v7346 = vld [vmem:[#allocation3 + $0x88] sm:$0xff]
      %v7347 = vld [vmem:[#allocation3 + $0x90] sm:$0xff]
      %v7348 = vld [vmem:[#allocation3 + $0x98] sm:$0xff]
      %v7349 = vld [vmem:[#allocation3 + $0xa0] sm:$0xff]
      %v7350 = vld [vmem:[#allocation3 + $0xa8] sm:$0xff]
      %v7351 = vld [vmem:[#allocation3 + $0xb0] sm:$0xff]
      %v7352 = vld [vmem:[#allocation3 + $0xb8] sm:$0xff]
      %v7353 = vld [vmem:[#allocation3 + $0xc0] sm:$0xff]
      %v7354 = vld [vmem:[#allocation3 + $0xc8] sm:$0xff]
      %v7355 = vld [vmem:[#allocation3 + $0xd0] sm:$0xff]
      %v7356 = vld [vmem:[#allocation3 + $0xd8] sm:$0xff]
      %v7357 = vld [vmem:[#allocation3 + $0xe0] sm:$0xff]
      %v7358 = vld [vmem:[#allocation3 + $0xe8] sm:$0xff]
      %v7359 = vld [vmem:[%s51] sm:$0xff]
      %v7360 = vld [vmem:[%s51 + $0x8] sm:$0xff]
      %v7361 = vld [vmem:[%s51 + $0x10] sm:$0xff]
      %v7363 = vsel %vm1066, %v7359, 0
      %v7366 = vsel %vm1066, %v7360, 0
      %v7369 = vsel %vm1066, %v7361, 0
      %7371 = vmatprep.subr.mxu0 0.0
      %7372 = vmatpush1.msra.mxu0 0.0
      %7373 = vmatprep.subr.mxu0 %v7358
      %7374 = vmatpush1.msra.mxu0 %v7357
      %7375 = vmatprep.subr.mxu0 %v7356
      %7376 = vmatpush1.msra.mxu0 %v7355
      %7377 = vmatprep.subr.mxu0 %v7354
      %7378 = vmatpush1.msra.mxu0 %v7353
      %7379 = vmatprep.subr.mxu0 %v7352
      %7380 = vmatpush1.msra.mxu0 %v7351
      %7381 = vmatprep.subr.mxu0 %v7350
      %7382 = vmatpush1.msra.mxu0 %v7349
      %7383 = vmatprep.subr.mxu0 %v7348
      %7384 = vmatpush1.msra.mxu0 %v7347
      %7385 = vmatprep.subr.mxu0 %v7346
      %7386 = vmatpush1.msra.mxu0 %v7345
      %7387 = vmatprep.subr.mxu0 %v7344
      %7388 = vmatpush1.msra.mxu0 %v7343
      %7389 = vmatprep.subr.mxu0 %v7342
      %7390 = vmatpush1.msra.mxu0 %v7341
      %7391 = vmatprep.subr.mxu0 %v7340
      %7392 = vmatpush1.msra.mxu0 %v7339
      %7393 = vmatprep.subr.mxu0 %v7338
      %7394 = vmatpush1.msra.mxu0 %v7337
      %7395 = vmatprep.subr.mxu0 %v7336
      %7396 = vmatpush1.msra.mxu0 %v7335
      %7397 = vmatprep.subr.mxu0 %v7334
      %7398 = vmatpush1.msra.mxu0 %v7333
      %7399 = vmatprep.subr.mxu0 %v7332
      %7400 = vmatpush1.msra.mxu0 %v7331
      %7401 = vmatprep.subr.mxu0 %v7330
      %7402 = vmatpush1.msra.mxu0 %v7329
      %7403 = vmatprep.subr.mxu0 0.0
      %7404 = vmatpush2.msra.mxu0 0.0
      %7405 = vmatprep.subr.mxu0 0.0
      %7406 = vmatpush2.msra.mxu0 0.0
      %7407 = vmatprep.subr.mxu0 0.0
      %7408 = vmatpush2.msra.mxu0 0.0
      %7409 = vmatprep.subr.mxu0 0.0
      %7410 = vmatpush2.msra.mxu0 0.0
      %7411 = vmatprep.subr.mxu0 0.0
      %7412 = vmatpush2.msra.mxu0 0.0
      %7413 = vmatprep.subr.mxu0 0.0
      %7414 = vmatpush2.msra.mxu0 0.0
      %7415 = vmatprep.subr.mxu0 0.0
      %7416 = vmatpush2.msra.mxu0 0.0
      %7417 = vmatprep.subr.mxu0 0.0
      %7418 = vmatpush2.msra.mxu0 0.0
      %7419 = vmatprep.subr.mxu0 0.0
      %7420 = vmatpush2.msra.mxu0 0.0
      %7421 = vmatprep.subr.mxu0 0.0
      %7422 = vmatpush2.msra.mxu0 0.0
      %7423 = vmatprep.subr.mxu0 0.0
      %7424 = vmatpush2.msra.mxu0 0.0
      %7425 = vmatprep.subr.mxu0 0.0
      %7426 = vmatpush2.msra.mxu0 0.0
      %7427 = vmatprep.subr.mxu0 0.0
      %7428 = vmatpush2.msra.mxu0 0.0
      %7429 = vmatprep.subr.mxu0 0.0
      %7430 = vmatpush2.msra.mxu0 0.0
      %7431 = vmatprep.subr.mxu0 0.0
      %7432 = vmatpush2.msra.mxu0 0.0
      %7433 = vmatprep.subr.mxu0 0.0
      %7434 = vmatpush2.msra.mxu0 0.0
      %7435 = vmatprep.mubr.f32.mxu0 0.0
      %7436 = vmatmul.mubr.f32.gmra.mxu0 %v7363
      %v7437 = vpop.f32.mrf.mxu0
      %v7438 = vadd.f32 0.0, %v7437
      %v7439 = vpop.f32.mrf.mxu0
      %v7440 = vadd.f32 0.0, %v7439
      %7441 = vmatprep.mubr.f32.mxu0 0.0
      %7442 = vmatmul.mubr.f32.gmra.mxu0 %v7366
      %v7443 = vpop.f32.mrf.mxu0
      %v7444 = vadd.f32 0.0, %v7443
      %v7445 = vpop.f32.mrf.mxu0
      %v7446 = vadd.f32 0.0, %v7445
      %7447 = vmatprep.mubr.f32.mxu0 0.0
      %7448 = vmatmul.mubr.f32.gmra.mxu0 %v7369
      %v7449 = vpop.f32.mrf.mxu0
      %v7450 = vadd.f32 0.0, %v7449
      %v7451 = vpop.f32.mrf.mxu0
      %v7452 = vadd.f32 0.0, %v7451
      %7453 = vdwg.mxu0
      %v7454 = vld [vmem:[%s53] sm:$0xff]
      %v7455 = vld [vmem:[%s53 + $0x8] sm:$0xff]
      %v7456 = vld [vmem:[%s53 + $0x10] sm:$0xff]
      %7458 = vset.pattern.permute.xlu0 0
      %7459 = vperm.xlu0 %7458, %v7454
      %v7460 = vpop.permute.xlu0 %7459
      %7463 = vset.pattern.permute.xlu0 0
      %7464 = vperm.xlu0 %7463, %v7455
      %v7465 = vpop.permute.xlu0 %7464
      %7468 = vset.pattern.permute.xlu0 0
      %7469 = vperm.xlu0 %7468, %v7456
      %v7470 = vpop.permute.xlu0 %7469
      %v7472 = vmul.f32 %v7438, %v7460
      %v7473 = vmul.f32 %v7440, %v7460
      %v7474 = vmul.f32 %v7444, %v7465
      %v7475 = vmul.f32 %v7446, %v7465
      %v7476 = vmul.f32 %v7450, %v7470
      %v7477 = vmul.f32 %v7452, %v7470
      %v7478 = vld [vmem:[%s55] sm:$0xff]
      %v7479 = vld [vmem:[%s55 + $0x8] sm:$0xff]
      %v7480 = vld [vmem:[%s55 + $0x10] sm:$0xff]
      %7482 = vset.pattern.permute.xlu0 0
      %7483 = vperm.xlu0 %7482, %v7478
      %v7484 = vpop.permute.xlu0 %7483
      %7487 = vset.pattern.permute.xlu0 0
      %7488 = vperm.xlu0 %7487, %v7479
      %v7489 = vpop.permute.xlu0 %7488
      %7492 = vset.pattern.permute.xlu0 0
      %7493 = vperm.xlu0 %7492, %v7480
      %v7494 = vpop.permute.xlu0 %7493
      %v7496 = vadd.f32 %v7472, %v7484
      %v7497 = vadd.f32 %v7473, %v7484
      %v7498 = vadd.f32 %v7474, %v7489
      %v7499 = vadd.f32 %v7475, %v7489
      %v7500 = vadd.f32 %v7476, %v7494
      %v7501 = vadd.f32 %v7477, %v7494
      %v7502 = vmax.f32 %v7496, 0.0
      %v7503 = vmax.f32 %v7497, 0.0
      %v7504 = vmax.f32 %v7498, 0.0
      %v7505 = vmax.f32 %v7499, 0.0
      %v7506 = vmax.f32 %v7500, 0.0
      %v7507 = vmax.f32 %v7501, 0.0
      %7508 = vst.msk [vmem:[#allocation2] sm:$0xff] %vm2377, 0.0
      %7509 = vst.msk [vmem:[#allocation2 + $0x18] sm:$0xff] %vm2377, 0.0
      %7510 = vst.msk [vmem:[#allocation2 + $0x30] sm:$0xff] %vm2377, 0.0
      %7511 = vst.msk [vmem:[#allocation2 + $0x48] sm:$0xff] %vm2377, 0.0
      %7512 = vst.msk [vmem:[#allocation2 + $0x60] sm:$0xff] %vm2377, 0.0
      %7513 = vst.msk [vmem:[#allocation2 + $0x78] sm:$0xff] %vm2377, 0.0
      %7514 = vst.msk [vmem:[#allocation2 + $0x10] sm:$0xff] %vm2381, 0.0
      %7515 = vst.msk [vmem:[#allocation2 + $0x28] sm:$0xff] %vm2381, 0.0
      %7516 = vst.msk [vmem:[#allocation2 + $0x40] sm:$0xff] %vm2381, 0.0
      %7517 = vst.msk [vmem:[#allocation2 + $0x58] sm:$0xff] %vm2381, 0.0
      %7518 = vst.msk [vmem:[#allocation2 + $0x70] sm:$0xff] %vm2381, 0.0
      %7519 = vst.msk [vmem:[#allocation2 + $0x88] sm:$0xff] %vm2381, 0.0
      %7526 = vrot.lane.b32.xlu0 %v7502, 2
      %v7527 = vpop.permute.xlu0 %7526
      %7528 = vrot.lane.b32.xlu0 %v7503, 2
      %v7529 = vpop.permute.xlu0 %7528
      %7530 = vrot.lane.b32.xlu0 %v7504, 2
      %v7531 = vpop.permute.xlu0 %7530
      %7532 = vrot.lane.b32.xlu0 %v7505, 2
      %v7533 = vpop.permute.xlu0 %7532
      %7534 = vrot.lane.b32.xlu0 %v7506, 2
      %v7535 = vpop.permute.xlu0 %7534
      %7536 = vrot.lane.b32.xlu0 %v7507, 2
      %v7537 = vpop.permute.xlu0 %7536
      %v7538 = vsel %vm2377, %v7527, %v7529
      %v7539 = vsel %vm2377, %v7531, %v7533
      %v7540 = vsel %vm2377, %v7535, %v7537
      %7550 = vst.msk [vmem:[#allocation2] sm:$0xff] %vm2397, %v7527
      %7551 = vst [vmem:[#allocation2 + $0x8] sm:$0xff] %v7538
      %7552 = vst.msk [vmem:[#allocation2 + $0x10] sm:$0xff] %vm2377, %v7529
      %7553 = vst.msk [vmem:[#allocation2 + $0x18] sm:$0xff] %vm2397, %v7531
      %7554 = vst [vmem:[#allocation2 + $0x20] sm:$0xff] %v7539
      %7555 = vst.msk [vmem:[#allocation2 + $0x28] sm:$0xff] %vm2377, %v7533
      %7556 = vst.msk [vmem:[#allocation2 + $0x30] sm:$0xff] %vm2397, %v7535
      %7557 = vst [vmem:[#allocation2 + $0x38] sm:$0xff] %v7540
      %7558 = vst.msk [vmem:[#allocation2 + $0x40] sm:$0xff] %vm2377, %v7537
      %7559 = vrot.lane.b32.xlu0 %v1400, 2
      %v7560 = vpop.permute.xlu0 %7559
      %7561 = vrot.lane.b32.xlu0 %v1401, 2
      %v7562 = vpop.permute.xlu0 %7561
      %7563 = vrot.lane.b32.xlu0 %v1402, 2
      %v7564 = vpop.permute.xlu0 %7563
      %7565 = vrot.lane.b32.xlu0 %v1403, 2
      %v7566 = vpop.permute.xlu0 %7565
      %7567 = vrot.lane.b32.xlu0 %v1404, 2
      %v7568 = vpop.permute.xlu0 %7567
      %7569 = vrot.lane.b32.xlu0 %v1405, 2
      %v7570 = vpop.permute.xlu0 %7569
      %v7571 = vsel %vm2377, %v7560, %v7562
      %v7572 = vsel %vm2377, %v7564, %v7566
      %v7573 = vsel %vm2377, %v7568, %v7570
      %7583 = vst.msk [vmem:[#allocation2 + $0x48] sm:$0xff] %vm2397, %v7560
      %7584 = vst [vmem:[#allocation2 + $0x50] sm:$0xff] %v7571
      %7585 = vst.msk [vmem:[#allocation2 + $0x58] sm:$0xff] %vm2377, %v7562
      %7586 = vst.msk [vmem:[#allocation2 + $0x60] sm:$0xff] %vm2397, %v7564
      %7587 = vst [vmem:[#allocation2 + $0x68] sm:$0xff] %v7572
      %7588 = vst.msk [vmem:[#allocation2 + $0x70] sm:$0xff] %vm2377, %v7566
      %7589 = vst.msk [vmem:[#allocation2 + $0x78] sm:$0xff] %vm2397, %v7568
      %7590 = vst [vmem:[#allocation2 + $0x80] sm:$0xff] %v7573
      %7591 = vst.msk [vmem:[#allocation2 + $0x88] sm:$0xff] %vm2377, %v7570
      %v7592 = vld [vmem:[#allocation2] sm:$0xff]
      %v7593 = vld [vmem:[#allocation2 + $0x8] sm:$0xff]
      %v7594 = vld [vmem:[#allocation2 + $0x18] sm:$0xff]
      %v7595 = vld [vmem:[#allocation2 + $0x20] sm:$0xff]
      %v7596 = vld [vmem:[#allocation2 + $0x30] sm:$0xff]
      %v7597 = vld [vmem:[#allocation2 + $0x38] sm:$0xff]
      %v7598 = vld [vmem:[#allocation2 + $0x48] sm:$0xff]
      %v7599 = vld [vmem:[#allocation2 + $0x50] sm:$0xff]
      %v7600 = vld [vmem:[#allocation2 + $0x60] sm:$0xff]
      %v7601 = vld [vmem:[#allocation2 + $0x68] sm:$0xff]
      %v7602 = vld [vmem:[#allocation2 + $0x78] sm:$0xff]
      %v7603 = vld [vmem:[#allocation2 + $0x80] sm:$0xff]
      %7604 = vst [vmem:[#allocation3] sm:$0xff] %v7592
      %7605 = vst [vmem:[#allocation3 + $0x8] sm:$0xff] %v7593
      %7606 = vst [vmem:[#allocation3 + $0x10] sm:$0xff] %v7594
      %7607 = vst [vmem:[#allocation3 + $0x18] sm:$0xff] %v7595
      %7608 = vst [vmem:[#allocation3 + $0x20] sm:$0xff] %v7596
      %7609 = vst [vmem:[#allocation3 + $0x28] sm:$0xff] %v7597
      %7610 = vst [vmem:[#allocation3 + $0x30] sm:$0xff] %v7598
      %7611 = vst [vmem:[#allocation3 + $0x38] sm:$0xff] %v7599
      %7612 = vst [vmem:[#allocation3 + $0x40] sm:$0xff] %v7600
      %7613 = vst [vmem:[#allocation3 + $0x48] sm:$0xff] %v7601
      %7614 = vst [vmem:[#allocation3 + $0x50] sm:$0xff] %v7602
      %7615 = vst [vmem:[#allocation3 + $0x58] sm:$0xff] %v7603
      %v7616 = vld [vmem:[#allocation2] sm:$0xff]
      %v7617 = vld [vmem:[#allocation2 + $0x8] sm:$0xff]
      %v7618 = vld [vmem:[#allocation2 + $0x10] sm:$0xff]
      %v7619 = vld [vmem:[#allocation2 + $0x18] sm:$0xff]
      %v7620 = vld [vmem:[#allocation2 + $0x20] sm:$0xff]
      %v7621 = vld [vmem:[#allocation2 + $0x28] sm:$0xff]
      %v7622 = vld [vmem:[#allocation2 + $0x30] sm:$0xff]
      %v7623 = vld [vmem:[#allocation2 + $0x38] sm:$0xff]
      %v7624 = vld [vmem:[#allocation2 + $0x40] sm:$0xff]
      %v7625 = vld [vmem:[#allocation2 + $0x48] sm:$0xff]
      %v7626 = vld [vmem:[#allocation2 + $0x50] sm:$0xff]
      %v7627 = vld [vmem:[#allocation2 + $0x58] sm:$0xff]
      %v7628 = vld [vmem:[#allocation2 + $0x60] sm:$0xff]
      %v7629 = vld [vmem:[#allocation2 + $0x68] sm:$0xff]
      %v7630 = vld [vmem:[#allocation2 + $0x70] sm:$0xff]
      %v7631 = vld [vmem:[#allocation2 + $0x78] sm:$0xff]
      %v7632 = vld [vmem:[#allocation2 + $0x80] sm:$0xff]
      %v7633 = vld [vmem:[#allocation2 + $0x88] sm:$0xff]
      %7652 = vrot.lane.b32.xlu0 %v7616, 127
      %v7653 = vpop.permute.xlu0 %7652
      %7654 = vrot.lane.b32.xlu0 %v7617, 127
      %v7655 = vpop.permute.xlu0 %7654
      %7656 = vrot.lane.b32.xlu0 %v7618, 127
      %v7657 = vpop.permute.xlu0 %7656
      %7658 = vrot.lane.b32.xlu0 %v7619, 127
      %v7659 = vpop.permute.xlu0 %7658
      %7660 = vrot.lane.b32.xlu0 %v7620, 127
      %v7661 = vpop.permute.xlu0 %7660
      %7662 = vrot.lane.b32.xlu0 %v7621, 127
      %v7663 = vpop.permute.xlu0 %7662
      %7664 = vrot.lane.b32.xlu0 %v7622, 127
      %v7665 = vpop.permute.xlu0 %7664
      %7666 = vrot.lane.b32.xlu0 %v7623, 127
      %v7667 = vpop.permute.xlu0 %7666
      %7668 = vrot.lane.b32.xlu0 %v7624, 127
      %v7669 = vpop.permute.xlu0 %7668
      %7670 = vrot.lane.b32.xlu0 %v7625, 127
      %v7671 = vpop.permute.xlu0 %7670
      %7672 = vrot.lane.b32.xlu0 %v7626, 127
      %v7673 = vpop.permute.xlu0 %7672
      %7674 = vrot.lane.b32.xlu0 %v7627, 127
      %v7675 = vpop.permute.xlu0 %7674
      %7676 = vrot.lane.b32.xlu0 %v7628, 127
      %v7677 = vpop.permute.xlu0 %7676
      %7678 = vrot.lane.b32.xlu0 %v7629, 127
      %v7679 = vpop.permute.xlu0 %7678
      %7680 = vrot.lane.b32.xlu0 %v7630, 127
      %v7681 = vpop.permute.xlu0 %7680
      %7682 = vrot.lane.b32.xlu0 %v7631, 127
      %v7683 = vpop.permute.xlu0 %7682
      %7684 = vrot.lane.b32.xlu0 %v7632, 127
      %v7685 = vpop.permute.xlu0 %7684
      %7686 = vrot.lane.b32.xlu0 %v7633, 127
      %v7687 = vpop.permute.xlu0 %7686
      %v7688 = vsel %vm989, %v7653, %v7655
      %v7689 = vsel %vm989, %v7655, %v7657
      %v7690 = vsel %vm989, %v7659, %v7661
      %v7691 = vsel %vm989, %v7661, %v7663
      %v7692 = vsel %vm989, %v7665, %v7667
      %v7693 = vsel %vm989, %v7667, %v7669
      %v7694 = vsel %vm989, %v7671, %v7673
      %v7695 = vsel %vm989, %v7673, %v7675
      %v7696 = vsel %vm989, %v7677, %v7679
      %v7697 = vsel %vm989, %v7679, %v7681
      %v7698 = vsel %vm989, %v7683, %v7685
      %v7699 = vsel %vm989, %v7685, %v7687
      %7712 = vst [vmem:[#allocation3 + $0x60] sm:$0xff] %v7688
      %7713 = vst [vmem:[#allocation3 + $0x68] sm:$0xff] %v7689
      %7714 = vst [vmem:[#allocation3 + $0x70] sm:$0xff] %v7690
      %7715 = vst [vmem:[#allocation3 + $0x78] sm:$0xff] %v7691
      %7716 = vst [vmem:[#allocation3 + $0x80] sm:$0xff] %v7692
      %7717 = vst [vmem:[#allocation3 + $0x88] sm:$0xff] %v7693
      %7718 = vst [vmem:[#allocation3 + $0x90] sm:$0xff] %v7694
      %7719 = vst [vmem:[#allocation3 + $0x98] sm:$0xff] %v7695
      %7720 = vst [vmem:[#allocation3 + $0xa0] sm:$0xff] %v7696
      %7721 = vst [vmem:[#allocation3 + $0xa8] sm:$0xff] %v7697
      %7722 = vst [vmem:[#allocation3 + $0xb0] sm:$0xff] %v7698
      %7723 = vst [vmem:[#allocation3 + $0xb8] sm:$0xff] %v7699
      %v7724 = vld [vmem:[#allocation2] sm:$0xff]
      %v7725 = vld [vmem:[#allocation2 + $0x8] sm:$0xff]
      %v7726 = vld [vmem:[#allocation2 + $0x10] sm:$0xff]
      %v7727 = vld [vmem:[#allocation2 + $0x18] sm:$0xff]
      %v7728 = vld [vmem:[#allocation2 + $0x20] sm:$0xff]
      %v7729 = vld [vmem:[#allocation2 + $0x28] sm:$0xff]
      %v7730 = vld [vmem:[#allocation2 + $0x30] sm:$0xff]
      %v7731 = vld [vmem:[#allocation2 + $0x38] sm:$0xff]
      %v7732 = vld [vmem:[#allocation2 + $0x40] sm:$0xff]
      %v7733 = vld [vmem:[#allocation2 + $0x48] sm:$0xff]
      %v7734 = vld [vmem:[#allocation2 + $0x50] sm:$0xff]
      %v7735 = vld [vmem:[#allocation2 + $0x58] sm:$0xff]
      %v7736 = vld [vmem:[#allocation2 + $0x60] sm:$0xff]
      %v7737 = vld [vmem:[#allocation2 + $0x68] sm:$0xff]
      %v7738 = vld [vmem:[#allocation2 + $0x70] sm:$0xff]
      %v7739 = vld [vmem:[#allocation2 + $0x78] sm:$0xff]
      %v7740 = vld [vmem:[#allocation2 + $0x80] sm:$0xff]
      %v7741 = vld [vmem:[#allocation2 + $0x88] sm:$0xff]
      %7760 = vrot.lane.b32.xlu0 %v7724, 126
      %v7761 = vpop.permute.xlu0 %7760
      %7762 = vrot.lane.b32.xlu0 %v7725, 126
      %v7763 = vpop.permute.xlu0 %7762
      %7764 = vrot.lane.b32.xlu0 %v7726, 126
      %v7765 = vpop.permute.xlu0 %7764
      %7766 = vrot.lane.b32.xlu0 %v7727, 126
      %v7767 = vpop.permute.xlu0 %7766
      %7768 = vrot.lane.b32.xlu0 %v7728, 126
      %v7769 = vpop.permute.xlu0 %7768
      %7770 = vrot.lane.b32.xlu0 %v7729, 126
      %v7771 = vpop.permute.xlu0 %7770
      %7772 = vrot.lane.b32.xlu0 %v7730, 126
      %v7773 = vpop.permute.xlu0 %7772
      %7774 = vrot.lane.b32.xlu0 %v7731, 126
      %v7775 = vpop.permute.xlu0 %7774
      %7776 = vrot.lane.b32.xlu0 %v7732, 126
      %v7777 = vpop.permute.xlu0 %7776
      %7778 = vrot.lane.b32.xlu0 %v7733, 126
      %v7779 = vpop.permute.xlu0 %7778
      %7780 = vrot.lane.b32.xlu0 %v7734, 126
      %v7781 = vpop.permute.xlu0 %7780
      %7782 = vrot.lane.b32.xlu0 %v7735, 126
      %v7783 = vpop.permute.xlu0 %7782
      %7784 = vrot.lane.b32.xlu0 %v7736, 126
      %v7785 = vpop.permute.xlu0 %7784
      %7786 = vrot.lane.b32.xlu0 %v7737, 126
      %v7787 = vpop.permute.xlu0 %7786
      %7788 = vrot.lane.b32.xlu0 %v7738, 126
      %v7789 = vpop.permute.xlu0 %7788
      %7790 = vrot.lane.b32.xlu0 %v7739, 126
      %v7791 = vpop.permute.xlu0 %7790
      %7792 = vrot.lane.b32.xlu0 %v7740, 126
      %v7793 = vpop.permute.xlu0 %7792
      %7794 = vrot.lane.b32.xlu0 %v7741, 126
      %v7795 = vpop.permute.xlu0 %7794
      %v7796 = vsel %vm1000, %v7761, %v7763
      %v7797 = vsel %vm1000, %v7763, %v7765
      %v7798 = vsel %vm1000, %v7767, %v7769
      %v7799 = vsel %vm1000, %v7769, %v7771
      %v7800 = vsel %vm1000, %v7773, %v7775
      %v7801 = vsel %vm1000, %v7775, %v7777
      %v7802 = vsel %vm1000, %v7779, %v7781
      %v7803 = vsel %vm1000, %v7781, %v7783
      %v7804 = vsel %vm1000, %v7785, %v7787
      %v7805 = vsel %vm1000, %v7787, %v7789
      %v7806 = vsel %vm1000, %v7791, %v7793
      %v7807 = vsel %vm1000, %v7793, %v7795
      %7820 = vst [vmem:[#allocation3 + $0xc0] sm:$0xff] %v7796
      %7821 = vst [vmem:[#allocation3 + $0xc8] sm:$0xff] %v7797
      %7822 = vst [vmem:[#allocation3 + $0xd0] sm:$0xff] %v7798
      %7823 = vst [vmem:[#allocation3 + $0xd8] sm:$0xff] %v7799
      %7824 = vst [vmem:[#allocation3 + $0xe0] sm:$0xff] %v7800
      %7825 = vst [vmem:[#allocation3 + $0xe8] sm:$0xff] %v7801
      %7826 = vst [vmem:[#allocation3 + $0xf0] sm:$0xff] %v7802
      %7827 = vst [vmem:[#allocation3 + $0xf8] sm:$0xff] %v7803
      %7828 = vst [vmem:[#allocation3 + $0x100] sm:$0xff] %v7804
      %7829 = vst [vmem:[#allocation3 + $0x108] sm:$0xff] %v7805
      %7830 = vst [vmem:[#allocation3 + $0x110] sm:$0xff] %v7806
      %7831 = vst [vmem:[#allocation3 + $0x118] sm:$0xff] %v7807
      %v7832 = vld [vmem:[#allocation2] sm:$0xff]
      %v7833 = vld [vmem:[#allocation2 + $0x8] sm:$0xff]
      %v7834 = vld [vmem:[#allocation2 + $0x10] sm:$0xff]
      %v7835 = vld [vmem:[#allocation2 + $0x18] sm:$0xff]
      %v7836 = vld [vmem:[#allocation2 + $0x20] sm:$0xff]
      %v7837 = vld [vmem:[#allocation2 + $0x28] sm:$0xff]
      %v7838 = vld [vmem:[#allocation2 + $0x30] sm:$0xff]
      %v7839 = vld [vmem:[#allocation2 + $0x38] sm:$0xff]
      %v7840 = vld [vmem:[#allocation2 + $0x40] sm:$0xff]
      %v7841 = vld [vmem:[#allocation2 + $0x48] sm:$0xff]
      %v7842 = vld [vmem:[#allocation2 + $0x50] sm:$0xff]
      %v7843 = vld [vmem:[#allocation2 + $0x58] sm:$0xff]
      %v7844 = vld [vmem:[#allocation2 + $0x60] sm:$0xff]
      %v7845 = vld [vmem:[#allocation2 + $0x68] sm:$0xff]
      %v7846 = vld [vmem:[#allocation2 + $0x70] sm:$0xff]
      %v7847 = vld [vmem:[#allocation2 + $0x78] sm:$0xff]
      %v7848 = vld [vmem:[#allocation2 + $0x80] sm:$0xff]
      %v7849 = vld [vmem:[#allocation2 + $0x88] sm:$0xff]
      %7868 = vrot.lane.b32.xlu0 %v7832, 125
      %v7869 = vpop.permute.xlu0 %7868
      %7870 = vrot.lane.b32.xlu0 %v7833, 125
      %v7871 = vpop.permute.xlu0 %7870
      %7872 = vrot.lane.b32.xlu0 %v7834, 125
      %v7873 = vpop.permute.xlu0 %7872
      %7874 = vrot.lane.b32.xlu0 %v7835, 125
      %v7875 = vpop.permute.xlu0 %7874
      %7876 = vrot.lane.b32.xlu0 %v7836, 125
      %v7877 = vpop.permute.xlu0 %7876
      %7878 = vrot.lane.b32.xlu0 %v7837, 125
      %v7879 = vpop.permute.xlu0 %7878
      %7880 = vrot.lane.b32.xlu0 %v7838, 125
      %v7881 = vpop.permute.xlu0 %7880
      %7882 = vrot.lane.b32.xlu0 %v7839, 125
      %v7883 = vpop.permute.xlu0 %7882
      %7884 = vrot.lane.b32.xlu0 %v7840, 125
      %v7885 = vpop.permute.xlu0 %7884
      %7886 = vrot.lane.b32.xlu0 %v7841, 125
      %v7887 = vpop.permute.xlu0 %7886
      %7888 = vrot.lane.b32.xlu0 %v7842, 125
      %v7889 = vpop.permute.xlu0 %7888
      %7890 = vrot.lane.b32.xlu0 %v7843, 125
      %v7891 = vpop.permute.xlu0 %7890
      %7892 = vrot.lane.b32.xlu0 %v7844, 125
      %v7893 = vpop.permute.xlu0 %7892
      %7894 = vrot.lane.b32.xlu0 %v7845, 125
      %v7895 = vpop.permute.xlu0 %7894
      %7896 = vrot.lane.b32.xlu0 %v7846, 125
      %v7897 = vpop.permute.xlu0 %7896
      %7898 = vrot.lane.b32.xlu0 %v7847, 125
      %v7899 = vpop.permute.xlu0 %7898
      %7900 = vrot.lane.b32.xlu0 %v7848, 125
      %v7901 = vpop.permute.xlu0 %7900
      %7902 = vrot.lane.b32.xlu0 %v7849, 125
      %v7903 = vpop.permute.xlu0 %7902
      %v7904 = vsel %vm1011, %v7869, %v7871
      %v7905 = vsel %vm1011, %v7871, %v7873
      %v7906 = vsel %vm1011, %v7875, %v7877
      %v7907 = vsel %vm1011, %v7877, %v7879
      %v7908 = vsel %vm1011, %v7881, %v7883
      %v7909 = vsel %vm1011, %v7883, %v7885
      %v7910 = vsel %vm1011, %v7887, %v7889
      %v7911 = vsel %vm1011, %v7889, %v7891
      %v7912 = vsel %vm1011, %v7893, %v7895
      %v7913 = vsel %vm1011, %v7895, %v7897
      %v7914 = vsel %vm1011, %v7899, %v7901
      %v7915 = vsel %vm1011, %v7901, %v7903
      %7928 = vst [vmem:[#allocation3 + $0x120] sm:$0xff] %v7904
      %7929 = vst [vmem:[#allocation3 + $0x128] sm:$0xff] %v7905
      %7930 = vst [vmem:[#allocation3 + $0x130] sm:$0xff] %v7906
      %7931 = vst [vmem:[#allocation3 + $0x138] sm:$0xff] %v7907
      %7932 = vst [vmem:[#allocation3 + $0x140] sm:$0xff] %v7908
      %7933 = vst [vmem:[#allocation3 + $0x148] sm:$0xff] %v7909
      %7934 = vst [vmem:[#allocation3 + $0x150] sm:$0xff] %v7910
      %7935 = vst [vmem:[#allocation3 + $0x158] sm:$0xff] %v7911
      %7936 = vst [vmem:[#allocation3 + $0x160] sm:$0xff] %v7912
      %7937 = vst [vmem:[#allocation3 + $0x168] sm:$0xff] %v7913
      %7938 = vst [vmem:[#allocation3 + $0x170] sm:$0xff] %v7914
      %7939 = vst [vmem:[#allocation3 + $0x178] sm:$0xff] %v7915
      %v7940 = vld [vmem:[#allocation2] sm:$0xff]
      %v7941 = vld [vmem:[#allocation2 + $0x8] sm:$0xff]
      %v7942 = vld [vmem:[#allocation2 + $0x10] sm:$0xff]
      %v7943 = vld [vmem:[#allocation2 + $0x18] sm:$0xff]
      %v7944 = vld [vmem:[#allocation2 + $0x20] sm:$0xff]
      %v7945 = vld [vmem:[#allocation2 + $0x28] sm:$0xff]
      %v7946 = vld [vmem:[#allocation2 + $0x30] sm:$0xff]
      %v7947 = vld [vmem:[#allocation2 + $0x38] sm:$0xff]
      %v7948 = vld [vmem:[#allocation2 + $0x40] sm:$0xff]
      %v7949 = vld [vmem:[#allocation2 + $0x48] sm:$0xff]
      %v7950 = vld [vmem:[#allocation2 + $0x50] sm:$0xff]
      %v7951 = vld [vmem:[#allocation2 + $0x58] sm:$0xff]
      %v7952 = vld [vmem:[#allocation2 + $0x60] sm:$0xff]
      %v7953 = vld [vmem:[#allocation2 + $0x68] sm:$0xff]
      %v7954 = vld [vmem:[#allocation2 + $0x70] sm:$0xff]
      %v7955 = vld [vmem:[#allocation2 + $0x78] sm:$0xff]
      %v7956 = vld [vmem:[#allocation2 + $0x80] sm:$0xff]
      %v7957 = vld [vmem:[#allocation2 + $0x88] sm:$0xff]
      %7976 = vrot.lane.b32.xlu0 %v7940, 124
      %v7977 = vpop.permute.xlu0 %7976
      %7978 = vrot.lane.b32.xlu0 %v7941, 124
      %v7979 = vpop.permute.xlu0 %7978
      %7980 = vrot.lane.b32.xlu0 %v7942, 124
      %v7981 = vpop.permute.xlu0 %7980
      %7982 = vrot.lane.b32.xlu0 %v7943, 124
      %v7983 = vpop.permute.xlu0 %7982
      %7984 = vrot.lane.b32.xlu0 %v7944, 124
      %v7985 = vpop.permute.xlu0 %7984
      %7986 = vrot.lane.b32.xlu0 %v7945, 124
      %v7987 = vpop.permute.xlu0 %7986
      %7988 = vrot.lane.b32.xlu0 %v7946, 124
      %v7989 = vpop.permute.xlu0 %7988
      %7990 = vrot.lane.b32.xlu0 %v7947, 124
      %v7991 = vpop.permute.xlu0 %7990
      %7992 = vrot.lane.b32.xlu0 %v7948, 124
      %v7993 = vpop.permute.xlu0 %7992
      %7994 = vrot.lane.b32.xlu0 %v7949, 124
      %v7995 = vpop.permute.xlu0 %7994
      %7996 = vrot.lane.b32.xlu0 %v7950, 124
      %v7997 = vpop.permute.xlu0 %7996
      %7998 = vrot.lane.b32.xlu0 %v7951, 124
      %v7999 = vpop.permute.xlu0 %7998
      %8000 = vrot.lane.b32.xlu0 %v7952, 124
      %v8001 = vpop.permute.xlu0 %8000
      %8002 = vrot.lane.b32.xlu0 %v7953, 124
      %v8003 = vpop.permute.xlu0 %8002
      %8004 = vrot.lane.b32.xlu0 %v7954, 124
      %v8005 = vpop.permute.xlu0 %8004
      %8006 = vrot.lane.b32.xlu0 %v7955, 124
      %v8007 = vpop.permute.xlu0 %8006
      %8008 = vrot.lane.b32.xlu0 %v7956, 124
      %v8009 = vpop.permute.xlu0 %8008
      %8010 = vrot.lane.b32.xlu0 %v7957, 124
      %v8011 = vpop.permute.xlu0 %8010
      %v8012 = vsel %vm1022, %v7977, %v7979
      %v8013 = vsel %vm1022, %v7979, %v7981
      %v8014 = vsel %vm1022, %v7983, %v7985
      %v8015 = vsel %vm1022, %v7985, %v7987
      %v8016 = vsel %vm1022, %v7989, %v7991
      %v8017 = vsel %vm1022, %v7991, %v7993
      %v8018 = vsel %vm1022, %v7995, %v7997
      %v8019 = vsel %vm1022, %v7997, %v7999
      %v8020 = vsel %vm1022, %v8001, %v8003
      %v8021 = vsel %vm1022, %v8003, %v8005
      %v8022 = vsel %vm1022, %v8007, %v8009
      %v8023 = vsel %vm1022, %v8009, %v8011
      %8036 = vst [vmem:[#allocation3 + $0x180] sm:$0xff] %v8012
      %8037 = vst [vmem:[#allocation3 + $0x188] sm:$0xff] %v8013
      %8038 = vst [vmem:[#allocation3 + $0x190] sm:$0xff] %v8014
      %8039 = vst [vmem:[#allocation3 + $0x198] sm:$0xff] %v8015
      %8040 = vst [vmem:[#allocation3 + $0x1a0] sm:$0xff] %v8016
      %8041 = vst [vmem:[#allocation3 + $0x1a8] sm:$0xff] %v8017
      %8042 = vst [vmem:[#allocation3 + $0x1b0] sm:$0xff] %v8018
      %8043 = vst [vmem:[#allocation3 + $0x1b8] sm:$0xff] %v8019
      %8044 = vst [vmem:[#allocation3 + $0x1c0] sm:$0xff] %v8020
      %8045 = vst [vmem:[#allocation3 + $0x1c8] sm:$0xff] %v8021
      %8046 = vst [vmem:[#allocation3 + $0x1d0] sm:$0xff] %v8022
      %8047 = vst [vmem:[#allocation3 + $0x1d8] sm:$0xff] %v8023
      %v8048 = vld [vmem:[#allocation3] sm:$0xff]
      %v8049 = vld [vmem:[#allocation3 + $0x8] sm:$0xff]
      %v8050 = vld [vmem:[#allocation3 + $0x10] sm:$0xff]
      %v8051 = vld [vmem:[#allocation3 + $0x18] sm:$0xff]
      %v8052 = vld [vmem:[#allocation3 + $0x20] sm:$0xff]
      %v8053 = vld [vmem:[#allocation3 + $0x28] sm:$0xff]
      %v8054 = vld [vmem:[#allocation3 + $0x30] sm:$0xff]
      %v8055 = vld [vmem:[#allocation3 + $0x38] sm:$0xff]
      %v8056 = vld [vmem:[#allocation3 + $0x40] sm:$0xff]
      %v8057 = vld [vmem:[#allocation3 + $0x48] sm:$0xff]
      %v8058 = vld [vmem:[#allocation3 + $0x50] sm:$0xff]
      %v8059 = vld [vmem:[#allocation3 + $0x58] sm:$0xff]
      %v8060 = vld [vmem:[#allocation3 + $0x60] sm:$0xff]
      %v8061 = vld [vmem:[#allocation3 + $0x68] sm:$0xff]
      %v8062 = vld [vmem:[#allocation3 + $0x70] sm:$0xff]
      %v8063 = vld [vmem:[#allocation3 + $0x78] sm:$0xff]
      %v8064 = vld [vmem:[#allocation3 + $0x80] sm:$0xff]
      %v8065 = vld [vmem:[#allocation3 + $0x88] sm:$0xff]
      %v8066 = vld [vmem:[#allocation3 + $0x90] sm:$0xff]
      %v8067 = vld [vmem:[#allocation3 + $0x98] sm:$0xff]
      %v8068 = vld [vmem:[#allocation3 + $0xa0] sm:$0xff]
      %v8069 = vld [vmem:[#allocation3 + $0xa8] sm:$0xff]
      %v8070 = vld [vmem:[#allocation3 + $0xb0] sm:$0xff]
      %v8071 = vld [vmem:[#allocation3 + $0xb8] sm:$0xff]
      %v8072 = vld [vmem:[#allocation3 + $0xc0] sm:$0xff]
      %v8073 = vld [vmem:[#allocation3 + $0xc8] sm:$0xff]
      %v8074 = vld [vmem:[#allocation3 + $0xd0] sm:$0xff]
      %v8075 = vld [vmem:[#allocation3 + $0xd8] sm:$0xff]
      %v8076 = vld [vmem:[#allocation3 + $0xe0] sm:$0xff]
      %v8077 = vld [vmem:[#allocation3 + $0xe8] sm:$0xff]
      %v8078 = vld [vmem:[#allocation3 + $0xf0] sm:$0xff]
      %v8079 = vld [vmem:[#allocation3 + $0xf8] sm:$0xff]
      %v8080 = vld [vmem:[#allocation3 + $0x100] sm:$0xff]
      %v8081 = vld [vmem:[#allocation3 + $0x108] sm:$0xff]
      %v8082 = vld [vmem:[#allocation3 + $0x110] sm:$0xff]
      %v8083 = vld [vmem:[#allocation3 + $0x118] sm:$0xff]
      %v8084 = vld [vmem:[#allocation3 + $0x120] sm:$0xff]
      %v8085 = vld [vmem:[#allocation3 + $0x128] sm:$0xff]
      %v8086 = vld [vmem:[#allocation3 + $0x130] sm:$0xff]
      %v8087 = vld [vmem:[#allocation3 + $0x138] sm:$0xff]
      %v8088 = vld [vmem:[#allocation3 + $0x140] sm:$0xff]
      %v8089 = vld [vmem:[#allocation3 + $0x148] sm:$0xff]
      %v8090 = vld [vmem:[#allocation3 + $0x150] sm:$0xff]
      %v8091 = vld [vmem:[#allocation3 + $0x158] sm:$0xff]
      %v8092 = vld [vmem:[#allocation3 + $0x160] sm:$0xff]
      %v8093 = vld [vmem:[#allocation3 + $0x168] sm:$0xff]
      %v8094 = vld [vmem:[#allocation3 + $0x170] sm:$0xff]
      %v8095 = vld [vmem:[#allocation3 + $0x178] sm:$0xff]
      %v8096 = vld [vmem:[#allocation3 + $0x180] sm:$0xff]
      %v8097 = vld [vmem:[#allocation3 + $0x188] sm:$0xff]
      %v8098 = vld [vmem:[#allocation3 + $0x190] sm:$0xff]
      %v8099 = vld [vmem:[#allocation3 + $0x198] sm:$0xff]
      %v8100 = vld [vmem:[#allocation3 + $0x1a0] sm:$0xff]
      %v8101 = vld [vmem:[#allocation3 + $0x1a8] sm:$0xff]
      %v8102 = vld [vmem:[#allocation3 + $0x1b0] sm:$0xff]
      %v8103 = vld [vmem:[#allocation3 + $0x1b8] sm:$0xff]
      %v8104 = vld [vmem:[#allocation3 + $0x1c0] sm:$0xff]
      %v8105 = vld [vmem:[#allocation3 + $0x1c8] sm:$0xff]
      %v8106 = vld [vmem:[#allocation3 + $0x1d0] sm:$0xff]
      %v8107 = vld [vmem:[#allocation3 + $0x1d8] sm:$0xff]
      %v8108 = vld [vmem:[%s57] sm:$0x3]
      %v8110 = vlaneseq
      %v8111 = vshrl.u32 %v8110, 7
      %v8112 = vsub.s32 0, %v8111
      %v8113 = vrot.slane %v8108, %v8112
      %v8114 = vlaneseq
      %v8115 = vshrl.u32 %v8114, 7
      %v8116 = vsub.s32 1, %v8115
      %v8117 = vrot.slane %v8108, %v8116
      %v8119 = vsel %vm1154, %v8117, 0
      %8121 = vmatprep.subr.mxu0 %v8079
      %8122 = vmatpush1.msra.mxu0 %v8078
      %8123 = vmatprep.subr.mxu0 %v8077
      %8124 = vmatpush1.msra.mxu0 %v8076
      %8125 = vmatprep.subr.mxu0 %v8075
      %8126 = vmatpush1.msra.mxu0 %v8074
      %8127 = vmatprep.subr.mxu0 %v8073
      %8128 = vmatpush1.msra.mxu0 %v8072
      %8129 = vmatprep.subr.mxu0 %v8071
      %8130 = vmatpush1.msra.mxu0 %v8070
      %8131 = vmatprep.subr.mxu0 %v8069
      %8132 = vmatpush1.msra.mxu0 %v8068
      %8133 = vmatprep.subr.mxu0 %v8067
      %8134 = vmatpush1.msra.mxu0 %v8066
      %8135 = vmatprep.subr.mxu0 %v8065
      %8136 = vmatpush1.msra.mxu0 %v8064
      %8137 = vmatprep.subr.mxu0 %v8063
      %8138 = vmatpush1.msra.mxu0 %v8062
      %8139 = vmatprep.subr.mxu0 %v8061
      %8140 = vmatpush1.msra.mxu0 %v8060
      %8141 = vmatprep.subr.mxu0 %v8059
      %8142 = vmatpush1.msra.mxu0 %v8058
      %8143 = vmatprep.subr.mxu0 %v8057
      %8144 = vmatpush1.msra.mxu0 %v8056
      %8145 = vmatprep.subr.mxu0 %v8055
      %8146 = vmatpush1.msra.mxu0 %v8054
      %8147 = vmatprep.subr.mxu0 %v8053
      %8148 = vmatpush1.msra.mxu0 %v8052
      %8149 = vmatprep.subr.mxu0 %v8051
      %8150 = vmatpush1.msra.mxu0 %v8050
      %8151 = vmatprep.subr.mxu0 %v8049
      %8152 = vmatpush1.msra.mxu0 %v8048
      %8153 = vmatprep.subr.mxu0 0.0
      %8154 = vmatpush2.msra.mxu0 0.0
      %8155 = vmatprep.subr.mxu0 0.0
      %8156 = vmatpush2.msra.mxu0 0.0
      %8157 = vmatprep.subr.mxu0 %v8107
      %8158 = vmatpush2.msra.mxu0 %v8106
      %8159 = vmatprep.subr.mxu0 %v8105
      %8160 = vmatpush2.msra.mxu0 %v8104
      %8161 = vmatprep.subr.mxu0 %v8103
      %8162 = vmatpush2.msra.mxu0 %v8102
      %8163 = vmatprep.subr.mxu0 %v8101
      %8164 = vmatpush2.msra.mxu0 %v8100
      %8165 = vmatprep.subr.mxu0 %v8099
      %8166 = vmatpush2.msra.mxu0 %v8098
      %8167 = vmatprep.subr.mxu0 %v8097
      %8168 = vmatpush2.msra.mxu0 %v8096
      %8169 = vmatprep.subr.mxu0 %v8095
      %8170 = vmatpush2.msra.mxu0 %v8094
      %8171 = vmatprep.subr.mxu0 %v8093
      %8172 = vmatpush2.msra.mxu0 %v8092
      %8173 = vmatprep.subr.mxu0 %v8091
      %8174 = vmatpush2.msra.mxu0 %v8090
      %8175 = vmatprep.subr.mxu0 %v8089
      %8176 = vmatpush2.msra.mxu0 %v8088
      %8177 = vmatprep.subr.mxu0 %v8087
      %8178 = vmatpush2.msra.mxu0 %v8086
      %8179 = vmatprep.subr.mxu0 %v8085
      %8180 = vmatpush2.msra.mxu0 %v8084
      %8181 = vmatprep.subr.mxu0 %v8083
      %8182 = vmatpush2.msra.mxu0 %v8082
      %8183 = vmatprep.subr.mxu0 %v8081
      %8184 = vmatpush2.msra.mxu0 %v8080
      %8185 = vmatprep.mubr.f32.mxu0 %v8119
      %8186 = vmatmul.mubr.f32.gmra.mxu0 %v8113
      %v8187 = vpop.f32.mrf.mxu0
      %v8188 = vadd.f32 0.0, %v8187
      %v8189 = vpop.f32.mrf.mxu0
      %v8190 = vadd.f32 0.0, %v8189
      %8191 = vdwg.mxu0
      %v8192 = vld [vmem:[#allocation4] sm:$0x1]
      %8194 = vset.pattern.permute.xlu0 0
      %8195 = vperm.xlu0 %8194, %v8192
      %v8196 = vpop.permute.xlu0 %8195
      %v8198 = vlaneseq
      %v8199 = vshrl.u32 %v8198, 7
      %v8200 = vsub.s32 0, %v8199
      %v8201 = vrot.slane %v8196, %v8200
      %v8202 = vmul.f32 %v8188, %v8201
      %v8203 = vmul.f32 %v8190, %v8201
      %v8204 = vld [vmem:[#allocation5] sm:$0x1]
      %8206 = vset.pattern.permute.xlu0 0
      %8207 = vperm.xlu0 %8206, %v8204
      %v8208 = vpop.permute.xlu0 %8207
      %v8210 = vlaneseq
      %v8211 = vshrl.u32 %v8210, 7
      %v8212 = vsub.s32 0, %v8211
      %v8213 = vrot.slane %v8208, %v8212
      %v8214 = vadd.f32 %v8202, %v8213
      %v8215 = vadd.f32 %v8203, %v8213
      %v8216 = vmax.f32 %v8214, 0.0
      %v8217 = vmax.f32 %v8215, 0.0
      %v8218 = vand.u32 2147483647, %v8214
      %v8219 = vand.u32 2147483647, %v8215
      %v8220 = vsub.f32 0.0, %v8218
      %v8221 = vsub.f32 0.0, %v8219
      %v8222 = vmul.f32 %v8220, 1.442695
      %v8223 = vpow.pop %v8222
      %v8224 = vmul.f32 %v8221, 1.442695
      %v8225 = vpow.pop %v8224
      %v8226 = vadd.f32 %v8223, 1.0
      %v8227 = vlog2.pop %v8226
      %v8228 = vmul.f32 %v8227, 0.6931472
      %v8229 = vmul.f32 -0.5, %v8223
      %v8230 = vadd.f32 %v8229, 1.0
      %v8231 = vmul.f32 %v8230, %v8223
      %v8232 = vand.u32 2147483647, %v8223
      %vm8233 = vcmp.lt.f32.partialorder %v8232, 0.0004427343
      %v8234 = vsel %vm8233, %v8231, %v8228
      %v8235 = vadd.f32 %v8225, 1.0
      %v8236 = vlog2.pop %v8235
      %v8237 = vmul.f32 %v8236, 0.6931472
      %v8238 = vmul.f32 -0.5, %v8225
      %v8239 = vadd.f32 %v8238, 1.0
      %v8240 = vmul.f32 %v8239, %v8225
      %v8241 = vand.u32 2147483647, %v8225
      %vm8242 = vcmp.lt.f32.partialorder %v8241, 0.0004427343
      %v8243 = vsel %vm8242, %v8240, %v8237
      %v8244 = vadd.f32 %v8216, %v8234
      %v8245 = vadd.f32 %v8217, %v8243
      %v8248 = vcombine.low %v8244, %v8245
      %v8250 = vunpack.c.l.s4 1966171168
      %v8251 = vunpack.c.0.s8 %v8250
      %v8252 = vlaneseq
      %v8253 = vshrl.u32 %v8252, 7
      %v8254 = vsub.s32 %v8251, %v8253
      %v8255 = vrot.slane %v8248, %v8254
      %v8257 = vunpack.c.l.s4 1966171168
      %v8258 = vunpack.c.0.s8 %v8257
      %v8259 = vlaneseq
      %v8260 = vshrl.u32 %v8259, 7
      %v8261 = vsub.s32 %v8258, %v8260
      %v8262 = vrot.slane %v8255, %v8261
      %8264 = vst.msk [vmem:[%s957] sm:$0x3] %vm981, %v8262
      %p8265 = scmp.lt.s32.totalorder %s78, 1
      %s8266 = scalar_select %p8265, %s78, 1
      %s8267 = smul.addr %s8266, 2
      %s8268 = scalar_lea.vmem %s63, %s8267
      // Predicated region
      $region145: #{unet3sc_forward.1} parent=143 // pred_check
        %p8269 = pneg %p752
      $region146: #{unet3sc_forward.1} parent=143 // pred_check_branch
        %8271 = sbr.rel (%p8269) target = $region148
      $region147: #{unet3sc_forward.1} parent=143 // pred_region
        _
      $region148: #{unet3sc_forward.1} parent=143 // pred_fallthru
        _
    $region144: #{unet3sc_forward.1} parent=5 // pred_fallthru
      _
    %p8272 = scmp.le.s32.totalorder 2, %s73
    // Predicated region
    $region149: #{unet3sc_forward.1} parent=5 // pred_check
      %p8273 = pneg %p8272
    $region150: #{unet3sc_forward.1} parent=5 // pred_check_branch
      %8275 = sbr.rel (%p8273) target = $region152
    $region151: #{unet3sc_forward.1} parent=5 // pred_region
      %s8276 = ssub.s32 %s73, 2
      // Predicated region
      $region153: #{unet3sc_forward.1} parent=151 // pred_check
        %p8277 = pneg %p758
      $region154: #{unet3sc_forward.1} parent=151 // pred_check_branch
        %8279 = sbr.rel (%p8277) target = $region156
      $region155: #{unet3sc_forward.1} parent=151 // pred_region
        %p8280 = scmp.lt.s32.totalorder %s79, 1
        %s8281 = scalar_select %p8280, %s79, 1
        %s8282 = smul.addr %s8281, 2
        %s8283 = scalar_lea.vmem %s63, %s8282
      $region156: #{unet3sc_forward.1} parent=151 // pred_fallthru
        _
    $region152: #{unet3sc_forward.1} parent=5 // pred_fallthru
      _
  $region6: #{unet3sc_forward.1} parent=0 // loop_footer
    %s77 = sadd.s32 1, %s73
  $region7: #{unet3sc_forward.1} parent=0 // loop_footer_branch
    %72 = sbr.rel target = $region3
  $region8: #{unet3sc_forward.1} parent=0 // loop_exit
    _

</llo_original>
